<compile_context>
chip_gen: v7x
topology: tpu7x:2x2x1
jax: 0.10.0
libtpu: 0.0.40
codegen_flags: <defaults>
</compile_context>

<pallas_src>
import functools

import jax
import jax.numpy as jnp
from jax.experimental import pallas as pl
from jax.experimental.pallas import tpu as pltpu


def _round_up(v, m):
    return ((v + m - 1) // m) * m


# ---------------------------------------------------------------------------
# Pallas kernels
# ---------------------------------------------------------------------------
def _gemm_bias_act_kernel(x_ref, w_ref, b_ref, o_ref, *, apply_relu):
    """o = x @ w + b (optional ReLU).  bf16 operands, f32 accumulation."""
    acc = jnp.dot(x_ref[...], w_ref[...], preferred_element_type=jnp.float32)
    acc = acc + b_ref[...]
    if apply_relu:
        acc = jnp.maximum(acc, 0.0)
    o_ref[...] = acc.astype(o_ref.dtype)


def _max9_kernel(v00, v01, v02, v10, v11, v12, v20, v21, v22, o_ref):
    """Elementwise max over the 9 shifted 3x3 pooling window views."""
    m0 = jnp.maximum(jnp.maximum(v00[...], v01[...]), v02[...])
    m1 = jnp.maximum(jnp.maximum(v10[...], v11[...]), v12[...])
    m2 = jnp.maximum(jnp.maximum(v20[...], v21[...]), v22[...])
    o_ref[...] = jnp.maximum(jnp.maximum(m0, m1), m2)


# ---------------------------------------------------------------------------
# Fused grouped GEMM (+bias +ReLU) wrapper
# ---------------------------------------------------------------------------
def _conv_gemm(patches, wmat, bias, apply_relu):
    """patches:(G,Mp,K) bf16, wmat:(G,K,Nc) bf16, bias:(G,1,Nc) f32 -> (G,Mp,Nc) bf16."""
    G, Mp, K = patches.shape
    Nc = wmat.shape[-1]
    tm = Mp if Mp <= 512 else 512                     # Mp is a multiple of 512 then
    tn = 128 if (Nc > 128 and Nc % 128 == 0) else Nc  # lane-dense output tiles
    grid = (G, Mp // tm, Nc // tn)
    return pl.pallas_call(
        functools.partial(_gemm_bias_act_kernel, apply_relu=apply_relu),
        out_shape=jax.ShapeDtypeStruct((G, Mp, Nc), jnp.bfloat16),
        grid=grid,
        in_specs=[
            pl.BlockSpec((None, tm, K), lambda g, i, n: (g, i, 0)),   # patches
            pl.BlockSpec((None, K, tn), lambda g, i, n: (g, 0, n)),   # weights
            pl.BlockSpec((None, 1, tn), lambda g, i, n: (g, 0, n)),   # bias row
        ],
        out_specs=pl.BlockSpec((None, tm, tn), lambda g, i, n: (g, i, n)),
        compiler_params=pltpu.CompilerParams(
            dimension_semantics=("parallel", "parallel", "parallel")),
    )(patches, wmat, bias)


# ---------------------------------------------------------------------------
# Conv / pool layers (NHWC)
# ---------------------------------------------------------------------------
def _im2col_nhwc(x, kh, kw, stride):
    """x:(N,Hp,Wp,C) -> (N*OH*OW, KH*KW*C); K ordered (kh, kw, c), channels last."""
    N, Hp, Wp, C = x.shape
    OH = (Hp - kh) // stride + 1
    OW = (Wp - kw) // stride + 1
    taps = []
    for i in range(kh):
        for j in range(kw):
            taps.append(x[:, i:i + stride * (OH - 1) + 1:stride,
                             j:j + stride * (OW - 1) + 1:stride, :])
    p = jnp.stack(taps, axis=3)                       # (N, OH, OW, KH*KW, C)
    return p.reshape(N * OH * OW, kh * kw * C), OH, OW


def conv2d_nhwc(x, w, b, stride=1, padding=0, groups=1, relu=False):
    """torch.nn.Conv2d semantics on NHWC activations; weight (Cout,Cin/g,KH,KW)."""
    N = x.shape[0]
    Cout, Cin_g, KH, KW = w.shape
    Cout_g = Cout // groups
    if padding:
        x = jnp.pad(x, ((0, 0), (padding, padding), (padding, padding), (0, 0)))

    pats, OH, OW = [], None, None
    for g in range(groups):
        xg = x[..., g * Cin_g:(g + 1) * Cin_g]        # trailing pad channels ignored
        pm, OH, OW = _im2col_nhwc(xg, KH, KW, stride)
        pats.append(pm)

    M = N * OH * OW
    K = KH * KW * Cin_g
    Mp = M if M <= 512 else _round_up(M, 512)

    patches = jnp.stack(pats, axis=0).astype(jnp.bfloat16)        # (G, M, K)
    if Mp != M:
        patches = jnp.pad(patches, ((0, 0), (0, Mp - M), (0, 0)))

    # (Cout, Cin_g, KH, KW) -> (G, KH*KW*Cin_g, Cout_g), K ordered (kh, kw, c).
    wmat = (w.reshape(groups, Cout_g, Cin_g, KH, KW)
              .transpose(0, 3, 4, 2, 1)
              .reshape(groups, K, Cout_g)
              .astype(jnp.bfloat16))
    bias = b.reshape(groups, 1, Cout_g).astype(jnp.float32)

    out = _conv_gemm(patches, wmat, bias, relu)                    # (G, Mp, Cout_g)
    if Mp != M:
        out = out[:, :M]
    return out.transpose(1, 0, 2).reshape(N, OH, OW, groups * Cout_g)


def maxpool2d_nhwc(x, k=3, s=2):
    """MaxPool2d(kernel=3, stride=2, ceil_mode=False) on NHWC, lane-dense."""
    assert k == 3
    N, H, W, C = x.shape
    PH = (H - k) // s + 1
    PW = (W - k) // s + 1
    M = N * PH * PW
    views = [x[:, i:i + s * (PH - 1) + 1:s,
                  j:j + s * (PW - 1) + 1:s, :].reshape(M, C)
             for i in range(k) for j in range(k)]
    out = pl.pallas_call(
        _max9_kernel,
        out_shape=jax.ShapeDtypeStruct((M, C), x.dtype),
        grid=(1,),
        in_specs=[pl.BlockSpec((M, C), lambda i: (0, 0))] * (k * k),
        out_specs=pl.BlockSpec((M, C), lambda i: (0, 0)),
        compiler_params=pltpu.CompilerParams(
            dimension_semantics=("arbitrary",)),
    )(*views)
    return out.reshape(N, PH, PW, C)


# ---------------------------------------------------------------------------
# ALEXNET forward (Imagenet_matconvnet_alex up to conv5, then flatten)
# ---------------------------------------------------------------------------
def init_params(key):
    # Deterministic synthetic init (torch kaiming-uniform not replicated).
    shapes = {
        "w1": (96, 3, 11, 11), "b1": (96,),
        "w2": (256, 48, 5, 5), "b2": (256,),     # groups=2
        "w3": (384, 256, 3, 3), "b3": (384,),
        "w4": (384, 192, 3, 3), "b4": (384,),    # groups=2
        "w5": (256, 192, 3, 3), "b5": (256,),    # groups=2
    }
    # TODO(synk): fc6/fc7/fc8 exist in the torch module but are never reached by
    # ALEXNET.forward (it returns the conv5 output), so they are not created.
    params = {}
    for name, shp in shapes.items():
        key, sub = jax.random.split(key)
        scale = 0.02 if name.startswith("w") else 0.01
        params[name] = scale * jax.random.normal(sub, shp, dtype=jnp.float32)
    return params


@jax.jit
def alexnet_forward(x_nchw, params):
    N = x_nchw.shape[0]
    x = x_nchw.transpose(0, 2, 3, 1).astype(jnp.bfloat16)   # NHWC, bf16 compute

    # conv1: zero-pad Cout 96 -> 128 for lane-dense stores; the pad channels stay
    # zero through ReLU/pool1 and are never consumed (conv2 reads ch 0:48/48:96).
    w1 = jnp.pad(params["w1"], ((0, 32), (0, 0), (0, 0), (0, 0)))
    b1 = jnp.pad(params["b1"], ((0, 32),))

    x = conv2d_nhwc(x, w1, b1, stride=4, padding=0, groups=1, relu=True)
    x = maxpool2d_nhwc(x)                                               # pool1
    x = conv2d_nhwc(x, params["w2"], params["b2"], stride=1, padding=2,
                    groups=2, relu=True)
    x = maxpool2d_nhwc(x)                                               # pool2
    x = conv2d_nhwc(x, params["w3"], params["b3"], stride=1, padding=1,
                    groups=1, relu=True)
    x = conv2d_nhwc(x, params["w4"], params["b4"], stride=1, padding=1,
                    groups=2, relu=True)
    x = conv2d_nhwc(x, params["w5"], params["b5"], stride=1, padding=1,
                    groups=2, relu=False)        # forward returns x15 (no relu5)

    x = x.astype(jnp.float32)
    # torch flattens NCHW with .view(N, -1); reproduce that channel-major order.
    feats = x.transpose(0, 3, 1, 2).reshape(N, -1)
    # torch's ALEXNET.forward does `print(x.max())`; return it instead to keep
    # stdout clean.
    return feats, jnp.max(x)


if __name__ == "__main__":
    key = jax.random.PRNGKey(0)
    pkey, xkey = jax.random.split(key)
    params = init_params(pkey)

    # Small input consistent with the conv stack (3 input channels, spatial size
    # chosen so every layer has a valid output): (2, 3, 67, 67) NCHW.
    x = jax.random.normal(xkey, (2, 3, 67, 67), dtype=jnp.float32)

    feats, feats_max = alexnet_forward(x, params)
    jax.block_until_ready(feats)
    jax.block_until_ready(feats_max)

    assert feats.shape == (2, 256 * 3 * 3), feats.shape
    print("KERNEL_OK")
</pallas_src>

<mosaic_0001>
module attributes {stable_mosaic.version = 11 : i64} {
  func.func @_gemm_bias_act_kernel(%arg0: i32, %arg1: i32, %arg2: i32, %arg3: memref<1x450x363xbf16, #tpu.memory_space<vmem>>, %arg4: memref<1x363x128xbf16, #tpu.memory_space<vmem>>, %arg5: memref<1x1x128xf32, #tpu.memory_space<vmem>>, %arg6: memref<1x450x128xbf16, #tpu.memory_space<vmem>>) attributes {dimension_semantics = [#tpu.dimension_semantics<parallel>, #tpu.dimension_semantics<parallel>, #tpu.dimension_semantics<parallel>], iteration_bounds = array<i64: 1, 1, 1>, scalar_prefetch = 0 : i64, scratch_operands = 0 : i64, tpu.core_type = #tpu.core_type<tc>, window_params = [{transform_indices = @transform_0, window_bounds = array<i64: 1, 450, 363>}, {transform_indices = @transform_1, window_bounds = array<i64: 1, 363, 128>}, {transform_indices = @transform_2, window_bounds = array<i64: 1, 1, 128>}, {transform_indices = @transform_3, window_bounds = array<i64: 1, 450, 128>}]} {
    %c0 = arith.constant 0 : index
    %c0_0 = arith.constant 0 : index
    %c0_1 = arith.constant 0 : index
    %0 = vector.load %arg3[%c0, %c0_0, %c0_1] : memref<1x450x363xbf16, #tpu.memory_space<vmem>>, vector<1x450x363xbf16>
    %1 = vector.shape_cast %0 : vector<1x450x363xbf16> to vector<450x363xbf16>
    %c0_2 = arith.constant 0 : index
    %c0_3 = arith.constant 0 : index
    %c0_4 = arith.constant 0 : index
    %2 = vector.load %arg4[%c0_2, %c0_3, %c0_4] : memref<1x363x128xbf16, #tpu.memory_space<vmem>>, vector<1x363x128xbf16>
    %3 = vector.shape_cast %2 : vector<1x363x128xbf16> to vector<363x128xbf16>
    %cst = arith.constant dense<0.000000e+00> : vector<450x128xf32>
    %4 = tpu.matmul %1, %3, %cst {dimension_numbers = #tpu.dot_dimension_numbers<[1], [0], [0], [1], [0, 0, 1, 1], [], []>} : vector<450x363xbf16>, vector<363x128xbf16>, vector<450x128xf32> -> vector<450x128xf32>
    %c0_5 = arith.constant 0 : index
    %c0_6 = arith.constant 0 : index
    %c0_7 = arith.constant 0 : index
    %5 = vector.load %arg5[%c0_5, %c0_6, %c0_7] : memref<1x1x128xf32, #tpu.memory_space<vmem>>, vector<1x1x128xf32>
    %6 = vector.shape_cast %5 : vector<1x1x128xf32> to vector<1x128xf32>
    %7 = vector.broadcast %6 : vector<1x128xf32> to vector<450x128xf32>
    %8 = arith.addf %4, %7 : vector<450x128xf32>
    %cst_8 = arith.constant 0.000000e+00 : f32
    %9 = vector.broadcast %cst_8 : f32 to vector<450x128xf32>
    %10 = arith.maximumf %8, %9 : vector<450x128xf32>
    %11 = arith.truncf %10 : vector<450x128xf32> to vector<450x128xbf16>
    %c0_9 = arith.constant 0 : index
    %c0_10 = arith.constant 0 : index
    %c0_11 = arith.constant 0 : index
    %12 = vector.load %arg6[%c0_9, %c0_10, %c0_11] : memref<1x450x128xbf16, #tpu.memory_space<vmem>>, vector<1x450x128xbf16>
    %13 = vector.shape_cast %12 : vector<1x450x128xbf16> to vector<450x128xbf16>
    %14 = vector.shape_cast %11 : vector<450x128xbf16> to vector<1x450x128xbf16>
    tpu.vector_store %arg6[%c0_9, %c0_10, %c0_11], %14 {strides = array<i32>} : memref<1x450x128xbf16, #tpu.memory_space<vmem>>, vector<1x450x128xbf16>,
    return
  }
  func.func @transform_0(%arg0: i32, %arg1: i32, %arg2: i32) -> (i32, i32, i32) {
    %c0_i32 = arith.constant 0 : i32
    %c0_i32_0 = arith.constant 0 : i32
    return %arg0, %arg1, %c0_i32 : i32, i32, i32
  }
  func.func @transform_1(%arg0: i32, %arg1: i32, %arg2: i32) -> (i32, i32, i32) {
    %c0_i32 = arith.constant 0 : i32
    %c0_i32_0 = arith.constant 0 : i32
    return %arg0, %c0_i32, %arg2 : i32, i32, i32
  }
  func.func @transform_2(%arg0: i32, %arg1: i32, %arg2: i32) -> (i32, i32, i32) {
    %c0_i32 = arith.constant 0 : i32
    %c0_i32_0 = arith.constant 0 : i32
    return %arg0, %c0_i32, %arg2 : i32, i32, i32
  }
  func.func @transform_3(%arg0: i32, %arg1: i32, %arg2: i32) -> (i32, i32, i32) {
    %c0_i32 = arith.constant 0 : i32
    return %arg0, %arg1, %arg2 : i32, i32, i32
  }
}

module attributes {stable_mosaic.version = 11 : i64} {
  func.func @_max9_kernel(%arg0: i32, %arg1: memref<98x128xbf16, #tpu.memory_space<vmem>>, %arg2: memref<98x128xbf16, #tpu.memory_space<vmem>>, %arg3: memref<98x128xbf16, #tpu.memory_space<vmem>>, %arg4: memref<98x128xbf16, #tpu.memory_space<vmem>>, %arg5: memref<98x128xbf16, #tpu.memory_space<vmem>>, %arg6: memref<98x128xbf16, #tpu.memory_space<vmem>>, %arg7: memref<98x128xbf16, #tpu.memory_space<vmem>>, %arg8: memref<98x128xbf16, #tpu.memory_space<vmem>>, %arg9: memref<98x128xbf16, #tpu.memory_space<vmem>>, %arg10: memref<98x128xbf16, #tpu.memory_space<vmem>>) attributes {dimension_semantics = [#tpu.dimension_semantics<arbitrary>], iteration_bounds = array<i64: 1>, scalar_prefetch = 0 : i64, scratch_operands = 0 : i64, tpu.core_type = #tpu.core_type<tc>, window_params = [{pipeline_mode = #tpu.pipeline_mode<synchronous>, transform_indices = @transform_0, window_bounds = array<i64: 98, 128>}, {pipeline_mode = #tpu.pipeline_mode<synchronous>, transform_indices = @transform_1, window_bounds = array<i64: 98, 128>}, {pipeline_mode = #tpu.pipeline_mode<synchronous>, transform_indices = @transform_2, window_bounds = array<i64: 98, 128>}, {pipeline_mode = #tpu.pipeline_mode<synchronous>, transform_indices = @transform_3, window_bounds = array<i64: 98, 128>}, {pipeline_mode = #tpu.pipeline_mode<synchronous>, transform_indices = @transform_4, window_bounds = array<i64: 98, 128>}, {pipeline_mode = #tpu.pipeline_mode<synchronous>, transform_indices = @transform_5, window_bounds = array<i64: 98, 128>}, {pipeline_mode = #tpu.pipeline_mode<synchronous>, transform_indices = @transform_6, window_bounds = array<i64: 98, 128>}, {pipeline_mode = #tpu.pipeline_mode<synchronous>, transform_indices = @transform_7, window_bounds = array<i64: 98, 128>}, {pipeline_mode = #tpu.pipeline_mode<synchronous>, transform_indices = @transform_8, window_bounds = array<i64: 98, 128>}, {pipeline_mode = #tpu.pipeline_mode<synchronous>, transform_indices = @transform_9, window_bounds = array<i64: 98, 128>}]} {
    %c0 = arith.constant 0 : index
    %c0_0 = arith.constant 0 : index
    %0 = vector.load %arg1[%c0, %c0_0] : memref<98x128xbf16, #tpu.memory_space<vmem>>, vector<98x128xbf16>
    %c0_1 = arith.constant 0 : index
    %c0_2 = arith.constant 0 : index
    %1 = vector.load %arg2[%c0_1, %c0_2] : memref<98x128xbf16, #tpu.memory_space<vmem>>, vector<98x128xbf16>
    %2 = arith.maximumf %0, %1 : vector<98x128xbf16>
    %c0_3 = arith.constant 0 : index
    %c0_4 = arith.constant 0 : index
    %3 = vector.load %arg3[%c0_3, %c0_4] : memref<98x128xbf16, #tpu.memory_space<vmem>>, vector<98x128xbf16>
    %4 = arith.maximumf %2, %3 : vector<98x128xbf16>
    %c0_5 = arith.constant 0 : index
    %c0_6 = arith.constant 0 : index
    %5 = vector.load %arg4[%c0_5, %c0_6] : memref<98x128xbf16, #tpu.memory_space<vmem>>, vector<98x128xbf16>
    %c0_7 = arith.constant 0 : index
    %c0_8 = arith.constant 0 : index
    %6 = vector.load %arg5[%c0_7, %c0_8] : memref<98x128xbf16, #tpu.memory_space<vmem>>, vector<98x128xbf16>
    %7 = arith.maximumf %5, %6 : vector<98x128xbf16>
    %c0_9 = arith.constant 0 : index
    %c0_10 = arith.constant 0 : index
    %8 = vector.load %arg6[%c0_9, %c0_10] : memref<98x128xbf16, #tpu.memory_space<vmem>>, vector<98x128xbf16>
    %9 = arith.maximumf %7, %8 : vector<98x128xbf16>
    %c0_11 = arith.constant 0 : index
    %c0_12 = arith.constant 0 : index
    %10 = vector.load %arg7[%c0_11, %c0_12] : memref<98x128xbf16, #tpu.memory_space<vmem>>, vector<98x128xbf16>
    %c0_13 = arith.constant 0 : index
    %c0_14 = arith.constant 0 : index
    %11 = vector.load %arg8[%c0_13, %c0_14] : memref<98x128xbf16, #tpu.memory_space<vmem>>, vector<98x128xbf16>
    %12 = arith.maximumf %10, %11 : vector<98x128xbf16>
    %c0_15 = arith.constant 0 : index
    %c0_16 = arith.constant 0 : index
    %13 = vector.load %arg9[%c0_15, %c0_16] : memref<98x128xbf16, #tpu.memory_space<vmem>>, vector<98x128xbf16>
    %14 = arith.maximumf %12, %13 : vector<98x128xbf16>
    %15 = arith.maximumf %4, %9 : vector<98x128xbf16>
    %16 = arith.maximumf %15, %14 : vector<98x128xbf16>
    %c0_17 = arith.constant 0 : index
    %c0_18 = arith.constant 0 : index
    %17 = vector.load %arg10[%c0_17, %c0_18] : memref<98x128xbf16, #tpu.memory_space<vmem>>, vector<98x128xbf16>
    tpu.vector_store %arg10[%c0_17, %c0_18], %16 {strides = array<i32>} : memref<98x128xbf16, #tpu.memory_space<vmem>>, vector<98x128xbf16>,
    return
  }
  func.func @transform_0(%arg0: i32) -> (i32, i32) {
    %c0_i32 = arith.constant 0 : i32
    %c0_i32_0 = arith.constant 0 : i32
    %c0_i32_1 = arith.constant 0 : i32
    return %c0_i32, %c0_i32_0 : i32, i32
  }
  func.func @transform_1(%arg0: i32) -> (i32, i32) {
    %c0_i32 = arith.constant 0 : i32
    %c0_i32_0 = arith.constant 0 : i32
    %c0_i32_1 = arith.constant 0 : i32
    return %c0_i32, %c0_i32_0 : i32, i32
  }
  func.func @transform_2(%arg0: i32) -> (i32, i32) {
    %c0_i32 = arith.constant 0 : i32
    %c0_i32_0 = arith.constant 0 : i32
    %c0_i32_1 = arith.constant 0 : i32
    return %c0_i32, %c0_i32_0 : i32, i32
  }
  func.func @transform_3(%arg0: i32) -> (i32, i32) {
    %c0_i32 = arith.constant 0 : i32
    %c0_i32_0 = arith.constant 0 : i32
    %c0_i32_1 = arith.constant 0 : i32
    return %c0_i32, %c0_i32_0 : i32, i32
  }
  func.func @transform_4(%arg0: i32) -> (i32, i32) {
    %c0_i32 = arith.constant 0 : i32
    %c0_i32_0 = arith.constant 0 : i32
    %c0_i32_1 = arith.constant 0 : i32
    return %c0_i32, %c0_i32_0 : i32, i32
  }
  func.func @transform_5(%arg0: i32) -> (i32, i32) {
    %c0_i32 = arith.constant 0 : i32
    %c0_i32_0 = arith.constant 0 : i32
    %c0_i32_1 = arith.constant 0 : i32
    return %c0_i32, %c0_i32_0 : i32, i32
  }
  func.func @transform_6(%arg0: i32) -> (i32, i32) {
    %c0_i32 = arith.constant 0 : i32
    %c0_i32_0 = arith.constant 0 : i32
    %c0_i32_1 = arith.constant 0 : i32
    return %c0_i32, %c0_i32_0 : i32, i32
  }
  func.func @transform_7(%arg0: i32) -> (i32, i32) {
    %c0_i32 = arith.constant 0 : i32
    %c0_i32_0 = arith.constant 0 : i32
    %c0_i32_1 = arith.constant 0 : i32
    return %c0_i32, %c0_i32_0 : i32, i32
  }
  func.func @transform_8(%arg0: i32) -> (i32, i32) {
    %c0_i32 = arith.constant 0 : i32
    %c0_i32_0 = arith.constant 0 : i32
    %c0_i32_1 = arith.constant 0 : i32
    return %c0_i32, %c0_i32_0 : i32, i32
  }
  func.func @transform_9(%arg0: i32) -> (i32, i32) {
    %c0_i32 = arith.constant 0 : i32
    %c0_i32_0 = arith.constant 0 : i32
    %c0_i32_1 = arith.constant 0 : i32
    return %c0_i32, %c0_i32_0 : i32, i32
  }
}

module attributes {stable_mosaic.version = 11 : i64} {
  func.func @_gemm_bias_act_kernel(%arg0: i32, %arg1: i32, %arg2: i32, %arg3: memref<1x98x1200xbf16, #tpu.memory_space<vmem>>, %arg4: memref<1x1200x128xbf16, #tpu.memory_space<vmem>>, %arg5: memref<1x1x128xf32, #tpu.memory_space<vmem>>, %arg6: memref<1x98x128xbf16, #tpu.memory_space<vmem>>) attributes {dimension_semantics = [#tpu.dimension_semantics<parallel>, #tpu.dimension_semantics<parallel>, #tpu.dimension_semantics<parallel>], iteration_bounds = array<i64: 2, 1, 1>, scalar_prefetch = 0 : i64, scratch_operands = 0 : i64, tpu.core_type = #tpu.core_type<tc>, window_params = [{transform_indices = @transform_0, window_bounds = array<i64: 1, 98, 1200>}, {transform_indices = @transform_1, window_bounds = array<i64: 1, 1200, 128>}, {transform_indices = @transform_2, window_bounds = array<i64: 1, 1, 128>}, {transform_indices = @transform_3, window_bounds = array<i64: 1, 98, 128>}]} {
    %c0 = arith.constant 0 : index
    %c0_0 = arith.constant 0 : index
    %c0_1 = arith.constant 0 : index
    %0 = vector.load %arg3[%c0, %c0_0, %c0_1] : memref<1x98x1200xbf16, #tpu.memory_space<vmem>>, vector<1x98x1200xbf16>
    %1 = vector.shape_cast %0 : vector<1x98x1200xbf16> to vector<98x1200xbf16>
    %c0_2 = arith.constant 0 : index
    %c0_3 = arith.constant 0 : index
    %c0_4 = arith.constant 0 : index
    %2 = vector.load %arg4[%c0_2, %c0_3, %c0_4] : memref<1x1200x128xbf16, #tpu.memory_space<vmem>>, vector<1x1200x128xbf16>
    %3 = vector.shape_cast %2 : vector<1x1200x128xbf16> to vector<1200x128xbf16>
    %cst = arith.constant dense<0.000000e+00> : vector<98x128xf32>
    %4 = tpu.matmul %1, %3, %cst {dimension_numbers = #tpu.dot_dimension_numbers<[1], [0], [0], [1], [0, 0, 1, 1], [], []>} : vector<98x1200xbf16>, vector<1200x128xbf16>, vector<98x128xf32> -> vector<98x128xf32>
    %c0_5 = arith.constant 0 : index
    %c0_6 = arith.constant 0 : index
    %c0_7 = arith.constant 0 : index
    %5 = vector.load %arg5[%c0_5, %c0_6, %c0_7] : memref<1x1x128xf32, #tpu.memory_space<vmem>>, vector<1x1x128xf32>
    %6 = vector.shape_cast %5 : vector<1x1x128xf32> to vector<1x128xf32>
    %7 = vector.broadcast %6 : vector<1x128xf32> to vector<98x128xf32>
    %8 = arith.addf %4, %7 : vector<98x128xf32>
    %cst_8 = arith.constant 0.000000e+00 : f32
    %9 = vector.broadcast %cst_8 : f32 to vector<98x128xf32>
    %10 = arith.maximumf %8, %9 : vector<98x128xf32>
    %11 = arith.truncf %10 : vector<98x128xf32> to vector<98x128xbf16>
    %c0_9 = arith.constant 0 : index
    %c0_10 = arith.constant 0 : index
    %c0_11 = arith.constant 0 : index
    %12 = vector.load %arg6[%c0_9, %c0_10, %c0_11] : memref<1x98x128xbf16, #tpu.memory_space<vmem>>, vector<1x98x128xbf16>
    %13 = vector.shape_cast %12 : vector<1x98x128xbf16> to vector<98x128xbf16>
    %14 = vector.shape_cast %11 : vector<98x128xbf16> to vector<1x98x128xbf16>
    tpu.vector_store %arg6[%c0_9, %c0_10, %c0_11], %14 {strides = array<i32>} : memref<1x98x128xbf16, #tpu.memory_space<vmem>>, vector<1x98x128xbf16>,
    return
  }
  func.func @transform_0(%arg0: i32, %arg1: i32, %arg2: i32) -> (i32, i32, i32) {
    %c0_i32 = arith.constant 0 : i32
    %c0_i32_0 = arith.constant 0 : i32
    return %arg0, %arg1, %c0_i32 : i32, i32, i32
  }
  func.func @transform_1(%arg0: i32, %arg1: i32, %arg2: i32) -> (i32, i32, i32) {
    %c0_i32 = arith.constant 0 : i32
    %c0_i32_0 = arith.constant 0 : i32
    return %arg0, %c0_i32, %arg2 : i32, i32, i32
  }
  func.func @transform_2(%arg0: i32, %arg1: i32, %arg2: i32) -> (i32, i32, i32) {
    %c0_i32 = arith.constant 0 : i32
    %c0_i32_0 = arith.constant 0 : i32
    return %arg0, %c0_i32, %arg2 : i32, i32, i32
  }
  func.func @transform_3(%arg0: i32, %arg1: i32, %arg2: i32) -> (i32, i32, i32) {
    %c0_i32 = arith.constant 0 : i32
    return %arg0, %arg1, %arg2 : i32, i32, i32
  }
}

module attributes {stable_mosaic.version = 11 : i64} {
  func.func @_max9_kernel(%arg0: i32, %arg1: memref<18x256xbf16, #tpu.memory_space<vmem>>, %arg2: memref<18x256xbf16, #tpu.memory_space<vmem>>, %arg3: memref<18x256xbf16, #tpu.memory_space<vmem>>, %arg4: memref<18x256xbf16, #tpu.memory_space<vmem>>, %arg5: memref<18x256xbf16, #tpu.memory_space<vmem>>, %arg6: memref<18x256xbf16, #tpu.memory_space<vmem>>, %arg7: memref<18x256xbf16, #tpu.memory_space<vmem>>, %arg8: memref<18x256xbf16, #tpu.memory_space<vmem>>, %arg9: memref<18x256xbf16, #tpu.memory_space<vmem>>, %arg10: memref<18x256xbf16, #tpu.memory_space<vmem>>) attributes {dimension_semantics = [#tpu.dimension_semantics<arbitrary>], iteration_bounds = array<i64: 1>, scalar_prefetch = 0 : i64, scratch_operands = 0 : i64, tpu.core_type = #tpu.core_type<tc>, window_params = [{pipeline_mode = #tpu.pipeline_mode<synchronous>, transform_indices = @transform_0, window_bounds = array<i64: 18, 256>}, {pipeline_mode = #tpu.pipeline_mode<synchronous>, transform_indices = @transform_1, window_bounds = array<i64: 18, 256>}, {pipeline_mode = #tpu.pipeline_mode<synchronous>, transform_indices = @transform_2, window_bounds = array<i64: 18, 256>}, {pipeline_mode = #tpu.pipeline_mode<synchronous>, transform_indices = @transform_3, window_bounds = array<i64: 18, 256>}, {pipeline_mode = #tpu.pipeline_mode<synchronous>, transform_indices = @transform_4, window_bounds = array<i64: 18, 256>}, {pipeline_mode = #tpu.pipeline_mode<synchronous>, transform_indices = @transform_5, window_bounds = array<i64: 18, 256>}, {pipeline_mode = #tpu.pipeline_mode<synchronous>, transform_indices = @transform_6, window_bounds = array<i64: 18, 256>}, {pipeline_mode = #tpu.pipeline_mode<synchronous>, transform_indices = @transform_7, window_bounds = array<i64: 18, 256>}, {pipeline_mode = #tpu.pipeline_mode<synchronous>, transform_indices = @transform_8, window_bounds = array<i64: 18, 256>}, {pipeline_mode = #tpu.pipeline_mode<synchronous>, transform_indices = @transform_9, window_bounds = array<i64: 18, 256>}]} {
    %c0 = arith.constant 0 : index
    %c0_0 = arith.constant 0 : index
    %0 = vector.load %arg1[%c0, %c0_0] : memref<18x256xbf16, #tpu.memory_space<vmem>>, vector<18x256xbf16>
    %c0_1 = arith.constant 0 : index
    %c0_2 = arith.constant 0 : index
    %1 = vector.load %arg2[%c0_1, %c0_2] : memref<18x256xbf16, #tpu.memory_space<vmem>>, vector<18x256xbf16>
    %2 = arith.maximumf %0, %1 : vector<18x256xbf16>
    %c0_3 = arith.constant 0 : index
    %c0_4 = arith.constant 0 : index
    %3 = vector.load %arg3[%c0_3, %c0_4] : memref<18x256xbf16, #tpu.memory_space<vmem>>, vector<18x256xbf16>
    %4 = arith.maximumf %2, %3 : vector<18x256xbf16>
    %c0_5 = arith.constant 0 : index
    %c0_6 = arith.constant 0 : index
    %5 = vector.load %arg4[%c0_5, %c0_6] : memref<18x256xbf16, #tpu.memory_space<vmem>>, vector<18x256xbf16>
    %c0_7 = arith.constant 0 : index
    %c0_8 = arith.constant 0 : index
    %6 = vector.load %arg5[%c0_7, %c0_8] : memref<18x256xbf16, #tpu.memory_space<vmem>>, vector<18x256xbf16>
    %7 = arith.maximumf %5, %6 : vector<18x256xbf16>
    %c0_9 = arith.constant 0 : index
    %c0_10 = arith.constant 0 : index
    %8 = vector.load %arg6[%c0_9, %c0_10] : memref<18x256xbf16, #tpu.memory_space<vmem>>, vector<18x256xbf16>
    %9 = arith.maximumf %7, %8 : vector<18x256xbf16>
    %c0_11 = arith.constant 0 : index
    %c0_12 = arith.constant 0 : index
    %10 = vector.load %arg7[%c0_11, %c0_12] : memref<18x256xbf16, #tpu.memory_space<vmem>>, vector<18x256xbf16>
    %c0_13 = arith.constant 0 : index
    %c0_14 = arith.constant 0 : index
    %11 = vector.load %arg8[%c0_13, %c0_14] : memref<18x256xbf16, #tpu.memory_space<vmem>>, vector<18x256xbf16>
    %12 = arith.maximumf %10, %11 : vector<18x256xbf16>
    %c0_15 = arith.constant 0 : index
    %c0_16 = arith.constant 0 : index
    %13 = vector.load %arg9[%c0_15, %c0_16] : memref<18x256xbf16, #tpu.memory_space<vmem>>, vector<18x256xbf16>
    %14 = arith.maximumf %12, %13 : vector<18x256xbf16>
    %15 = arith.maximumf %4, %9 : vector<18x256xbf16>
    %16 = arith.maximumf %15, %14 : vector<18x256xbf16>
    %c0_17 = arith.constant 0 : index
    %c0_18 = arith.constant 0 : index
    %17 = vector.load %arg10[%c0_17, %c0_18] : memref<18x256xbf16, #tpu.memory_space<vmem>>, vector<18x256xbf16>
    tpu.vector_store %arg10[%c0_17, %c0_18], %16 {strides = array<i32>} : memref<18x256xbf16, #tpu.memory_space<vmem>>, vector<18x256xbf16>,
    return
  }
  func.func @transform_0(%arg0: i32) -> (i32, i32) {
    %c0_i32 = arith.constant 0 : i32
    %c0_i32_0 = arith.constant 0 : i32
    %c0_i32_1 = arith.constant 0 : i32
    return %c0_i32, %c0_i32_0 : i32, i32
  }
  func.func @transform_1(%arg0: i32) -> (i32, i32) {
    %c0_i32 = arith.constant 0 : i32
    %c0_i32_0 = arith.constant 0 : i32
    %c0_i32_1 = arith.constant 0 : i32
    return %c0_i32, %c0_i32_0 : i32, i32
  }
  func.func @transform_2(%arg0: i32) -> (i32, i32) {
    %c0_i32 = arith.constant 0 : i32
    %c0_i32_0 = arith.constant 0 : i32
    %c0_i32_1 = arith.constant 0 : i32
    return %c0_i32, %c0_i32_0 : i32, i32
  }
  func.func @transform_3(%arg0: i32) -> (i32, i32) {
    %c0_i32 = arith.constant 0 : i32
    %c0_i32_0 = arith.constant 0 : i32
    %c0_i32_1 = arith.constant 0 : i32
    return %c0_i32, %c0_i32_0 : i32, i32
  }
  func.func @transform_4(%arg0: i32) -> (i32, i32) {
    %c0_i32 = arith.constant 0 : i32
    %c0_i32_0 = arith.constant 0 : i32
    %c0_i32_1 = arith.constant 0 : i32
    return %c0_i32, %c0_i32_0 : i32, i32
  }
  func.func @transform_5(%arg0: i32) -> (i32, i32) {
    %c0_i32 = arith.constant 0 : i32
    %c0_i32_0 = arith.constant 0 : i32
    %c0_i32_1 = arith.constant 0 : i32
    return %c0_i32, %c0_i32_0 : i32, i32
  }
  func.func @transform_6(%arg0: i32) -> (i32, i32) {
    %c0_i32 = arith.constant 0 : i32
    %c0_i32_0 = arith.constant 0 : i32
    %c0_i32_1 = arith.constant 0 : i32
    return %c0_i32, %c0_i32_0 : i32, i32
  }
  func.func @transform_7(%arg0: i32) -> (i32, i32) {
    %c0_i32 = arith.constant 0 : i32
    %c0_i32_0 = arith.constant 0 : i32
    %c0_i32_1 = arith.constant 0 : i32
    return %c0_i32, %c0_i32_0 : i32, i32
  }
  func.func @transform_8(%arg0: i32) -> (i32, i32) {
    %c0_i32 = arith.constant 0 : i32
    %c0_i32_0 = arith.constant 0 : i32
    %c0_i32_1 = arith.constant 0 : i32
    return %c0_i32, %c0_i32_0 : i32, i32
  }
  func.func @transform_9(%arg0: i32) -> (i32, i32) {
    %c0_i32 = arith.constant 0 : i32
    %c0_i32_0 = arith.constant 0 : i32
    %c0_i32_1 = arith.constant 0 : i32
    return %c0_i32, %c0_i32_0 : i32, i32
  }
}

module attributes {stable_mosaic.version = 11 : i64} {
  func.func @_gemm_bias_act_kernel(%arg0: i32, %arg1: i32, %arg2: i32, %arg3: memref<1x18x2304xbf16, #tpu.memory_space<vmem>>, %arg4: memref<1x2304x128xbf16, #tpu.memory_space<vmem>>, %arg5: memref<1x1x128xf32, #tpu.memory_space<vmem>>, %arg6: memref<1x18x128xbf16, #tpu.memory_space<vmem>>) attributes {dimension_semantics = [#tpu.dimension_semantics<parallel>, #tpu.dimension_semantics<parallel>, #tpu.dimension_semantics<parallel>], iteration_bounds = array<i64: 1, 1, 3>, scalar_prefetch = 0 : i64, scratch_operands = 0 : i64, tpu.core_type = #tpu.core_type<tc>, window_params = [{transform_indices = @transform_0, window_bounds = array<i64: 1, 18, 2304>}, {transform_indices = @transform_1, window_bounds = array<i64: 1, 2304, 128>}, {transform_indices = @transform_2, window_bounds = array<i64: 1, 1, 128>}, {transform_indices = @transform_3, window_bounds = array<i64: 1, 18, 128>}]} {
    %c0 = arith.constant 0 : index
    %c0_0 = arith.constant 0 : index
    %c0_1 = arith.constant 0 : index
    %0 = vector.load %arg3[%c0, %c0_0, %c0_1] : memref<1x18x2304xbf16, #tpu.memory_space<vmem>>, vector<1x18x2304xbf16>
    %1 = vector.shape_cast %0 : vector<1x18x2304xbf16> to vector<18x2304xbf16>
    %c0_2 = arith.constant 0 : index
    %c0_3 = arith.constant 0 : index
    %c0_4 = arith.constant 0 : index
    %2 = vector.load %arg4[%c0_2, %c0_3, %c0_4] : memref<1x2304x128xbf16, #tpu.memory_space<vmem>>, vector<1x2304x128xbf16>
    %3 = vector.shape_cast %2 : vector<1x2304x128xbf16> to vector<2304x128xbf16>
    %cst = arith.constant dense<0.000000e+00> : vector<18x128xf32>
    %4 = tpu.matmul %1, %3, %cst {dimension_numbers = #tpu.dot_dimension_numbers<[1], [0], [0], [1], [0, 0, 1, 1], [], []>} : vector<18x2304xbf16>, vector<2304x128xbf16>, vector<18x128xf32> -> vector<18x128xf32>
    %c0_5 = arith.constant 0 : index
    %c0_6 = arith.constant 0 : index
    %c0_7 = arith.constant 0 : index
    %5 = vector.load %arg5[%c0_5, %c0_6, %c0_7] : memref<1x1x128xf32, #tpu.memory_space<vmem>>, vector<1x1x128xf32>
    %6 = vector.shape_cast %5 : vector<1x1x128xf32> to vector<1x128xf32>
    %7 = vector.broadcast %6 : vector<1x128xf32> to vector<18x128xf32>
    %8 = arith.addf %4, %7 : vector<18x128xf32>
    %cst_8 = arith.constant 0.000000e+00 : f32
    %9 = vector.broadcast %cst_8 : f32 to vector<18x128xf32>
    %10 = arith.maximumf %8, %9 : vector<18x128xf32>
    %11 = arith.truncf %10 : vector<18x128xf32> to vector<18x128xbf16>
    %c0_9 = arith.constant 0 : index
    %c0_10 = arith.constant 0 : index
    %c0_11 = arith.constant 0 : index
    %12 = vector.load %arg6[%c0_9, %c0_10, %c0_11] : memref<1x18x128xbf16, #tpu.memory_space<vmem>>, vector<1x18x128xbf16>
    %13 = vector.shape_cast %12 : vector<1x18x128xbf16> to vector<18x128xbf16>
    %14 = vector.shape_cast %11 : vector<18x128xbf16> to vector<1x18x128xbf16>
    tpu.vector_store %arg6[%c0_9, %c0_10, %c0_11], %14 {strides = array<i32>} : memref<1x18x128xbf16, #tpu.memory_space<vmem>>, vector<1x18x128xbf16>,
    return
  }
  func.func @transform_0(%arg0: i32, %arg1: i32, %arg2: i32) -> (i32, i32, i32) {
    %c0_i32 = arith.constant 0 : i32
    %c0_i32_0 = arith.constant 0 : i32
    return %arg0, %arg1, %c0_i32 : i32, i32, i32
  }
  func.func @transform_1(%arg0: i32, %arg1: i32, %arg2: i32) -> (i32, i32, i32) {
    %c0_i32 = arith.constant 0 : i32
    %c0_i32_0 = arith.constant 0 : i32
    return %arg0, %c0_i32, %arg2 : i32, i32, i32
  }
  func.func @transform_2(%arg0: i32, %arg1: i32, %arg2: i32) -> (i32, i32, i32) {
    %c0_i32 = arith.constant 0 : i32
    %c0_i32_0 = arith.constant 0 : i32
    return %arg0, %c0_i32, %arg2 : i32, i32, i32
  }
  func.func @transform_3(%arg0: i32, %arg1: i32, %arg2: i32) -> (i32, i32, i32) {
    %c0_i32 = arith.constant 0 : i32
    return %arg0, %arg1, %arg2 : i32, i32, i32
  }
}

module attributes {stable_mosaic.version = 11 : i64} {
  func.func @_gemm_bias_act_kernel(%arg0: i32, %arg1: i32, %arg2: i32, %arg3: memref<1x18x1728xbf16, #tpu.memory_space<vmem>>, %arg4: memref<1x1728x192xbf16, #tpu.memory_space<vmem>>, %arg5: memref<1x1x192xf32, #tpu.memory_space<vmem>>, %arg6: memref<1x18x192xbf16, #tpu.memory_space<vmem>>) attributes {dimension_semantics = [#tpu.dimension_semantics<parallel>, #tpu.dimension_semantics<parallel>, #tpu.dimension_semantics<parallel>], iteration_bounds = array<i64: 2, 1, 1>, scalar_prefetch = 0 : i64, scratch_operands = 0 : i64, tpu.core_type = #tpu.core_type<tc>, window_params = [{transform_indices = @transform_0, window_bounds = array<i64: 1, 18, 1728>}, {transform_indices = @transform_1, window_bounds = array<i64: 1, 1728, 192>}, {transform_indices = @transform_2, window_bounds = array<i64: 1, 1, 192>}, {transform_indices = @transform_3, window_bounds = array<i64: 1, 18, 192>}]} {
    %c0 = arith.constant 0 : index
    %c0_0 = arith.constant 0 : index
    %c0_1 = arith.constant 0 : index
    %0 = vector.load %arg3[%c0, %c0_0, %c0_1] : memref<1x18x1728xbf16, #tpu.memory_space<vmem>>, vector<1x18x1728xbf16>
    %1 = vector.shape_cast %0 : vector<1x18x1728xbf16> to vector<18x1728xbf16>
    %c0_2 = arith.constant 0 : index
    %c0_3 = arith.constant 0 : index
    %c0_4 = arith.constant 0 : index
    %2 = vector.load %arg4[%c0_2, %c0_3, %c0_4] : memref<1x1728x192xbf16, #tpu.memory_space<vmem>>, vector<1x1728x192xbf16>
    %3 = vector.shape_cast %2 : vector<1x1728x192xbf16> to vector<1728x192xbf16>
    %cst = arith.constant dense<0.000000e+00> : vector<18x192xf32>
    %4 = tpu.matmul %1, %3, %cst {dimension_numbers = #tpu.dot_dimension_numbers<[1], [0], [0], [1], [0, 0, 1, 1], [], []>} : vector<18x1728xbf16>, vector<1728x192xbf16>, vector<18x192xf32> -> vector<18x192xf32>
    %c0_5 = arith.constant 0 : index
    %c0_6 = arith.constant 0 : index
    %c0_7 = arith.constant 0 : index
    %5 = vector.load %arg5[%c0_5, %c0_6, %c0_7] : memref<1x1x192xf32, #tpu.memory_space<vmem>>, vector<1x1x192xf32>
    %6 = vector.shape_cast %5 : vector<1x1x192xf32> to vector<1x192xf32>
    %7 = vector.broadcast %6 : vector<1x192xf32> to vector<18x192xf32>
    %8 = arith.addf %4, %7 : vector<18x192xf32>
    %cst_8 = arith.constant 0.000000e+00 : f32
    %9 = vector.broadcast %cst_8 : f32 to vector<18x192xf32>
    %10 = arith.maximumf %8, %9 : vector<18x192xf32>
    %11 = arith.truncf %10 : vector<18x192xf32> to vector<18x192xbf16>
    %c0_9 = arith.constant 0 : index
    %c0_10 = arith.constant 0 : index
    %c0_11 = arith.constant 0 : index
    %12 = vector.load %arg6[%c0_9, %c0_10, %c0_11] : memref<1x18x192xbf16, #tpu.memory_space<vmem>>, vector<1x18x192xbf16>
    %13 = vector.shape_cast %12 : vector<1x18x192xbf16> to vector<18x192xbf16>
    %14 = vector.shape_cast %11 : vector<18x192xbf16> to vector<1x18x192xbf16>
    tpu.vector_store %arg6[%c0_9, %c0_10, %c0_11], %14 {strides = array<i32>} : memref<1x18x192xbf16, #tpu.memory_space<vmem>>, vector<1x18x192xbf16>,
    return
  }
  func.func @transform_0(%arg0: i32, %arg1: i32, %arg2: i32) -> (i32, i32, i32) {
    %c0_i32 = arith.constant 0 : i32
    %c0_i32_0 = arith.constant 0 : i32
    return %arg0, %arg1, %c0_i32 : i32, i32, i32
  }
  func.func @transform_1(%arg0: i32, %arg1: i32, %arg2: i32) -> (i32, i32, i32) {
    %c0_i32 = arith.constant 0 : i32
    %c0_i32_0 = arith.constant 0 : i32
    return %arg0, %c0_i32, %arg2 : i32, i32, i32
  }
  func.func @transform_2(%arg0: i32, %arg1: i32, %arg2: i32) -> (i32, i32, i32) {
    %c0_i32 = arith.constant 0 : i32
    %c0_i32_0 = arith.constant 0 : i32
    return %arg0, %c0_i32, %arg2 : i32, i32, i32
  }
  func.func @transform_3(%arg0: i32, %arg1: i32, %arg2: i32) -> (i32, i32, i32) {
    %c0_i32 = arith.constant 0 : i32
    return %arg0, %arg1, %arg2 : i32, i32, i32
  }
}

module attributes {stable_mosaic.version = 11 : i64} {
  func.func @_gemm_bias_act_kernel(%arg0: i32, %arg1: i32, %arg2: i32, %arg3: memref<1x18x1728xbf16, #tpu.memory_space<vmem>>, %arg4: memref<1x1728x128xbf16, #tpu.memory_space<vmem>>, %arg5: memref<1x1x128xf32, #tpu.memory_space<vmem>>, %arg6: memref<1x18x128xbf16, #tpu.memory_space<vmem>>) attributes {dimension_semantics = [#tpu.dimension_semantics<parallel>, #tpu.dimension_semantics<parallel>, #tpu.dimension_semantics<parallel>], iteration_bounds = array<i64: 2, 1, 1>, scalar_prefetch = 0 : i64, scratch_operands = 0 : i64, tpu.core_type = #tpu.core_type<tc>, window_params = [{transform_indices = @transform_0, window_bounds = array<i64: 1, 18, 1728>}, {transform_indices = @transform_1, window_bounds = array<i64: 1, 1728, 128>}, {transform_indices = @transform_2, window_bounds = array<i64: 1, 1, 128>}, {transform_indices = @transform_3, window_bounds = array<i64: 1, 18, 128>}]} {
    %c0 = arith.constant 0 : index
    %c0_0 = arith.constant 0 : index
    %c0_1 = arith.constant 0 : index
    %0 = vector.load %arg3[%c0, %c0_0, %c0_1] : memref<1x18x1728xbf16, #tpu.memory_space<vmem>>, vector<1x18x1728xbf16>
    %1 = vector.shape_cast %0 : vector<1x18x1728xbf16> to vector<18x1728xbf16>
    %c0_2 = arith.constant 0 : index
    %c0_3 = arith.constant 0 : index
    %c0_4 = arith.constant 0 : index
    %2 = vector.load %arg4[%c0_2, %c0_3, %c0_4] : memref<1x1728x128xbf16, #tpu.memory_space<vmem>>, vector<1x1728x128xbf16>
    %3 = vector.shape_cast %2 : vector<1x1728x128xbf16> to vector<1728x128xbf16>
    %cst = arith.constant dense<0.000000e+00> : vector<18x128xf32>
    %4 = tpu.matmul %1, %3, %cst {dimension_numbers = #tpu.dot_dimension_numbers<[1], [0], [0], [1], [0, 0, 1, 1], [], []>} : vector<18x1728xbf16>, vector<1728x128xbf16>, vector<18x128xf32> -> vector<18x128xf32>
    %c0_5 = arith.constant 0 : index
    %c0_6 = arith.constant 0 : index
    %c0_7 = arith.constant 0 : index
    %5 = vector.load %arg5[%c0_5, %c0_6, %c0_7] : memref<1x1x128xf32, #tpu.memory_space<vmem>>, vector<1x1x128xf32>
    %6 = vector.shape_cast %5 : vector<1x1x128xf32> to vector<1x128xf32>
    %7 = vector.broadcast %6 : vector<1x128xf32> to vector<18x128xf32>
    %8 = arith.addf %4, %7 : vector<18x128xf32>
    %9 = arith.truncf %8 : vector<18x128xf32> to vector<18x128xbf16>
    %c0_8 = arith.constant 0 : index
    %c0_9 = arith.constant 0 : index
    %c0_10 = arith.constant 0 : index
    %10 = vector.load %arg6[%c0_8, %c0_9, %c0_10] : memref<1x18x128xbf16, #tpu.memory_space<vmem>>, vector<1x18x128xbf16>
    %11 = vector.shape_cast %10 : vector<1x18x128xbf16> to vector<18x128xbf16>
    %12 = vector.shape_cast %9 : vector<18x128xbf16> to vector<1x18x128xbf16>
    tpu.vector_store %arg6[%c0_8, %c0_9, %c0_10], %12 {strides = array<i32>} : memref<1x18x128xbf16, #tpu.memory_space<vmem>>, vector<1x18x128xbf16>,
    return
  }
  func.func @transform_0(%arg0: i32, %arg1: i32, %arg2: i32) -> (i32, i32, i32) {
    %c0_i32 = arith.constant 0 : i32
    %c0_i32_0 = arith.constant 0 : i32
    return %arg0, %arg1, %c0_i32 : i32, i32, i32
  }
  func.func @transform_1(%arg0: i32, %arg1: i32, %arg2: i32) -> (i32, i32, i32) {
    %c0_i32 = arith.constant 0 : i32
    %c0_i32_0 = arith.constant 0 : i32
    return %arg0, %c0_i32, %arg2 : i32, i32, i32
  }
  func.func @transform_2(%arg0: i32, %arg1: i32, %arg2: i32) -> (i32, i32, i32) {
    %c0_i32 = arith.constant 0 : i32
    %c0_i32_0 = arith.constant 0 : i32
    return %arg0, %c0_i32, %arg2 : i32, i32, i32
  }
  func.func @transform_3(%arg0: i32, %arg1: i32, %arg2: i32) -> (i32, i32, i32) {
    %c0_i32 = arith.constant 0 : i32
    return %arg0, %arg1, %arg2 : i32, i32, i32
  }
}

</mosaic_0001>

<llo_original>
// kernel: alexnet_forward.7
$region0: #{alexnet_forward.7}
  #allocation0 [shape = 'u32[]', space=smem, size = 0x4, offset = 0x4, fixed_abs, tag = 'smem constant byte address 0x4 - core index']
  #allocation1 [shape = 'u32[144,128]{1,0:T(1,128)}', space=vmem, size = 0x12000, scoped, tag = 'internal scratch']
  %s0 = inlined_call_operand.vmem [shape: bf16[1,450,363], index: 0, kind: input, shape index: {}]
  %s1 = inlined_call_operand.vmem [shape: bf16[1,363,128], index: 1, kind: input, shape index: {}]
  %s2 = inlined_call_operand.vmem [shape: f32[1,1,128], index: 2, kind: input, shape index: {}]
  %s3 = inlined_call_operand.vmem [shape: bf16[1,450,128], index: 3, kind: output, shape index: {}]
  %s4 = sld [smem:[#allocation0]]
  $region22: #{alexnet_forward.7} parent=0
    _
  %s6 = ssub.s32 1, %s4
  %s7 = scalar_select 0, %s6, %s4
  // Predicated region
  $region2: #{alexnet_forward.7} parent=0 // pred_check
    _
  $region3: #{alexnet_forward.7} parent=0 // pred_check_branch
    %9 = sbr.rel (0) target = $region5
  $region4: #{alexnet_forward.7} parent=0 // pred_region
    _
  $region5: #{alexnet_forward.7} parent=0 // pred_fallthru
    _
  // Predicated region
  $region6: #{alexnet_forward.7} parent=0 // pred_check
    _
  $region7: #{alexnet_forward.7} parent=0 // pred_check_branch
    %11 = sbr.rel (0) target = $region9
  $region8: #{alexnet_forward.7} parent=0 // pred_region
    _
  $region9: #{alexnet_forward.7} parent=0 // pred_fallthru
    _
  // Predicated region
  $region10: #{alexnet_forward.7} parent=0 // pred_check
    _
  $region11: #{alexnet_forward.7} parent=0 // pred_check_branch
    %13 = sbr.rel (0) target = $region13
  $region12: #{alexnet_forward.7} parent=0 // pred_region
    _
  $region13: #{alexnet_forward.7} parent=0 // pred_fallthru
    _
  %v15 = vld [vmem:[%s0] sm:$0xff]
  %v16 = vld [vmem:[%s0 + $0x8] sm:$0xf]
  %v17 = vld [vmem:[%s0 + $0xc] sm:$0xff]
  %v18 = vld [vmem:[%s0 + $0x14] sm:$0xf]
  %v19 = vld [vmem:[%s0 + $0x18] sm:$0xff]
  %v20 = vld [vmem:[%s0 + $0x20] sm:$0xf]
  %v21 = vld [vmem:[%s0 + $0x24] sm:$0xff]
  %v22 = vld [vmem:[%s0 + $0x2c] sm:$0xf]
  %v23 = vld [vmem:[%s0 + $0x30] sm:$0xff]
  %v24 = vld [vmem:[%s0 + $0x38] sm:$0xf]
  %v25 = vld [vmem:[%s0 + $0x3c] sm:$0xff]
  %v26 = vld [vmem:[%s0 + $0x44] sm:$0xf]
  %v27 = vld [vmem:[%s0 + $0x48] sm:$0xff]
  %v28 = vld [vmem:[%s0 + $0x50] sm:$0xf]
  %v29 = vld [vmem:[%s0 + $0x54] sm:$0xff]
  %v30 = vld [vmem:[%s0 + $0x5c] sm:$0xf]
  %v31 = vld [vmem:[%s0 + $0x60] sm:$0xff]
  %v32 = vld [vmem:[%s0 + $0x68] sm:$0xf]
  %v33 = vld [vmem:[%s0 + $0x6c] sm:$0xff]
  %v34 = vld [vmem:[%s0 + $0x74] sm:$0xf]
  %v35 = vld [vmem:[%s0 + $0x78] sm:$0xff]
  %v36 = vld [vmem:[%s0 + $0x80] sm:$0xf]
  %v37 = vld [vmem:[%s0 + $0x84] sm:$0xff]
  %v38 = vld [vmem:[%s0 + $0x8c] sm:$0xf]
  %v39 = vld [vmem:[%s0 + $0x90] sm:$0xff]
  %v40 = vld [vmem:[%s0 + $0x98] sm:$0xf]
  %v41 = vld [vmem:[%s0 + $0x9c] sm:$0xff]
  %v42 = vld [vmem:[%s0 + $0xa4] sm:$0xf]
  %v43 = vld [vmem:[%s0 + $0xa8] sm:$0xff]
  %v44 = vld [vmem:[%s0 + $0xb0] sm:$0xf]
  %v45 = vld [vmem:[%s0 + $0xb4] sm:$0xff]
  %v46 = vld [vmem:[%s0 + $0xbc] sm:$0xf]
  %v47 = vld [vmem:[%s0 + $0xc0] sm:$0xff]
  %v48 = vld [vmem:[%s0 + $0xc8] sm:$0xf]
  %v49 = vld [vmem:[%s0 + $0xcc] sm:$0xff]
  %v50 = vld [vmem:[%s0 + $0xd4] sm:$0xf]
  %v51 = vld [vmem:[%s0 + $0xd8] sm:$0xff]
  %v52 = vld [vmem:[%s0 + $0xe0] sm:$0xf]
  %v53 = vld [vmem:[%s0 + $0xe4] sm:$0xff]
  %v54 = vld [vmem:[%s0 + $0xec] sm:$0xf]
  %v55 = vld [vmem:[%s0 + $0xf0] sm:$0xff]
  %v56 = vld [vmem:[%s0 + $0xf8] sm:$0xf]
  %v57 = vld [vmem:[%s0 + $0xfc] sm:$0xff]
  %v58 = vld [vmem:[%s0 + $0x104] sm:$0xf]
  %v59 = vld [vmem:[%s0 + $0x108] sm:$0xff]
  %v60 = vld [vmem:[%s0 + $0x110] sm:$0xf]
  %v61 = vld [vmem:[%s0 + $0x114] sm:$0xff]
  %v62 = vld [vmem:[%s0 + $0x11c] sm:$0xf]
  %v63 = vld [vmem:[%s0 + $0x120] sm:$0xff]
  %v64 = vld [vmem:[%s0 + $0x128] sm:$0xf]
  %v65 = vld [vmem:[%s0 + $0x12c] sm:$0xff]
  %v66 = vld [vmem:[%s0 + $0x134] sm:$0xf]
  %v67 = vld [vmem:[%s0 + $0x138] sm:$0xff]
  %v68 = vld [vmem:[%s0 + $0x140] sm:$0xf]
  %v69 = vld [vmem:[%s0 + $0x144] sm:$0xff]
  %v70 = vld [vmem:[%s0 + $0x14c] sm:$0xf]
  %v71 = vld [vmem:[%s0 + $0x150] sm:$0xff]
  %v72 = vld [vmem:[%s0 + $0x158] sm:$0xf]
  %v73 = vld [vmem:[%s0 + $0x15c] sm:$0xff]
  %v74 = vld [vmem:[%s0 + $0x164] sm:$0xf]
  %v75 = vld [vmem:[%s0 + $0x168] sm:$0xff]
  %v76 = vld [vmem:[%s0 + $0x170] sm:$0xf]
  %v77 = vld [vmem:[%s0 + $0x174] sm:$0xff]
  %v78 = vld [vmem:[%s0 + $0x17c] sm:$0xf]
  %v79 = vld [vmem:[%s0 + $0x180] sm:$0xff]
  %v80 = vld [vmem:[%s0 + $0x188] sm:$0xf]
  %v81 = vld [vmem:[%s0 + $0x18c] sm:$0xff]
  %v82 = vld [vmem:[%s0 + $0x194] sm:$0xf]
  %v83 = vld [vmem:[%s0 + $0x198] sm:$0xff]
  %v84 = vld [vmem:[%s0 + $0x1a0] sm:$0xf]
  %v85 = vld [vmem:[%s0 + $0x1a4] sm:$0xff]
  %v86 = vld [vmem:[%s0 + $0x1ac] sm:$0xf]
  %v87 = vld [vmem:[%s0 + $0x1b0] sm:$0xff]
  %v88 = vld [vmem:[%s0 + $0x1b8] sm:$0xf]
  %v89 = vld [vmem:[%s0 + $0x1bc] sm:$0xff]
  %v90 = vld [vmem:[%s0 + $0x1c4] sm:$0xf]
  %v91 = vld [vmem:[%s0 + $0x1c8] sm:$0xff]
  %v92 = vld [vmem:[%s0 + $0x1d0] sm:$0xf]
  %v93 = vld [vmem:[%s0 + $0x1d4] sm:$0xff]
  %v94 = vld [vmem:[%s0 + $0x1dc] sm:$0xf]
  %v95 = vld [vmem:[%s0 + $0x1e0] sm:$0xff]
  %v96 = vld [vmem:[%s0 + $0x1e8] sm:$0xf]
  %v97 = vld [vmem:[%s0 + $0x1ec] sm:$0xff]
  %v98 = vld [vmem:[%s0 + $0x1f4] sm:$0xf]
  %v99 = vld [vmem:[%s0 + $0x1f8] sm:$0xff]
  %v100 = vld [vmem:[%s0 + $0x200] sm:$0xf]
  %v101 = vld [vmem:[%s0 + $0x204] sm:$0xff]
  %v102 = vld [vmem:[%s0 + $0x20c] sm:$0xf]
  %v103 = vld [vmem:[%s0 + $0x210] sm:$0xff]
  %v104 = vld [vmem:[%s0 + $0x218] sm:$0xf]
  %v105 = vld [vmem:[%s0 + $0x21c] sm:$0xff]
  %v106 = vld [vmem:[%s0 + $0x224] sm:$0xf]
  %v107 = vld [vmem:[%s0 + $0x228] sm:$0xff]
  %v108 = vld [vmem:[%s0 + $0x230] sm:$0xf]
  %v109 = vld [vmem:[%s0 + $0x234] sm:$0xff]
  %v110 = vld [vmem:[%s0 + $0x23c] sm:$0xf]
  %v111 = vld [vmem:[%s0 + $0x240] sm:$0xff]
  %v112 = vld [vmem:[%s0 + $0x248] sm:$0xf]
  %v113 = vld [vmem:[%s0 + $0x24c] sm:$0xff]
  %v114 = vld [vmem:[%s0 + $0x254] sm:$0xf]
  %v115 = vld [vmem:[%s0 + $0x258] sm:$0xff]
  %v116 = vld [vmem:[%s0 + $0x260] sm:$0xf]
  %v117 = vld [vmem:[%s0 + $0x264] sm:$0xff]
  %v118 = vld [vmem:[%s0 + $0x26c] sm:$0xf]
  %v119 = vld [vmem:[%s0 + $0x270] sm:$0xff]
  %v120 = vld [vmem:[%s0 + $0x278] sm:$0xf]
  %v121 = vld [vmem:[%s0 + $0x27c] sm:$0xff]
  %v122 = vld [vmem:[%s0 + $0x284] sm:$0xf]
  %v123 = vld [vmem:[%s0 + $0x288] sm:$0xff]
  %v124 = vld [vmem:[%s0 + $0x290] sm:$0xf]
  %v125 = vld [vmem:[%s0 + $0x294] sm:$0xff]
  %v126 = vld [vmem:[%s0 + $0x29c] sm:$0xf]
  %v127 = vld [vmem:[%s0 + $0x2a0] sm:$0x11]
  %v128 = vld [vmem:[%s0 + $0x2a8] sm:$0x1]
  %v129 = vld [vmem:[%s1] sm:$0xf]
  %v130 = vld [vmem:[%s1 + $0x4] sm:$0xf]
  %v131 = vld [vmem:[%s1 + $0x8] sm:$0xf]
  %v132 = vld [vmem:[%s1 + $0xc] sm:$0xf]
  %v133 = vld [vmem:[%s1 + $0x10] sm:$0xf]
  %v134 = vld [vmem:[%s1 + $0x14] sm:$0xf]
  %v135 = vld [vmem:[%s1 + $0x18] sm:$0xf]
  %v136 = vld [vmem:[%s1 + $0x1c] sm:$0xf]
  %v137 = vld [vmem:[%s1 + $0x20] sm:$0xf]
  %v138 = vld [vmem:[%s1 + $0x24] sm:$0xf]
  %v139 = vld [vmem:[%s1 + $0x28] sm:$0xf]
  %v140 = vld [vmem:[%s1 + $0x2c] sm:$0xf]
  %v141 = vld [vmem:[%s1 + $0x30] sm:$0xf]
  %v142 = vld [vmem:[%s1 + $0x34] sm:$0xf]
  %v143 = vld [vmem:[%s1 + $0x38] sm:$0xf]
  %v144 = vld [vmem:[%s1 + $0x3c] sm:$0xf]
  %v145 = vld [vmem:[%s1 + $0x40] sm:$0xf]
  %v146 = vld [vmem:[%s1 + $0x44] sm:$0xf]
  %v147 = vld [vmem:[%s1 + $0x48] sm:$0xf]
  %v148 = vld [vmem:[%s1 + $0x4c] sm:$0xf]
  %v149 = vld [vmem:[%s1 + $0x50] sm:$0xf]
  %v150 = vld [vmem:[%s1 + $0x54] sm:$0xf]
  %v151 = vld [vmem:[%s1 + $0x58] sm:$0xf]
  %v152 = vld [vmem:[%s1 + $0x5c] sm:$0xf]
  %v153 = vld [vmem:[%s1 + $0x60] sm:$0xf]
  %v154 = vld [vmem:[%s1 + $0x64] sm:$0xf]
  %v155 = vld [vmem:[%s1 + $0x68] sm:$0xf]
  %v156 = vld [vmem:[%s1 + $0x6c] sm:$0xf]
  %v157 = vld [vmem:[%s1 + $0x70] sm:$0xf]
  %v158 = vld [vmem:[%s1 + $0x74] sm:$0xf]
  %v159 = vld [vmem:[%s1 + $0x78] sm:$0xf]
  %v160 = vld [vmem:[%s1 + $0x7c] sm:$0xf]
  %v161 = vld [vmem:[%s1 + $0x80] sm:$0xf]
  %v162 = vld [vmem:[%s1 + $0x84] sm:$0xf]
  %v163 = vld [vmem:[%s1 + $0x88] sm:$0xf]
  %v164 = vld [vmem:[%s1 + $0x8c] sm:$0xf]
  %v165 = vld [vmem:[%s1 + $0x90] sm:$0xf]
  %v166 = vld [vmem:[%s1 + $0x94] sm:$0xf]
  %v167 = vld [vmem:[%s1 + $0x98] sm:$0xf]
  %v168 = vld [vmem:[%s1 + $0x9c] sm:$0xf]
  %v169 = vld [vmem:[%s1 + $0xa0] sm:$0xf]
  %v170 = vld [vmem:[%s1 + $0xa4] sm:$0xf]
  %v171 = vld [vmem:[%s1 + $0xa8] sm:$0xf]
  %v172 = vld [vmem:[%s1 + $0xac] sm:$0xf]
  %v173 = vld [vmem:[%s1 + $0xb0] sm:$0xf]
  %v174 = vld [vmem:[%s1 + $0xb4] sm:$0x3]
  %v175 = vld [vmem:[%s2] sm:$0x1]
  %v177 = vlaneseq
  %v178 = vshrl.u32 %v177, 7
  %v179 = vsub.s32 0, %v178
  %v180 = vrot.slane %v175, %v179
  %v296 = vunpack.c.l.b16 %v15
  %v297 = vunpack.c.h.b16 %v15
  %v298 = vunpack.c.l.b16 %v16
  %v299 = vunpack.c.l.b16 %v17
  %v300 = vunpack.c.h.b16 %v17
  %v301 = vunpack.c.l.b16 %v18
  %v302 = vunpack.c.l.b16 %v19
  %v303 = vunpack.c.h.b16 %v19
  %v304 = vunpack.c.l.b16 %v20
  %v305 = vunpack.c.l.b16 %v21
  %v306 = vunpack.c.h.b16 %v21
  %v307 = vunpack.c.l.b16 %v22
  %v308 = vunpack.c.l.b16 %v23
  %v309 = vunpack.c.h.b16 %v23
  %v310 = vunpack.c.l.b16 %v24
  %v311 = vunpack.c.l.b16 %v25
  %v312 = vunpack.c.h.b16 %v25
  %v313 = vunpack.c.l.b16 %v26
  %v314 = vunpack.c.l.b16 %v27
  %v315 = vunpack.c.h.b16 %v27
  %v316 = vunpack.c.l.b16 %v28
  %v317 = vunpack.c.l.b16 %v29
  %v318 = vunpack.c.h.b16 %v29
  %v319 = vunpack.c.l.b16 %v30
  %v320 = vunpack.c.l.b16 %v31
  %v321 = vunpack.c.h.b16 %v31
  %v322 = vunpack.c.l.b16 %v32
  %v323 = vunpack.c.l.b16 %v33
  %v324 = vunpack.c.h.b16 %v33
  %v325 = vunpack.c.l.b16 %v34
  %v326 = vunpack.c.l.b16 %v35
  %v327 = vunpack.c.h.b16 %v35
  %v328 = vunpack.c.l.b16 %v36
  %v329 = vunpack.c.l.b16 %v37
  %v330 = vunpack.c.h.b16 %v37
  %v331 = vunpack.c.l.b16 %v38
  %v332 = vunpack.c.l.b16 %v39
  %v333 = vunpack.c.h.b16 %v39
  %v334 = vunpack.c.l.b16 %v40
  %v335 = vunpack.c.l.b16 %v41
  %v336 = vunpack.c.h.b16 %v41
  %v337 = vunpack.c.l.b16 %v42
  %v338 = vunpack.c.l.b16 %v43
  %v339 = vunpack.c.h.b16 %v43
  %v340 = vunpack.c.l.b16 %v44
  %v341 = vunpack.c.l.b16 %v45
  %v342 = vunpack.c.h.b16 %v45
  %v343 = vunpack.c.l.b16 %v46
  %v344 = vunpack.c.l.b16 %v47
  %v345 = vunpack.c.h.b16 %v47
  %v346 = vunpack.c.l.b16 %v48
  %v347 = vunpack.c.l.b16 %v49
  %v348 = vunpack.c.h.b16 %v49
  %v349 = vunpack.c.l.b16 %v50
  %v350 = vunpack.c.l.b16 %v51
  %v351 = vunpack.c.h.b16 %v51
  %v352 = vunpack.c.l.b16 %v52
  %v353 = vunpack.c.l.b16 %v53
  %v354 = vunpack.c.h.b16 %v53
  %v355 = vunpack.c.l.b16 %v54
  %v356 = vunpack.c.l.b16 %v55
  %v357 = vunpack.c.h.b16 %v55
  %v358 = vunpack.c.l.b16 %v56
  %v359 = vunpack.c.l.b16 %v57
  %v360 = vunpack.c.h.b16 %v57
  %v361 = vunpack.c.l.b16 %v58
  %v362 = vunpack.c.l.b16 %v59
  %v363 = vunpack.c.h.b16 %v59
  %v364 = vunpack.c.l.b16 %v60
  %v365 = vunpack.c.l.b16 %v61
  %v366 = vunpack.c.h.b16 %v61
  %v367 = vunpack.c.l.b16 %v62
  %v368 = vunpack.c.l.b16 %v63
  %v369 = vunpack.c.h.b16 %v63
  %v370 = vunpack.c.l.b16 %v64
  %v371 = vunpack.c.l.b16 %v65
  %v372 = vunpack.c.h.b16 %v65
  %v373 = vunpack.c.l.b16 %v66
  %v374 = vunpack.c.l.b16 %v67
  %v375 = vunpack.c.h.b16 %v67
  %v376 = vunpack.c.l.b16 %v68
  %v377 = vunpack.c.l.b16 %v69
  %v378 = vunpack.c.h.b16 %v69
  %v379 = vunpack.c.l.b16 %v70
  %v380 = vunpack.c.l.b16 %v71
  %v381 = vunpack.c.h.b16 %v71
  %v382 = vunpack.c.l.b16 %v72
  %v383 = vunpack.c.l.b16 %v73
  %v384 = vunpack.c.h.b16 %v73
  %v385 = vunpack.c.l.b16 %v74
  %v386 = vunpack.c.l.b16 %v75
  %v387 = vunpack.c.h.b16 %v75
  %v388 = vunpack.c.l.b16 %v76
  %v389 = vunpack.c.l.b16 %v77
  %v390 = vunpack.c.h.b16 %v77
  %v391 = vunpack.c.l.b16 %v78
  %v392 = vunpack.c.l.b16 %v79
  %v393 = vunpack.c.h.b16 %v79
  %v394 = vunpack.c.l.b16 %v80
  %v395 = vunpack.c.l.b16 %v81
  %v396 = vunpack.c.h.b16 %v81
  %v397 = vunpack.c.l.b16 %v82
  %v398 = vunpack.c.l.b16 %v83
  %v399 = vunpack.c.h.b16 %v83
  %v400 = vunpack.c.l.b16 %v84
  %v401 = vunpack.c.l.b16 %v85
  %v402 = vunpack.c.h.b16 %v85
  %v403 = vunpack.c.l.b16 %v86
  %v404 = vunpack.c.l.b16 %v87
  %v405 = vunpack.c.h.b16 %v87
  %v406 = vunpack.c.l.b16 %v88
  %v407 = vunpack.c.l.b16 %v89
  %v408 = vunpack.c.h.b16 %v89
  %v409 = vunpack.c.l.b16 %v90
  %v410 = vunpack.c.l.b16 %v91
  %v411 = vunpack.c.h.b16 %v91
  %v412 = vunpack.c.l.b16 %v92
  %v413 = vunpack.c.l.b16 %v93
  %v414 = vunpack.c.h.b16 %v93
  %v415 = vunpack.c.l.b16 %v94
  %v416 = vunpack.c.l.b16 %v95
  %v417 = vunpack.c.h.b16 %v95
  %v418 = vunpack.c.l.b16 %v96
  %v419 = vunpack.c.l.b16 %v97
  %v420 = vunpack.c.h.b16 %v97
  %v421 = vunpack.c.l.b16 %v98
  %v422 = vunpack.c.l.b16 %v99
  %v423 = vunpack.c.h.b16 %v99
  %v424 = vunpack.c.l.b16 %v100
  %v425 = vunpack.c.l.b16 %v101
  %v426 = vunpack.c.h.b16 %v101
  %v427 = vunpack.c.l.b16 %v102
  %v428 = vunpack.c.l.b16 %v103
  %v429 = vunpack.c.h.b16 %v103
  %v430 = vunpack.c.l.b16 %v104
  %v431 = vunpack.c.l.b16 %v105
  %v432 = vunpack.c.h.b16 %v105
  %v433 = vunpack.c.l.b16 %v106
  %v434 = vunpack.c.l.b16 %v107
  %v435 = vunpack.c.h.b16 %v107
  %v436 = vunpack.c.l.b16 %v108
  %v437 = vunpack.c.l.b16 %v109
  %v438 = vunpack.c.h.b16 %v109
  %v439 = vunpack.c.l.b16 %v110
  %v440 = vunpack.c.l.b16 %v111
  %v441 = vunpack.c.h.b16 %v111
  %v442 = vunpack.c.l.b16 %v112
  %v443 = vunpack.c.l.b16 %v113
  %v444 = vunpack.c.h.b16 %v113
  %v445 = vunpack.c.l.b16 %v114
  %v446 = vunpack.c.l.b16 %v115
  %v447 = vunpack.c.h.b16 %v115
  %v448 = vunpack.c.l.b16 %v116
  %v449 = vunpack.c.l.b16 %v117
  %v450 = vunpack.c.h.b16 %v117
  %v451 = vunpack.c.l.b16 %v118
  %v452 = vunpack.c.l.b16 %v119
  %v453 = vunpack.c.h.b16 %v119
  %v454 = vunpack.c.l.b16 %v120
  %v455 = vunpack.c.l.b16 %v121
  %v456 = vunpack.c.h.b16 %v121
  %v457 = vunpack.c.l.b16 %v122
  %v458 = vunpack.c.l.b16 %v123
  %v459 = vunpack.c.h.b16 %v123
  %v460 = vunpack.c.l.b16 %v124
  %v461 = vunpack.c.l.b16 %v125
  %v462 = vunpack.c.h.b16 %v125
  %v463 = vunpack.c.l.b16 %v126
  %v464 = vunpack.c.l.b16 %v127
  %v465 = vunpack.c.h.b16 %v127
  %v466 = vunpack.c.l.b16 %v128
  %v467 = vpack.c.b16 %v299, %v296
  %v468 = vpack.c.b16 %v300, %v297
  %v469 = vpack.c.b16 %v301, %v298
  %v470 = vpack.c.b16 %v305, %v302
  %v471 = vpack.c.b16 %v306, %v303
  %v472 = vpack.c.b16 %v307, %v304
  %v473 = vpack.c.b16 %v311, %v308
  %v474 = vpack.c.b16 %v312, %v309
  %v475 = vpack.c.b16 %v313, %v310
  %v476 = vpack.c.b16 %v317, %v314
  %v477 = vpack.c.b16 %v318, %v315
  %v478 = vpack.c.b16 %v319, %v316
  %v479 = vpack.c.b16 %v323, %v320
  %v480 = vpack.c.b16 %v324, %v321
  %v481 = vpack.c.b16 %v325, %v322
  %v482 = vpack.c.b16 %v329, %v326
  %v483 = vpack.c.b16 %v330, %v327
  %v484 = vpack.c.b16 %v331, %v328
  %v485 = vpack.c.b16 %v335, %v332
  %v486 = vpack.c.b16 %v336, %v333
  %v487 = vpack.c.b16 %v337, %v334
  %v488 = vpack.c.b16 %v341, %v338
  %v489 = vpack.c.b16 %v342, %v339
  %v490 = vpack.c.b16 %v343, %v340
  %v491 = vpack.c.b16 %v347, %v344
  %v492 = vpack.c.b16 %v348, %v345
  %v493 = vpack.c.b16 %v349, %v346
  %v494 = vpack.c.b16 %v353, %v350
  %v495 = vpack.c.b16 %v354, %v351
  %v496 = vpack.c.b16 %v355, %v352
  %v497 = vpack.c.b16 %v359, %v356
  %v498 = vpack.c.b16 %v360, %v357
  %v499 = vpack.c.b16 %v361, %v358
  %v500 = vpack.c.b16 %v365, %v362
  %v501 = vpack.c.b16 %v366, %v363
  %v502 = vpack.c.b16 %v367, %v364
  %v503 = vpack.c.b16 %v371, %v368
  %v504 = vpack.c.b16 %v372, %v369
  %v505 = vpack.c.b16 %v373, %v370
  %v506 = vpack.c.b16 %v377, %v374
  %v507 = vpack.c.b16 %v378, %v375
  %v508 = vpack.c.b16 %v379, %v376
  %v509 = vpack.c.b16 %v383, %v380
  %v510 = vpack.c.b16 %v384, %v381
  %v511 = vpack.c.b16 %v385, %v382
  %v512 = vpack.c.b16 %v389, %v386
  %v513 = vpack.c.b16 %v390, %v387
  %v514 = vpack.c.b16 %v391, %v388
  %v515 = vpack.c.b16 %v395, %v392
  %v516 = vpack.c.b16 %v396, %v393
  %v517 = vpack.c.b16 %v397, %v394
  %v518 = vpack.c.b16 %v401, %v398
  %v519 = vpack.c.b16 %v402, %v399
  %v520 = vpack.c.b16 %v403, %v400
  %v521 = vpack.c.b16 %v407, %v404
  %v522 = vpack.c.b16 %v408, %v405
  %v523 = vpack.c.b16 %v409, %v406
  %v524 = vpack.c.b16 %v413, %v410
  %v525 = vpack.c.b16 %v414, %v411
  %v526 = vpack.c.b16 %v415, %v412
  %v527 = vpack.c.b16 %v419, %v416
  %v528 = vpack.c.b16 %v420, %v417
  %v529 = vpack.c.b16 %v421, %v418
  %v530 = vpack.c.b16 %v425, %v422
  %v531 = vpack.c.b16 %v426, %v423
  %v532 = vpack.c.b16 %v427, %v424
  %v533 = vpack.c.b16 %v431, %v428
  %v534 = vpack.c.b16 %v432, %v429
  %v535 = vpack.c.b16 %v433, %v430
  %v536 = vpack.c.b16 %v437, %v434
  %v537 = vpack.c.b16 %v438, %v435
  %v538 = vpack.c.b16 %v439, %v436
  %v539 = vpack.c.b16 %v443, %v440
  %v540 = vpack.c.b16 %v444, %v441
  %v541 = vpack.c.b16 %v445, %v442
  %v542 = vpack.c.b16 %v449, %v446
  %v543 = vpack.c.b16 %v450, %v447
  %v544 = vpack.c.b16 %v451, %v448
  %v545 = vpack.c.b16 %v455, %v452
  %v546 = vpack.c.b16 %v456, %v453
  %v547 = vpack.c.b16 %v457, %v454
  %v548 = vpack.c.b16 %v461, %v458
  %v549 = vpack.c.b16 %v462, %v459
  %v550 = vpack.c.b16 %v463, %v460
  %v551 = vpack.c.b16 %v464, %v464
  %v552 = vpack.c.b16 %v465, %v465
  %v553 = vpack.c.b16 %v466, %v466
  %v658 = vunpack.c.l.b16 %v129
  %v659 = vunpack.c.l.b16 %v130
  %v660 = vunpack.c.l.b16 %v131
  %v661 = vunpack.c.l.b16 %v132
  %v662 = vunpack.c.l.b16 %v133
  %v663 = vunpack.c.l.b16 %v134
  %v664 = vunpack.c.l.b16 %v135
  %v665 = vunpack.c.l.b16 %v136
  %v666 = vunpack.c.l.b16 %v137
  %v667 = vunpack.c.l.b16 %v138
  %v668 = vunpack.c.l.b16 %v139
  %v669 = vunpack.c.l.b16 %v140
  %v670 = vunpack.c.l.b16 %v141
  %v671 = vunpack.c.l.b16 %v142
  %v672 = vunpack.c.l.b16 %v143
  %v673 = vunpack.c.l.b16 %v144
  %v674 = vunpack.c.l.b16 %v145
  %v675 = vunpack.c.l.b16 %v146
  %v676 = vunpack.c.l.b16 %v147
  %v677 = vunpack.c.l.b16 %v148
  %v678 = vunpack.c.l.b16 %v149
  %v679 = vunpack.c.l.b16 %v150
  %v680 = vunpack.c.l.b16 %v151
  %v681 = vunpack.c.l.b16 %v152
  %v682 = vunpack.c.l.b16 %v153
  %v683 = vunpack.c.l.b16 %v154
  %v684 = vunpack.c.l.b16 %v155
  %v685 = vunpack.c.l.b16 %v156
  %v686 = vunpack.c.l.b16 %v157
  %v687 = vunpack.c.l.b16 %v158
  %v688 = vunpack.c.l.b16 %v159
  %v689 = vunpack.c.l.b16 %v160
  %v690 = vunpack.c.l.b16 %v161
  %v691 = vunpack.c.l.b16 %v162
  %v692 = vunpack.c.l.b16 %v163
  %v693 = vunpack.c.l.b16 %v164
  %v694 = vunpack.c.l.b16 %v165
  %v695 = vunpack.c.l.b16 %v166
  %v696 = vunpack.c.l.b16 %v167
  %v697 = vunpack.c.l.b16 %v168
  %v698 = vunpack.c.l.b16 %v169
  %v699 = vunpack.c.l.b16 %v170
  %v700 = vunpack.c.l.b16 %v171
  %v701 = vunpack.c.l.b16 %v172
  %v702 = vunpack.c.l.b16 %v173
  %v703 = vunpack.c.l.b16 %v174
  %v704 = vpack.c.b16 %v659, %v658
  %v705 = vpack.c.b16 %v661, %v660
  %v706 = vpack.c.b16 %v663, %v662
  %v707 = vpack.c.b16 %v665, %v664
  %v708 = vpack.c.b16 %v667, %v666
  %v709 = vpack.c.b16 %v669, %v668
  %v710 = vpack.c.b16 %v671, %v670
  %v711 = vpack.c.b16 %v673, %v672
  %v712 = vpack.c.b16 %v675, %v674
  %v713 = vpack.c.b16 %v677, %v676
  %v714 = vpack.c.b16 %v679, %v678
  %v715 = vpack.c.b16 %v681, %v680
  %v716 = vpack.c.b16 %v683, %v682
  %v717 = vpack.c.b16 %v685, %v684
  %v718 = vpack.c.b16 %v687, %v686
  %v719 = vpack.c.b16 %v689, %v688
  %v720 = vpack.c.b16 %v691, %v690
  %v721 = vpack.c.b16 %v693, %v692
  %v722 = vpack.c.b16 %v695, %v694
  %v723 = vpack.c.b16 %v697, %v696
  %v724 = vpack.c.b16 %v699, %v698
  %v725 = vpack.c.b16 %v701, %v700
  %v726 = vpack.c.b16 %v703, %v702
  %vm749 = vcmask 875520
  %v751 = vsel %vm749, %v469, 0
  %v754 = vsel %vm749, %v472, 0
  %v757 = vsel %vm749, %v475, 0
  %v760 = vsel %vm749, %v478, 0
  %v763 = vsel %vm749, %v481, 0
  %v766 = vsel %vm749, %v484, 0
  %v769 = vsel %vm749, %v487, 0
  %v772 = vsel %vm749, %v490, 0
  %v775 = vsel %vm749, %v493, 0
  %v778 = vsel %vm749, %v496, 0
  %v781 = vsel %vm749, %v499, 0
  %v784 = vsel %vm749, %v502, 0
  %v787 = vsel %vm749, %v505, 0
  %v790 = vsel %vm749, %v508, 0
  %v793 = vsel %vm749, %v511, 0
  %v796 = vsel %vm749, %v514, 0
  %v799 = vsel %vm749, %v517, 0
  %v802 = vsel %vm749, %v520, 0
  %v805 = vsel %vm749, %v523, 0
  %v808 = vsel %vm749, %v526, 0
  %v811 = vsel %vm749, %v529, 0
  %v814 = vsel %vm749, %v532, 0
  %v817 = vsel %vm749, %v535, 0
  %v820 = vsel %vm749, %v538, 0
  %v823 = vsel %vm749, %v541, 0
  %v826 = vsel %vm749, %v544, 0
  %v829 = vsel %vm749, %v547, 0
  %v832 = vsel %vm749, %v550, 0
  %v835 = vsel %vm749, %v553, 0
  %vm837 = vcmask 1044480
  %vm838 = vcmask 1045504
  %v839 = vsel %vm837, 4294967295, 65535
  %v840 = vsel %vm838, %v839, 0
  %v842 = vand.u32 %v726, %v840
  %844 = vmatprep.subr.bf16.mxu0 0
  %845 = vmatpush1.bf16.msra.mxu0 %v704
  %846 = vmatprep.subr.bf16.mxu0 0
  %847 = vmatpush1.bf16.msra.mxu0 %v705
  %848 = vmatprep.subr.bf16.mxu0 0
  %849 = vmatpush1.bf16.msra.mxu0 %v706
  %850 = vmatprep.subr.bf16.mxu0 0
  %851 = vmatpush1.bf16.msra.mxu0 %v707
  %852 = vmatprep.subr.bf16.mxu0 0
  %853 = vmatpush1.bf16.msra.mxu0 %v708
  %854 = vmatprep.subr.bf16.mxu0 0
  %855 = vmatpush1.bf16.msra.mxu0 %v709
  %856 = vmatprep.subr.bf16.mxu0 0
  %857 = vmatpush1.bf16.msra.mxu0 %v710
  %858 = vmatprep.subr.bf16.mxu0 0
  %859 = vmatpush1.bf16.msra.mxu0 %v711
  %860 = vmatprep.subr.bf16.mxu0 0
  %861 = vmatpush1.bf16.msra.mxu0 %v712
  %862 = vmatprep.subr.bf16.mxu0 0
  %863 = vmatpush1.bf16.msra.mxu0 %v713
  %864 = vmatprep.subr.bf16.mxu0 0
  %865 = vmatpush1.bf16.msra.mxu0 %v714
  %866 = vmatprep.subr.bf16.mxu0 0
  %867 = vmatpush1.bf16.msra.mxu0 %v715
  %868 = vmatprep.subr.bf16.mxu0 0
  %869 = vmatpush1.bf16.msra.mxu0 %v716
  %870 = vmatprep.subr.bf16.mxu0 0
  %871 = vmatpush1.bf16.msra.mxu0 %v717
  %872 = vmatprep.subr.bf16.mxu0 0
  %873 = vmatpush1.bf16.msra.mxu0 %v718
  %874 = vmatprep.subr.bf16.mxu0 0
  %875 = vmatpush1.bf16.msra.mxu0 %v719
  %876 = vmatprep.mubr.bf16.mxu0 %v468
  %877 = vmatmul.mubr.bf16.gmra.mrb[0].mxu0 %v467
  %v878 = vpop.f32.mrb[0].mxu0
  %v879 = vadd.f32 %v180, %v878
  %v880 = vpop.f32.mrb[0].mxu0
  %v881 = vpop.f32.mrb[0].mxu0
  %v882 = vadd.f32 %v180, %v881
  %v883 = vpop.f32.mrb[0].mxu0
  %884 = vmatprep.mubr.bf16.mxu0 %v471
  %885 = vmatmul.mubr.bf16.gmra.mrb[0].mxu0 %v470
  %v886 = vpop.f32.mrb[0].mxu0
  %v887 = vadd.f32 %v180, %v886
  %v888 = vpop.f32.mrb[0].mxu0
  %v889 = vpop.f32.mrb[0].mxu0
  %v890 = vadd.f32 %v180, %v889
  %v891 = vpop.f32.mrb[0].mxu0
  %892 = vmatprep.mubr.bf16.mxu0 %v474
  %893 = vmatmul.mubr.bf16.gmra.mrb[0].mxu0 %v473
  %v894 = vpop.f32.mrb[0].mxu0
  %v895 = vadd.f32 %v180, %v894
  %v896 = vpop.f32.mrb[0].mxu0
  %v897 = vpop.f32.mrb[0].mxu0
  %v898 = vadd.f32 %v180, %v897
  %v899 = vpop.f32.mrb[0].mxu0
  %900 = vmatprep.mubr.bf16.mxu0 %v477
  %901 = vmatmul.mubr.bf16.gmra.mrb[0].mxu0 %v476
  %v902 = vpop.f32.mrb[0].mxu0
  %v903 = vadd.f32 %v180, %v902
  %v904 = vpop.f32.mrb[0].mxu0
  %v905 = vpop.f32.mrb[0].mxu0
  %v906 = vadd.f32 %v180, %v905
  %v907 = vpop.f32.mrb[0].mxu0
  %908 = vmatprep.mubr.bf16.mxu0 %v480
  %909 = vmatmul.mubr.bf16.gmra.mrb[0].mxu0 %v479
  %v910 = vpop.f32.mrb[0].mxu0
  %v911 = vadd.f32 %v180, %v910
  %v912 = vpop.f32.mrb[0].mxu0
  %v913 = vpop.f32.mrb[0].mxu0
  %v914 = vadd.f32 %v180, %v913
  %v915 = vpop.f32.mrb[0].mxu0
  %916 = vmatprep.mubr.bf16.mxu0 %v483
  %917 = vmatmul.mubr.bf16.gmra.mrb[0].mxu0 %v482
  %v918 = vpop.f32.mrb[0].mxu0
  %v919 = vadd.f32 %v180, %v918
  %v920 = vpop.f32.mrb[0].mxu0
  %v921 = vpop.f32.mrb[0].mxu0
  %v922 = vadd.f32 %v180, %v921
  %v923 = vpop.f32.mrb[0].mxu0
  %924 = vmatprep.mubr.bf16.mxu0 %v486
  %925 = vmatmul.mubr.bf16.gmra.mrb[0].mxu0 %v485
  %v926 = vpop.f32.mrb[0].mxu0
  %v927 = vadd.f32 %v180, %v926
  %v928 = vpop.f32.mrb[0].mxu0
  %v929 = vpop.f32.mrb[0].mxu0
  %v930 = vadd.f32 %v180, %v929
  %v931 = vpop.f32.mrb[0].mxu0
  %932 = vmatprep.mubr.bf16.mxu0 %v489
  %933 = vmatmul.mubr.bf16.gmra.mrb[0].mxu0 %v488
  %v934 = vpop.f32.mrb[0].mxu0
  %v935 = vadd.f32 %v180, %v934
  %v936 = vpop.f32.mrb[0].mxu0
  %v937 = vpop.f32.mrb[0].mxu0
  %v938 = vadd.f32 %v180, %v937
  %v939 = vpop.f32.mrb[0].mxu0
  %940 = vmatprep.mubr.bf16.mxu0 %v492
  %941 = vmatmul.mubr.bf16.gmra.mrb[0].mxu0 %v491
  %v942 = vpop.f32.mrb[0].mxu0
  %v943 = vadd.f32 %v180, %v942
  %v944 = vpop.f32.mrb[0].mxu0
  %v945 = vpop.f32.mrb[0].mxu0
  %v946 = vadd.f32 %v180, %v945
  %v947 = vpop.f32.mrb[0].mxu0
  %948 = vmatprep.mubr.bf16.mxu0 %v495
  %949 = vmatmul.mubr.bf16.gmra.mrb[0].mxu0 %v494
  %v950 = vpop.f32.mrb[0].mxu0
  %v951 = vadd.f32 %v180, %v950
  %v952 = vpop.f32.mrb[0].mxu0
  %v953 = vpop.f32.mrb[0].mxu0
  %v954 = vadd.f32 %v180, %v953
  %v955 = vpop.f32.mrb[0].mxu0
  %956 = vmatprep.mubr.bf16.mxu0 %v498
  %957 = vmatmul.mubr.bf16.gmra.mrb[0].mxu0 %v497
  %v958 = vpop.f32.mrb[0].mxu0
  %v959 = vadd.f32 %v180, %v958
  %v960 = vpop.f32.mrb[0].mxu0
  %v961 = vpop.f32.mrb[0].mxu0
  %v962 = vadd.f32 %v180, %v961
  %v963 = vpop.f32.mrb[0].mxu0
  %964 = vmatprep.mubr.bf16.mxu0 %v501
  %965 = vmatmul.mubr.bf16.gmra.mrb[0].mxu0 %v500
  %v966 = vpop.f32.mrb[0].mxu0
  %v967 = vadd.f32 %v180, %v966
  %v968 = vpop.f32.mrb[0].mxu0
  %v969 = vpop.f32.mrb[0].mxu0
  %v970 = vadd.f32 %v180, %v969
  %v971 = vpop.f32.mrb[0].mxu0
  %972 = vmatprep.mubr.bf16.mxu0 %v504
  %973 = vmatmul.mubr.bf16.gmra.mrb[0].mxu0 %v503
  %v974 = vpop.f32.mrb[0].mxu0
  %v975 = vadd.f32 %v180, %v974
  %v976 = vpop.f32.mrb[0].mxu0
  %v977 = vpop.f32.mrb[0].mxu0
  %v978 = vadd.f32 %v180, %v977
  %v979 = vpop.f32.mrb[0].mxu0
  %980 = vmatprep.mubr.bf16.mxu0 %v507
  %981 = vmatmul.mubr.bf16.gmra.mrb[0].mxu0 %v506
  %v982 = vpop.f32.mrb[0].mxu0
  %v983 = vadd.f32 %v180, %v982
  %v984 = vpop.f32.mrb[0].mxu0
  %v985 = vpop.f32.mrb[0].mxu0
  %v986 = vadd.f32 %v180, %v985
  %v987 = vpop.f32.mrb[0].mxu0
  %988 = vmatprep.mubr.bf16.mxu0 %v510
  %989 = vmatmul.mubr.bf16.gmra.mrb[0].mxu0 %v509
  %v990 = vpop.f32.mrb[0].mxu0
  %v991 = vadd.f32 %v180, %v990
  %v992 = vpop.f32.mrb[0].mxu0
  %v993 = vpop.f32.mrb[0].mxu0
  %v994 = vadd.f32 %v180, %v993
  %v995 = vpop.f32.mrb[0].mxu0
  %996 = vmatprep.mubr.bf16.mxu0 %v513
  %997 = vmatmul.mubr.bf16.gmra.mrb[0].mxu0 %v512
  %v998 = vpop.f32.mrb[0].mxu0
  %v999 = vadd.f32 %v180, %v998
  %v1000 = vpop.f32.mrb[0].mxu0
  %v1001 = vpop.f32.mrb[0].mxu0
  %v1002 = vadd.f32 %v180, %v1001
  %v1003 = vpop.f32.mrb[0].mxu0
  %1004 = vmatprep.mubr.bf16.mxu0 %v516
  %1005 = vmatmul.mubr.bf16.gmra.mrb[0].mxu0 %v515
  %v1006 = vpop.f32.mrb[0].mxu0
  %v1007 = vadd.f32 %v180, %v1006
  %v1008 = vpop.f32.mrb[0].mxu0
  %v1009 = vpop.f32.mrb[0].mxu0
  %v1010 = vadd.f32 %v180, %v1009
  %v1011 = vpop.f32.mrb[0].mxu0
  %1012 = vmatprep.mubr.bf16.mxu0 %v519
  %1013 = vmatmul.mubr.bf16.gmra.mrb[0].mxu0 %v518
  %v1014 = vpop.f32.mrb[0].mxu0
  %v1015 = vadd.f32 %v180, %v1014
  %v1016 = vpop.f32.mrb[0].mxu0
  %v1017 = vpop.f32.mrb[0].mxu0
  %v1018 = vadd.f32 %v180, %v1017
  %v1019 = vpop.f32.mrb[0].mxu0
  %1020 = vmatprep.mubr.bf16.mxu0 %v522
  %1021 = vmatmul.mubr.bf16.gmra.mrb[0].mxu0 %v521
  %v1022 = vpop.f32.mrb[0].mxu0
  %v1023 = vadd.f32 %v180, %v1022
  %v1024 = vpop.f32.mrb[0].mxu0
  %v1025 = vpop.f32.mrb[0].mxu0
  %v1026 = vadd.f32 %v180, %v1025
  %v1027 = vpop.f32.mrb[0].mxu0
  %1028 = vmatprep.mubr.bf16.mxu0 %v525
  %1029 = vmatmul.mubr.bf16.gmra.mrb[0].mxu0 %v524
  %v1030 = vpop.f32.mrb[0].mxu0
  %v1031 = vadd.f32 %v180, %v1030
  %v1032 = vpop.f32.mrb[0].mxu0
  %v1033 = vpop.f32.mrb[0].mxu0
  %v1034 = vadd.f32 %v180, %v1033
  %v1035 = vpop.f32.mrb[0].mxu0
  %1036 = vmatprep.mubr.bf16.mxu0 %v528
  %1037 = vmatmul.mubr.bf16.gmra.mrb[0].mxu0 %v527
  %v1038 = vpop.f32.mrb[0].mxu0
  %v1039 = vadd.f32 %v180, %v1038
  %v1040 = vpop.f32.mrb[0].mxu0
  %v1041 = vpop.f32.mrb[0].mxu0
  %v1042 = vadd.f32 %v180, %v1041
  %v1043 = vpop.f32.mrb[0].mxu0
  %1044 = vmatprep.mubr.bf16.mxu0 %v531
  %1045 = vmatmul.mubr.bf16.gmra.mrb[0].mxu0 %v530
  %v1046 = vpop.f32.mrb[0].mxu0
  %v1047 = vadd.f32 %v180, %v1046
  %v1048 = vpop.f32.mrb[0].mxu0
  %v1049 = vpop.f32.mrb[0].mxu0
  %v1050 = vadd.f32 %v180, %v1049
  %v1051 = vpop.f32.mrb[0].mxu0
  %1052 = vmatprep.mubr.bf16.mxu0 %v534
  %1053 = vmatmul.mubr.bf16.gmra.mrb[0].mxu0 %v533
  %v1054 = vpop.f32.mrb[0].mxu0
  %v1055 = vadd.f32 %v180, %v1054
  %v1056 = vpop.f32.mrb[0].mxu0
  %v1057 = vpop.f32.mrb[0].mxu0
  %v1058 = vadd.f32 %v180, %v1057
  %v1059 = vpop.f32.mrb[0].mxu0
  %1060 = vmatprep.mubr.bf16.mxu0 %v537
  %1061 = vmatmul.mubr.bf16.gmra.mrb[0].mxu0 %v536
  %v1062 = vpop.f32.mrb[0].mxu0
  %v1063 = vadd.f32 %v180, %v1062
  %v1064 = vpop.f32.mrb[0].mxu0
  %v1065 = vpop.f32.mrb[0].mxu0
  %v1066 = vadd.f32 %v180, %v1065
  %v1067 = vpop.f32.mrb[0].mxu0
  %1068 = vmatprep.mubr.bf16.mxu0 %v540
  %1069 = vmatmul.mubr.bf16.gmra.mrb[0].mxu0 %v539
  %v1070 = vpop.f32.mrb[0].mxu0
  %v1071 = vadd.f32 %v180, %v1070
  %v1072 = vpop.f32.mrb[0].mxu0
  %v1073 = vpop.f32.mrb[0].mxu0
  %v1074 = vadd.f32 %v180, %v1073
  %v1075 = vpop.f32.mrb[0].mxu0
  %1076 = vmatprep.mubr.bf16.mxu0 %v543
  %1077 = vmatmul.mubr.bf16.gmra.mrb[0].mxu0 %v542
  %v1078 = vpop.f32.mrb[0].mxu0
  %v1079 = vadd.f32 %v180, %v1078
  %v1080 = vpop.f32.mrb[0].mxu0
  %v1081 = vpop.f32.mrb[0].mxu0
  %v1082 = vadd.f32 %v180, %v1081
  %v1083 = vpop.f32.mrb[0].mxu0
  %1084 = vmatprep.mubr.bf16.mxu0 %v546
  %1085 = vmatmul.mubr.bf16.gmra.mrb[0].mxu0 %v545
  %v1086 = vpop.f32.mrb[0].mxu0
  %v1087 = vadd.f32 %v180, %v1086
  %v1088 = vpop.f32.mrb[0].mxu0
  %v1089 = vpop.f32.mrb[0].mxu0
  %v1090 = vadd.f32 %v180, %v1089
  %v1091 = vpop.f32.mrb[0].mxu0
  %1092 = vmatprep.mubr.bf16.mxu0 %v549
  %1093 = vmatmul.mubr.bf16.gmra.mrb[0].mxu0 %v548
  %v1094 = vpop.f32.mrb[0].mxu0
  %v1095 = vadd.f32 %v180, %v1094
  %v1096 = vpop.f32.mrb[0].mxu0
  %v1097 = vpop.f32.mrb[0].mxu0
  %v1098 = vadd.f32 %v180, %v1097
  %v1099 = vpop.f32.mrb[0].mxu0
  %1100 = vmatprep.mubr.bf16.mxu0 %v552
  %1101 = vmatmul.mubr.bf16.gmra.mrb[0].mxu0 %v551
  %v1102 = vpop.f32.mrb[0].mxu0
  %v1103 = vadd.f32 %v180, %v1102
  %v1104 = vpop.f32.mrb[0].mxu0
  %v1105 = vpop.f32.mrb[0].mxu0
  %v1106 = vpop.f32.mrb[0].mxu0
  %1107 = vdwg.mxu0
  %1108 = vmatprep.subr.bf16.mxu0 0
  %1109 = vmatpush1.bf16.msra.mxu0 %v720
  %1110 = vmatprep.subr.bf16.mxu0 0
  %1111 = vmatpush1.bf16.msra.mxu0 %v721
  %1112 = vmatprep.subr.bf16.mxu0 0
  %1113 = vmatpush1.bf16.msra.mxu0 %v722
  %1114 = vmatprep.subr.bf16.mxu0 0
  %1115 = vmatpush1.bf16.msra.mxu0 %v723
  %1116 = vmatprep.subr.bf16.mxu0 0
  %1117 = vmatpush1.bf16.msra.mxu0 %v724
  %1118 = vmatprep.subr.bf16.mxu0 0
  %1119 = vmatpush1.bf16.msra.mxu0 %v725
  %1120 = vmatprep.subr.bf16.mxu0 0
  %1121 = vmatpush1.bf16.msra.mxu0 %v842
  %1122 = vmatprep.subr.bf16.mxu0 0
  %1123 = vmatpush1.bf16.msra.mxu0 0
  %1124 = vmatprep.subr.bf16.mxu0 0
  %1125 = vmatpush1.bf16.msra.mxu0 0
  %1126 = vmatprep.subr.bf16.mxu0 0
  %1127 = vmatpush1.bf16.msra.mxu0 0
  %1128 = vmatprep.subr.bf16.mxu0 0
  %1129 = vmatpush1.bf16.msra.mxu0 0
  %1130 = vmatprep.subr.bf16.mxu0 0
  %1131 = vmatpush1.bf16.msra.mxu0 0
  %1132 = vmatprep.subr.bf16.mxu0 0
  %1133 = vmatpush1.bf16.msra.mxu0 0
  %1134 = vmatprep.subr.bf16.mxu0 0
  %1135 = vmatpush1.bf16.msra.mxu0 0
  %1136 = vmatprep.subr.bf16.mxu0 0
  %1137 = vmatpush1.bf16.msra.mxu0 0
  %1138 = vmatprep.subr.bf16.mxu0 0
  %1139 = vmatpush1.bf16.msra.mxu0 0
  %1140 = vmatprep.mubr.bf16.mxu0 0
  %1141 = vmatmul.mubr.bf16.gmra.mrb[0].mxu0 %v751
  %v1142 = vpop.f32.mrb[0].mxu0
  %v1143 = vadd.f32 %v879, %v1142
  %v1144 = vpop.f32.mrb[0].mxu0
  %v1145 = vpop.f32.mrb[0].mxu0
  %v1146 = vadd.f32 %v882, %v1145
  %v1147 = vpop.f32.mrb[0].mxu0
  %1148 = vmatprep.mubr.bf16.mxu0 0
  %1149 = vmatmul.mubr.bf16.gmra.mrb[0].mxu0 %v754
  %v1150 = vpop.f32.mrb[0].mxu0
  %v1151 = vadd.f32 %v887, %v1150
  %v1152 = vpop.f32.mrb[0].mxu0
  %v1153 = vpop.f32.mrb[0].mxu0
  %v1154 = vadd.f32 %v890, %v1153
  %v1155 = vpop.f32.mrb[0].mxu0
  %1156 = vmatprep.mubr.bf16.mxu0 0
  %1157 = vmatmul.mubr.bf16.gmra.mrb[0].mxu0 %v757
  %v1158 = vpop.f32.mrb[0].mxu0
  %v1159 = vadd.f32 %v895, %v1158
  %v1160 = vpop.f32.mrb[0].mxu0
  %v1161 = vpop.f32.mrb[0].mxu0
  %v1162 = vadd.f32 %v898, %v1161
  %v1163 = vpop.f32.mrb[0].mxu0
  %1164 = vmatprep.mubr.bf16.mxu0 0
  %1165 = vmatmul.mubr.bf16.gmra.mrb[0].mxu0 %v760
  %v1166 = vpop.f32.mrb[0].mxu0
  %v1167 = vadd.f32 %v903, %v1166
  %v1168 = vpop.f32.mrb[0].mxu0
  %v1169 = vpop.f32.mrb[0].mxu0
  %v1170 = vadd.f32 %v906, %v1169
  %v1171 = vpop.f32.mrb[0].mxu0
  %1172 = vmatprep.mubr.bf16.mxu0 0
  %1173 = vmatmul.mubr.bf16.gmra.mrb[0].mxu0 %v763
  %v1174 = vpop.f32.mrb[0].mxu0
  %v1175 = vadd.f32 %v911, %v1174
  %v1176 = vpop.f32.mrb[0].mxu0
  %v1177 = vpop.f32.mrb[0].mxu0
  %v1178 = vadd.f32 %v914, %v1177
  %v1179 = vpop.f32.mrb[0].mxu0
  %1180 = vmatprep.mubr.bf16.mxu0 0
  %1181 = vmatmul.mubr.bf16.gmra.mrb[0].mxu0 %v766
  %v1182 = vpop.f32.mrb[0].mxu0
  %v1183 = vadd.f32 %v919, %v1182
  %v1184 = vpop.f32.mrb[0].mxu0
  %v1185 = vpop.f32.mrb[0].mxu0
  %v1186 = vadd.f32 %v922, %v1185
  %v1187 = vpop.f32.mrb[0].mxu0
  %1188 = vmatprep.mubr.bf16.mxu0 0
  %1189 = vmatmul.mubr.bf16.gmra.mrb[0].mxu0 %v769
  %v1190 = vpop.f32.mrb[0].mxu0
  %v1191 = vadd.f32 %v927, %v1190
  %v1192 = vpop.f32.mrb[0].mxu0
  %v1193 = vpop.f32.mrb[0].mxu0
  %v1194 = vadd.f32 %v930, %v1193
  %v1195 = vpop.f32.mrb[0].mxu0
  %1196 = vmatprep.mubr.bf16.mxu0 0
  %1197 = vmatmul.mubr.bf16.gmra.mrb[0].mxu0 %v772
  %v1198 = vpop.f32.mrb[0].mxu0
  %v1199 = vadd.f32 %v935, %v1198
  %v1200 = vpop.f32.mrb[0].mxu0
  %v1201 = vpop.f32.mrb[0].mxu0
  %v1202 = vadd.f32 %v938, %v1201
  %v1203 = vpop.f32.mrb[0].mxu0
  %1204 = vmatprep.mubr.bf16.mxu0 0
  %1205 = vmatmul.mubr.bf16.gmra.mrb[0].mxu0 %v775
  %v1206 = vpop.f32.mrb[0].mxu0
  %v1207 = vadd.f32 %v943, %v1206
  %v1208 = vpop.f32.mrb[0].mxu0
  %v1209 = vpop.f32.mrb[0].mxu0
  %v1210 = vadd.f32 %v946, %v1209
  %v1211 = vpop.f32.mrb[0].mxu0
  %1212 = vmatprep.mubr.bf16.mxu0 0
  %1213 = vmatmul.mubr.bf16.gmra.mrb[0].mxu0 %v778
  %v1214 = vpop.f32.mrb[0].mxu0
  %v1215 = vadd.f32 %v951, %v1214
  %v1216 = vpop.f32.mrb[0].mxu0
  %v1217 = vpop.f32.mrb[0].mxu0
  %v1218 = vadd.f32 %v954, %v1217
  %v1219 = vpop.f32.mrb[0].mxu0
  %1220 = vmatprep.mubr.bf16.mxu0 0
  %1221 = vmatmul.mubr.bf16.gmra.mrb[0].mxu0 %v781
  %v1222 = vpop.f32.mrb[0].mxu0
  %v1223 = vadd.f32 %v959, %v1222
  %v1224 = vpop.f32.mrb[0].mxu0
  %v1225 = vpop.f32.mrb[0].mxu0
  %v1226 = vadd.f32 %v962, %v1225
  %v1227 = vpop.f32.mrb[0].mxu0
  %1228 = vmatprep.mubr.bf16.mxu0 0
  %1229 = vmatmul.mubr.bf16.gmra.mrb[0].mxu0 %v784
  %v1230 = vpop.f32.mrb[0].mxu0
  %v1231 = vadd.f32 %v967, %v1230
  %v1232 = vpop.f32.mrb[0].mxu0
  %v1233 = vpop.f32.mrb[0].mxu0
  %v1234 = vadd.f32 %v970, %v1233
  %v1235 = vpop.f32.mrb[0].mxu0
  %1236 = vmatprep.mubr.bf16.mxu0 0
  %1237 = vmatmul.mubr.bf16.gmra.mrb[0].mxu0 %v787
  %v1238 = vpop.f32.mrb[0].mxu0
  %v1239 = vadd.f32 %v975, %v1238
  %v1240 = vpop.f32.mrb[0].mxu0
  %v1241 = vpop.f32.mrb[0].mxu0
  %v1242 = vadd.f32 %v978, %v1241
  %v1243 = vpop.f32.mrb[0].mxu0
  %1244 = vmatprep.mubr.bf16.mxu0 0
  %1245 = vmatmul.mubr.bf16.gmra.mrb[0].mxu0 %v790
  %v1246 = vpop.f32.mrb[0].mxu0
  %v1247 = vadd.f32 %v983, %v1246
  %v1248 = vpop.f32.mrb[0].mxu0
  %v1249 = vpop.f32.mrb[0].mxu0
  %v1250 = vadd.f32 %v986, %v1249
  %v1251 = vpop.f32.mrb[0].mxu0
  %1252 = vmatprep.mubr.bf16.mxu0 0
  %1253 = vmatmul.mubr.bf16.gmra.mrb[0].mxu0 %v793
  %v1254 = vpop.f32.mrb[0].mxu0
  %v1255 = vadd.f32 %v991, %v1254
  %v1256 = vpop.f32.mrb[0].mxu0
  %v1257 = vpop.f32.mrb[0].mxu0
  %v1258 = vadd.f32 %v994, %v1257
  %v1259 = vpop.f32.mrb[0].mxu0
  %1260 = vmatprep.mubr.bf16.mxu0 0
  %1261 = vmatmul.mubr.bf16.gmra.mrb[0].mxu0 %v796
  %v1262 = vpop.f32.mrb[0].mxu0
  %v1263 = vadd.f32 %v999, %v1262
  %v1264 = vpop.f32.mrb[0].mxu0
  %v1265 = vpop.f32.mrb[0].mxu0
  %v1266 = vadd.f32 %v1002, %v1265
  %v1267 = vpop.f32.mrb[0].mxu0
  %1268 = vmatprep.mubr.bf16.mxu0 0
  %1269 = vmatmul.mubr.bf16.gmra.mrb[0].mxu0 %v799
  %v1270 = vpop.f32.mrb[0].mxu0
  %v1271 = vadd.f32 %v1007, %v1270
  %v1272 = vpop.f32.mrb[0].mxu0
  %v1273 = vpop.f32.mrb[0].mxu0
  %v1274 = vadd.f32 %v1010, %v1273
  %v1275 = vpop.f32.mrb[0].mxu0
  %1276 = vmatprep.mubr.bf16.mxu0 0
  %1277 = vmatmul.mubr.bf16.gmra.mrb[0].mxu0 %v802
  %v1278 = vpop.f32.mrb[0].mxu0
  %v1279 = vadd.f32 %v1015, %v1278
  %v1280 = vpop.f32.mrb[0].mxu0
  %v1281 = vpop.f32.mrb[0].mxu0
  %v1282 = vadd.f32 %v1018, %v1281
  %v1283 = vpop.f32.mrb[0].mxu0
  %1284 = vmatprep.mubr.bf16.mxu0 0
  %1285 = vmatmul.mubr.bf16.gmra.mrb[0].mxu0 %v805
  %v1286 = vpop.f32.mrb[0].mxu0
  %v1287 = vadd.f32 %v1023, %v1286
  %v1288 = vpop.f32.mrb[0].mxu0
  %v1289 = vpop.f32.mrb[0].mxu0
  %v1290 = vadd.f32 %v1026, %v1289
  %v1291 = vpop.f32.mrb[0].mxu0
  %1292 = vmatprep.mubr.bf16.mxu0 0
  %1293 = vmatmul.mubr.bf16.gmra.mrb[0].mxu0 %v808
  %v1294 = vpop.f32.mrb[0].mxu0
  %v1295 = vadd.f32 %v1031, %v1294
  %v1296 = vpop.f32.mrb[0].mxu0
  %v1297 = vpop.f32.mrb[0].mxu0
  %v1298 = vadd.f32 %v1034, %v1297
  %v1299 = vpop.f32.mrb[0].mxu0
  %1300 = vmatprep.mubr.bf16.mxu0 0
  %1301 = vmatmul.mubr.bf16.gmra.mrb[0].mxu0 %v811
  %v1302 = vpop.f32.mrb[0].mxu0
  %v1303 = vadd.f32 %v1039, %v1302
  %v1304 = vpop.f32.mrb[0].mxu0
  %v1305 = vpop.f32.mrb[0].mxu0
  %v1306 = vadd.f32 %v1042, %v1305
  %v1307 = vpop.f32.mrb[0].mxu0
  %1308 = vmatprep.mubr.bf16.mxu0 0
  %1309 = vmatmul.mubr.bf16.gmra.mrb[0].mxu0 %v814
  %v1310 = vpop.f32.mrb[0].mxu0
  %v1311 = vadd.f32 %v1047, %v1310
  %v1312 = vpop.f32.mrb[0].mxu0
  %v1313 = vpop.f32.mrb[0].mxu0
  %v1314 = vadd.f32 %v1050, %v1313
  %v1315 = vpop.f32.mrb[0].mxu0
  %1316 = vmatprep.mubr.bf16.mxu0 0
  %1317 = vmatmul.mubr.bf16.gmra.mrb[0].mxu0 %v817
  %v1318 = vpop.f32.mrb[0].mxu0
  %v1319 = vadd.f32 %v1055, %v1318
  %v1320 = vpop.f32.mrb[0].mxu0
  %v1321 = vpop.f32.mrb[0].mxu0
  %v1322 = vadd.f32 %v1058, %v1321
  %v1323 = vpop.f32.mrb[0].mxu0
  %1324 = vmatprep.mubr.bf16.mxu0 0
  %1325 = vmatmul.mubr.bf16.gmra.mrb[0].mxu0 %v820
  %v1326 = vpop.f32.mrb[0].mxu0
  %v1327 = vadd.f32 %v1063, %v1326
  %v1328 = vpop.f32.mrb[0].mxu0
  %v1329 = vpop.f32.mrb[0].mxu0
  %v1330 = vadd.f32 %v1066, %v1329
  %v1331 = vpop.f32.mrb[0].mxu0
  %1332 = vmatprep.mubr.bf16.mxu0 0
  %1333 = vmatmul.mubr.bf16.gmra.mrb[0].mxu0 %v823
  %v1334 = vpop.f32.mrb[0].mxu0
  %v1335 = vadd.f32 %v1071, %v1334
  %v1336 = vpop.f32.mrb[0].mxu0
  %v1337 = vpop.f32.mrb[0].mxu0
  %v1338 = vadd.f32 %v1074, %v1337
  %v1339 = vpop.f32.mrb[0].mxu0
  %1340 = vmatprep.mubr.bf16.mxu0 0
  %1341 = vmatmul.mubr.bf16.gmra.mrb[0].mxu0 %v826
  %v1342 = vpop.f32.mrb[0].mxu0
  %v1343 = vadd.f32 %v1079, %v1342
  %v1344 = vpop.f32.mrb[0].mxu0
  %v1345 = vpop.f32.mrb[0].mxu0
  %v1346 = vadd.f32 %v1082, %v1345
  %v1347 = vpop.f32.mrb[0].mxu0
  %1348 = vmatprep.mubr.bf16.mxu0 0
  %1349 = vmatmul.mubr.bf16.gmra.mrb[0].mxu0 %v829
  %v1350 = vpop.f32.mrb[0].mxu0
  %v1351 = vadd.f32 %v1087, %v1350
  %v1352 = vpop.f32.mrb[0].mxu0
  %v1353 = vpop.f32.mrb[0].mxu0
  %v1354 = vadd.f32 %v1090, %v1353
  %v1355 = vpop.f32.mrb[0].mxu0
  %1356 = vmatprep.mubr.bf16.mxu0 0
  %1357 = vmatmul.mubr.bf16.gmra.mrb[0].mxu0 %v832
  %v1358 = vpop.f32.mrb[0].mxu0
  %v1359 = vadd.f32 %v1095, %v1358
  %v1360 = vpop.f32.mrb[0].mxu0
  %v1361 = vpop.f32.mrb[0].mxu0
  %v1362 = vadd.f32 %v1098, %v1361
  %v1363 = vpop.f32.mrb[0].mxu0
  %1364 = vmatprep.mubr.bf16.mxu0 0
  %1365 = vmatmul.mubr.bf16.gmra.mrb[0].mxu0 %v835
  %v1366 = vpop.f32.mrb[0].mxu0
  %v1367 = vadd.f32 %v1103, %v1366
  %v1368 = vpop.f32.mrb[0].mxu0
  %v1369 = vpop.f32.mrb[0].mxu0
  %v1370 = vpop.f32.mrb[0].mxu0
  %1371 = vdwg.mxu0
  %v1372 = vmax.f32 %v1143, 0.0
  %v1373 = vmax.f32 %v1146, 0.0
  %v1374 = vmax.f32 %v1151, 0.0
  %v1375 = vmax.f32 %v1154, 0.0
  %v1376 = vmax.f32 %v1159, 0.0
  %v1377 = vmax.f32 %v1162, 0.0
  %v1378 = vmax.f32 %v1167, 0.0
  %v1379 = vmax.f32 %v1170, 0.0
  %v1380 = vmax.f32 %v1175, 0.0
  %v1381 = vmax.f32 %v1178, 0.0
  %v1382 = vmax.f32 %v1183, 0.0
  %v1383 = vmax.f32 %v1186, 0.0
  %v1384 = vmax.f32 %v1191, 0.0
  %v1385 = vmax.f32 %v1194, 0.0
  %v1386 = vmax.f32 %v1199, 0.0
  %v1387 = vmax.f32 %v1202, 0.0
  %v1388 = vmax.f32 %v1207, 0.0
  %v1389 = vmax.f32 %v1210, 0.0
  %v1390 = vmax.f32 %v1215, 0.0
  %v1391 = vmax.f32 %v1218, 0.0
  %v1392 = vmax.f32 %v1223, 0.0
  %v1393 = vmax.f32 %v1226, 0.0
  %v1394 = vmax.f32 %v1231, 0.0
  %v1395 = vmax.f32 %v1234, 0.0
  %v1396 = vmax.f32 %v1239, 0.0
  %v1397 = vmax.f32 %v1242, 0.0
  %v1398 = vmax.f32 %v1247, 0.0
  %v1399 = vmax.f32 %v1250, 0.0
  %v1400 = vmax.f32 %v1255, 0.0
  %v1401 = vmax.f32 %v1258, 0.0
  %v1402 = vmax.f32 %v1263, 0.0
  %v1403 = vmax.f32 %v1266, 0.0
  %v1404 = vmax.f32 %v1271, 0.0
  %v1405 = vmax.f32 %v1274, 0.0
  %v1406 = vmax.f32 %v1279, 0.0
  %v1407 = vmax.f32 %v1282, 0.0
  %v1408 = vmax.f32 %v1287, 0.0
  %v1409 = vmax.f32 %v1290, 0.0
  %v1410 = vmax.f32 %v1295, 0.0
  %v1411 = vmax.f32 %v1298, 0.0
  %v1412 = vmax.f32 %v1303, 0.0
  %v1413 = vmax.f32 %v1306, 0.0
  %v1414 = vmax.f32 %v1311, 0.0
  %v1415 = vmax.f32 %v1314, 0.0
  %v1416 = vmax.f32 %v1319, 0.0
  %v1417 = vmax.f32 %v1322, 0.0
  %v1418 = vmax.f32 %v1327, 0.0
  %v1419 = vmax.f32 %v1330, 0.0
  %v1420 = vmax.f32 %v1335, 0.0
  %v1421 = vmax.f32 %v1338, 0.0
  %v1422 = vmax.f32 %v1343, 0.0
  %v1423 = vmax.f32 %v1346, 0.0
  %v1424 = vmax.f32 %v1351, 0.0
  %v1425 = vmax.f32 %v1354, 0.0
  %v1426 = vmax.f32 %v1359, 0.0
  %v1427 = vmax.f32 %v1362, 0.0
  %v1428 = vmax.f32 %v1367, 0.0
  %v1429 = vpack.c.bf16 %v1373, %v1372
  %v1430 = vpack.c.bf16 %v1375, %v1374
  %v1431 = vpack.c.bf16 %v1377, %v1376
  %v1432 = vpack.c.bf16 %v1379, %v1378
  %v1433 = vpack.c.bf16 %v1381, %v1380
  %v1434 = vpack.c.bf16 %v1383, %v1382
  %v1435 = vpack.c.bf16 %v1385, %v1384
  %v1436 = vpack.c.bf16 %v1387, %v1386
  %v1437 = vpack.c.bf16 %v1389, %v1388
  %v1438 = vpack.c.bf16 %v1391, %v1390
  %v1439 = vpack.c.bf16 %v1393, %v1392
  %v1440 = vpack.c.bf16 %v1395, %v1394
  %v1441 = vpack.c.bf16 %v1397, %v1396
  %v1442 = vpack.c.bf16 %v1399, %v1398
  %v1443 = vpack.c.bf16 %v1401, %v1400
  %v1444 = vpack.c.bf16 %v1403, %v1402
  %v1445 = vpack.c.bf16 %v1405, %v1404
  %v1446 = vpack.c.bf16 %v1407, %v1406
  %v1447 = vpack.c.bf16 %v1409, %v1408
  %v1448 = vpack.c.bf16 %v1411, %v1410
  %v1449 = vpack.c.bf16 %v1413, %v1412
  %v1450 = vpack.c.bf16 %v1415, %v1414
  %v1451 = vpack.c.bf16 %v1417, %v1416
  %v1452 = vpack.c.bf16 %v1419, %v1418
  %v1453 = vpack.c.bf16 %v1421, %v1420
  %v1454 = vpack.c.bf16 %v1423, %v1422
  %v1455 = vpack.c.bf16 %v1425, %v1424
  %v1456 = vpack.c.bf16 %v1427, %v1426
  %v1457 = vpack.c.bf16 %v1428, %v1428
  %v1487 = vunpack.c.l.b16 %v1429
  %v1488 = vunpack.c.h.b16 %v1429
  %v1489 = vunpack.c.l.b16 %v1430
  %v1490 = vunpack.c.h.b16 %v1430
  %v1491 = vunpack.c.l.b16 %v1431
  %v1492 = vunpack.c.h.b16 %v1431
  %v1493 = vunpack.c.l.b16 %v1432
  %v1494 = vunpack.c.h.b16 %v1432
  %v1495 = vunpack.c.l.b16 %v1433
  %v1496 = vunpack.c.h.b16 %v1433
  %v1497 = vunpack.c.l.b16 %v1434
  %v1498 = vunpack.c.h.b16 %v1434
  %v1499 = vunpack.c.l.b16 %v1435
  %v1500 = vunpack.c.h.b16 %v1435
  %v1501 = vunpack.c.l.b16 %v1436
  %v1502 = vunpack.c.h.b16 %v1436
  %v1503 = vunpack.c.l.b16 %v1437
  %v1504 = vunpack.c.h.b16 %v1437
  %v1505 = vunpack.c.l.b16 %v1438
  %v1506 = vunpack.c.h.b16 %v1438
  %v1507 = vunpack.c.l.b16 %v1439
  %v1508 = vunpack.c.h.b16 %v1439
  %v1509 = vunpack.c.l.b16 %v1440
  %v1510 = vunpack.c.h.b16 %v1440
  %v1511 = vunpack.c.l.b16 %v1441
  %v1512 = vunpack.c.h.b16 %v1441
  %v1513 = vunpack.c.l.b16 %v1442
  %v1514 = vunpack.c.h.b16 %v1442
  %v1515 = vunpack.c.l.b16 %v1443
  %v1516 = vunpack.c.h.b16 %v1443
  %v1517 = vunpack.c.l.b16 %v1444
  %v1518 = vunpack.c.h.b16 %v1444
  %v1519 = vunpack.c.l.b16 %v1445
  %v1520 = vunpack.c.h.b16 %v1445
  %v1521 = vunpack.c.l.b16 %v1446
  %v1522 = vunpack.c.h.b16 %v1446
  %v1523 = vunpack.c.l.b16 %v1447
  %v1524 = vunpack.c.h.b16 %v1447
  %v1525 = vunpack.c.l.b16 %v1448
  %v1526 = vunpack.c.h.b16 %v1448
  %v1527 = vunpack.c.l.b16 %v1449
  %v1528 = vunpack.c.h.b16 %v1449
  %v1529 = vunpack.c.l.b16 %v1450
  %v1530 = vunpack.c.h.b16 %v1450
  %v1531 = vunpack.c.l.b16 %v1451
  %v1532 = vunpack.c.h.b16 %v1451
  %v1533 = vunpack.c.l.b16 %v1452
  %v1534 = vunpack.c.h.b16 %v1452
  %v1535 = vunpack.c.l.b16 %v1453
  %v1536 = vunpack.c.h.b16 %v1453
  %v1537 = vunpack.c.l.b16 %v1454
  %v1538 = vunpack.c.h.b16 %v1454
  %v1539 = vunpack.c.l.b16 %v1455
  %v1540 = vunpack.c.h.b16 %v1455
  %v1541 = vunpack.c.l.b16 %v1456
  %v1542 = vunpack.c.h.b16 %v1456
  %v1543 = vunpack.c.l.b16 %v1457
  %v1544 = vpack.c.b16 %v1487, %v1487
  %v1545 = vpack.c.b16 %v1488, %v1488
  %v1546 = vpack.c.b16 %v1489, %v1489
  %v1547 = vpack.c.b16 %v1490, %v1490
  %v1548 = vpack.c.b16 %v1491, %v1491
  %v1549 = vpack.c.b16 %v1492, %v1492
  %v1550 = vpack.c.b16 %v1493, %v1493
  %v1551 = vpack.c.b16 %v1494, %v1494
  %v1552 = vpack.c.b16 %v1495, %v1495
  %v1553 = vpack.c.b16 %v1496, %v1496
  %v1554 = vpack.c.b16 %v1497, %v1497
  %v1555 = vpack.c.b16 %v1498, %v1498
  %v1556 = vpack.c.b16 %v1499, %v1499
  %v1557 = vpack.c.b16 %v1500, %v1500
  %v1558 = vpack.c.b16 %v1501, %v1501
  %v1559 = vpack.c.b16 %v1502, %v1502
  %v1560 = vpack.c.b16 %v1503, %v1503
  %v1561 = vpack.c.b16 %v1504, %v1504
  %v1562 = vpack.c.b16 %v1505, %v1505
  %v1563 = vpack.c.b16 %v1506, %v1506
  %v1564 = vpack.c.b16 %v1507, %v1507
  %v1565 = vpack.c.b16 %v1508, %v1508
  %v1566 = vpack.c.b16 %v1509, %v1509
  %v1567 = vpack.c.b16 %v1510, %v1510
  %v1568 = vpack.c.b16 %v1511, %v1511
  %v1569 = vpack.c.b16 %v1512, %v1512
  %v1570 = vpack.c.b16 %v1513, %v1513
  %v1571 = vpack.c.b16 %v1514, %v1514
  %v1572 = vpack.c.b16 %v1515, %v1515
  %v1573 = vpack.c.b16 %v1516, %v1516
  %v1574 = vpack.c.b16 %v1517, %v1517
  %v1575 = vpack.c.b16 %v1518, %v1518
  %v1576 = vpack.c.b16 %v1519, %v1519
  %v1577 = vpack.c.b16 %v1520, %v1520
  %v1578 = vpack.c.b16 %v1521, %v1521
  %v1579 = vpack.c.b16 %v1522, %v1522
  %v1580 = vpack.c.b16 %v1523, %v1523
  %v1581 = vpack.c.b16 %v1524, %v1524
  %v1582 = vpack.c.b16 %v1525, %v1525
  %v1583 = vpack.c.b16 %v1526, %v1526
  %v1584 = vpack.c.b16 %v1527, %v1527
  %v1585 = vpack.c.b16 %v1528, %v1528
  %v1586 = vpack.c.b16 %v1529, %v1529
  %v1587 = vpack.c.b16 %v1530, %v1530
  %v1588 = vpack.c.b16 %v1531, %v1531
  %v1589 = vpack.c.b16 %v1532, %v1532
  %v1590 = vpack.c.b16 %v1533, %v1533
  %v1591 = vpack.c.b16 %v1534, %v1534
  %v1592 = vpack.c.b16 %v1535, %v1535
  %v1593 = vpack.c.b16 %v1536, %v1536
  %v1594 = vpack.c.b16 %v1537, %v1537
  %v1595 = vpack.c.b16 %v1538, %v1538
  %v1596 = vpack.c.b16 %v1539, %v1539
  %v1597 = vpack.c.b16 %v1540, %v1540
  %v1598 = vpack.c.b16 %v1541, %v1541
  %v1599 = vpack.c.b16 %v1542, %v1542
  %v1600 = vpack.c.b16 %v1543, %v1543
  %1658 = vst [vmem:[%s3] sm:$0xf] %v1544
  %1659 = vst [vmem:[%s3 + $0x4] sm:$0xf] %v1545
  %1660 = vst [vmem:[%s3 + $0x8] sm:$0xf] %v1546
  %1661 = vst [vmem:[%s3 + $0xc] sm:$0xf] %v1547
  %1662 = vst [vmem:[%s3 + $0x10] sm:$0xf] %v1548
  %1663 = vst [vmem:[%s3 + $0x14] sm:$0xf] %v1549
  %1664 = vst [vmem:[%s3 + $0x18] sm:$0xf] %v1550
  %1665 = vst [vmem:[%s3 + $0x1c] sm:$0xf] %v1551
  %1666 = vst [vmem:[%s3 + $0x20] sm:$0xf] %v1552
  %1667 = vst [vmem:[%s3 + $0x24] sm:$0xf] %v1553
  %1668 = vst [vmem:[%s3 + $0x28] sm:$0xf] %v1554
  %1669 = vst [vmem:[%s3 + $0x2c] sm:$0xf] %v1555
  %1670 = vst [vmem:[%s3 + $0x30] sm:$0xf] %v1556
  %1671 = vst [vmem:[%s3 + $0x34] sm:$0xf] %v1557
  %1672 = vst [vmem:[%s3 + $0x38] sm:$0xf] %v1558
  %1673 = vst [vmem:[%s3 + $0x3c] sm:$0xf] %v1559
  %1674 = vst [vmem:[%s3 + $0x40] sm:$0xf] %v1560
  %1675 = vst [vmem:[%s3 + $0x44] sm:$0xf] %v1561
  %1676 = vst [vmem:[%s3 + $0x48] sm:$0xf] %v1562
  %1677 = vst [vmem:[%s3 + $0x4c] sm:$0xf] %v1563
  %1678 = vst [vmem:[%s3 + $0x50] sm:$0xf] %v1564
  %1679 = vst [vmem:[%s3 + $0x54] sm:$0xf] %v1565
  %1680 = vst [vmem:[%s3 + $0x58] sm:$0xf] %v1566
  %1681 = vst [vmem:[%s3 + $0x5c] sm:$0xf] %v1567
  %1682 = vst [vmem:[%s3 + $0x60] sm:$0xf] %v1568
  %1683 = vst [vmem:[%s3 + $0x64] sm:$0xf] %v1569
  %1684 = vst [vmem:[%s3 + $0x68] sm:$0xf] %v1570
  %1685 = vst [vmem:[%s3 + $0x6c] sm:$0xf] %v1571
  %1686 = vst [vmem:[%s3 + $0x70] sm:$0xf] %v1572
  %1687 = vst [vmem:[%s3 + $0x74] sm:$0xf] %v1573
  %1688 = vst [vmem:[%s3 + $0x78] sm:$0xf] %v1574
  %1689 = vst [vmem:[%s3 + $0x7c] sm:$0xf] %v1575
  %1690 = vst [vmem:[%s3 + $0x80] sm:$0xf] %v1576
  %1691 = vst [vmem:[%s3 + $0x84] sm:$0xf] %v1577
  %1692 = vst [vmem:[%s3 + $0x88] sm:$0xf] %v1578
  %1693 = vst [vmem:[%s3 + $0x8c] sm:$0xf] %v1579
  %1694 = vst [vmem:[%s3 + $0x90] sm:$0xf] %v1580
  %1695 = vst [vmem:[%s3 + $0x94] sm:$0xf] %v1581
  %1696 = vst [vmem:[%s3 + $0x98] sm:$0xf] %v1582
  %1697 = vst [vmem:[%s3 + $0x9c] sm:$0xf] %v1583
  %1698 = vst [vmem:[%s3 + $0xa0] sm:$0xf] %v1584
  %1699 = vst [vmem:[%s3 + $0xa4] sm:$0xf] %v1585
  %1700 = vst [vmem:[%s3 + $0xa8] sm:$0xf] %v1586
  %1701 = vst [vmem:[%s3 + $0xac] sm:$0xf] %v1587
  %1702 = vst [vmem:[%s3 + $0xb0] sm:$0xf] %v1588
  %1703 = vst [vmem:[%s3 + $0xb4] sm:$0xf] %v1589
  %1704 = vst [vmem:[%s3 + $0xb8] sm:$0xf] %v1590
  %1705 = vst [vmem:[%s3 + $0xbc] sm:$0xf] %v1591
  %1706 = vst [vmem:[%s3 + $0xc0] sm:$0xf] %v1592
  %1707 = vst [vmem:[%s3 + $0xc4] sm:$0xf] %v1593
  %1708 = vst [vmem:[%s3 + $0xc8] sm:$0xf] %v1594
  %1709 = vst [vmem:[%s3 + $0xcc] sm:$0xf] %v1595
  %1710 = vst [vmem:[%s3 + $0xd0] sm:$0xf] %v1596
  %1711 = vst [vmem:[%s3 + $0xd4] sm:$0xf] %v1597
  %1712 = vst [vmem:[%s3 + $0xd8] sm:$0xf] %v1598
  %1713 = vst [vmem:[%s3 + $0xdc] sm:$0xf] %v1599
  %1714 = vst [vmem:[%s3 + $0xe0] sm:$0x1] %v1600
  // Predicated region
  $region14: #{alexnet_forward.7} parent=0 // pred_check
    _
  $region15: #{alexnet_forward.7} parent=0 // pred_check_branch
    %1716 = sbr.rel (0) target = $region17
  $region16: #{alexnet_forward.7} parent=0 // pred_region
    _
  $region17: #{alexnet_forward.7} parent=0 // pred_fallthru
    _
  // Predicated region
  $region18: #{alexnet_forward.7} parent=0 // pred_check
    _
  $region19: #{alexnet_forward.7} parent=0 // pred_check_branch
    %1718 = sbr.rel (0) target = $region21
  $region20: #{alexnet_forward.7} parent=0 // pred_region
    _
  $region21: #{alexnet_forward.7} parent=0 // pred_fallthru
    _

// kernel: alexnet_forward.8
$region0: #{alexnet_forward.8}
  #allocation0 [shape = 'u32[]', space=smem, size = 0x4, offset = 0x4, fixed_abs, tag = 'smem constant byte address 0x4 - core index']
  #allocation1 [shape = 'u32[144,128]{1,0:T(1,128)}', space=vmem, size = 0x12000, scoped, tag = 'internal scratch']
  %s0 = inlined_call_operand.vmem [shape: bf16[98,128], index: 0, kind: input, shape index: {}]
  %s1 = inlined_call_operand.vmem [shape: bf16[98,128], index: 1, kind: input, shape index: {}]
  %s2 = inlined_call_operand.vmem [shape: bf16[98,128], index: 2, kind: input, shape index: {}]
  %s3 = inlined_call_operand.vmem [shape: bf16[98,128], index: 3, kind: input, shape index: {}]
  %s4 = inlined_call_operand.vmem [shape: bf16[98,128], index: 4, kind: input, shape index: {}]
  %s5 = inlined_call_operand.vmem [shape: bf16[98,128], index: 5, kind: input, shape index: {}]
  %s6 = inlined_call_operand.vmem [shape: bf16[98,128], index: 6, kind: input, shape index: {}]
  %s7 = inlined_call_operand.vmem [shape: bf16[98,128], index: 7, kind: input, shape index: {}]
  %s8 = inlined_call_operand.vmem [shape: bf16[98,128], index: 8, kind: input, shape index: {}]
  %s9 = inlined_call_operand.vmem [shape: bf16[98,128], index: 9, kind: output, shape index: {}]
  %s10 = sld [smem:[#allocation0]]
  $region46: #{alexnet_forward.8} parent=0
    _
  %s12 = ssub.s32 1, %s10
  %s13 = scalar_select 0, %s12, %s10
  // Predicated region
  $region2: #{alexnet_forward.8} parent=0 // pred_check
    _
  $region3: #{alexnet_forward.8} parent=0 // pred_check_branch
    %15 = sbr.rel (0) target = $region5
  $region4: #{alexnet_forward.8} parent=0 // pred_region
    _
  $region5: #{alexnet_forward.8} parent=0 // pred_fallthru
    _
  // Predicated region
  $region6: #{alexnet_forward.8} parent=0 // pred_check
    _
  $region7: #{alexnet_forward.8} parent=0 // pred_check_branch
    %17 = sbr.rel (0) target = $region9
  $region8: #{alexnet_forward.8} parent=0 // pred_region
    _
  $region9: #{alexnet_forward.8} parent=0 // pred_fallthru
    _
  // Predicated region
  $region10: #{alexnet_forward.8} parent=0 // pred_check
    _
  $region11: #{alexnet_forward.8} parent=0 // pred_check_branch
    %19 = sbr.rel (0) target = $region13
  $region12: #{alexnet_forward.8} parent=0 // pred_region
    _
  $region13: #{alexnet_forward.8} parent=0 // pred_fallthru
    _
  // Predicated region
  $region14: #{alexnet_forward.8} parent=0 // pred_check
    _
  $region15: #{alexnet_forward.8} parent=0 // pred_check_branch
    %21 = sbr.rel (0) target = $region17
  $region16: #{alexnet_forward.8} parent=0 // pred_region
    _
  $region17: #{alexnet_forward.8} parent=0 // pred_fallthru
    _
  // Predicated region
  $region18: #{alexnet_forward.8} parent=0 // pred_check
    _
  $region19: #{alexnet_forward.8} parent=0 // pred_check_branch
    %23 = sbr.rel (0) target = $region21
  $region20: #{alexnet_forward.8} parent=0 // pred_region
    _
  $region21: #{alexnet_forward.8} parent=0 // pred_fallthru
    _
  // Predicated region
  $region22: #{alexnet_forward.8} parent=0 // pred_check
    _
  $region23: #{alexnet_forward.8} parent=0 // pred_check_branch
    %25 = sbr.rel (0) target = $region25
  $region24: #{alexnet_forward.8} parent=0 // pred_region
    _
  $region25: #{alexnet_forward.8} parent=0 // pred_fallthru
    _
  // Predicated region
  $region26: #{alexnet_forward.8} parent=0 // pred_check
    _
  $region27: #{alexnet_forward.8} parent=0 // pred_check_branch
    %27 = sbr.rel (0) target = $region29
  $region28: #{alexnet_forward.8} parent=0 // pred_region
    _
  $region29: #{alexnet_forward.8} parent=0 // pred_fallthru
    _
  // Predicated region
  $region30: #{alexnet_forward.8} parent=0 // pred_check
    _
  $region31: #{alexnet_forward.8} parent=0 // pred_check_branch
    %29 = sbr.rel (0) target = $region33
  $region32: #{alexnet_forward.8} parent=0 // pred_region
    _
  $region33: #{alexnet_forward.8} parent=0 // pred_fallthru
    _
  // Predicated region
  $region34: #{alexnet_forward.8} parent=0 // pred_check
    _
  $region35: #{alexnet_forward.8} parent=0 // pred_check_branch
    %31 = sbr.rel (0) target = $region37
  $region36: #{alexnet_forward.8} parent=0 // pred_region
    _
  $region37: #{alexnet_forward.8} parent=0 // pred_fallthru
    _
  %v32 = vld [vmem:[%s0] sm:$0xf]
  %v33 = vld [vmem:[%s0 + $0x4] sm:$0xf]
  %v34 = vld [vmem:[%s0 + $0x8] sm:$0xf]
  %v35 = vld [vmem:[%s0 + $0xc] sm:$0xf]
  %v36 = vld [vmem:[%s0 + $0x10] sm:$0xf]
  %v37 = vld [vmem:[%s0 + $0x14] sm:$0xf]
  %v38 = vld [vmem:[%s0 + $0x18] sm:$0xf]
  %v39 = vld [vmem:[%s0 + $0x1c] sm:$0xf]
  %v40 = vld [vmem:[%s0 + $0x20] sm:$0xf]
  %v41 = vld [vmem:[%s0 + $0x24] sm:$0xf]
  %v42 = vld [vmem:[%s0 + $0x28] sm:$0xf]
  %v43 = vld [vmem:[%s0 + $0x2c] sm:$0xf]
  %v44 = vld [vmem:[%s0 + $0x30] sm:$0x1]
  %v45 = vld [vmem:[%s1] sm:$0xf]
  %v46 = vld [vmem:[%s1 + $0x4] sm:$0xf]
  %v47 = vld [vmem:[%s1 + $0x8] sm:$0xf]
  %v48 = vld [vmem:[%s1 + $0xc] sm:$0xf]
  %v49 = vld [vmem:[%s1 + $0x10] sm:$0xf]
  %v50 = vld [vmem:[%s1 + $0x14] sm:$0xf]
  %v51 = vld [vmem:[%s1 + $0x18] sm:$0xf]
  %v52 = vld [vmem:[%s1 + $0x1c] sm:$0xf]
  %v53 = vld [vmem:[%s1 + $0x20] sm:$0xf]
  %v54 = vld [vmem:[%s1 + $0x24] sm:$0xf]
  %v55 = vld [vmem:[%s1 + $0x28] sm:$0xf]
  %v56 = vld [vmem:[%s1 + $0x2c] sm:$0xf]
  %v57 = vld [vmem:[%s1 + $0x30] sm:$0x1]
  %v58 = vmax.bf16 %v32, %v45
  %v59 = vmax.bf16 %v33, %v46
  %v60 = vmax.bf16 %v34, %v47
  %v61 = vmax.bf16 %v35, %v48
  %v62 = vmax.bf16 %v36, %v49
  %v63 = vmax.bf16 %v37, %v50
  %v64 = vmax.bf16 %v38, %v51
  %v65 = vmax.bf16 %v39, %v52
  %v66 = vmax.bf16 %v40, %v53
  %v67 = vmax.bf16 %v41, %v54
  %v68 = vmax.bf16 %v42, %v55
  %v69 = vmax.bf16 %v43, %v56
  %v70 = vmax.bf16 %v44, %v57
  %v71 = vld [vmem:[%s2] sm:$0xf]
  %v72 = vld [vmem:[%s2 + $0x4] sm:$0xf]
  %v73 = vld [vmem:[%s2 + $0x8] sm:$0xf]
  %v74 = vld [vmem:[%s2 + $0xc] sm:$0xf]
  %v75 = vld [vmem:[%s2 + $0x10] sm:$0xf]
  %v76 = vld [vmem:[%s2 + $0x14] sm:$0xf]
  %v77 = vld [vmem:[%s2 + $0x18] sm:$0xf]
  %v78 = vld [vmem:[%s2 + $0x1c] sm:$0xf]
  %v79 = vld [vmem:[%s2 + $0x20] sm:$0xf]
  %v80 = vld [vmem:[%s2 + $0x24] sm:$0xf]
  %v81 = vld [vmem:[%s2 + $0x28] sm:$0xf]
  %v82 = vld [vmem:[%s2 + $0x2c] sm:$0xf]
  %v83 = vld [vmem:[%s2 + $0x30] sm:$0x1]
  %v84 = vmax.bf16 %v58, %v71
  %v85 = vmax.bf16 %v59, %v72
  %v86 = vmax.bf16 %v60, %v73
  %v87 = vmax.bf16 %v61, %v74
  %v88 = vmax.bf16 %v62, %v75
  %v89 = vmax.bf16 %v63, %v76
  %v90 = vmax.bf16 %v64, %v77
  %v91 = vmax.bf16 %v65, %v78
  %v92 = vmax.bf16 %v66, %v79
  %v93 = vmax.bf16 %v67, %v80
  %v94 = vmax.bf16 %v68, %v81
  %v95 = vmax.bf16 %v69, %v82
  %v96 = vmax.bf16 %v70, %v83
  %v97 = vld [vmem:[%s3] sm:$0xf]
  %v98 = vld [vmem:[%s3 + $0x4] sm:$0xf]
  %v99 = vld [vmem:[%s3 + $0x8] sm:$0xf]
  %v100 = vld [vmem:[%s3 + $0xc] sm:$0xf]
  %v101 = vld [vmem:[%s3 + $0x10] sm:$0xf]
  %v102 = vld [vmem:[%s3 + $0x14] sm:$0xf]
  %v103 = vld [vmem:[%s3 + $0x18] sm:$0xf]
  %v104 = vld [vmem:[%s3 + $0x1c] sm:$0xf]
  %v105 = vld [vmem:[%s3 + $0x20] sm:$0xf]
  %v106 = vld [vmem:[%s3 + $0x24] sm:$0xf]
  %v107 = vld [vmem:[%s3 + $0x28] sm:$0xf]
  %v108 = vld [vmem:[%s3 + $0x2c] sm:$0xf]
  %v109 = vld [vmem:[%s3 + $0x30] sm:$0x1]
  %v110 = vld [vmem:[%s4] sm:$0xf]
  %v111 = vld [vmem:[%s4 + $0x4] sm:$0xf]
  %v112 = vld [vmem:[%s4 + $0x8] sm:$0xf]
  %v113 = vld [vmem:[%s4 + $0xc] sm:$0xf]
  %v114 = vld [vmem:[%s4 + $0x10] sm:$0xf]
  %v115 = vld [vmem:[%s4 + $0x14] sm:$0xf]
  %v116 = vld [vmem:[%s4 + $0x18] sm:$0xf]
  %v117 = vld [vmem:[%s4 + $0x1c] sm:$0xf]
  %v118 = vld [vmem:[%s4 + $0x20] sm:$0xf]
  %v119 = vld [vmem:[%s4 + $0x24] sm:$0xf]
  %v120 = vld [vmem:[%s4 + $0x28] sm:$0xf]
  %v121 = vld [vmem:[%s4 + $0x2c] sm:$0xf]
  %v122 = vld [vmem:[%s4 + $0x30] sm:$0x1]
  %v123 = vmax.bf16 %v97, %v110
  %v124 = vmax.bf16 %v98, %v111
  %v125 = vmax.bf16 %v99, %v112
  %v126 = vmax.bf16 %v100, %v113
  %v127 = vmax.bf16 %v101, %v114
  %v128 = vmax.bf16 %v102, %v115
  %v129 = vmax.bf16 %v103, %v116
  %v130 = vmax.bf16 %v104, %v117
  %v131 = vmax.bf16 %v105, %v118
  %v132 = vmax.bf16 %v106, %v119
  %v133 = vmax.bf16 %v107, %v120
  %v134 = vmax.bf16 %v108, %v121
  %v135 = vmax.bf16 %v109, %v122
  %v136 = vld [vmem:[%s5] sm:$0xf]
  %v137 = vld [vmem:[%s5 + $0x4] sm:$0xf]
  %v138 = vld [vmem:[%s5 + $0x8] sm:$0xf]
  %v139 = vld [vmem:[%s5 + $0xc] sm:$0xf]
  %v140 = vld [vmem:[%s5 + $0x10] sm:$0xf]
  %v141 = vld [vmem:[%s5 + $0x14] sm:$0xf]
  %v142 = vld [vmem:[%s5 + $0x18] sm:$0xf]
  %v143 = vld [vmem:[%s5 + $0x1c] sm:$0xf]
  %v144 = vld [vmem:[%s5 + $0x20] sm:$0xf]
  %v145 = vld [vmem:[%s5 + $0x24] sm:$0xf]
  %v146 = vld [vmem:[%s5 + $0x28] sm:$0xf]
  %v147 = vld [vmem:[%s5 + $0x2c] sm:$0xf]
  %v148 = vld [vmem:[%s5 + $0x30] sm:$0x1]
  %v149 = vmax.bf16 %v123, %v136
  %v150 = vmax.bf16 %v124, %v137
  %v151 = vmax.bf16 %v125, %v138
  %v152 = vmax.bf16 %v126, %v139
  %v153 = vmax.bf16 %v127, %v140
  %v154 = vmax.bf16 %v128, %v141
  %v155 = vmax.bf16 %v129, %v142
  %v156 = vmax.bf16 %v130, %v143
  %v157 = vmax.bf16 %v131, %v144
  %v158 = vmax.bf16 %v132, %v145
  %v159 = vmax.bf16 %v133, %v146
  %v160 = vmax.bf16 %v134, %v147
  %v161 = vmax.bf16 %v135, %v148
  %v162 = vld [vmem:[%s6] sm:$0xf]
  %v163 = vld [vmem:[%s6 + $0x4] sm:$0xf]
  %v164 = vld [vmem:[%s6 + $0x8] sm:$0xf]
  %v165 = vld [vmem:[%s6 + $0xc] sm:$0xf]
  %v166 = vld [vmem:[%s6 + $0x10] sm:$0xf]
  %v167 = vld [vmem:[%s6 + $0x14] sm:$0xf]
  %v168 = vld [vmem:[%s6 + $0x18] sm:$0xf]
  %v169 = vld [vmem:[%s6 + $0x1c] sm:$0xf]
  %v170 = vld [vmem:[%s6 + $0x20] sm:$0xf]
  %v171 = vld [vmem:[%s6 + $0x24] sm:$0xf]
  %v172 = vld [vmem:[%s6 + $0x28] sm:$0xf]
  %v173 = vld [vmem:[%s6 + $0x2c] sm:$0xf]
  %v174 = vld [vmem:[%s6 + $0x30] sm:$0x1]
  %v175 = vld [vmem:[%s7] sm:$0xf]
  %v176 = vld [vmem:[%s7 + $0x4] sm:$0xf]
  %v177 = vld [vmem:[%s7 + $0x8] sm:$0xf]
  %v178 = vld [vmem:[%s7 + $0xc] sm:$0xf]
  %v179 = vld [vmem:[%s7 + $0x10] sm:$0xf]
  %v180 = vld [vmem:[%s7 + $0x14] sm:$0xf]
  %v181 = vld [vmem:[%s7 + $0x18] sm:$0xf]
  %v182 = vld [vmem:[%s7 + $0x1c] sm:$0xf]
  %v183 = vld [vmem:[%s7 + $0x20] sm:$0xf]
  %v184 = vld [vmem:[%s7 + $0x24] sm:$0xf]
  %v185 = vld [vmem:[%s7 + $0x28] sm:$0xf]
  %v186 = vld [vmem:[%s7 + $0x2c] sm:$0xf]
  %v187 = vld [vmem:[%s7 + $0x30] sm:$0x1]
  %v188 = vmax.bf16 %v162, %v175
  %v189 = vmax.bf16 %v163, %v176
  %v190 = vmax.bf16 %v164, %v177
  %v191 = vmax.bf16 %v165, %v178
  %v192 = vmax.bf16 %v166, %v179
  %v193 = vmax.bf16 %v167, %v180
  %v194 = vmax.bf16 %v168, %v181
  %v195 = vmax.bf16 %v169, %v182
  %v196 = vmax.bf16 %v170, %v183
  %v197 = vmax.bf16 %v171, %v184
  %v198 = vmax.bf16 %v172, %v185
  %v199 = vmax.bf16 %v173, %v186
  %v200 = vmax.bf16 %v174, %v187
  %v201 = vld [vmem:[%s8] sm:$0xf]
  %v202 = vld [vmem:[%s8 + $0x4] sm:$0xf]
  %v203 = vld [vmem:[%s8 + $0x8] sm:$0xf]
  %v204 = vld [vmem:[%s8 + $0xc] sm:$0xf]
  %v205 = vld [vmem:[%s8 + $0x10] sm:$0xf]
  %v206 = vld [vmem:[%s8 + $0x14] sm:$0xf]
  %v207 = vld [vmem:[%s8 + $0x18] sm:$0xf]
  %v208 = vld [vmem:[%s8 + $0x1c] sm:$0xf]
  %v209 = vld [vmem:[%s8 + $0x20] sm:$0xf]
  %v210 = vld [vmem:[%s8 + $0x24] sm:$0xf]
  %v211 = vld [vmem:[%s8 + $0x28] sm:$0xf]
  %v212 = vld [vmem:[%s8 + $0x2c] sm:$0xf]
  %v213 = vld [vmem:[%s8 + $0x30] sm:$0x1]
  %v214 = vmax.bf16 %v188, %v201
  %v215 = vmax.bf16 %v189, %v202
  %v216 = vmax.bf16 %v190, %v203
  %v217 = vmax.bf16 %v191, %v204
  %v218 = vmax.bf16 %v192, %v205
  %v219 = vmax.bf16 %v193, %v206
  %v220 = vmax.bf16 %v194, %v207
  %v221 = vmax.bf16 %v195, %v208
  %v222 = vmax.bf16 %v196, %v209
  %v223 = vmax.bf16 %v197, %v210
  %v224 = vmax.bf16 %v198, %v211
  %v225 = vmax.bf16 %v199, %v212
  %v226 = vmax.bf16 %v200, %v213
  %v227 = vmax.bf16 %v84, %v149
  %v228 = vmax.bf16 %v85, %v150
  %v229 = vmax.bf16 %v86, %v151
  %v230 = vmax.bf16 %v87, %v152
  %v231 = vmax.bf16 %v88, %v153
  %v232 = vmax.bf16 %v89, %v154
  %v233 = vmax.bf16 %v90, %v155
  %v234 = vmax.bf16 %v91, %v156
  %v235 = vmax.bf16 %v92, %v157
  %v236 = vmax.bf16 %v93, %v158
  %v237 = vmax.bf16 %v94, %v159
  %v238 = vmax.bf16 %v95, %v160
  %v239 = vmax.bf16 %v96, %v161
  %v240 = vmax.bf16 %v227, %v214
  %v241 = vmax.bf16 %v228, %v215
  %v242 = vmax.bf16 %v229, %v216
  %v243 = vmax.bf16 %v230, %v217
  %v244 = vmax.bf16 %v231, %v218
  %v245 = vmax.bf16 %v232, %v219
  %v246 = vmax.bf16 %v233, %v220
  %v247 = vmax.bf16 %v234, %v221
  %v248 = vmax.bf16 %v235, %v222
  %v249 = vmax.bf16 %v236, %v223
  %v250 = vmax.bf16 %v237, %v224
  %v251 = vmax.bf16 %v238, %v225
  %v252 = vmax.bf16 %v239, %v226
  %253 = vst [vmem:[%s9] sm:$0xf] %v240
  %254 = vst [vmem:[%s9 + $0x4] sm:$0xf] %v241
  %255 = vst [vmem:[%s9 + $0x8] sm:$0xf] %v242
  %256 = vst [vmem:[%s9 + $0xc] sm:$0xf] %v243
  %257 = vst [vmem:[%s9 + $0x10] sm:$0xf] %v244
  %258 = vst [vmem:[%s9 + $0x14] sm:$0xf] %v245
  %259 = vst [vmem:[%s9 + $0x18] sm:$0xf] %v246
  %260 = vst [vmem:[%s9 + $0x1c] sm:$0xf] %v247
  %261 = vst [vmem:[%s9 + $0x20] sm:$0xf] %v248
  %262 = vst [vmem:[%s9 + $0x24] sm:$0xf] %v249
  %263 = vst [vmem:[%s9 + $0x28] sm:$0xf] %v250
  %264 = vst [vmem:[%s9 + $0x2c] sm:$0xf] %v251
  %265 = vst [vmem:[%s9 + $0x30] sm:$0x1] %v252
  // Predicated region
  $region38: #{alexnet_forward.8} parent=0 // pred_check
    _
  $region39: #{alexnet_forward.8} parent=0 // pred_check_branch
    %267 = sbr.rel (0) target = $region41
  $region40: #{alexnet_forward.8} parent=0 // pred_region
    _
  $region41: #{alexnet_forward.8} parent=0 // pred_fallthru
    _
  // Predicated region
  $region42: #{alexnet_forward.8} parent=0 // pred_check
    _
  $region43: #{alexnet_forward.8} parent=0 // pred_check_branch
    %269 = sbr.rel (0) target = $region45
  $region44: #{alexnet_forward.8} parent=0 // pred_region
    _
  $region45: #{alexnet_forward.8} parent=0 // pred_fallthru
    _

// kernel: alexnet_forward.9
$region0: #{alexnet_forward.9}
  #allocation0 [shape = 'u32[]', space=smem, size = 0x4, offset = 0x4, fixed_abs, tag = 'smem constant byte address 0x4 - core index']
  #allocation1 [shape = 'u32[144,128]{1,0:T(1,128)}', space=vmem, size = 0x12000, scoped, tag = 'internal scratch']
  %s0 = inlined_call_operand.vmem [shape: bf16[2,98,1200], index: 0, kind: input, shape index: {}]
  %s1 = inlined_call_operand.vmem [shape: bf16[2,1200,128], index: 1, kind: input, shape index: {}]
  %s2 = inlined_call_operand.vmem [shape: f32[2,1,128], index: 2, kind: input, shape index: {}]
  %s3 = inlined_call_operand.vmem [shape: bf16[2,98,128], index: 3, kind: output, shape index: {}]
  %s4 = sld [smem:[#allocation0]]
  $region45: #{alexnet_forward.9} parent=0
    _
  %s6 = ssub.s32 1, %s4
  %s7 = scalar_select 0, %s6, %s4
  loop: start=0, step=1, limit=4
  $region2: #{alexnet_forward.9} parent=0 // loop_pre_header
    _
  $region3: #{alexnet_forward.9} parent=0 // loop_header
    %s9 = sphi 0, %s13
    %p10 = scmp.ge.s32.totalorder %s9, 4
    %s16 = sphi 0, %s35
    %s17 = sphi 0, %s31
    %s18 = sphi 0, %s27
    %s19 = sphi 0, %s16
    %s20 = sphi 0, %s17
    %s21 = sphi 0, %s18
    %s22 = sphi 0, %s19
    %s23 = sphi 0, %s20
    %s24 = sphi 0, %s21
    %s40 = sphi 0, %s42
    %s43 = sphi 0, %s40
    %s44 = sphi 0, %s43
    %s60 = sphi 0, %s44
    %s68 = sphi 0, %s70
    %s71 = sphi 0, %s68
    %s72 = sphi 0, %s71
    %s88 = sphi 0, %s72
    %s96 = sphi 0, %s98
    %s99 = sphi 0, %s96
    %s100 = sphi 0, %s99
    %s116 = sphi 0, %s100
    %s126 = sphi 0, %s128
    %s129 = sphi 0, %s126
    %s130 = sphi 0, %s129
    %s146 = sphi 0, %s130
  $region4: #{alexnet_forward.9} parent=0 // loop_header_branch
    %12 = sbr.rel (%p10) target = $region8
  $region5: #{alexnet_forward.9} parent=0 // loop_body
    %s14 = ssub.s32 %s9, 1
    %s15 = ssub.s32 %s9, 2
    %s25 = sadd.s32 1, %s18
    %p26 = scmp.ge.s32.totalorder %s25, 1
    %s27 = scalar_select %p26, 0, %s25
    %s28 = sadd.s32 1, %s17
    %s29 = scalar_select %p26, %s28, %s17
    %p30 = scmp.ge.s32.totalorder %s29, 1
    %s31 = scalar_select %p30, 0, %s29
    %s32 = sadd.s32 1, %s16
    %s33 = scalar_select %p30, %s32, %s16
    %p34 = scmp.ge.s32.totalorder %s33, 2
    %s35 = scalar_select %p34, 0, %s33
    %s36 = ssub.s32 %s16, %s35
    %s37 = ssub.s32 %s17, %s31
    %s38 = sor.u32 %s36, %s37
    %p39 = scmp.eq.s32.totalorder %s38, 0
    %s41 = sadd.s32 %s40, 1
    %s42 = scalar_select %p39, %s40, %s41
    %p45 = pneg %p39
    %p46 = scmp.eq.s32.totalorder %s9, 1
    %p47 = por %p45, %p46
    %p48 = scmp.ne.s32.totalorder %s40, %s43
    %p49 = scmp.eq.s32.totalorder %s9, 0
    %p50 = por %p48, %p49
    %p51 = scmp.ne.s32.totalorder %s40, %s43
    %p52 = scmp.eq.s32.totalorder %s14, 1
    %p53 = por %p51, %p52
    %p54 = scmp.ne.s32.totalorder %s43, %s44
    %p55 = scmp.eq.s32.totalorder %s14, 0
    %p56 = por %p54, %p55
    %p57 = scmp.ne.s32.totalorder %s43, %s44
    %p58 = scmp.eq.s32.totalorder %s15, 1
    %p59 = por %p57, %p58
    %p61 = scmp.ne.s32.totalorder %s44, %s60
    %p62 = scmp.eq.s32.totalorder %s15, 0
    %p63 = por %p61, %p62
    %s64 = ssub.s32 %s16, %s35
    %s65 = ssub.s32 %s18, %s27
    %s66 = sor.u32 %s64, %s65
    %p67 = scmp.eq.s32.totalorder %s66, 0
    %s69 = sadd.s32 %s68, 1
    %s70 = scalar_select %p67, %s68, %s69
    %p73 = pneg %p67
    %p74 = scmp.eq.s32.totalorder %s9, 1
    %p75 = por %p73, %p74
    %p76 = scmp.ne.s32.totalorder %s68, %s71
    %p77 = scmp.eq.s32.totalorder %s9, 0
    %p78 = por %p76, %p77
    %p79 = scmp.ne.s32.totalorder %s68, %s71
    %p80 = scmp.eq.s32.totalorder %s14, 1
    %p81 = por %p79, %p80
    %p82 = scmp.ne.s32.totalorder %s71, %s72
    %p83 = scmp.eq.s32.totalorder %s14, 0
    %p84 = por %p82, %p83
    %p85 = scmp.ne.s32.totalorder %s71, %s72
    %p86 = scmp.eq.s32.totalorder %s15, 1
    %p87 = por %p85, %p86
    %p89 = scmp.ne.s32.totalorder %s72, %s88
    %p90 = scmp.eq.s32.totalorder %s15, 0
    %p91 = por %p89, %p90
    %s92 = ssub.s32 %s16, %s35
    %s93 = ssub.s32 %s18, %s27
    %s94 = sor.u32 %s92, %s93
    %p95 = scmp.eq.s32.totalorder %s94, 0
    %s97 = sadd.s32 %s96, 1
    %s98 = scalar_select %p95, %s96, %s97
    %p101 = pneg %p95
    %p102 = scmp.eq.s32.totalorder %s9, 1
    %p103 = por %p101, %p102
    %p104 = scmp.ne.s32.totalorder %s96, %s99
    %p105 = scmp.eq.s32.totalorder %s9, 0
    %p106 = por %p104, %p105
    %p107 = scmp.ne.s32.totalorder %s96, %s99
    %p108 = scmp.eq.s32.totalorder %s14, 1
    %p109 = por %p107, %p108
    %p110 = scmp.ne.s32.totalorder %s99, %s100
    %p111 = scmp.eq.s32.totalorder %s14, 0
    %p112 = por %p110, %p111
    %p113 = scmp.ne.s32.totalorder %s99, %s100
    %p114 = scmp.eq.s32.totalorder %s15, 1
    %p115 = por %p113, %p114
    %p117 = scmp.ne.s32.totalorder %s100, %s116
    %p118 = scmp.eq.s32.totalorder %s15, 0
    %p119 = por %p117, %p118
    %s120 = ssub.s32 %s16, %s35
    %s121 = ssub.s32 %s17, %s31
    %s122 = sor.u32 %s120, %s121
    %s123 = ssub.s32 %s18, %s27
    %s124 = sor.u32 %s122, %s123
    %p125 = scmp.eq.s32.totalorder %s124, 0
    %s127 = sadd.s32 %s126, 1
    %s128 = scalar_select %p125, %s126, %s127
    %p131 = pneg %p125
    %p132 = scmp.eq.s32.totalorder %s9, 1
    %p133 = por %p131, %p132
    %p134 = scmp.ne.s32.totalorder %s126, %s129
    %p135 = scmp.eq.s32.totalorder %s9, 0
    %p136 = por %p134, %p135
    %p137 = scmp.ne.s32.totalorder %s126, %s129
    %p138 = scmp.eq.s32.totalorder %s14, 1
    %p139 = por %p137, %p138
    %p140 = scmp.ne.s32.totalorder %s129, %s130
    %p141 = scmp.eq.s32.totalorder %s14, 0
    %p142 = por %p140, %p141
    %p143 = scmp.ne.s32.totalorder %s129, %s130
    %p144 = scmp.eq.s32.totalorder %s15, 1
    %p145 = por %p143, %p144
    %p147 = scmp.ne.s32.totalorder %s130, %s146
    %p148 = scmp.eq.s32.totalorder %s15, 0
    %p149 = por %p147, %p148
    %p150 = scmp.le.s32.totalorder 1, %s9
    %p151 = scmp.lt.s32.totalorder %s9, 3
    %p152 = pnand %p150, %p151
    %p153 = pneg %p152
    // Predicated region
    $region9: #{alexnet_forward.9} parent=5 // pred_check
      _
    $region10: #{alexnet_forward.9} parent=5 // pred_check_branch
      %155 = sbr.rel (%p152) target = $region12
    $region11: #{alexnet_forward.9} parent=5 // pred_region
      %s156 = ssub.s32 %s9, 1
    $region12: #{alexnet_forward.9} parent=5 // pred_fallthru
      _
    %p157 = scmp.lt.s32.totalorder %s9, 2
    // Predicated region
    $region13: #{alexnet_forward.9} parent=5 // pred_check
      %p158 = pneg %p157
    $region14: #{alexnet_forward.9} parent=5 // pred_check_branch
      %160 = sbr.rel (%p158) target = $region16
    $region15: #{alexnet_forward.9} parent=5 // pred_region
      // Predicated region
      $region17: #{alexnet_forward.9} parent=15 // pred_check
        %p161 = pneg %p50
      $region18: #{alexnet_forward.9} parent=15 // pred_check_branch
        %163 = sbr.rel (%p161) target = $region20
      $region19: #{alexnet_forward.9} parent=15 // pred_region
        %s164 = smul.u32 13, %s17
        %p165 = scmp.lt.s32.totalorder %s16, 1
        %s166 = scalar_select %p165, %s16, 1
        %p167 = scmp.lt.s32.totalorder %s164, 12
        %s168 = scalar_select %p167, %s164, 12
        %s169 = smul.addr %s168, 10
        %s170 = smul.addr %s166, 130
        %s171 = sadd.s32 %s169, %s170
        %s172 = smul.addr %s171, 4
        %s173 = scalar_lea.vmem %s0, %s172
        %s174 = smul.u32 13, %s17
      $region20: #{alexnet_forward.9} parent=15 // pred_fallthru
        _
      // Predicated region
      $region21: #{alexnet_forward.9} parent=15 // pred_check
        %p175 = pneg %p78
      $region22: #{alexnet_forward.9} parent=15 // pred_check_branch
        %177 = sbr.rel (%p175) target = $region24
      $region23: #{alexnet_forward.9} parent=15 // pred_region
        %p178 = scmp.lt.s32.totalorder %s16, 1
        %s179 = scalar_select %p178, %s16, 1
        %p180 = scmp.lt.s32.totalorder %s18, 0
        %s181 = scalar_select %p180, %s18, 0
        %s182 = smul.addr %s179, 150
        %s183 = sadd.s32 %s181, %s182
        %s184 = smul.addr %s183, 4
        %s185 = scalar_lea.vmem %s1, %s184
      $region24: #{alexnet_forward.9} parent=15 // pred_fallthru
        _
      // Predicated region
      $region25: #{alexnet_forward.9} parent=15 // pred_check
        %p186 = pneg %p106
      $region26: #{alexnet_forward.9} parent=15 // pred_check_branch
        %188 = sbr.rel (%p186) target = $region28
      $region27: #{alexnet_forward.9} parent=15 // pred_region
        %p189 = scmp.lt.s32.totalorder %s16, 1
        %s190 = scalar_select %p189, %s16, 1
        %p191 = scmp.lt.s32.totalorder %s18, 0
        %s192 = scalar_select %p191, %s18, 0
        %s193 = sadd.s32 %s192, %s190
        %s194 = scalar_lea.vmem %s2, %s193
      $region28: #{alexnet_forward.9} parent=15 // pred_fallthru
        _
    $region16: #{alexnet_forward.9} parent=5 // pred_fallthru
      _
    %p195 = scmp.le.s32.totalorder 1, %s9
    %p196 = scmp.lt.s32.totalorder %s9, 3
    %p197 = pnand %p195, %p196
    %p198 = pneg %p197
    // Predicated region
    $region29: #{alexnet_forward.9} parent=5 // pred_check
      _
    $region30: #{alexnet_forward.9} parent=5 // pred_check_branch
      %200 = sbr.rel (%p197) target = $region32
    $region31: #{alexnet_forward.9} parent=5 // pred_region
      %s201 = ssub.s32 %s9, 1
      %s202 = smul.u32 13, %s20
      %p203 = scmp.lt.s32.totalorder %s19, 1
      %s204 = scalar_select %p203, %s19, 1
      %p205 = scmp.lt.s32.totalorder %s202, 12
      %s206 = scalar_select %p205, %s202, 12
      %s207 = smul.addr %s206, 10
      %s208 = smul.addr %s204, 130
      %s209 = sadd.s32 %s207, %s208
      %s210 = smul.addr %s209, 4
      %s211 = scalar_lea.vmem %s0, %s210
      %p212 = pneg %p56
      %p213 = pneg %p53
      %p214 = scmp.lt.s32.totalorder %s19, 1
      %s215 = scalar_select %p214, %s19, 1
      %p216 = scmp.lt.s32.totalorder %s21, 0
      %s217 = scalar_select %p216, %s21, 0
      %s218 = smul.addr %s215, 150
      %s219 = sadd.s32 %s217, %s218
      %s220 = smul.addr %s219, 4
      %s221 = scalar_lea.vmem %s1, %s220
      %p222 = pneg %p84
      %p223 = pneg %p81
      %p224 = scmp.lt.s32.totalorder %s19, 1
      %s225 = scalar_select %p224, %s19, 1
      %p226 = scmp.lt.s32.totalorder %s21, 0
      %s227 = scalar_select %p226, %s21, 0
      %s228 = sadd.s32 %s227, %s225
      %s229 = scalar_lea.vmem %s2, %s228
      %p230 = pneg %p112
      %p231 = pneg %p109
      %p232 = pneg %p142
      %p233 = pneg %p139
      %s234 = smul.u32 13, %s20
      %p235 = scmp.lt.s32.totalorder %s19, 1
      %s236 = scalar_select %p235, %s19, 1
      %p237 = scmp.lt.s32.totalorder %s234, 12
      %s238 = scalar_select %p237, %s234, 12
      %p239 = scmp.lt.s32.totalorder %s21, 0
      %s240 = scalar_select %p239, %s21, 0
      %s241 = sadd.s32 %s240, %s238
      %s242 = smul.addr %s236, 13
      %s243 = sadd.s32 %s241, %s242
      %s244 = smul.addr %s243, 4
      %s245 = scalar_lea.vmem %s3, %s244
      %s246 = smul.u32 13, %s20
      %p247 = scmp.lt.s32.totalorder %s19, 1
      %s248 = scalar_select %p247, %s19, 1
      %p249 = scmp.lt.s32.totalorder %s246, 12
      %s250 = scalar_select %p249, %s246, 12
      %s251 = smul.addr %s250, 10
      %s252 = smul.addr %s248, 130
      %s253 = sadd.s32 %s251, %s252
      %s254 = smul.addr %s253, 4
      %s255 = scalar_lea.vmem %s0, %s254
      %s256 = smul.u32 13, %s20
      %p257 = scmp.lt.s32.totalorder %s19, 1
      %s258 = scalar_select %p257, %s19, 1
      %p259 = scmp.lt.s32.totalorder %s21, 0
      %s260 = scalar_select %p259, %s21, 0
      %s261 = smul.addr %s258, 150
      %s262 = sadd.s32 %s260, %s261
      %s263 = smul.addr %s262, 4
      %s264 = scalar_lea.vmem %s1, %s263
      %p265 = scmp.lt.s32.totalorder %s19, 1
      %s266 = scalar_select %p265, %s19, 1
      %p267 = scmp.lt.s32.totalorder %s21, 0
      %s268 = scalar_select %p267, %s21, 0
      %s269 = sadd.s32 %s268, %s266
      %s270 = scalar_lea.vmem %s2, %s269
      %s271 = smul.u32 13, %s20
      %p272 = scmp.lt.s32.totalorder %s19, 1
      %s273 = scalar_select %p272, %s19, 1
      %p274 = scmp.lt.s32.totalorder %s271, 12
      %s275 = scalar_select %p274, %s271, 12
      %p276 = scmp.lt.s32.totalorder %s21, 0
      %s277 = scalar_select %p276, %s21, 0
      %s278 = sadd.s32 %s277, %s275
      %s279 = smul.addr %s273, 13
      %s280 = sadd.s32 %s278, %s279
      %s281 = smul.addr %s280, 4
      %s282 = scalar_lea.vmem %s3, %s281
      %s283 = smul.u32 13, %s20
      %v285 = vld [vmem:[%s255] sm:$0xff]
      %v286 = vld [vmem:[%s255 + $0x8] sm:$0xff]
      %v287 = vld [vmem:[%s255 + $0x10] sm:$0xff]
      %v288 = vld [vmem:[%s255 + $0x18] sm:$0xff]
      %v289 = vld [vmem:[%s255 + $0x20] sm:$0xff]
      %v290 = vld [vmem:[%s255 + $0x28] sm:$0xff]
      %v291 = vld [vmem:[%s255 + $0x30] sm:$0xff]
      %v292 = vld [vmem:[%s255 + $0x38] sm:$0xff]
      %v293 = vld [vmem:[%s255 + $0x40] sm:$0xff]
      %v294 = vld [vmem:[%s255 + $0x48] sm:$0xff]
      %v295 = vld [vmem:[%s255 + $0x50] sm:$0xff]
      %v296 = vld [vmem:[%s255 + $0x58] sm:$0xff]
      %v297 = vld [vmem:[%s255 + $0x60] sm:$0xff]
      %v298 = vld [vmem:[%s255 + $0x68] sm:$0xff]
      %v299 = vld [vmem:[%s255 + $0x70] sm:$0xff]
      %v300 = vld [vmem:[%s255 + $0x78] sm:$0xff]
      %v301 = vld [vmem:[%s255 + $0x80] sm:$0xff]
      %v302 = vld [vmem:[%s255 + $0x88] sm:$0xff]
      %v303 = vld [vmem:[%s255 + $0x90] sm:$0xff]
      %v304 = vld [vmem:[%s255 + $0x98] sm:$0xff]
      %v305 = vld [vmem:[%s255 + $0xa0] sm:$0xff]
      %v306 = vld [vmem:[%s255 + $0xa8] sm:$0xff]
      %v307 = vld [vmem:[%s255 + $0xb0] sm:$0xff]
      %v308 = vld [vmem:[%s255 + $0xb8] sm:$0xff]
      %v309 = vld [vmem:[%s255 + $0xc0] sm:$0xff]
      %v310 = vld [vmem:[%s255 + $0xc8] sm:$0xff]
      %v311 = vld [vmem:[%s255 + $0xd0] sm:$0xff]
      %v312 = vld [vmem:[%s255 + $0xd8] sm:$0xff]
      %v313 = vld [vmem:[%s255 + $0xe0] sm:$0xff]
      %v314 = vld [vmem:[%s255 + $0xe8] sm:$0xff]
      %v315 = vld [vmem:[%s255 + $0xf0] sm:$0xff]
      %v316 = vld [vmem:[%s255 + $0xf8] sm:$0xff]
      %v317 = vld [vmem:[%s255 + $0x100] sm:$0xff]
      %v318 = vld [vmem:[%s255 + $0x108] sm:$0xff]
      %v319 = vld [vmem:[%s255 + $0x110] sm:$0xff]
      %v320 = vld [vmem:[%s255 + $0x118] sm:$0xff]
      %v321 = vld [vmem:[%s255 + $0x120] sm:$0xff]
      %v322 = vld [vmem:[%s255 + $0x128] sm:$0xff]
      %v323 = vld [vmem:[%s255 + $0x130] sm:$0xff]
      %v324 = vld [vmem:[%s255 + $0x138] sm:$0xff]
      %v325 = vld [vmem:[%s255 + $0x140] sm:$0xff]
      %v326 = vld [vmem:[%s255 + $0x148] sm:$0xff]
      %v327 = vld [vmem:[%s255 + $0x150] sm:$0xff]
      %v328 = vld [vmem:[%s255 + $0x158] sm:$0xff]
      %v329 = vld [vmem:[%s255 + $0x160] sm:$0xff]
      %v330 = vld [vmem:[%s255 + $0x168] sm:$0xff]
      %v331 = vld [vmem:[%s255 + $0x170] sm:$0xff]
      %v332 = vld [vmem:[%s255 + $0x178] sm:$0xff]
      %v333 = vld [vmem:[%s255 + $0x180] sm:$0xff]
      %v334 = vld [vmem:[%s255 + $0x188] sm:$0xff]
      %v335 = vld [vmem:[%s255 + $0x190] sm:$0xff]
      %v336 = vld [vmem:[%s255 + $0x198] sm:$0xff]
      %v337 = vld [vmem:[%s255 + $0x1a0] sm:$0xff]
      %v338 = vld [vmem:[%s255 + $0x1a8] sm:$0xff]
      %v339 = vld [vmem:[%s255 + $0x1b0] sm:$0xff]
      %v340 = vld [vmem:[%s255 + $0x1b8] sm:$0xff]
      %v341 = vld [vmem:[%s255 + $0x1c0] sm:$0xff]
      %v342 = vld [vmem:[%s255 + $0x1c8] sm:$0xff]
      %v343 = vld [vmem:[%s255 + $0x1d0] sm:$0xff]
      %v344 = vld [vmem:[%s255 + $0x1d8] sm:$0xff]
      %v345 = vld [vmem:[%s255 + $0x1e0] sm:$0x11]
      %v346 = vld [vmem:[%s255 + $0x1e8] sm:$0x11]
      %v347 = vld [vmem:[%s255 + $0x1f0] sm:$0x11]
      %v348 = vld [vmem:[%s255 + $0x1f8] sm:$0x11]
      %v349 = vld [vmem:[%s255 + $0x200] sm:$0x11]
      %v350 = vld [vmem:[%s264] sm:$0xf]
      %v351 = vld [vmem:[%s264 + $0x4] sm:$0xf]
      %v352 = vld [vmem:[%s264 + $0x8] sm:$0xf]
      %v353 = vld [vmem:[%s264 + $0xc] sm:$0xf]
      %v354 = vld [vmem:[%s264 + $0x10] sm:$0xf]
      %v355 = vld [vmem:[%s264 + $0x14] sm:$0xf]
      %v356 = vld [vmem:[%s264 + $0x18] sm:$0xf]
      %v357 = vld [vmem:[%s264 + $0x1c] sm:$0xf]
      %v358 = vld [vmem:[%s264 + $0x20] sm:$0xf]
      %v359 = vld [vmem:[%s264 + $0x24] sm:$0xf]
      %v360 = vld [vmem:[%s264 + $0x28] sm:$0xf]
      %v361 = vld [vmem:[%s264 + $0x2c] sm:$0xf]
      %v362 = vld [vmem:[%s264 + $0x30] sm:$0xf]
      %v363 = vld [vmem:[%s264 + $0x34] sm:$0xf]
      %v364 = vld [vmem:[%s264 + $0x38] sm:$0xf]
      %v365 = vld [vmem:[%s264 + $0x3c] sm:$0xf]
      %v366 = vld [vmem:[%s264 + $0x40] sm:$0xf]
      %v367 = vld [vmem:[%s264 + $0x44] sm:$0xf]
      %v368 = vld [vmem:[%s264 + $0x48] sm:$0xf]
      %v369 = vld [vmem:[%s264 + $0x4c] sm:$0xf]
      %v370 = vld [vmem:[%s264 + $0x50] sm:$0xf]
      %v371 = vld [vmem:[%s264 + $0x54] sm:$0xf]
      %v372 = vld [vmem:[%s264 + $0x58] sm:$0xf]
      %v373 = vld [vmem:[%s264 + $0x5c] sm:$0xf]
      %v374 = vld [vmem:[%s264 + $0x60] sm:$0xf]
      %v375 = vld [vmem:[%s264 + $0x64] sm:$0xf]
      %v376 = vld [vmem:[%s264 + $0x68] sm:$0xf]
      %v377 = vld [vmem:[%s264 + $0x6c] sm:$0xf]
      %v378 = vld [vmem:[%s264 + $0x70] sm:$0xf]
      %v379 = vld [vmem:[%s264 + $0x74] sm:$0xf]
      %v380 = vld [vmem:[%s264 + $0x78] sm:$0xf]
      %v381 = vld [vmem:[%s264 + $0x7c] sm:$0xf]
      %v382 = vld [vmem:[%s264 + $0x80] sm:$0xf]
      %v383 = vld [vmem:[%s264 + $0x84] sm:$0xf]
      %v384 = vld [vmem:[%s264 + $0x88] sm:$0xf]
      %v385 = vld [vmem:[%s264 + $0x8c] sm:$0xf]
      %v386 = vld [vmem:[%s264 + $0x90] sm:$0xf]
      %v387 = vld [vmem:[%s264 + $0x94] sm:$0xf]
      %v388 = vld [vmem:[%s264 + $0x98] sm:$0xf]
      %v389 = vld [vmem:[%s264 + $0x9c] sm:$0xf]
      %v390 = vld [vmem:[%s264 + $0xa0] sm:$0xf]
      %v391 = vld [vmem:[%s264 + $0xa4] sm:$0xf]
      %v392 = vld [vmem:[%s264 + $0xa8] sm:$0xf]
      %v393 = vld [vmem:[%s264 + $0xac] sm:$0xf]
      %v394 = vld [vmem:[%s264 + $0xb0] sm:$0xf]
      %v395 = vld [vmem:[%s264 + $0xb4] sm:$0xf]
      %v396 = vld [vmem:[%s264 + $0xb8] sm:$0xf]
      %v397 = vld [vmem:[%s264 + $0xbc] sm:$0xf]
      %v398 = vld [vmem:[%s264 + $0xc0] sm:$0xf]
      %v399 = vld [vmem:[%s264 + $0xc4] sm:$0xf]
      %v400 = vld [vmem:[%s264 + $0xc8] sm:$0xf]
      %v401 = vld [vmem:[%s264 + $0xcc] sm:$0xf]
      %v402 = vld [vmem:[%s264 + $0xd0] sm:$0xf]
      %v403 = vld [vmem:[%s264 + $0xd4] sm:$0xf]
      %v404 = vld [vmem:[%s264 + $0xd8] sm:$0xf]
      %v405 = vld [vmem:[%s264 + $0xdc] sm:$0xf]
      %v406 = vld [vmem:[%s264 + $0xe0] sm:$0xf]
      %v407 = vld [vmem:[%s264 + $0xe4] sm:$0xf]
      %v408 = vld [vmem:[%s264 + $0xe8] sm:$0xf]
      %v409 = vld [vmem:[%s264 + $0xec] sm:$0xf]
      %v410 = vld [vmem:[%s264 + $0xf0] sm:$0xf]
      %v411 = vld [vmem:[%s264 + $0xf4] sm:$0xf]
      %v412 = vld [vmem:[%s264 + $0xf8] sm:$0xf]
      %v413 = vld [vmem:[%s264 + $0xfc] sm:$0xf]
      %v414 = vld [vmem:[%s264 + $0x100] sm:$0xf]
      %v415 = vld [vmem:[%s264 + $0x104] sm:$0xf]
      %v416 = vld [vmem:[%s264 + $0x108] sm:$0xf]
      %v417 = vld [vmem:[%s264 + $0x10c] sm:$0xf]
      %v418 = vld [vmem:[%s264 + $0x110] sm:$0xf]
      %v419 = vld [vmem:[%s264 + $0x114] sm:$0xf]
      %v420 = vld [vmem:[%s264 + $0x118] sm:$0xf]
      %v421 = vld [vmem:[%s264 + $0x11c] sm:$0xf]
      %v422 = vld [vmem:[%s264 + $0x120] sm:$0xf]
      %v423 = vld [vmem:[%s264 + $0x124] sm:$0xf]
      %v424 = vld [vmem:[%s264 + $0x128] sm:$0xf]
      %v425 = vld [vmem:[%s264 + $0x12c] sm:$0xf]
      %v426 = vld [vmem:[%s264 + $0x130] sm:$0xf]
      %v427 = vld [vmem:[%s264 + $0x134] sm:$0xf]
      %v428 = vld [vmem:[%s264 + $0x138] sm:$0xf]
      %v429 = vld [vmem:[%s264 + $0x13c] sm:$0xf]
      %v430 = vld [vmem:[%s264 + $0x140] sm:$0xf]
      %v431 = vld [vmem:[%s264 + $0x144] sm:$0xf]
      %v432 = vld [vmem:[%s264 + $0x148] sm:$0xf]
      %v433 = vld [vmem:[%s264 + $0x14c] sm:$0xf]
      %v434 = vld [vmem:[%s264 + $0x150] sm:$0xf]
      %v435 = vld [vmem:[%s264 + $0x154] sm:$0xf]
      %v436 = vld [vmem:[%s264 + $0x158] sm:$0xf]
      %v437 = vld [vmem:[%s264 + $0x15c] sm:$0xf]
      %v438 = vld [vmem:[%s264 + $0x160] sm:$0xf]
      %v439 = vld [vmem:[%s264 + $0x164] sm:$0xf]
      %v440 = vld [vmem:[%s264 + $0x168] sm:$0xf]
      %v441 = vld [vmem:[%s264 + $0x16c] sm:$0xf]
      %v442 = vld [vmem:[%s264 + $0x170] sm:$0xf]
      %v443 = vld [vmem:[%s264 + $0x174] sm:$0xf]
      %v444 = vld [vmem:[%s264 + $0x178] sm:$0xf]
      %v445 = vld [vmem:[%s264 + $0x17c] sm:$0xf]
      %v446 = vld [vmem:[%s264 + $0x180] sm:$0xf]
      %v447 = vld [vmem:[%s264 + $0x184] sm:$0xf]
      %v448 = vld [vmem:[%s264 + $0x188] sm:$0xf]
      %v449 = vld [vmem:[%s264 + $0x18c] sm:$0xf]
      %v450 = vld [vmem:[%s264 + $0x190] sm:$0xf]
      %v451 = vld [vmem:[%s264 + $0x194] sm:$0xf]
      %v452 = vld [vmem:[%s264 + $0x198] sm:$0xf]
      %v453 = vld [vmem:[%s264 + $0x19c] sm:$0xf]
      %v454 = vld [vmem:[%s264 + $0x1a0] sm:$0xf]
      %v455 = vld [vmem:[%s264 + $0x1a4] sm:$0xf]
      %v456 = vld [vmem:[%s264 + $0x1a8] sm:$0xf]
      %v457 = vld [vmem:[%s264 + $0x1ac] sm:$0xf]
      %v458 = vld [vmem:[%s264 + $0x1b0] sm:$0xf]
      %v459 = vld [vmem:[%s264 + $0x1b4] sm:$0xf]
      %v460 = vld [vmem:[%s264 + $0x1b8] sm:$0xf]
      %v461 = vld [vmem:[%s264 + $0x1bc] sm:$0xf]
      %v462 = vld [vmem:[%s264 + $0x1c0] sm:$0xf]
      %v463 = vld [vmem:[%s264 + $0x1c4] sm:$0xf]
      %v464 = vld [vmem:[%s264 + $0x1c8] sm:$0xf]
      %v465 = vld [vmem:[%s264 + $0x1cc] sm:$0xf]
      %v466 = vld [vmem:[%s264 + $0x1d0] sm:$0xf]
      %v467 = vld [vmem:[%s264 + $0x1d4] sm:$0xf]
      %v468 = vld [vmem:[%s264 + $0x1d8] sm:$0xf]
      %v469 = vld [vmem:[%s264 + $0x1dc] sm:$0xf]
      %v470 = vld [vmem:[%s264 + $0x1e0] sm:$0xf]
      %v471 = vld [vmem:[%s264 + $0x1e4] sm:$0xf]
      %v472 = vld [vmem:[%s264 + $0x1e8] sm:$0xf]
      %v473 = vld [vmem:[%s264 + $0x1ec] sm:$0xf]
      %v474 = vld [vmem:[%s264 + $0x1f0] sm:$0xf]
      %v475 = vld [vmem:[%s264 + $0x1f4] sm:$0xf]
      %v476 = vld [vmem:[%s264 + $0x1f8] sm:$0xf]
      %v477 = vld [vmem:[%s264 + $0x1fc] sm:$0xf]
      %v478 = vld [vmem:[%s264 + $0x200] sm:$0xf]
      %v479 = vld [vmem:[%s264 + $0x204] sm:$0xf]
      %v480 = vld [vmem:[%s264 + $0x208] sm:$0xf]
      %v481 = vld [vmem:[%s264 + $0x20c] sm:$0xf]
      %v482 = vld [vmem:[%s264 + $0x210] sm:$0xf]
      %v483 = vld [vmem:[%s264 + $0x214] sm:$0xf]
      %v484 = vld [vmem:[%s264 + $0x218] sm:$0xf]
      %v485 = vld [vmem:[%s264 + $0x21c] sm:$0xf]
      %v486 = vld [vmem:[%s264 + $0x220] sm:$0xf]
      %v487 = vld [vmem:[%s264 + $0x224] sm:$0xf]
      %v488 = vld [vmem:[%s264 + $0x228] sm:$0xf]
      %v489 = vld [vmem:[%s264 + $0x22c] sm:$0xf]
      %v490 = vld [vmem:[%s264 + $0x230] sm:$0xf]
      %v491 = vld [vmem:[%s264 + $0x234] sm:$0xf]
      %v492 = vld [vmem:[%s264 + $0x238] sm:$0xf]
      %v493 = vld [vmem:[%s264 + $0x23c] sm:$0xf]
      %v494 = vld [vmem:[%s264 + $0x240] sm:$0xf]
      %v495 = vld [vmem:[%s264 + $0x244] sm:$0xf]
      %v496 = vld [vmem:[%s264 + $0x248] sm:$0xf]
      %v497 = vld [vmem:[%s264 + $0x24c] sm:$0xf]
      %v498 = vld [vmem:[%s264 + $0x250] sm:$0xf]
      %v499 = vld [vmem:[%s264 + $0x254] sm:$0xf]
      %v500 = vld [vmem:[%s270] sm:$0x1]
      %v502 = vlaneseq
      %v503 = vshrl.u32 %v502, 7
      %v504 = vsub.s32 0, %v503
      %v505 = vrot.slane %v500, %v504
      %v572 = vunpack.c.l.b16 %v285
      %v573 = vunpack.c.h.b16 %v285
      %v574 = vunpack.c.l.b16 %v286
      %v575 = vunpack.c.h.b16 %v286
      %v576 = vunpack.c.l.b16 %v287
      %v577 = vunpack.c.h.b16 %v287
      %v578 = vunpack.c.l.b16 %v288
      %v579 = vunpack.c.h.b16 %v288
      %v580 = vunpack.c.l.b16 %v289
      %v581 = vunpack.c.h.b16 %v289
      %v582 = vunpack.c.l.b16 %v290
      %v583 = vunpack.c.h.b16 %v290
      %v584 = vunpack.c.l.b16 %v291
      %v585 = vunpack.c.h.b16 %v291
      %v586 = vunpack.c.l.b16 %v292
      %v587 = vunpack.c.h.b16 %v292
      %v588 = vunpack.c.l.b16 %v293
      %v589 = vunpack.c.h.b16 %v293
      %v590 = vunpack.c.l.b16 %v294
      %v591 = vunpack.c.h.b16 %v294
      %v592 = vunpack.c.l.b16 %v295
      %v593 = vunpack.c.h.b16 %v295
      %v594 = vunpack.c.l.b16 %v296
      %v595 = vunpack.c.h.b16 %v296
      %v596 = vunpack.c.l.b16 %v297
      %v597 = vunpack.c.h.b16 %v297
      %v598 = vunpack.c.l.b16 %v298
      %v599 = vunpack.c.h.b16 %v298
      %v600 = vunpack.c.l.b16 %v299
      %v601 = vunpack.c.h.b16 %v299
      %v602 = vunpack.c.l.b16 %v300
      %v603 = vunpack.c.h.b16 %v300
      %v604 = vunpack.c.l.b16 %v301
      %v605 = vunpack.c.h.b16 %v301
      %v606 = vunpack.c.l.b16 %v302
      %v607 = vunpack.c.h.b16 %v302
      %v608 = vunpack.c.l.b16 %v303
      %v609 = vunpack.c.h.b16 %v303
      %v610 = vunpack.c.l.b16 %v304
      %v611 = vunpack.c.h.b16 %v304
      %v612 = vunpack.c.l.b16 %v305
      %v613 = vunpack.c.h.b16 %v305
      %v614 = vunpack.c.l.b16 %v306
      %v615 = vunpack.c.h.b16 %v306
      %v616 = vunpack.c.l.b16 %v307
      %v617 = vunpack.c.h.b16 %v307
      %v618 = vunpack.c.l.b16 %v308
      %v619 = vunpack.c.h.b16 %v308
      %v620 = vunpack.c.l.b16 %v309
      %v621 = vunpack.c.h.b16 %v309
      %v622 = vunpack.c.l.b16 %v310
      %v623 = vunpack.c.h.b16 %v310
      %v624 = vunpack.c.l.b16 %v311
      %v625 = vunpack.c.h.b16 %v311
      %v626 = vunpack.c.l.b16 %v312
      %v627 = vunpack.c.h.b16 %v312
      %v628 = vunpack.c.l.b16 %v313
      %v629 = vunpack.c.h.b16 %v313
      %v630 = vunpack.c.l.b16 %v314
      %v631 = vunpack.c.h.b16 %v314
      %v632 = vunpack.c.l.b16 %v315
      %v633 = vunpack.c.h.b16 %v315
      %v634 = vunpack.c.l.b16 %v316
      %v635 = vunpack.c.h.b16 %v316
      %v636 = vunpack.c.l.b16 %v317
      %v637 = vunpack.c.h.b16 %v317
      %v638 = vunpack.c.l.b16 %v318
      %v639 = vunpack.c.h.b16 %v318
      %v640 = vunpack.c.l.b16 %v319
      %v641 = vunpack.c.h.b16 %v319
      %v642 = vunpack.c.l.b16 %v320
      %v643 = vunpack.c.h.b16 %v320
      %v644 = vunpack.c.l.b16 %v321
      %v645 = vunpack.c.h.b16 %v321
      %v646 = vunpack.c.l.b16 %v322
      %v647 = vunpack.c.h.b16 %v322
      %v648 = vunpack.c.l.b16 %v323
      %v649 = vunpack.c.h.b16 %v323
      %v650 = vunpack.c.l.b16 %v324
      %v651 = vunpack.c.h.b16 %v324
      %v652 = vunpack.c.l.b16 %v325
      %v653 = vunpack.c.h.b16 %v325
      %v654 = vunpack.c.l.b16 %v326
      %v655 = vunpack.c.h.b16 %v326
      %v656 = vunpack.c.l.b16 %v327
      %v657 = vunpack.c.h.b16 %v327
      %v658 = vunpack.c.l.b16 %v328
      %v659 = vunpack.c.h.b16 %v328
      %v660 = vunpack.c.l.b16 %v329
      %v661 = vunpack.c.h.b16 %v329
      %v662 = vunpack.c.l.b16 %v330
      %v663 = vunpack.c.h.b16 %v330
      %v664 = vunpack.c.l.b16 %v331
      %v665 = vunpack.c.h.b16 %v331
      %v666 = vunpack.c.l.b16 %v332
      %v667 = vunpack.c.h.b16 %v332
      %v668 = vunpack.c.l.b16 %v333
      %v669 = vunpack.c.h.b16 %v333
      %v670 = vunpack.c.l.b16 %v334
      %v671 = vunpack.c.h.b16 %v334
      %v672 = vunpack.c.l.b16 %v335
      %v673 = vunpack.c.h.b16 %v335
      %v674 = vunpack.c.l.b16 %v336
      %v675 = vunpack.c.h.b16 %v336
      %v676 = vunpack.c.l.b16 %v337
      %v677 = vunpack.c.h.b16 %v337
      %v678 = vunpack.c.l.b16 %v338
      %v679 = vunpack.c.h.b16 %v338
      %v680 = vunpack.c.l.b16 %v339
      %v681 = vunpack.c.h.b16 %v339
      %v682 = vunpack.c.l.b16 %v340
      %v683 = vunpack.c.h.b16 %v340
      %v684 = vunpack.c.l.b16 %v341
      %v685 = vunpack.c.h.b16 %v341
      %v686 = vunpack.c.l.b16 %v342
      %v687 = vunpack.c.h.b16 %v342
      %v688 = vunpack.c.l.b16 %v343
      %v689 = vunpack.c.h.b16 %v343
      %v690 = vunpack.c.l.b16 %v344
      %v691 = vunpack.c.h.b16 %v344
      %v692 = vunpack.c.l.b16 %v345
      %v693 = vunpack.c.h.b16 %v345
      %v694 = vunpack.c.l.b16 %v346
      %v695 = vunpack.c.h.b16 %v346
      %v696 = vunpack.c.l.b16 %v347
      %v697 = vunpack.c.h.b16 %v347
      %v698 = vunpack.c.l.b16 %v348
      %v699 = vunpack.c.h.b16 %v348
      %v700 = vunpack.c.l.b16 %v349
      %v701 = vunpack.c.h.b16 %v349
      %v702 = vpack.c.b16 %v582, %v572
      %v703 = vpack.c.b16 %v583, %v573
      %v704 = vpack.c.b16 %v584, %v574
      %v705 = vpack.c.b16 %v585, %v575
      %v706 = vpack.c.b16 %v586, %v576
      %v707 = vpack.c.b16 %v587, %v577
      %v708 = vpack.c.b16 %v588, %v578
      %v709 = vpack.c.b16 %v589, %v579
      %v710 = vpack.c.b16 %v590, %v580
      %v711 = vpack.c.b16 %v591, %v581
      %v712 = vpack.c.b16 %v602, %v592
      %v713 = vpack.c.b16 %v603, %v593
      %v714 = vpack.c.b16 %v604, %v594
      %v715 = vpack.c.b16 %v605, %v595
      %v716 = vpack.c.b16 %v606, %v596
      %v717 = vpack.c.b16 %v607, %v597
      %v718 = vpack.c.b16 %v608, %v598
      %v719 = vpack.c.b16 %v609, %v599
      %v720 = vpack.c.b16 %v610, %v600
      %v721 = vpack.c.b16 %v611, %v601
      %v722 = vpack.c.b16 %v622, %v612
      %v723 = vpack.c.b16 %v623, %v613
      %v724 = vpack.c.b16 %v624, %v614
      %v725 = vpack.c.b16 %v625, %v615
      %v726 = vpack.c.b16 %v626, %v616
      %v727 = vpack.c.b16 %v627, %v617
      %v728 = vpack.c.b16 %v628, %v618
      %v729 = vpack.c.b16 %v629, %v619
      %v730 = vpack.c.b16 %v630, %v620
      %v731 = vpack.c.b16 %v631, %v621
      %v732 = vpack.c.b16 %v642, %v632
      %v733 = vpack.c.b16 %v643, %v633
      %v734 = vpack.c.b16 %v644, %v634
      %v735 = vpack.c.b16 %v645, %v635
      %v736 = vpack.c.b16 %v646, %v636
      %v737 = vpack.c.b16 %v647, %v637
      %v738 = vpack.c.b16 %v648, %v638
      %v739 = vpack.c.b16 %v649, %v639
      %v740 = vpack.c.b16 %v650, %v640
      %v741 = vpack.c.b16 %v651, %v641
      %v742 = vpack.c.b16 %v662, %v652
      %v743 = vpack.c.b16 %v663, %v653
      %v744 = vpack.c.b16 %v664, %v654
      %v745 = vpack.c.b16 %v665, %v655
      %v746 = vpack.c.b16 %v666, %v656
      %v747 = vpack.c.b16 %v667, %v657
      %v748 = vpack.c.b16 %v668, %v658
      %v749 = vpack.c.b16 %v669, %v659
      %v750 = vpack.c.b16 %v670, %v660
      %v751 = vpack.c.b16 %v671, %v661
      %v752 = vpack.c.b16 %v682, %v672
      %v753 = vpack.c.b16 %v683, %v673
      %v754 = vpack.c.b16 %v684, %v674
      %v755 = vpack.c.b16 %v685, %v675
      %v756 = vpack.c.b16 %v686, %v676
      %v757 = vpack.c.b16 %v687, %v677
      %v758 = vpack.c.b16 %v688, %v678
      %v759 = vpack.c.b16 %v689, %v679
      %v760 = vpack.c.b16 %v690, %v680
      %v761 = vpack.c.b16 %v691, %v681
      %v762 = vpack.c.b16 %v692, %v692
      %v763 = vpack.c.b16 %v693, %v693
      %v764 = vpack.c.b16 %v694, %v694
      %v765 = vpack.c.b16 %v695, %v695
      %v766 = vpack.c.b16 %v696, %v696
      %v767 = vpack.c.b16 %v697, %v697
      %v768 = vpack.c.b16 %v698, %v698
      %v769 = vpack.c.b16 %v699, %v699
      %v770 = vpack.c.b16 %v700, %v700
      %v771 = vpack.c.b16 %v701, %v701
      %v985 = vunpack.c.l.b16 %v350
      %v986 = vunpack.c.l.b16 %v351
      %v987 = vunpack.c.l.b16 %v352
      %v988 = vunpack.c.l.b16 %v353
      %v989 = vunpack.c.l.b16 %v354
      %v990 = vunpack.c.l.b16 %v355
      %v991 = vunpack.c.l.b16 %v356
      %v992 = vunpack.c.l.b16 %v357
      %v993 = vunpack.c.l.b16 %v358
      %v994 = vunpack.c.l.b16 %v359
      %v995 = vunpack.c.l.b16 %v360
      %v996 = vunpack.c.l.b16 %v361
      %v997 = vunpack.c.l.b16 %v362
      %v998 = vunpack.c.l.b16 %v363
      %v999 = vunpack.c.l.b16 %v364
      %v1000 = vunpack.c.l.b16 %v365
      %v1001 = vunpack.c.l.b16 %v366
      %v1002 = vunpack.c.l.b16 %v367
      %v1003 = vunpack.c.l.b16 %v368
      %v1004 = vunpack.c.l.b16 %v369
      %v1005 = vunpack.c.l.b16 %v370
      %v1006 = vunpack.c.l.b16 %v371
      %v1007 = vunpack.c.l.b16 %v372
      %v1008 = vunpack.c.l.b16 %v373
      %v1009 = vunpack.c.l.b16 %v374
      %v1010 = vunpack.c.l.b16 %v375
      %v1011 = vunpack.c.l.b16 %v376
      %v1012 = vunpack.c.l.b16 %v377
      %v1013 = vunpack.c.l.b16 %v378
      %v1014 = vunpack.c.l.b16 %v379
      %v1015 = vunpack.c.l.b16 %v380
      %v1016 = vunpack.c.l.b16 %v381
      %v1017 = vunpack.c.l.b16 %v382
      %v1018 = vunpack.c.l.b16 %v383
      %v1019 = vunpack.c.l.b16 %v384
      %v1020 = vunpack.c.l.b16 %v385
      %v1021 = vunpack.c.l.b16 %v386
      %v1022 = vunpack.c.l.b16 %v387
      %v1023 = vunpack.c.l.b16 %v388
      %v1024 = vunpack.c.l.b16 %v389
      %v1025 = vunpack.c.l.b16 %v390
      %v1026 = vunpack.c.l.b16 %v391
      %v1027 = vunpack.c.l.b16 %v392
      %v1028 = vunpack.c.l.b16 %v393
      %v1029 = vunpack.c.l.b16 %v394
      %v1030 = vunpack.c.l.b16 %v395
      %v1031 = vunpack.c.l.b16 %v396
      %v1032 = vunpack.c.l.b16 %v397
      %v1033 = vunpack.c.l.b16 %v398
      %v1034 = vunpack.c.l.b16 %v399
      %v1035 = vunpack.c.l.b16 %v400
      %v1036 = vunpack.c.l.b16 %v401
      %v1037 = vunpack.c.l.b16 %v402
      %v1038 = vunpack.c.l.b16 %v403
      %v1039 = vunpack.c.l.b16 %v404
      %v1040 = vunpack.c.l.b16 %v405
      %v1041 = vunpack.c.l.b16 %v406
      %v1042 = vunpack.c.l.b16 %v407
      %v1043 = vunpack.c.l.b16 %v408
      %v1044 = vunpack.c.l.b16 %v409
      %v1045 = vunpack.c.l.b16 %v410
      %v1046 = vunpack.c.l.b16 %v411
      %v1047 = vunpack.c.l.b16 %v412
      %v1048 = vunpack.c.l.b16 %v413
      %v1049 = vunpack.c.l.b16 %v414
      %v1050 = vunpack.c.l.b16 %v415
      %v1051 = vunpack.c.l.b16 %v416
      %v1052 = vunpack.c.l.b16 %v417
      %v1053 = vunpack.c.l.b16 %v418
      %v1054 = vunpack.c.l.b16 %v419
      %v1055 = vunpack.c.l.b16 %v420
      %v1056 = vunpack.c.l.b16 %v421
      %v1057 = vunpack.c.l.b16 %v422
      %v1058 = vunpack.c.l.b16 %v423
      %v1059 = vunpack.c.l.b16 %v424
      %v1060 = vunpack.c.l.b16 %v425
      %v1061 = vunpack.c.l.b16 %v426
      %v1062 = vunpack.c.l.b16 %v427
      %v1063 = vunpack.c.l.b16 %v428
      %v1064 = vunpack.c.l.b16 %v429
      %v1065 = vunpack.c.l.b16 %v430
      %v1066 = vunpack.c.l.b16 %v431
      %v1067 = vunpack.c.l.b16 %v432
      %v1068 = vunpack.c.l.b16 %v433
      %v1069 = vunpack.c.l.b16 %v434
      %v1070 = vunpack.c.l.b16 %v435
      %v1071 = vunpack.c.l.b16 %v436
      %v1072 = vunpack.c.l.b16 %v437
      %v1073 = vunpack.c.l.b16 %v438
      %v1074 = vunpack.c.l.b16 %v439
      %v1075 = vunpack.c.l.b16 %v440
      %v1076 = vunpack.c.l.b16 %v441
      %v1077 = vunpack.c.l.b16 %v442
      %v1078 = vunpack.c.l.b16 %v443
      %v1079 = vunpack.c.l.b16 %v444
      %v1080 = vunpack.c.l.b16 %v445
      %v1081 = vunpack.c.l.b16 %v446
      %v1082 = vunpack.c.l.b16 %v447
      %v1083 = vunpack.c.l.b16 %v448
      %v1084 = vunpack.c.l.b16 %v449
      %v1085 = vunpack.c.l.b16 %v450
      %v1086 = vunpack.c.l.b16 %v451
      %v1087 = vunpack.c.l.b16 %v452
      %v1088 = vunpack.c.l.b16 %v453
      %v1089 = vunpack.c.l.b16 %v454
      %v1090 = vunpack.c.l.b16 %v455
      %v1091 = vunpack.c.l.b16 %v456
      %v1092 = vunpack.c.l.b16 %v457
      %v1093 = vunpack.c.l.b16 %v458
      %v1094 = vunpack.c.l.b16 %v459
      %v1095 = vunpack.c.l.b16 %v460
      %v1096 = vunpack.c.l.b16 %v461
      %v1097 = vunpack.c.l.b16 %v462
      %v1098 = vunpack.c.l.b16 %v463
      %v1099 = vunpack.c.l.b16 %v464
      %v1100 = vunpack.c.l.b16 %v465
      %v1101 = vunpack.c.l.b16 %v466
      %v1102 = vunpack.c.l.b16 %v467
      %v1103 = vunpack.c.l.b16 %v468
      %v1104 = vunpack.c.l.b16 %v469
      %v1105 = vunpack.c.l.b16 %v470
      %v1106 = vunpack.c.l.b16 %v471
      %v1107 = vunpack.c.l.b16 %v472
      %v1108 = vunpack.c.l.b16 %v473
      %v1109 = vunpack.c.l.b16 %v474
      %v1110 = vunpack.c.l.b16 %v475
      %v1111 = vunpack.c.l.b16 %v476
      %v1112 = vunpack.c.l.b16 %v477
      %v1113 = vunpack.c.l.b16 %v478
      %v1114 = vunpack.c.l.b16 %v479
      %v1115 = vunpack.c.l.b16 %v480
      %v1116 = vunpack.c.l.b16 %v481
      %v1117 = vunpack.c.l.b16 %v482
      %v1118 = vunpack.c.l.b16 %v483
      %v1119 = vunpack.c.l.b16 %v484
      %v1120 = vunpack.c.l.b16 %v485
      %v1121 = vunpack.c.l.b16 %v486
      %v1122 = vunpack.c.l.b16 %v487
      %v1123 = vunpack.c.l.b16 %v488
      %v1124 = vunpack.c.l.b16 %v489
      %v1125 = vunpack.c.l.b16 %v490
      %v1126 = vunpack.c.l.b16 %v491
      %v1127 = vunpack.c.l.b16 %v492
      %v1128 = vunpack.c.l.b16 %v493
      %v1129 = vunpack.c.l.b16 %v494
      %v1130 = vunpack.c.l.b16 %v495
      %v1131 = vunpack.c.l.b16 %v496
      %v1132 = vunpack.c.l.b16 %v497
      %v1133 = vunpack.c.l.b16 %v498
      %v1134 = vunpack.c.l.b16 %v499
      %v1135 = vpack.c.b16 %v986, %v985
      %v1136 = vpack.c.b16 %v988, %v987
      %v1137 = vpack.c.b16 %v990, %v989
      %v1138 = vpack.c.b16 %v992, %v991
      %v1139 = vpack.c.b16 %v994, %v993
      %v1140 = vpack.c.b16 %v996, %v995
      %v1141 = vpack.c.b16 %v998, %v997
      %v1142 = vpack.c.b16 %v1000, %v999
      %v1143 = vpack.c.b16 %v1002, %v1001
      %v1144 = vpack.c.b16 %v1004, %v1003
      %v1145 = vpack.c.b16 %v1006, %v1005
      %v1146 = vpack.c.b16 %v1008, %v1007
      %v1147 = vpack.c.b16 %v1010, %v1009
      %v1148 = vpack.c.b16 %v1012, %v1011
      %v1149 = vpack.c.b16 %v1014, %v1013
      %v1150 = vpack.c.b16 %v1016, %v1015
      %v1151 = vpack.c.b16 %v1018, %v1017
      %v1152 = vpack.c.b16 %v1020, %v1019
      %v1153 = vpack.c.b16 %v1022, %v1021
      %v1154 = vpack.c.b16 %v1024, %v1023
      %v1155 = vpack.c.b16 %v1026, %v1025
      %v1156 = vpack.c.b16 %v1028, %v1027
      %v1157 = vpack.c.b16 %v1030, %v1029
      %v1158 = vpack.c.b16 %v1032, %v1031
      %v1159 = vpack.c.b16 %v1034, %v1033
      %v1160 = vpack.c.b16 %v1036, %v1035
      %v1161 = vpack.c.b16 %v1038, %v1037
      %v1162 = vpack.c.b16 %v1040, %v1039
      %v1163 = vpack.c.b16 %v1042, %v1041
      %v1164 = vpack.c.b16 %v1044, %v1043
      %v1165 = vpack.c.b16 %v1046, %v1045
      %v1166 = vpack.c.b16 %v1048, %v1047
      %v1167 = vpack.c.b16 %v1050, %v1049
      %v1168 = vpack.c.b16 %v1052, %v1051
      %v1169 = vpack.c.b16 %v1054, %v1053
      %v1170 = vpack.c.b16 %v1056, %v1055
      %v1171 = vpack.c.b16 %v1058, %v1057
      %v1172 = vpack.c.b16 %v1060, %v1059
      %v1173 = vpack.c.b16 %v1062, %v1061
      %v1174 = vpack.c.b16 %v1064, %v1063
      %v1175 = vpack.c.b16 %v1066, %v1065
      %v1176 = vpack.c.b16 %v1068, %v1067
      %v1177 = vpack.c.b16 %v1070, %v1069
      %v1178 = vpack.c.b16 %v1072, %v1071
      %v1179 = vpack.c.b16 %v1074, %v1073
      %v1180 = vpack.c.b16 %v1076, %v1075
      %v1181 = vpack.c.b16 %v1078, %v1077
      %v1182 = vpack.c.b16 %v1080, %v1079
      %v1183 = vpack.c.b16 %v1082, %v1081
      %v1184 = vpack.c.b16 %v1084, %v1083
      %v1185 = vpack.c.b16 %v1086, %v1085
      %v1186 = vpack.c.b16 %v1088, %v1087
      %v1187 = vpack.c.b16 %v1090, %v1089
      %v1188 = vpack.c.b16 %v1092, %v1091
      %v1189 = vpack.c.b16 %v1094, %v1093
      %v1190 = vpack.c.b16 %v1096, %v1095
      %v1191 = vpack.c.b16 %v1098, %v1097
      %v1192 = vpack.c.b16 %v1100, %v1099
      %v1193 = vpack.c.b16 %v1102, %v1101
      %v1194 = vpack.c.b16 %v1104, %v1103
      %v1195 = vpack.c.b16 %v1106, %v1105
      %v1196 = vpack.c.b16 %v1108, %v1107
      %v1197 = vpack.c.b16 %v1110, %v1109
      %v1198 = vpack.c.b16 %v1112, %v1111
      %v1199 = vpack.c.b16 %v1114, %v1113
      %v1200 = vpack.c.b16 %v1116, %v1115
      %v1201 = vpack.c.b16 %v1118, %v1117
      %v1202 = vpack.c.b16 %v1120, %v1119
      %v1203 = vpack.c.b16 %v1122, %v1121
      %v1204 = vpack.c.b16 %v1124, %v1123
      %v1205 = vpack.c.b16 %v1126, %v1125
      %v1206 = vpack.c.b16 %v1128, %v1127
      %v1207 = vpack.c.b16 %v1130, %v1129
      %v1208 = vpack.c.b16 %v1132, %v1131
      %v1209 = vpack.c.b16 %v1134, %v1133
      %vm1285 = vcmask 392192
      %v1287 = vsel %vm1285, %v711, 0
      %v1290 = vsel %vm1285, %v721, 0
      %v1293 = vsel %vm1285, %v731, 0
      %v1296 = vsel %vm1285, %v741, 0
      %v1299 = vsel %vm1285, %v751, 0
      %v1302 = vsel %vm1285, %v761, 0
      %v1305 = vsel %vm1285, %v771, 0
      %1307 = vmatprep.subr.bf16.mxu0 0
      %1308 = vmatpush1.bf16.msra.mxu0 %v1135
      %1309 = vmatprep.subr.bf16.mxu0 0
      %1310 = vmatpush1.bf16.msra.mxu0 %v1136
      %1311 = vmatprep.subr.bf16.mxu0 0
      %1312 = vmatpush1.bf16.msra.mxu0 %v1137
      %1313 = vmatprep.subr.bf16.mxu0 0
      %1314 = vmatpush1.bf16.msra.mxu0 %v1138
      %1315 = vmatprep.subr.bf16.mxu0 0
      %1316 = vmatpush1.bf16.msra.mxu0 %v1139
      %1317 = vmatprep.subr.bf16.mxu0 0
      %1318 = vmatpush1.bf16.msra.mxu0 %v1140
      %1319 = vmatprep.subr.bf16.mxu0 0
      %1320 = vmatpush1.bf16.msra.mxu0 %v1141
      %1321 = vmatprep.subr.bf16.mxu0 0
      %1322 = vmatpush1.bf16.msra.mxu0 %v1142
      %1323 = vmatprep.subr.bf16.mxu0 0
      %1324 = vmatpush1.bf16.msra.mxu0 %v1143
      %1325 = vmatprep.subr.bf16.mxu0 0
      %1326 = vmatpush1.bf16.msra.mxu0 %v1144
      %1327 = vmatprep.subr.bf16.mxu0 0
      %1328 = vmatpush1.bf16.msra.mxu0 %v1145
      %1329 = vmatprep.subr.bf16.mxu0 0
      %1330 = vmatpush1.bf16.msra.mxu0 %v1146
      %1331 = vmatprep.subr.bf16.mxu0 0
      %1332 = vmatpush1.bf16.msra.mxu0 %v1147
      %1333 = vmatprep.subr.bf16.mxu0 0
      %1334 = vmatpush1.bf16.msra.mxu0 %v1148
      %1335 = vmatprep.subr.bf16.mxu0 0
      %1336 = vmatpush1.bf16.msra.mxu0 %v1149
      %1337 = vmatprep.subr.bf16.mxu0 0
      %1338 = vmatpush1.bf16.msra.mxu0 %v1150
      %1339 = vmatprep.mubr.bf16.mxu0 %v703
      %1340 = vmatmul.mubr.bf16.gmra.mrb[0].mxu0 %v702
      %v1341 = vpop.f32.mrb[0].mxu0
      %v1342 = vadd.f32 %v505, %v1341
      %v1343 = vpop.f32.mrb[0].mxu0
      %v1344 = vpop.f32.mrb[0].mxu0
      %v1345 = vadd.f32 %v505, %v1344
      %v1346 = vpop.f32.mrb[0].mxu0
      %1347 = vmatprep.mubr.bf16.mxu0 %v713
      %1348 = vmatmul.mubr.bf16.gmra.mrb[0].mxu0 %v712
      %v1349 = vpop.f32.mrb[0].mxu0
      %v1350 = vadd.f32 %v505, %v1349
      %v1351 = vpop.f32.mrb[0].mxu0
      %v1352 = vpop.f32.mrb[0].mxu0
      %v1353 = vadd.f32 %v505, %v1352
      %v1354 = vpop.f32.mrb[0].mxu0
      %1355 = vmatprep.mubr.bf16.mxu0 %v723
      %1356 = vmatmul.mubr.bf16.gmra.mrb[0].mxu0 %v722
      %v1357 = vpop.f32.mrb[0].mxu0
      %v1358 = vadd.f32 %v505, %v1357
      %v1359 = vpop.f32.mrb[0].mxu0
      %v1360 = vpop.f32.mrb[0].mxu0
      %v1361 = vadd.f32 %v505, %v1360
      %v1362 = vpop.f32.mrb[0].mxu0
      %1363 = vmatprep.mubr.bf16.mxu0 %v733
      %1364 = vmatmul.mubr.bf16.gmra.mrb[0].mxu0 %v732
      %v1365 = vpop.f32.mrb[0].mxu0
      %v1366 = vadd.f32 %v505, %v1365
      %v1367 = vpop.f32.mrb[0].mxu0
      %v1368 = vpop.f32.mrb[0].mxu0
      %v1369 = vadd.f32 %v505, %v1368
      %v1370 = vpop.f32.mrb[0].mxu0
      %1371 = vmatprep.mubr.bf16.mxu0 %v743
      %1372 = vmatmul.mubr.bf16.gmra.mrb[0].mxu0 %v742
      %v1373 = vpop.f32.mrb[0].mxu0
      %v1374 = vadd.f32 %v505, %v1373
      %v1375 = vpop.f32.mrb[0].mxu0
      %v1376 = vpop.f32.mrb[0].mxu0
      %v1377 = vadd.f32 %v505, %v1376
      %v1378 = vpop.f32.mrb[0].mxu0
      %1379 = vmatprep.mubr.bf16.mxu0 %v753
      %1380 = vmatmul.mubr.bf16.gmra.mrb[0].mxu0 %v752
      %v1381 = vpop.f32.mrb[0].mxu0
      %v1382 = vadd.f32 %v505, %v1381
      %v1383 = vpop.f32.mrb[0].mxu0
      %v1384 = vpop.f32.mrb[0].mxu0
      %v1385 = vadd.f32 %v505, %v1384
      %v1386 = vpop.f32.mrb[0].mxu0
      %1387 = vmatprep.mubr.bf16.mxu0 %v763
      %1388 = vmatmul.mubr.bf16.gmra.mrb[0].mxu0 %v762
      %v1389 = vpop.f32.mrb[0].mxu0
      %v1390 = vadd.f32 %v505, %v1389
      %v1391 = vpop.f32.mrb[0].mxu0
      %v1392 = vpop.f32.mrb[0].mxu0
      %v1393 = vpop.f32.mrb[0].mxu0
      %1394 = vdwg.mxu0
      %1395 = vmatprep.subr.bf16.mxu0 0
      %1396 = vmatpush1.bf16.msra.mxu0 %v1151
      %1397 = vmatprep.subr.bf16.mxu0 0
      %1398 = vmatpush1.bf16.msra.mxu0 %v1152
      %1399 = vmatprep.subr.bf16.mxu0 0
      %1400 = vmatpush1.bf16.msra.mxu0 %v1153
      %1401 = vmatprep.subr.bf16.mxu0 0
      %1402 = vmatpush1.bf16.msra.mxu0 %v1154
      %1403 = vmatprep.subr.bf16.mxu0 0
      %1404 = vmatpush1.bf16.msra.mxu0 %v1155
      %1405 = vmatprep.subr.bf16.mxu0 0
      %1406 = vmatpush1.bf16.msra.mxu0 %v1156
      %1407 = vmatprep.subr.bf16.mxu0 0
      %1408 = vmatpush1.bf16.msra.mxu0 %v1157
      %1409 = vmatprep.subr.bf16.mxu0 0
      %1410 = vmatpush1.bf16.msra.mxu0 %v1158
      %1411 = vmatprep.subr.bf16.mxu0 0
      %1412 = vmatpush1.bf16.msra.mxu0 %v1159
      %1413 = vmatprep.subr.bf16.mxu0 0
      %1414 = vmatpush1.bf16.msra.mxu0 %v1160
      %1415 = vmatprep.subr.bf16.mxu0 0
      %1416 = vmatpush1.bf16.msra.mxu0 %v1161
      %1417 = vmatprep.subr.bf16.mxu0 0
      %1418 = vmatpush1.bf16.msra.mxu0 %v1162
      %1419 = vmatprep.subr.bf16.mxu0 0
      %1420 = vmatpush1.bf16.msra.mxu0 %v1163
      %1421 = vmatprep.subr.bf16.mxu0 0
      %1422 = vmatpush1.bf16.msra.mxu0 %v1164
      %1423 = vmatprep.subr.bf16.mxu0 0
      %1424 = vmatpush1.bf16.msra.mxu0 %v1165
      %1425 = vmatprep.subr.bf16.mxu0 0
      %1426 = vmatpush1.bf16.msra.mxu0 %v1166
      %1427 = vmatprep.mubr.bf16.mxu0 %v705
      %1428 = vmatmul.mubr.bf16.gmra.mrb[0].mxu0 %v704
      %v1429 = vpop.f32.mrb[0].mxu0
      %v1430 = vadd.f32 %v1342, %v1429
      %v1431 = vpop.f32.mrb[0].mxu0
      %v1432 = vpop.f32.mrb[0].mxu0
      %v1433 = vadd.f32 %v1345, %v1432
      %v1434 = vpop.f32.mrb[0].mxu0
      %1435 = vmatprep.mubr.bf16.mxu0 %v715
      %1436 = vmatmul.mubr.bf16.gmra.mrb[0].mxu0 %v714
      %v1437 = vpop.f32.mrb[0].mxu0
      %v1438 = vadd.f32 %v1350, %v1437
      %v1439 = vpop.f32.mrb[0].mxu0
      %v1440 = vpop.f32.mrb[0].mxu0
      %v1441 = vadd.f32 %v1353, %v1440
      %v1442 = vpop.f32.mrb[0].mxu0
      %1443 = vmatprep.mubr.bf16.mxu0 %v725
      %1444 = vmatmul.mubr.bf16.gmra.mrb[0].mxu0 %v724
      %v1445 = vpop.f32.mrb[0].mxu0
      %v1446 = vadd.f32 %v1358, %v1445
      %v1447 = vpop.f32.mrb[0].mxu0
      %v1448 = vpop.f32.mrb[0].mxu0
      %v1449 = vadd.f32 %v1361, %v1448
      %v1450 = vpop.f32.mrb[0].mxu0
      %1451 = vmatprep.mubr.bf16.mxu0 %v735
      %1452 = vmatmul.mubr.bf16.gmra.mrb[0].mxu0 %v734
      %v1453 = vpop.f32.mrb[0].mxu0
      %v1454 = vadd.f32 %v1366, %v1453
      %v1455 = vpop.f32.mrb[0].mxu0
      %v1456 = vpop.f32.mrb[0].mxu0
      %v1457 = vadd.f32 %v1369, %v1456
      %v1458 = vpop.f32.mrb[0].mxu0
      %1459 = vmatprep.mubr.bf16.mxu0 %v745
      %1460 = vmatmul.mubr.bf16.gmra.mrb[0].mxu0 %v744
      %v1461 = vpop.f32.mrb[0].mxu0
      %v1462 = vadd.f32 %v1374, %v1461
      %v1463 = vpop.f32.mrb[0].mxu0
      %v1464 = vpop.f32.mrb[0].mxu0
      %v1465 = vadd.f32 %v1377, %v1464
      %v1466 = vpop.f32.mrb[0].mxu0
      %1467 = vmatprep.mubr.bf16.mxu0 %v755
      %1468 = vmatmul.mubr.bf16.gmra.mrb[0].mxu0 %v754
      %v1469 = vpop.f32.mrb[0].mxu0
      %v1470 = vadd.f32 %v1382, %v1469
      %v1471 = vpop.f32.mrb[0].mxu0
      %v1472 = vpop.f32.mrb[0].mxu0
      %v1473 = vadd.f32 %v1385, %v1472
      %v1474 = vpop.f32.mrb[0].mxu0
      %1475 = vmatprep.mubr.bf16.mxu0 %v765
      %1476 = vmatmul.mubr.bf16.gmra.mrb[0].mxu0 %v764
      %v1477 = vpop.f32.mrb[0].mxu0
      %v1478 = vadd.f32 %v1390, %v1477
      %v1479 = vpop.f32.mrb[0].mxu0
      %v1480 = vpop.f32.mrb[0].mxu0
      %v1481 = vpop.f32.mrb[0].mxu0
      %1482 = vdwg.mxu0
      %1483 = vmatprep.subr.bf16.mxu0 0
      %1484 = vmatpush1.bf16.msra.mxu0 %v1167
      %1485 = vmatprep.subr.bf16.mxu0 0
      %1486 = vmatpush1.bf16.msra.mxu0 %v1168
      %1487 = vmatprep.subr.bf16.mxu0 0
      %1488 = vmatpush1.bf16.msra.mxu0 %v1169
      %1489 = vmatprep.subr.bf16.mxu0 0
      %1490 = vmatpush1.bf16.msra.mxu0 %v1170
      %1491 = vmatprep.subr.bf16.mxu0 0
      %1492 = vmatpush1.bf16.msra.mxu0 %v1171
      %1493 = vmatprep.subr.bf16.mxu0 0
      %1494 = vmatpush1.bf16.msra.mxu0 %v1172
      %1495 = vmatprep.subr.bf16.mxu0 0
      %1496 = vmatpush1.bf16.msra.mxu0 %v1173
      %1497 = vmatprep.subr.bf16.mxu0 0
      %1498 = vmatpush1.bf16.msra.mxu0 %v1174
      %1499 = vmatprep.subr.bf16.mxu0 0
      %1500 = vmatpush1.bf16.msra.mxu0 %v1175
      %1501 = vmatprep.subr.bf16.mxu0 0
      %1502 = vmatpush1.bf16.msra.mxu0 %v1176
      %1503 = vmatprep.subr.bf16.mxu0 0
      %1504 = vmatpush1.bf16.msra.mxu0 %v1177
      %1505 = vmatprep.subr.bf16.mxu0 0
      %1506 = vmatpush1.bf16.msra.mxu0 %v1178
      %1507 = vmatprep.subr.bf16.mxu0 0
      %1508 = vmatpush1.bf16.msra.mxu0 %v1179
      %1509 = vmatprep.subr.bf16.mxu0 0
      %1510 = vmatpush1.bf16.msra.mxu0 %v1180
      %1511 = vmatprep.subr.bf16.mxu0 0
      %1512 = vmatpush1.bf16.msra.mxu0 %v1181
      %1513 = vmatprep.subr.bf16.mxu0 0
      %1514 = vmatpush1.bf16.msra.mxu0 %v1182
      %1515 = vmatprep.mubr.bf16.mxu0 %v707
      %1516 = vmatmul.mubr.bf16.gmra.mrb[0].mxu0 %v706
      %v1517 = vpop.f32.mrb[0].mxu0
      %v1518 = vadd.f32 %v1430, %v1517
      %v1519 = vpop.f32.mrb[0].mxu0
      %v1520 = vpop.f32.mrb[0].mxu0
      %v1521 = vadd.f32 %v1433, %v1520
      %v1522 = vpop.f32.mrb[0].mxu0
      %1523 = vmatprep.mubr.bf16.mxu0 %v717
      %1524 = vmatmul.mubr.bf16.gmra.mrb[0].mxu0 %v716
      %v1525 = vpop.f32.mrb[0].mxu0
      %v1526 = vadd.f32 %v1438, %v1525
      %v1527 = vpop.f32.mrb[0].mxu0
      %v1528 = vpop.f32.mrb[0].mxu0
      %v1529 = vadd.f32 %v1441, %v1528
      %v1530 = vpop.f32.mrb[0].mxu0
      %1531 = vmatprep.mubr.bf16.mxu0 %v727
      %1532 = vmatmul.mubr.bf16.gmra.mrb[0].mxu0 %v726
      %v1533 = vpop.f32.mrb[0].mxu0
      %v1534 = vadd.f32 %v1446, %v1533
      %v1535 = vpop.f32.mrb[0].mxu0
      %v1536 = vpop.f32.mrb[0].mxu0
      %v1537 = vadd.f32 %v1449, %v1536
      %v1538 = vpop.f32.mrb[0].mxu0
      %1539 = vmatprep.mubr.bf16.mxu0 %v737
      %1540 = vmatmul.mubr.bf16.gmra.mrb[0].mxu0 %v736
      %v1541 = vpop.f32.mrb[0].mxu0
      %v1542 = vadd.f32 %v1454, %v1541
      %v1543 = vpop.f32.mrb[0].mxu0
      %v1544 = vpop.f32.mrb[0].mxu0
      %v1545 = vadd.f32 %v1457, %v1544
      %v1546 = vpop.f32.mrb[0].mxu0
      %1547 = vmatprep.mubr.bf16.mxu0 %v747
      %1548 = vmatmul.mubr.bf16.gmra.mrb[0].mxu0 %v746
      %v1549 = vpop.f32.mrb[0].mxu0
      %v1550 = vadd.f32 %v1462, %v1549
      %v1551 = vpop.f32.mrb[0].mxu0
      %v1552 = vpop.f32.mrb[0].mxu0
      %v1553 = vadd.f32 %v1465, %v1552
      %v1554 = vpop.f32.mrb[0].mxu0
      %1555 = vmatprep.mubr.bf16.mxu0 %v757
      %1556 = vmatmul.mubr.bf16.gmra.mrb[0].mxu0 %v756
      %v1557 = vpop.f32.mrb[0].mxu0
      %v1558 = vadd.f32 %v1470, %v1557
      %v1559 = vpop.f32.mrb[0].mxu0
      %v1560 = vpop.f32.mrb[0].mxu0
      %v1561 = vadd.f32 %v1473, %v1560
      %v1562 = vpop.f32.mrb[0].mxu0
      %1563 = vmatprep.mubr.bf16.mxu0 %v767
      %1564 = vmatmul.mubr.bf16.gmra.mrb[0].mxu0 %v766
      %v1565 = vpop.f32.mrb[0].mxu0
      %v1566 = vadd.f32 %v1478, %v1565
      %v1567 = vpop.f32.mrb[0].mxu0
      %v1568 = vpop.f32.mrb[0].mxu0
      %v1569 = vpop.f32.mrb[0].mxu0
      %1570 = vdwg.mxu0
      %1571 = vmatprep.subr.bf16.mxu0 0
      %1572 = vmatpush1.bf16.msra.mxu0 %v1183
      %1573 = vmatprep.subr.bf16.mxu0 0
      %1574 = vmatpush1.bf16.msra.mxu0 %v1184
      %1575 = vmatprep.subr.bf16.mxu0 0
      %1576 = vmatpush1.bf16.msra.mxu0 %v1185
      %1577 = vmatprep.subr.bf16.mxu0 0
      %1578 = vmatpush1.bf16.msra.mxu0 %v1186
      %1579 = vmatprep.subr.bf16.mxu0 0
      %1580 = vmatpush1.bf16.msra.mxu0 %v1187
      %1581 = vmatprep.subr.bf16.mxu0 0
      %1582 = vmatpush1.bf16.msra.mxu0 %v1188
      %1583 = vmatprep.subr.bf16.mxu0 0
      %1584 = vmatpush1.bf16.msra.mxu0 %v1189
      %1585 = vmatprep.subr.bf16.mxu0 0
      %1586 = vmatpush1.bf16.msra.mxu0 %v1190
      %1587 = vmatprep.subr.bf16.mxu0 0
      %1588 = vmatpush1.bf16.msra.mxu0 %v1191
      %1589 = vmatprep.subr.bf16.mxu0 0
      %1590 = vmatpush1.bf16.msra.mxu0 %v1192
      %1591 = vmatprep.subr.bf16.mxu0 0
      %1592 = vmatpush1.bf16.msra.mxu0 %v1193
      %1593 = vmatprep.subr.bf16.mxu0 0
      %1594 = vmatpush1.bf16.msra.mxu0 %v1194
      %1595 = vmatprep.subr.bf16.mxu0 0
      %1596 = vmatpush1.bf16.msra.mxu0 %v1195
      %1597 = vmatprep.subr.bf16.mxu0 0
      %1598 = vmatpush1.bf16.msra.mxu0 %v1196
      %1599 = vmatprep.subr.bf16.mxu0 0
      %1600 = vmatpush1.bf16.msra.mxu0 %v1197
      %1601 = vmatprep.subr.bf16.mxu0 0
      %1602 = vmatpush1.bf16.msra.mxu0 %v1198
      %1603 = vmatprep.mubr.bf16.mxu0 %v709
      %1604 = vmatmul.mubr.bf16.gmra.mrb[0].mxu0 %v708
      %v1605 = vpop.f32.mrb[0].mxu0
      %v1606 = vadd.f32 %v1518, %v1605
      %v1607 = vpop.f32.mrb[0].mxu0
      %v1608 = vpop.f32.mrb[0].mxu0
      %v1609 = vadd.f32 %v1521, %v1608
      %v1610 = vpop.f32.mrb[0].mxu0
      %1611 = vmatprep.mubr.bf16.mxu0 %v719
      %1612 = vmatmul.mubr.bf16.gmra.mrb[0].mxu0 %v718
      %v1613 = vpop.f32.mrb[0].mxu0
      %v1614 = vadd.f32 %v1526, %v1613
      %v1615 = vpop.f32.mrb[0].mxu0
      %v1616 = vpop.f32.mrb[0].mxu0
      %v1617 = vadd.f32 %v1529, %v1616
      %v1618 = vpop.f32.mrb[0].mxu0
      %1619 = vmatprep.mubr.bf16.mxu0 %v729
      %1620 = vmatmul.mubr.bf16.gmra.mrb[0].mxu0 %v728
      %v1621 = vpop.f32.mrb[0].mxu0
      %v1622 = vadd.f32 %v1534, %v1621
      %v1623 = vpop.f32.mrb[0].mxu0
      %v1624 = vpop.f32.mrb[0].mxu0
      %v1625 = vadd.f32 %v1537, %v1624
      %v1626 = vpop.f32.mrb[0].mxu0
      %1627 = vmatprep.mubr.bf16.mxu0 %v739
      %1628 = vmatmul.mubr.bf16.gmra.mrb[0].mxu0 %v738
      %v1629 = vpop.f32.mrb[0].mxu0
      %v1630 = vadd.f32 %v1542, %v1629
      %v1631 = vpop.f32.mrb[0].mxu0
      %v1632 = vpop.f32.mrb[0].mxu0
      %v1633 = vadd.f32 %v1545, %v1632
      %v1634 = vpop.f32.mrb[0].mxu0
      %1635 = vmatprep.mubr.bf16.mxu0 %v749
      %1636 = vmatmul.mubr.bf16.gmra.mrb[0].mxu0 %v748
      %v1637 = vpop.f32.mrb[0].mxu0
      %v1638 = vadd.f32 %v1550, %v1637
      %v1639 = vpop.f32.mrb[0].mxu0
      %v1640 = vpop.f32.mrb[0].mxu0
      %v1641 = vadd.f32 %v1553, %v1640
      %v1642 = vpop.f32.mrb[0].mxu0
      %1643 = vmatprep.mubr.bf16.mxu0 %v759
      %1644 = vmatmul.mubr.bf16.gmra.mrb[0].mxu0 %v758
      %v1645 = vpop.f32.mrb[0].mxu0
      %v1646 = vadd.f32 %v1558, %v1645
      %v1647 = vpop.f32.mrb[0].mxu0
      %v1648 = vpop.f32.mrb[0].mxu0
      %v1649 = vadd.f32 %v1561, %v1648
      %v1650 = vpop.f32.mrb[0].mxu0
      %1651 = vmatprep.mubr.bf16.mxu0 %v769
      %1652 = vmatmul.mubr.bf16.gmra.mrb[0].mxu0 %v768
      %v1653 = vpop.f32.mrb[0].mxu0
      %v1654 = vadd.f32 %v1566, %v1653
      %v1655 = vpop.f32.mrb[0].mxu0
      %v1656 = vpop.f32.mrb[0].mxu0
      %v1657 = vpop.f32.mrb[0].mxu0
      %1658 = vdwg.mxu0
      %1659 = vmatprep.subr.bf16.mxu0 0
      %1660 = vmatpush1.bf16.msra.mxu0 %v1199
      %1661 = vmatprep.subr.bf16.mxu0 0
      %1662 = vmatpush1.bf16.msra.mxu0 %v1200
      %1663 = vmatprep.subr.bf16.mxu0 0
      %1664 = vmatpush1.bf16.msra.mxu0 %v1201
      %1665 = vmatprep.subr.bf16.mxu0 0
      %1666 = vmatpush1.bf16.msra.mxu0 %v1202
      %1667 = vmatprep.subr.bf16.mxu0 0
      %1668 = vmatpush1.bf16.msra.mxu0 %v1203
      %1669 = vmatprep.subr.bf16.mxu0 0
      %1670 = vmatpush1.bf16.msra.mxu0 %v1204
      %1671 = vmatprep.subr.bf16.mxu0 0
      %1672 = vmatpush1.bf16.msra.mxu0 %v1205
      %1673 = vmatprep.subr.bf16.mxu0 0
      %1674 = vmatpush1.bf16.msra.mxu0 %v1206
      %1675 = vmatprep.subr.bf16.mxu0 0
      %1676 = vmatpush1.bf16.msra.mxu0 %v1207
      %1677 = vmatprep.subr.bf16.mxu0 0
      %1678 = vmatpush1.bf16.msra.mxu0 %v1208
      %1679 = vmatprep.subr.bf16.mxu0 0
      %1680 = vmatpush1.bf16.msra.mxu0 %v1209
      %1681 = vmatprep.subr.bf16.mxu0 0
      %1682 = vmatpush1.bf16.msra.mxu0 0
      %1683 = vmatprep.subr.bf16.mxu0 0
      %1684 = vmatpush1.bf16.msra.mxu0 0
      %1685 = vmatprep.subr.bf16.mxu0 0
      %1686 = vmatpush1.bf16.msra.mxu0 0
      %1687 = vmatprep.subr.bf16.mxu0 0
      %1688 = vmatpush1.bf16.msra.mxu0 0
      %1689 = vmatprep.subr.bf16.mxu0 0
      %1690 = vmatpush1.bf16.msra.mxu0 0
      %1691 = vmatprep.mubr.bf16.mxu0 %v1287
      %1692 = vmatmul.mubr.bf16.gmra.mrb[0].mxu0 %v710
      %v1693 = vpop.f32.mrb[0].mxu0
      %v1694 = vadd.f32 %v1606, %v1693
      %v1695 = vpop.f32.mrb[0].mxu0
      %v1696 = vpop.f32.mrb[0].mxu0
      %v1697 = vadd.f32 %v1609, %v1696
      %v1698 = vpop.f32.mrb[0].mxu0
      %1699 = vmatprep.mubr.bf16.mxu0 %v1290
      %1700 = vmatmul.mubr.bf16.gmra.mrb[0].mxu0 %v720
      %v1701 = vpop.f32.mrb[0].mxu0
      %v1702 = vadd.f32 %v1614, %v1701
      %v1703 = vpop.f32.mrb[0].mxu0
      %v1704 = vpop.f32.mrb[0].mxu0
      %v1705 = vadd.f32 %v1617, %v1704
      %v1706 = vpop.f32.mrb[0].mxu0
      %1707 = vmatprep.mubr.bf16.mxu0 %v1293
      %1708 = vmatmul.mubr.bf16.gmra.mrb[0].mxu0 %v730
      %v1709 = vpop.f32.mrb[0].mxu0
      %v1710 = vadd.f32 %v1622, %v1709
      %v1711 = vpop.f32.mrb[0].mxu0
      %v1712 = vpop.f32.mrb[0].mxu0
      %v1713 = vadd.f32 %v1625, %v1712
      %v1714 = vpop.f32.mrb[0].mxu0
      %1715 = vmatprep.mubr.bf16.mxu0 %v1296
      %1716 = vmatmul.mubr.bf16.gmra.mrb[0].mxu0 %v740
      %v1717 = vpop.f32.mrb[0].mxu0
      %v1718 = vadd.f32 %v1630, %v1717
      %v1719 = vpop.f32.mrb[0].mxu0
      %v1720 = vpop.f32.mrb[0].mxu0
      %v1721 = vadd.f32 %v1633, %v1720
      %v1722 = vpop.f32.mrb[0].mxu0
      %1723 = vmatprep.mubr.bf16.mxu0 %v1299
      %1724 = vmatmul.mubr.bf16.gmra.mrb[0].mxu0 %v750
      %v1725 = vpop.f32.mrb[0].mxu0
      %v1726 = vadd.f32 %v1638, %v1725
      %v1727 = vpop.f32.mrb[0].mxu0
      %v1728 = vpop.f32.mrb[0].mxu0
      %v1729 = vadd.f32 %v1641, %v1728
      %v1730 = vpop.f32.mrb[0].mxu0
      %1731 = vmatprep.mubr.bf16.mxu0 %v1302
      %1732 = vmatmul.mubr.bf16.gmra.mrb[0].mxu0 %v760
      %v1733 = vpop.f32.mrb[0].mxu0
      %v1734 = vadd.f32 %v1646, %v1733
      %v1735 = vpop.f32.mrb[0].mxu0
      %v1736 = vpop.f32.mrb[0].mxu0
      %v1737 = vadd.f32 %v1649, %v1736
      %v1738 = vpop.f32.mrb[0].mxu0
      %1739 = vmatprep.mubr.bf16.mxu0 %v1305
      %1740 = vmatmul.mubr.bf16.gmra.mrb[0].mxu0 %v770
      %v1741 = vpop.f32.mrb[0].mxu0
      %v1742 = vadd.f32 %v1654, %v1741
      %v1743 = vpop.f32.mrb[0].mxu0
      %v1744 = vpop.f32.mrb[0].mxu0
      %v1745 = vpop.f32.mrb[0].mxu0
      %1746 = vdwg.mxu0
      %v1747 = vmax.f32 %v1694, 0.0
      %v1748 = vmax.f32 %v1697, 0.0
      %v1749 = vmax.f32 %v1702, 0.0
      %v1750 = vmax.f32 %v1705, 0.0
      %v1751 = vmax.f32 %v1710, 0.0
      %v1752 = vmax.f32 %v1713, 0.0
      %v1753 = vmax.f32 %v1718, 0.0
      %v1754 = vmax.f32 %v1721, 0.0
      %v1755 = vmax.f32 %v1726, 0.0
      %v1756 = vmax.f32 %v1729, 0.0
      %v1757 = vmax.f32 %v1734, 0.0
      %v1758 = vmax.f32 %v1737, 0.0
      %v1759 = vmax.f32 %v1742, 0.0
      %v1760 = vpack.c.bf16 %v1748, %v1747
      %v1761 = vpack.c.bf16 %v1750, %v1749
      %v1762 = vpack.c.bf16 %v1752, %v1751
      %v1763 = vpack.c.bf16 %v1754, %v1753
      %v1764 = vpack.c.bf16 %v1756, %v1755
      %v1765 = vpack.c.bf16 %v1758, %v1757
      %v1766 = vpack.c.bf16 %v1759, %v1759
      %v1774 = vunpack.c.l.b16 %v1760
      %v1775 = vunpack.c.h.b16 %v1760
      %v1776 = vunpack.c.l.b16 %v1761
      %v1777 = vunpack.c.h.b16 %v1761
      %v1778 = vunpack.c.l.b16 %v1762
      %v1779 = vunpack.c.h.b16 %v1762
      %v1780 = vunpack.c.l.b16 %v1763
      %v1781 = vunpack.c.h.b16 %v1763
      %v1782 = vunpack.c.l.b16 %v1764
      %v1783 = vunpack.c.h.b16 %v1764
      %v1784 = vunpack.c.l.b16 %v1765
      %v1785 = vunpack.c.h.b16 %v1765
      %v1786 = vunpack.c.l.b16 %v1766
      %v1787 = vpack.c.b16 %v1774, %v1774
      %v1788 = vpack.c.b16 %v1775, %v1775
      %v1789 = vpack.c.b16 %v1776, %v1776
      %v1790 = vpack.c.b16 %v1777, %v1777
      %v1791 = vpack.c.b16 %v1778, %v1778
      %v1792 = vpack.c.b16 %v1779, %v1779
      %v1793 = vpack.c.b16 %v1780, %v1780
      %v1794 = vpack.c.b16 %v1781, %v1781
      %v1795 = vpack.c.b16 %v1782, %v1782
      %v1796 = vpack.c.b16 %v1783, %v1783
      %v1797 = vpack.c.b16 %v1784, %v1784
      %v1798 = vpack.c.b16 %v1785, %v1785
      %v1799 = vpack.c.b16 %v1786, %v1786
      %1813 = vst [vmem:[%s282] sm:$0xf] %v1787
      %1814 = vst [vmem:[%s282 + $0x4] sm:$0xf] %v1788
      %1815 = vst [vmem:[%s282 + $0x8] sm:$0xf] %v1789
      %1816 = vst [vmem:[%s282 + $0xc] sm:$0xf] %v1790
      %1817 = vst [vmem:[%s282 + $0x10] sm:$0xf] %v1791
      %1818 = vst [vmem:[%s282 + $0x14] sm:$0xf] %v1792
      %1819 = vst [vmem:[%s282 + $0x18] sm:$0xf] %v1793
      %1820 = vst [vmem:[%s282 + $0x1c] sm:$0xf] %v1794
      %1821 = vst [vmem:[%s282 + $0x20] sm:$0xf] %v1795
      %1822 = vst [vmem:[%s282 + $0x24] sm:$0xf] %v1796
      %1823 = vst [vmem:[%s282 + $0x28] sm:$0xf] %v1797
      %1824 = vst [vmem:[%s282 + $0x2c] sm:$0xf] %v1798
      %1825 = vst [vmem:[%s282 + $0x30] sm:$0x1] %v1799
      %s1826 = smul.u32 13, %s20
      %p1827 = scmp.lt.s32.totalorder %s19, 1
      %s1828 = scalar_select %p1827, %s19, 1
      %p1829 = scmp.lt.s32.totalorder %s1826, 12
      %s1830 = scalar_select %p1829, %s1826, 12
      %p1831 = scmp.lt.s32.totalorder %s21, 0
      %s1832 = scalar_select %p1831, %s21, 0
      %s1833 = sadd.s32 %s1832, %s1830
      %s1834 = smul.addr %s1828, 13
      %s1835 = sadd.s32 %s1833, %s1834
      %s1836 = smul.addr %s1835, 4
      %s1837 = scalar_lea.vmem %s3, %s1836
      // Predicated region
      $region33: #{alexnet_forward.9} parent=31 // pred_check
        %p1838 = pneg %p139
      $region34: #{alexnet_forward.9} parent=31 // pred_check_branch
        %1840 = sbr.rel (%p1838) target = $region36
      $region35: #{alexnet_forward.9} parent=31 // pred_region
        %s1841 = smul.u32 13, %s20
      $region36: #{alexnet_forward.9} parent=31 // pred_fallthru
        _
    $region32: #{alexnet_forward.9} parent=5 // pred_fallthru
      _
    %p1842 = scmp.le.s32.totalorder 2, %s9
    // Predicated region
    $region37: #{alexnet_forward.9} parent=5 // pred_check
      %p1843 = pneg %p1842
    $region38: #{alexnet_forward.9} parent=5 // pred_check_branch
      %1845 = sbr.rel (%p1843) target = $region40
    $region39: #{alexnet_forward.9} parent=5 // pred_region
      %s1846 = ssub.s32 %s9, 2
      // Predicated region
      $region41: #{alexnet_forward.9} parent=39 // pred_check
        %p1847 = pneg %p145
      $region42: #{alexnet_forward.9} parent=39 // pred_check_branch
        %1849 = sbr.rel (%p1847) target = $region44
      $region43: #{alexnet_forward.9} parent=39 // pred_region
        %s1850 = smul.u32 13, %s23
        %p1851 = scmp.lt.s32.totalorder %s22, 1
        %s1852 = scalar_select %p1851, %s22, 1
        %p1853 = scmp.lt.s32.totalorder %s1850, 12
        %s1854 = scalar_select %p1853, %s1850, 12
        %p1855 = scmp.lt.s32.totalorder %s24, 0
        %s1856 = scalar_select %p1855, %s24, 0
        %s1857 = sadd.s32 %s1856, %s1854
        %s1858 = smul.addr %s1852, 13
        %s1859 = sadd.s32 %s1857, %s1858
        %s1860 = smul.addr %s1859, 4
        %s1861 = scalar_lea.vmem %s3, %s1860
      $region44: #{alexnet_forward.9} parent=39 // pred_fallthru
        _
    $region40: #{alexnet_forward.9} parent=5 // pred_fallthru
      _
  $region6: #{alexnet_forward.9} parent=0 // loop_footer
    %s13 = sadd.s32 1, %s9
  $region7: #{alexnet_forward.9} parent=0 // loop_footer_branch
    %8 = sbr.rel target = $region3
  $region8: #{alexnet_forward.9} parent=0 // loop_exit
    _

// kernel: alexnet_forward.10
$region0: #{alexnet_forward.10}
  #allocation0 [shape = 'u32[]', space=smem, size = 0x4, offset = 0x4, fixed_abs, tag = 'smem constant byte address 0x4 - core index']
  #allocation1 [shape = 'u32[144,128]{1,0:T(1,128)}', space=vmem, size = 0x12000, scoped, tag = 'internal scratch']
  %s0 = inlined_call_operand.vmem [shape: bf16[18,256], index: 0, kind: input, shape index: {}]
  %s1 = inlined_call_operand.vmem [shape: bf16[18,256], index: 1, kind: input, shape index: {}]
  %s2 = inlined_call_operand.vmem [shape: bf16[18,256], index: 2, kind: input, shape index: {}]
  %s3 = inlined_call_operand.vmem [shape: bf16[18,256], index: 3, kind: input, shape index: {}]
  %s4 = inlined_call_operand.vmem [shape: bf16[18,256], index: 4, kind: input, shape index: {}]
  %s5 = inlined_call_operand.vmem [shape: bf16[18,256], index: 5, kind: input, shape index: {}]
  %s6 = inlined_call_operand.vmem [shape: bf16[18,256], index: 6, kind: input, shape index: {}]
  %s7 = inlined_call_operand.vmem [shape: bf16[18,256], index: 7, kind: input, shape index: {}]
  %s8 = inlined_call_operand.vmem [shape: bf16[18,256], index: 8, kind: input, shape index: {}]
  %s9 = inlined_call_operand.vmem [shape: bf16[18,256], index: 9, kind: output, shape index: {}]
  %s10 = sld [smem:[#allocation0]]
  $region46: #{alexnet_forward.10} parent=0
    _
  %s12 = ssub.s32 1, %s10
  %s13 = scalar_select 0, %s12, %s10
  // Predicated region
  $region2: #{alexnet_forward.10} parent=0 // pred_check
    _
  $region3: #{alexnet_forward.10} parent=0 // pred_check_branch
    %15 = sbr.rel (0) target = $region5
  $region4: #{alexnet_forward.10} parent=0 // pred_region
    _
  $region5: #{alexnet_forward.10} parent=0 // pred_fallthru
    _
  // Predicated region
  $region6: #{alexnet_forward.10} parent=0 // pred_check
    _
  $region7: #{alexnet_forward.10} parent=0 // pred_check_branch
    %17 = sbr.rel (0) target = $region9
  $region8: #{alexnet_forward.10} parent=0 // pred_region
    _
  $region9: #{alexnet_forward.10} parent=0 // pred_fallthru
    _
  // Predicated region
  $region10: #{alexnet_forward.10} parent=0 // pred_check
    _
  $region11: #{alexnet_forward.10} parent=0 // pred_check_branch
    %19 = sbr.rel (0) target = $region13
  $region12: #{alexnet_forward.10} parent=0 // pred_region
    _
  $region13: #{alexnet_forward.10} parent=0 // pred_fallthru
    _
  // Predicated region
  $region14: #{alexnet_forward.10} parent=0 // pred_check
    _
  $region15: #{alexnet_forward.10} parent=0 // pred_check_branch
    %21 = sbr.rel (0) target = $region17
  $region16: #{alexnet_forward.10} parent=0 // pred_region
    _
  $region17: #{alexnet_forward.10} parent=0 // pred_fallthru
    _
  // Predicated region
  $region18: #{alexnet_forward.10} parent=0 // pred_check
    _
  $region19: #{alexnet_forward.10} parent=0 // pred_check_branch
    %23 = sbr.rel (0) target = $region21
  $region20: #{alexnet_forward.10} parent=0 // pred_region
    _
  $region21: #{alexnet_forward.10} parent=0 // pred_fallthru
    _
  // Predicated region
  $region22: #{alexnet_forward.10} parent=0 // pred_check
    _
  $region23: #{alexnet_forward.10} parent=0 // pred_check_branch
    %25 = sbr.rel (0) target = $region25
  $region24: #{alexnet_forward.10} parent=0 // pred_region
    _
  $region25: #{alexnet_forward.10} parent=0 // pred_fallthru
    _
  // Predicated region
  $region26: #{alexnet_forward.10} parent=0 // pred_check
    _
  $region27: #{alexnet_forward.10} parent=0 // pred_check_branch
    %27 = sbr.rel (0) target = $region29
  $region28: #{alexnet_forward.10} parent=0 // pred_region
    _
  $region29: #{alexnet_forward.10} parent=0 // pred_fallthru
    _
  // Predicated region
  $region30: #{alexnet_forward.10} parent=0 // pred_check
    _
  $region31: #{alexnet_forward.10} parent=0 // pred_check_branch
    %29 = sbr.rel (0) target = $region33
  $region32: #{alexnet_forward.10} parent=0 // pred_region
    _
  $region33: #{alexnet_forward.10} parent=0 // pred_fallthru
    _
  // Predicated region
  $region34: #{alexnet_forward.10} parent=0 // pred_check
    _
  $region35: #{alexnet_forward.10} parent=0 // pred_check_branch
    %31 = sbr.rel (0) target = $region37
  $region36: #{alexnet_forward.10} parent=0 // pred_region
    _
  $region37: #{alexnet_forward.10} parent=0 // pred_fallthru
    _
  %v32 = vld [vmem:[%s0] sm:$0xff]
  %v33 = vld [vmem:[%s0 + $0x8] sm:$0xff]
  %v34 = vld [vmem:[%s0 + $0x10] sm:$0x11]
  %v35 = vld [vmem:[%s1] sm:$0xff]
  %v36 = vld [vmem:[%s1 + $0x8] sm:$0xff]
  %v37 = vld [vmem:[%s1 + $0x10] sm:$0x11]
  %v38 = vmax.bf16 %v32, %v35
  %v39 = vmax.bf16 %v33, %v36
  %v40 = vmax.bf16 %v34, %v37
  %v41 = vld [vmem:[%s2] sm:$0xff]
  %v42 = vld [vmem:[%s2 + $0x8] sm:$0xff]
  %v43 = vld [vmem:[%s2 + $0x10] sm:$0x11]
  %v44 = vmax.bf16 %v38, %v41
  %v45 = vmax.bf16 %v39, %v42
  %v46 = vmax.bf16 %v40, %v43
  %v47 = vld [vmem:[%s3] sm:$0xff]
  %v48 = vld [vmem:[%s3 + $0x8] sm:$0xff]
  %v49 = vld [vmem:[%s3 + $0x10] sm:$0x11]
  %v50 = vld [vmem:[%s4] sm:$0xff]
  %v51 = vld [vmem:[%s4 + $0x8] sm:$0xff]
  %v52 = vld [vmem:[%s4 + $0x10] sm:$0x11]
  %v53 = vmax.bf16 %v47, %v50
  %v54 = vmax.bf16 %v48, %v51
  %v55 = vmax.bf16 %v49, %v52
  %v56 = vld [vmem:[%s5] sm:$0xff]
  %v57 = vld [vmem:[%s5 + $0x8] sm:$0xff]
  %v58 = vld [vmem:[%s5 + $0x10] sm:$0x11]
  %v59 = vmax.bf16 %v53, %v56
  %v60 = vmax.bf16 %v54, %v57
  %v61 = vmax.bf16 %v55, %v58
  %v62 = vld [vmem:[%s6] sm:$0xff]
  %v63 = vld [vmem:[%s6 + $0x8] sm:$0xff]
  %v64 = vld [vmem:[%s6 + $0x10] sm:$0x11]
  %v65 = vld [vmem:[%s7] sm:$0xff]
  %v66 = vld [vmem:[%s7 + $0x8] sm:$0xff]
  %v67 = vld [vmem:[%s7 + $0x10] sm:$0x11]
  %v68 = vmax.bf16 %v62, %v65
  %v69 = vmax.bf16 %v63, %v66
  %v70 = vmax.bf16 %v64, %v67
  %v71 = vld [vmem:[%s8] sm:$0xff]
  %v72 = vld [vmem:[%s8 + $0x8] sm:$0xff]
  %v73 = vld [vmem:[%s8 + $0x10] sm:$0x11]
  %v74 = vmax.bf16 %v68, %v71
  %v75 = vmax.bf16 %v69, %v72
  %v76 = vmax.bf16 %v70, %v73
  %v77 = vmax.bf16 %v44, %v59
  %v78 = vmax.bf16 %v45, %v60
  %v79 = vmax.bf16 %v46, %v61
  %v80 = vmax.bf16 %v77, %v74
  %v81 = vmax.bf16 %v78, %v75
  %v82 = vmax.bf16 %v79, %v76
  %83 = vst [vmem:[%s9] sm:$0xff] %v80
  %84 = vst [vmem:[%s9 + $0x8] sm:$0xff] %v81
  %85 = vst [vmem:[%s9 + $0x10] sm:$0x11] %v82
  // Predicated region
  $region38: #{alexnet_forward.10} parent=0 // pred_check
    _
  $region39: #{alexnet_forward.10} parent=0 // pred_check_branch
    %87 = sbr.rel (0) target = $region41
  $region40: #{alexnet_forward.10} parent=0 // pred_region
    _
  $region41: #{alexnet_forward.10} parent=0 // pred_fallthru
    _
  // Predicated region
  $region42: #{alexnet_forward.10} parent=0 // pred_check
    _
  $region43: #{alexnet_forward.10} parent=0 // pred_check_branch
    %89 = sbr.rel (0) target = $region45
  $region44: #{alexnet_forward.10} parent=0 // pred_region
    _
  $region45: #{alexnet_forward.10} parent=0 // pred_fallthru
    _

// kernel: alexnet_forward.11
$region0: #{alexnet_forward.11}
  #allocation0 [shape = 'u32[]', space=smem, size = 0x4, offset = 0x4, fixed_abs, tag = 'smem constant byte address 0x4 - core index']
  #allocation1 [shape = 'u32[144,128]{1,0:T(1,128)}', space=vmem, size = 0x12000, scoped, tag = 'internal scratch']
  %s0 = inlined_call_operand.vmem [shape: bf16[1,18,2304], index: 0, kind: input, shape index: {}]
  %s1 = inlined_call_operand.vmem [shape: bf16[1,2304,384], index: 1, kind: input, shape index: {}]
  %s2 = inlined_call_operand.vmem [shape: f32[1,1,384], index: 2, kind: input, shape index: {}]
  %s3 = inlined_call_operand.vmem [shape: bf16[1,18,384], index: 3, kind: output, shape index: {}]
  %s4 = sld [smem:[#allocation0]]
  $region123: #{alexnet_forward.11} parent=0
    _
  %s6 = ssub.s32 1, %s4
  %s7 = scalar_select 0, %s6, %s4
  $region1: #{alexnet_forward.11} parent=0
    #allocation2 [shape = 'u8[1179648]{0}', space=vmem, size = 0x120000, scoped, tag = 'input window, operand 1']
    #allocation3 [shape = 'u8[12288]{0}', space=vmem, size = 0x3000, scoped, tag = 'output window, operand 0']
    loop: start=0, step=1, limit=5
    $region2: #{alexnet_forward.11} parent=1 // loop_pre_header
      _
    $region3: #{alexnet_forward.11} parent=1 // loop_header
      %s9 = sphi 0, %s13
      %p10 = scmp.ge.s32.totalorder %s9, 5
      %s16 = sphi 0, %s35
      %s17 = sphi 0, %s31
      %s18 = sphi 0, %s27
      %s19 = sphi 0, %s16
      %s20 = sphi 0, %s17
      %s21 = sphi 0, %s18
      %s22 = sphi 0, %s19
      %s23 = sphi 0, %s20
      %s24 = sphi 0, %s21
      %s40 = sphi 0, %s42
      %s43 = sphi 0, %s40
      %s44 = sphi 0, %s43
      %s60 = sphi 0, %s44
      %s68 = sphi 0, %s70
      %s71 = sphi 0, %s68
      %s72 = sphi 0, %s71
      %s88 = sphi 0, %s72
      %s96 = sphi 0, %s98
      %s99 = sphi 0, %s96
      %s100 = sphi 0, %s99
      %s116 = sphi 0, %s100
      %s126 = sphi 0, %s128
      %s129 = sphi 0, %s126
      %s130 = sphi 0, %s129
      %s146 = sphi 0, %s130
    $region4: #{alexnet_forward.11} parent=1 // loop_header_branch
      %12 = sbr.rel (%p10) target = $region8
    $region5: #{alexnet_forward.11} parent=1 // loop_body
      %s14 = ssub.s32 %s9, 1
      %s15 = ssub.s32 %s9, 2
      %s25 = sadd.s32 1, %s18
      %p26 = scmp.ge.s32.totalorder %s25, 3
      %s27 = scalar_select %p26, 0, %s25
      %s28 = sadd.s32 1, %s17
      %s29 = scalar_select %p26, %s28, %s17
      %p30 = scmp.ge.s32.totalorder %s29, 1
      %s31 = scalar_select %p30, 0, %s29
      %s32 = sadd.s32 1, %s16
      %s33 = scalar_select %p30, %s32, %s16
      %p34 = scmp.ge.s32.totalorder %s33, 1
      %s35 = scalar_select %p34, 0, %s33
      %s36 = ssub.s32 %s16, %s35
      %s37 = ssub.s32 %s17, %s31
      %s38 = sor.u32 %s36, %s37
      %p39 = scmp.eq.s32.totalorder %s38, 0
      %s41 = sadd.s32 %s40, 1
      %s42 = scalar_select %p39, %s40, %s41
      %p45 = pneg %p39
      %p46 = scmp.eq.s32.totalorder %s9, 2
      %p47 = por %p45, %p46
      %p48 = scmp.ne.s32.totalorder %s40, %s43
      %p49 = scmp.eq.s32.totalorder %s9, 0
      %p50 = por %p48, %p49
      %p51 = scmp.ne.s32.totalorder %s40, %s43
      %p52 = scmp.eq.s32.totalorder %s14, 2
      %p53 = por %p51, %p52
      %p54 = scmp.ne.s32.totalorder %s43, %s44
      %p55 = scmp.eq.s32.totalorder %s14, 0
      %p56 = por %p54, %p55
      %p57 = scmp.ne.s32.totalorder %s43, %s44
      %p58 = scmp.eq.s32.totalorder %s15, 2
      %p59 = por %p57, %p58
      %p61 = scmp.ne.s32.totalorder %s44, %s60
      %p62 = scmp.eq.s32.totalorder %s15, 0
      %p63 = por %p61, %p62
      %s64 = ssub.s32 %s16, %s35
      %s65 = ssub.s32 %s18, %s27
      %s66 = sor.u32 %s64, %s65
      %p67 = scmp.eq.s32.totalorder %s66, 0
      %s69 = sadd.s32 %s68, 1
      %s70 = scalar_select %p67, %s68, %s69
      %p73 = pneg %p67
      %p74 = scmp.eq.s32.totalorder %s9, 2
      %p75 = por %p73, %p74
      %p76 = scmp.ne.s32.totalorder %s68, %s71
      %p77 = scmp.eq.s32.totalorder %s9, 0
      %p78 = por %p76, %p77
      %p79 = scmp.ne.s32.totalorder %s68, %s71
      %p80 = scmp.eq.s32.totalorder %s14, 2
      %p81 = por %p79, %p80
      %p82 = scmp.ne.s32.totalorder %s71, %s72
      %p83 = scmp.eq.s32.totalorder %s14, 0
      %p84 = por %p82, %p83
      %p85 = scmp.ne.s32.totalorder %s71, %s72
      %p86 = scmp.eq.s32.totalorder %s15, 2
      %p87 = por %p85, %p86
      %p89 = scmp.ne.s32.totalorder %s72, %s88
      %p90 = scmp.eq.s32.totalorder %s15, 0
      %p91 = por %p89, %p90
      %s92 = ssub.s32 %s16, %s35
      %s93 = ssub.s32 %s18, %s27
      %s94 = sor.u32 %s92, %s93
      %p95 = scmp.eq.s32.totalorder %s94, 0
      %s97 = sadd.s32 %s96, 1
      %s98 = scalar_select %p95, %s96, %s97
      %p101 = pneg %p95
      %p102 = scmp.eq.s32.totalorder %s9, 2
      %p103 = por %p101, %p102
      %p104 = scmp.ne.s32.totalorder %s96, %s99
      %p105 = scmp.eq.s32.totalorder %s9, 0
      %p106 = por %p104, %p105
      %p107 = scmp.ne.s32.totalorder %s96, %s99
      %p108 = scmp.eq.s32.totalorder %s14, 2
      %p109 = por %p107, %p108
      %p110 = scmp.ne.s32.totalorder %s99, %s100
      %p111 = scmp.eq.s32.totalorder %s14, 0
      %p112 = por %p110, %p111
      %p113 = scmp.ne.s32.totalorder %s99, %s100
      %p114 = scmp.eq.s32.totalorder %s15, 2
      %p115 = por %p113, %p114
      %p117 = scmp.ne.s32.totalorder %s100, %s116
      %p118 = scmp.eq.s32.totalorder %s15, 0
      %p119 = por %p117, %p118
      %s120 = ssub.s32 %s16, %s35
      %s121 = ssub.s32 %s17, %s31
      %s122 = sor.u32 %s120, %s121
      %s123 = ssub.s32 %s18, %s27
      %s124 = sor.u32 %s122, %s123
      %p125 = scmp.eq.s32.totalorder %s124, 0
      %s127 = sadd.s32 %s126, 1
      %s128 = scalar_select %p125, %s126, %s127
      %p131 = pneg %p125
      %p132 = scmp.eq.s32.totalorder %s9, 2
      %p133 = por %p131, %p132
      %p134 = scmp.ne.s32.totalorder %s126, %s129
      %p135 = scmp.eq.s32.totalorder %s9, 0
      %p136 = por %p134, %p135
      %p137 = scmp.ne.s32.totalorder %s126, %s129
      %p138 = scmp.eq.s32.totalorder %s14, 2
      %p139 = por %p137, %p138
      %p140 = scmp.ne.s32.totalorder %s129, %s130
      %p141 = scmp.eq.s32.totalorder %s14, 0
      %p142 = por %p140, %p141
      %p143 = scmp.ne.s32.totalorder %s129, %s130
      %p144 = scmp.eq.s32.totalorder %s15, 2
      %p145 = por %p143, %p144
      %p147 = scmp.ne.s32.totalorder %s130, %s146
      %p148 = scmp.eq.s32.totalorder %s15, 0
      %p149 = por %p147, %p148
      %p150 = scmp.le.s32.totalorder 1, %s9
      %p151 = scmp.lt.s32.totalorder %s9, 4
      %p152 = pnand %p150, %p151
      %p153 = pneg %p152
      // Predicated region
      $region9: #{alexnet_forward.11} parent=5 // pred_check
        _
      $region10: #{alexnet_forward.11} parent=5 // pred_check_branch
        %155 = sbr.rel (%p152) target = $region12
      $region11: #{alexnet_forward.11} parent=5 // pred_region
        %s156 = ssub.s32 %s9, 1
        // Predicated region
        $region13: #{alexnet_forward.11} parent=11 // pred_check
          %p157 = pneg %p56
        $region14: #{alexnet_forward.11} parent=11 // pred_check_branch
          %159 = sbr.rel (%p157) target = $region16
        $region15: #{alexnet_forward.11} parent=11 // pred_region
          %s160 = smul.u32 3, %s20
          %p161 = scmp.lt.s32.totalorder %s19, 0
          %s162 = scalar_select %p161, %s19, 0
          %p163 = scmp.lt.s32.totalorder %s160, 2
          %s164 = scalar_select %p163, %s160, 2
          %s165 = smul.addr %s164, 18
          %s166 = smul.addr %s162, 54
          %s167 = sadd.s32 %s165, %s166
          %s168 = smul.addr %s167, 4
          %s169 = scalar_lea.vmem %s0, %s168
          %s170 = smul.u32 3, %s20
        $region16: #{alexnet_forward.11} parent=11 // pred_fallthru
          _
      $region12: #{alexnet_forward.11} parent=5 // pred_fallthru
        _
      %p171 = scmp.lt.s32.totalorder %s9, 3
      // Predicated region
      $region17: #{alexnet_forward.11} parent=5 // pred_check
        %p172 = pneg %p171
      $region18: #{alexnet_forward.11} parent=5 // pred_check_branch
        %174 = sbr.rel (%p172) target = $region20
      $region19: #{alexnet_forward.11} parent=5 // pred_region
        // Predicated region
        $region21: #{alexnet_forward.11} parent=19 // pred_check
          %p175 = pneg %p78
        $region22: #{alexnet_forward.11} parent=19 // pred_check_branch
          %177 = sbr.rel (%p175) target = $region24
        $region23: #{alexnet_forward.11} parent=19 // pred_region
          %s178 = sand.u32 %s68, 1
          %s179 = sand.u32 %s68, 1
          %s180 = smul.addr %s179, 1152
          %s181 = scalar_lea.vmem [#allocation2], %s180
          %s182 = smul.addr %s16, 864
          %s183 = sadd.s32 %s18, %s182
          %s184 = smul.addr %s183, 4
          %s185 = scalar_lea.vmem %s1, %s184
          // Predicated region
          $region25: #{alexnet_forward.11} parent=23 // pred_check
            _
          $region26: #{alexnet_forward.11} parent=23 // pred_check_branch
            %187 = sbr.rel (0) target = $region28
          $region27: #{alexnet_forward.11} parent=23 // pred_region
            // Predicated region
            $region29: #{alexnet_forward.11} parent=27 // pred_check
              _
            $region30: #{alexnet_forward.11} parent=27 // pred_check_branch
              %189 = sbr.rel target = $region32
            $region31: #{alexnet_forward.11} parent=27 // pred_region
              // Predicated region
              $region44: #{alexnet_forward.11} parent=31 // pred_check
                _
              $region45: #{alexnet_forward.11} parent=31 // pred_check_branch
                %778 = sbr.rel (0) target = $region47
              $region46: #{alexnet_forward.11} parent=31 // pred_region
                loop: start=0, step=1, limit=1
                $region48: #{alexnet_forward.11} parent=46 // loop_pre_header
                  _
                $region49: #{alexnet_forward.11} parent=46 // loop_header
                  %s780 = sphi 0, %s784
                  %p781 = scmp.ge.s32.totalorder %s780, 1
                  %s785 = sphi %s185, %s185
                  %s786 = sphi %s181, %s181
                $region50: #{alexnet_forward.11} parent=46 // loop_header_branch
                  %783 = sbr.rel (%p781) target = $region54
                $region51: #{alexnet_forward.11} parent=46 // loop_body
                  _
                $region52: #{alexnet_forward.11} parent=46 // loop_footer
                  %s784 = sadd.s32 1, %s780
                $region53: #{alexnet_forward.11} parent=46 // loop_footer_branch
                  %779 = sbr.rel target = $region49
                $region54: #{alexnet_forward.11} parent=46 // loop_exit
                  _
                loop: start=0, step=1, limit=1
                $region55: #{alexnet_forward.11} parent=46 // loop_pre_header
                  _
                $region56: #{alexnet_forward.11} parent=46 // loop_header
                  %s789 = sphi 0, %s793
                  %p790 = scmp.ge.s32.totalorder %s789, 1
                  %s794 = sphi %s185, %s185
                  %s795 = sphi %s181, %s181
                $region57: #{alexnet_forward.11} parent=46 // loop_header_branch
                  %792 = sbr.rel (%p790) target = $region61
                $region58: #{alexnet_forward.11} parent=46 // loop_body
                  %v796 = vld [vmem:[%s794] sm:$0xf]
                  %797 = vst [vmem:[%s795] sm:$0xf] %v796
                  %v798 = vld [vmem:[%s794 + $0xc] sm:$0xf]
                  %799 = vst [vmem:[%s795 + $0x4] sm:$0xf] %v798
                  %v800 = vld [vmem:[%s794 + $0x18] sm:$0xf]
                  %801 = vst [vmem:[%s795 + $0x8] sm:$0xf] %v800
                  %v802 = vld [vmem:[%s794 + $0x24] sm:$0xf]
                  %803 = vst [vmem:[%s795 + $0xc] sm:$0xf] %v802
                  %v804 = vld [vmem:[%s794 + $0x30] sm:$0xf]
                  %805 = vst [vmem:[%s795 + $0x10] sm:$0xf] %v804
                  %v806 = vld [vmem:[%s794 + $0x3c] sm:$0xf]
                  %807 = vst [vmem:[%s795 + $0x14] sm:$0xf] %v806
                  %v808 = vld [vmem:[%s794 + $0x48] sm:$0xf]
                  %809 = vst [vmem:[%s795 + $0x18] sm:$0xf] %v808
                  %v810 = vld [vmem:[%s794 + $0x54] sm:$0xf]
                  %811 = vst [vmem:[%s795 + $0x1c] sm:$0xf] %v810
                  %v812 = vld [vmem:[%s794 + $0x60] sm:$0xf]
                  %813 = vst [vmem:[%s795 + $0x20] sm:$0xf] %v812
                  %v814 = vld [vmem:[%s794 + $0x6c] sm:$0xf]
                  %815 = vst [vmem:[%s795 + $0x24] sm:$0xf] %v814
                  %v816 = vld [vmem:[%s794 + $0x78] sm:$0xf]
                  %817 = vst [vmem:[%s795 + $0x28] sm:$0xf] %v816
                  %v818 = vld [vmem:[%s794 + $0x84] sm:$0xf]
                  %819 = vst [vmem:[%s795 + $0x2c] sm:$0xf] %v818
                  %v820 = vld [vmem:[%s794 + $0x90] sm:$0xf]
                  %821 = vst [vmem:[%s795 + $0x30] sm:$0xf] %v820
                  %v822 = vld [vmem:[%s794 + $0x9c] sm:$0xf]
                  %823 = vst [vmem:[%s795 + $0x34] sm:$0xf] %v822
                  %v824 = vld [vmem:[%s794 + $0xa8] sm:$0xf]
                  %825 = vst [vmem:[%s795 + $0x38] sm:$0xf] %v824
                  %v826 = vld [vmem:[%s794 + $0xb4] sm:$0xf]
                  %827 = vst [vmem:[%s795 + $0x3c] sm:$0xf] %v826
                  %v828 = vld [vmem:[%s794 + $0xc0] sm:$0xf]
                  %829 = vst [vmem:[%s795 + $0x40] sm:$0xf] %v828
                  %v830 = vld [vmem:[%s794 + $0xcc] sm:$0xf]
                  %831 = vst [vmem:[%s795 + $0x44] sm:$0xf] %v830
                  %v832 = vld [vmem:[%s794 + $0xd8] sm:$0xf]
                  %833 = vst [vmem:[%s795 + $0x48] sm:$0xf] %v832
                  %v834 = vld [vmem:[%s794 + $0xe4] sm:$0xf]
                  %835 = vst [vmem:[%s795 + $0x4c] sm:$0xf] %v834
                  %v836 = vld [vmem:[%s794 + $0xf0] sm:$0xf]
                  %837 = vst [vmem:[%s795 + $0x50] sm:$0xf] %v836
                  %v838 = vld [vmem:[%s794 + $0xfc] sm:$0xf]
                  %839 = vst [vmem:[%s795 + $0x54] sm:$0xf] %v838
                  %v840 = vld [vmem:[%s794 + $0x108] sm:$0xf]
                  %841 = vst [vmem:[%s795 + $0x58] sm:$0xf] %v840
                  %v842 = vld [vmem:[%s794 + $0x114] sm:$0xf]
                  %843 = vst [vmem:[%s795 + $0x5c] sm:$0xf] %v842
                  %v844 = vld [vmem:[%s794 + $0x120] sm:$0xf]
                  %845 = vst [vmem:[%s795 + $0x60] sm:$0xf] %v844
                  %v846 = vld [vmem:[%s794 + $0x12c] sm:$0xf]
                  %847 = vst [vmem:[%s795 + $0x64] sm:$0xf] %v846
                  %v848 = vld [vmem:[%s794 + $0x138] sm:$0xf]
                  %849 = vst [vmem:[%s795 + $0x68] sm:$0xf] %v848
                  %v850 = vld [vmem:[%s794 + $0x144] sm:$0xf]
                  %851 = vst [vmem:[%s795 + $0x6c] sm:$0xf] %v850
                  %v852 = vld [vmem:[%s794 + $0x150] sm:$0xf]
                  %853 = vst [vmem:[%s795 + $0x70] sm:$0xf] %v852
                  %v854 = vld [vmem:[%s794 + $0x15c] sm:$0xf]
                  %855 = vst [vmem:[%s795 + $0x74] sm:$0xf] %v854
                  %v856 = vld [vmem:[%s794 + $0x168] sm:$0xf]
                  %857 = vst [vmem:[%s795 + $0x78] sm:$0xf] %v856
                  %v858 = vld [vmem:[%s794 + $0x174] sm:$0xf]
                  %859 = vst [vmem:[%s795 + $0x7c] sm:$0xf] %v858
                  %v860 = vld [vmem:[%s794 + $0x180] sm:$0xf]
                  %861 = vst [vmem:[%s795 + $0x80] sm:$0xf] %v860
                  %v862 = vld [vmem:[%s794 + $0x18c] sm:$0xf]
                  %863 = vst [vmem:[%s795 + $0x84] sm:$0xf] %v862
                  %v864 = vld [vmem:[%s794 + $0x198] sm:$0xf]
                  %865 = vst [vmem:[%s795 + $0x88] sm:$0xf] %v864
                  %v866 = vld [vmem:[%s794 + $0x1a4] sm:$0xf]
                  %867 = vst [vmem:[%s795 + $0x8c] sm:$0xf] %v866
                  %v868 = vld [vmem:[%s794 + $0x1b0] sm:$0xf]
                  %869 = vst [vmem:[%s795 + $0x90] sm:$0xf] %v868
                  %v870 = vld [vmem:[%s794 + $0x1bc] sm:$0xf]
                  %871 = vst [vmem:[%s795 + $0x94] sm:$0xf] %v870
                  %v872 = vld [vmem:[%s794 + $0x1c8] sm:$0xf]
                  %873 = vst [vmem:[%s795 + $0x98] sm:$0xf] %v872
                  %v874 = vld [vmem:[%s794 + $0x1d4] sm:$0xf]
                  %875 = vst [vmem:[%s795 + $0x9c] sm:$0xf] %v874
                  %v876 = vld [vmem:[%s794 + $0x1e0] sm:$0xf]
                  %877 = vst [vmem:[%s795 + $0xa0] sm:$0xf] %v876
                  %v878 = vld [vmem:[%s794 + $0x1ec] sm:$0xf]
                  %879 = vst [vmem:[%s795 + $0xa4] sm:$0xf] %v878
                  %v880 = vld [vmem:[%s794 + $0x1f8] sm:$0xf]
                  %881 = vst [vmem:[%s795 + $0xa8] sm:$0xf] %v880
                  %v882 = vld [vmem:[%s794 + $0x204] sm:$0xf]
                  %883 = vst [vmem:[%s795 + $0xac] sm:$0xf] %v882
                  %v884 = vld [vmem:[%s794 + $0x210] sm:$0xf]
                  %885 = vst [vmem:[%s795 + $0xb0] sm:$0xf] %v884
                  %v886 = vld [vmem:[%s794 + $0x21c] sm:$0xf]
                  %887 = vst [vmem:[%s795 + $0xb4] sm:$0xf] %v886
                  %v888 = vld [vmem:[%s794 + $0x228] sm:$0xf]
                  %889 = vst [vmem:[%s795 + $0xb8] sm:$0xf] %v888
                  %v890 = vld [vmem:[%s794 + $0x234] sm:$0xf]
                  %891 = vst [vmem:[%s795 + $0xbc] sm:$0xf] %v890
                  %v892 = vld [vmem:[%s794 + $0x240] sm:$0xf]
                  %893 = vst [vmem:[%s795 + $0xc0] sm:$0xf] %v892
                  %v894 = vld [vmem:[%s794 + $0x24c] sm:$0xf]
                  %895 = vst [vmem:[%s795 + $0xc4] sm:$0xf] %v894
                  %v896 = vld [vmem:[%s794 + $0x258] sm:$0xf]
                  %897 = vst [vmem:[%s795 + $0xc8] sm:$0xf] %v896
                  %v898 = vld [vmem:[%s794 + $0x264] sm:$0xf]
                  %899 = vst [vmem:[%s795 + $0xcc] sm:$0xf] %v898
                  %v900 = vld [vmem:[%s794 + $0x270] sm:$0xf]
                  %901 = vst [vmem:[%s795 + $0xd0] sm:$0xf] %v900
                  %v902 = vld [vmem:[%s794 + $0x27c] sm:$0xf]
                  %903 = vst [vmem:[%s795 + $0xd4] sm:$0xf] %v902
                  %v904 = vld [vmem:[%s794 + $0x288] sm:$0xf]
                  %905 = vst [vmem:[%s795 + $0xd8] sm:$0xf] %v904
                  %v906 = vld [vmem:[%s794 + $0x294] sm:$0xf]
                  %907 = vst [vmem:[%s795 + $0xdc] sm:$0xf] %v906
                  %v908 = vld [vmem:[%s794 + $0x2a0] sm:$0xf]
                  %909 = vst [vmem:[%s795 + $0xe0] sm:$0xf] %v908
                  %v910 = vld [vmem:[%s794 + $0x2ac] sm:$0xf]
                  %911 = vst [vmem:[%s795 + $0xe4] sm:$0xf] %v910
                  %v912 = vld [vmem:[%s794 + $0x2b8] sm:$0xf]
                  %913 = vst [vmem:[%s795 + $0xe8] sm:$0xf] %v912
                  %v914 = vld [vmem:[%s794 + $0x2c4] sm:$0xf]
                  %915 = vst [vmem:[%s795 + $0xec] sm:$0xf] %v914
                  %v916 = vld [vmem:[%s794 + $0x2d0] sm:$0xf]
                  %917 = vst [vmem:[%s795 + $0xf0] sm:$0xf] %v916
                  %v918 = vld [vmem:[%s794 + $0x2dc] sm:$0xf]
                  %919 = vst [vmem:[%s795 + $0xf4] sm:$0xf] %v918
                  %v920 = vld [vmem:[%s794 + $0x2e8] sm:$0xf]
                  %921 = vst [vmem:[%s795 + $0xf8] sm:$0xf] %v920
                  %v922 = vld [vmem:[%s794 + $0x2f4] sm:$0xf]
                  %923 = vst [vmem:[%s795 + $0xfc] sm:$0xf] %v922
                  %v924 = vld [vmem:[%s794 + $0x300] sm:$0xf]
                  %925 = vst [vmem:[%s795 + $0x100] sm:$0xf] %v924
                  %v926 = vld [vmem:[%s794 + $0x30c] sm:$0xf]
                  %927 = vst [vmem:[%s795 + $0x104] sm:$0xf] %v926
                  %v928 = vld [vmem:[%s794 + $0x318] sm:$0xf]
                  %929 = vst [vmem:[%s795 + $0x108] sm:$0xf] %v928
                  %v930 = vld [vmem:[%s794 + $0x324] sm:$0xf]
                  %931 = vst [vmem:[%s795 + $0x10c] sm:$0xf] %v930
                  %v932 = vld [vmem:[%s794 + $0x330] sm:$0xf]
                  %933 = vst [vmem:[%s795 + $0x110] sm:$0xf] %v932
                  %v934 = vld [vmem:[%s794 + $0x33c] sm:$0xf]
                  %935 = vst [vmem:[%s795 + $0x114] sm:$0xf] %v934
                  %v936 = vld [vmem:[%s794 + $0x348] sm:$0xf]
                  %937 = vst [vmem:[%s795 + $0x118] sm:$0xf] %v936
                  %v938 = vld [vmem:[%s794 + $0x354] sm:$0xf]
                  %939 = vst [vmem:[%s795 + $0x11c] sm:$0xf] %v938
                  %v940 = vld [vmem:[%s794 + $0x360] sm:$0xf]
                  %941 = vst [vmem:[%s795 + $0x120] sm:$0xf] %v940
                  %v942 = vld [vmem:[%s794 + $0x36c] sm:$0xf]
                  %943 = vst [vmem:[%s795 + $0x124] sm:$0xf] %v942
                  %v944 = vld [vmem:[%s794 + $0x378] sm:$0xf]
                  %945 = vst [vmem:[%s795 + $0x128] sm:$0xf] %v944
                  %v946 = vld [vmem:[%s794 + $0x384] sm:$0xf]
                  %947 = vst [vmem:[%s795 + $0x12c] sm:$0xf] %v946
                  %v948 = vld [vmem:[%s794 + $0x390] sm:$0xf]
                  %949 = vst [vmem:[%s795 + $0x130] sm:$0xf] %v948
                  %v950 = vld [vmem:[%s794 + $0x39c] sm:$0xf]
                  %951 = vst [vmem:[%s795 + $0x134] sm:$0xf] %v950
                  %v952 = vld [vmem:[%s794 + $0x3a8] sm:$0xf]
                  %953 = vst [vmem:[%s795 + $0x138] sm:$0xf] %v952
                  %v954 = vld [vmem:[%s794 + $0x3b4] sm:$0xf]
                  %955 = vst [vmem:[%s795 + $0x13c] sm:$0xf] %v954
                  %v956 = vld [vmem:[%s794 + $0x3c0] sm:$0xf]
                  %957 = vst [vmem:[%s795 + $0x140] sm:$0xf] %v956
                  %v958 = vld [vmem:[%s794 + $0x3cc] sm:$0xf]
                  %959 = vst [vmem:[%s795 + $0x144] sm:$0xf] %v958
                  %v960 = vld [vmem:[%s794 + $0x3d8] sm:$0xf]
                  %961 = vst [vmem:[%s795 + $0x148] sm:$0xf] %v960
                  %v962 = vld [vmem:[%s794 + $0x3e4] sm:$0xf]
                  %963 = vst [vmem:[%s795 + $0x14c] sm:$0xf] %v962
                  %v964 = vld [vmem:[%s794 + $0x3f0] sm:$0xf]
                  %965 = vst [vmem:[%s795 + $0x150] sm:$0xf] %v964
                  %v966 = vld [vmem:[%s794 + $0x3fc] sm:$0xf]
                  %967 = vst [vmem:[%s795 + $0x154] sm:$0xf] %v966
                  %v968 = vld [vmem:[%s794 + $0x408] sm:$0xf]
                  %969 = vst [vmem:[%s795 + $0x158] sm:$0xf] %v968
                  %v970 = vld [vmem:[%s794 + $0x414] sm:$0xf]
                  %971 = vst [vmem:[%s795 + $0x15c] sm:$0xf] %v970
                  %v972 = vld [vmem:[%s794 + $0x420] sm:$0xf]
                  %973 = vst [vmem:[%s795 + $0x160] sm:$0xf] %v972
                  %v974 = vld [vmem:[%s794 + $0x42c] sm:$0xf]
                  %975 = vst [vmem:[%s795 + $0x164] sm:$0xf] %v974
                  %v976 = vld [vmem:[%s794 + $0x438] sm:$0xf]
                  %977 = vst [vmem:[%s795 + $0x168] sm:$0xf] %v976
                  %v978 = vld [vmem:[%s794 + $0x444] sm:$0xf]
                  %979 = vst [vmem:[%s795 + $0x16c] sm:$0xf] %v978
                  %v980 = vld [vmem:[%s794 + $0x450] sm:$0xf]
                  %981 = vst [vmem:[%s795 + $0x170] sm:$0xf] %v980
                  %v982 = vld [vmem:[%s794 + $0x45c] sm:$0xf]
                  %983 = vst [vmem:[%s795 + $0x174] sm:$0xf] %v982
                  %v984 = vld [vmem:[%s794 + $0x468] sm:$0xf]
                  %985 = vst [vmem:[%s795 + $0x178] sm:$0xf] %v984
                  %v986 = vld [vmem:[%s794 + $0x474] sm:$0xf]
                  %987 = vst [vmem:[%s795 + $0x17c] sm:$0xf] %v986
                  %v988 = vld [vmem:[%s794 + $0x480] sm:$0xf]
                  %989 = vst [vmem:[%s795 + $0x180] sm:$0xf] %v988
                  %v990 = vld [vmem:[%s794 + $0x48c] sm:$0xf]
                  %991 = vst [vmem:[%s795 + $0x184] sm:$0xf] %v990
                  %v992 = vld [vmem:[%s794 + $0x498] sm:$0xf]
                  %993 = vst [vmem:[%s795 + $0x188] sm:$0xf] %v992
                  %v994 = vld [vmem:[%s794 + $0x4a4] sm:$0xf]
                  %995 = vst [vmem:[%s795 + $0x18c] sm:$0xf] %v994
                  %v996 = vld [vmem:[%s794 + $0x4b0] sm:$0xf]
                  %997 = vst [vmem:[%s795 + $0x190] sm:$0xf] %v996
                  %v998 = vld [vmem:[%s794 + $0x4bc] sm:$0xf]
                  %999 = vst [vmem:[%s795 + $0x194] sm:$0xf] %v998
                  %v1000 = vld [vmem:[%s794 + $0x4c8] sm:$0xf]
                  %1001 = vst [vmem:[%s795 + $0x198] sm:$0xf] %v1000
                  %v1002 = vld [vmem:[%s794 + $0x4d4] sm:$0xf]
                  %1003 = vst [vmem:[%s795 + $0x19c] sm:$0xf] %v1002
                  %v1004 = vld [vmem:[%s794 + $0x4e0] sm:$0xf]
                  %1005 = vst [vmem:[%s795 + $0x1a0] sm:$0xf] %v1004
                  %v1006 = vld [vmem:[%s794 + $0x4ec] sm:$0xf]
                  %1007 = vst [vmem:[%s795 + $0x1a4] sm:$0xf] %v1006
                  %v1008 = vld [vmem:[%s794 + $0x4f8] sm:$0xf]
                  %1009 = vst [vmem:[%s795 + $0x1a8] sm:$0xf] %v1008
                  %v1010 = vld [vmem:[%s794 + $0x504] sm:$0xf]
                  %1011 = vst [vmem:[%s795 + $0x1ac] sm:$0xf] %v1010
                  %v1012 = vld [vmem:[%s794 + $0x510] sm:$0xf]
                  %1013 = vst [vmem:[%s795 + $0x1b0] sm:$0xf] %v1012
                  %v1014 = vld [vmem:[%s794 + $0x51c] sm:$0xf]
                  %1015 = vst [vmem:[%s795 + $0x1b4] sm:$0xf] %v1014
                  %v1016 = vld [vmem:[%s794 + $0x528] sm:$0xf]
                  %1017 = vst [vmem:[%s795 + $0x1b8] sm:$0xf] %v1016
                  %v1018 = vld [vmem:[%s794 + $0x534] sm:$0xf]
                  %1019 = vst [vmem:[%s795 + $0x1bc] sm:$0xf] %v1018
                  %v1020 = vld [vmem:[%s794 + $0x540] sm:$0xf]
                  %1021 = vst [vmem:[%s795 + $0x1c0] sm:$0xf] %v1020
                  %v1022 = vld [vmem:[%s794 + $0x54c] sm:$0xf]
                  %1023 = vst [vmem:[%s795 + $0x1c4] sm:$0xf] %v1022
                  %v1024 = vld [vmem:[%s794 + $0x558] sm:$0xf]
                  %1025 = vst [vmem:[%s795 + $0x1c8] sm:$0xf] %v1024
                  %v1026 = vld [vmem:[%s794 + $0x564] sm:$0xf]
                  %1027 = vst [vmem:[%s795 + $0x1cc] sm:$0xf] %v1026
                  %v1028 = vld [vmem:[%s794 + $0x570] sm:$0xf]
                  %1029 = vst [vmem:[%s795 + $0x1d0] sm:$0xf] %v1028
                  %v1030 = vld [vmem:[%s794 + $0x57c] sm:$0xf]
                  %1031 = vst [vmem:[%s795 + $0x1d4] sm:$0xf] %v1030
                  %v1032 = vld [vmem:[%s794 + $0x588] sm:$0xf]
                  %1033 = vst [vmem:[%s795 + $0x1d8] sm:$0xf] %v1032
                  %v1034 = vld [vmem:[%s794 + $0x594] sm:$0xf]
                  %1035 = vst [vmem:[%s795 + $0x1dc] sm:$0xf] %v1034
                  %v1036 = vld [vmem:[%s794 + $0x5a0] sm:$0xf]
                  %1037 = vst [vmem:[%s795 + $0x1e0] sm:$0xf] %v1036
                  %v1038 = vld [vmem:[%s794 + $0x5ac] sm:$0xf]
                  %1039 = vst [vmem:[%s795 + $0x1e4] sm:$0xf] %v1038
                  %v1040 = vld [vmem:[%s794 + $0x5b8] sm:$0xf]
                  %1041 = vst [vmem:[%s795 + $0x1e8] sm:$0xf] %v1040
                  %v1042 = vld [vmem:[%s794 + $0x5c4] sm:$0xf]
                  %1043 = vst [vmem:[%s795 + $0x1ec] sm:$0xf] %v1042
                  %v1044 = vld [vmem:[%s794 + $0x5d0] sm:$0xf]
                  %1045 = vst [vmem:[%s795 + $0x1f0] sm:$0xf] %v1044
                  %v1046 = vld [vmem:[%s794 + $0x5dc] sm:$0xf]
                  %1047 = vst [vmem:[%s795 + $0x1f4] sm:$0xf] %v1046
                  %v1048 = vld [vmem:[%s794 + $0x5e8] sm:$0xf]
                  %1049 = vst [vmem:[%s795 + $0x1f8] sm:$0xf] %v1048
                  %v1050 = vld [vmem:[%s794 + $0x5f4] sm:$0xf]
                  %1051 = vst [vmem:[%s795 + $0x1fc] sm:$0xf] %v1050
                  %v1052 = vld [vmem:[%s794 + $0x600] sm:$0xf]
                  %1053 = vst [vmem:[%s795 + $0x200] sm:$0xf] %v1052
                  %v1054 = vld [vmem:[%s794 + $0x60c] sm:$0xf]
                  %1055 = vst [vmem:[%s795 + $0x204] sm:$0xf] %v1054
                  %v1056 = vld [vmem:[%s794 + $0x618] sm:$0xf]
                  %1057 = vst [vmem:[%s795 + $0x208] sm:$0xf] %v1056
                  %v1058 = vld [vmem:[%s794 + $0x624] sm:$0xf]
                  %1059 = vst [vmem:[%s795 + $0x20c] sm:$0xf] %v1058
                  %v1060 = vld [vmem:[%s794 + $0x630] sm:$0xf]
                  %1061 = vst [vmem:[%s795 + $0x210] sm:$0xf] %v1060
                  %v1062 = vld [vmem:[%s794 + $0x63c] sm:$0xf]
                  %1063 = vst [vmem:[%s795 + $0x214] sm:$0xf] %v1062
                  %v1064 = vld [vmem:[%s794 + $0x648] sm:$0xf]
                  %1065 = vst [vmem:[%s795 + $0x218] sm:$0xf] %v1064
                  %v1066 = vld [vmem:[%s794 + $0x654] sm:$0xf]
                  %1067 = vst [vmem:[%s795 + $0x21c] sm:$0xf] %v1066
                  %v1068 = vld [vmem:[%s794 + $0x660] sm:$0xf]
                  %1069 = vst [vmem:[%s795 + $0x220] sm:$0xf] %v1068
                  %v1070 = vld [vmem:[%s794 + $0x66c] sm:$0xf]
                  %1071 = vst [vmem:[%s795 + $0x224] sm:$0xf] %v1070
                  %v1072 = vld [vmem:[%s794 + $0x678] sm:$0xf]
                  %1073 = vst [vmem:[%s795 + $0x228] sm:$0xf] %v1072
                  %v1074 = vld [vmem:[%s794 + $0x684] sm:$0xf]
                  %1075 = vst [vmem:[%s795 + $0x22c] sm:$0xf] %v1074
                  %v1076 = vld [vmem:[%s794 + $0x690] sm:$0xf]
                  %1077 = vst [vmem:[%s795 + $0x230] sm:$0xf] %v1076
                  %v1078 = vld [vmem:[%s794 + $0x69c] sm:$0xf]
                  %1079 = vst [vmem:[%s795 + $0x234] sm:$0xf] %v1078
                  %v1080 = vld [vmem:[%s794 + $0x6a8] sm:$0xf]
                  %1081 = vst [vmem:[%s795 + $0x238] sm:$0xf] %v1080
                  %v1082 = vld [vmem:[%s794 + $0x6b4] sm:$0xf]
                  %1083 = vst [vmem:[%s795 + $0x23c] sm:$0xf] %v1082
                  %v1084 = vld [vmem:[%s794 + $0x6c0] sm:$0xf]
                  %1085 = vst [vmem:[%s795 + $0x240] sm:$0xf] %v1084
                  %v1086 = vld [vmem:[%s794 + $0x6cc] sm:$0xf]
                  %1087 = vst [vmem:[%s795 + $0x244] sm:$0xf] %v1086
                  %v1088 = vld [vmem:[%s794 + $0x6d8] sm:$0xf]
                  %1089 = vst [vmem:[%s795 + $0x248] sm:$0xf] %v1088
                  %v1090 = vld [vmem:[%s794 + $0x6e4] sm:$0xf]
                  %1091 = vst [vmem:[%s795 + $0x24c] sm:$0xf] %v1090
                  %v1092 = vld [vmem:[%s794 + $0x6f0] sm:$0xf]
                  %1093 = vst [vmem:[%s795 + $0x250] sm:$0xf] %v1092
                  %v1094 = vld [vmem:[%s794 + $0x6fc] sm:$0xf]
                  %1095 = vst [vmem:[%s795 + $0x254] sm:$0xf] %v1094
                  %v1096 = vld [vmem:[%s794 + $0x708] sm:$0xf]
                  %1097 = vst [vmem:[%s795 + $0x258] sm:$0xf] %v1096
                  %v1098 = vld [vmem:[%s794 + $0x714] sm:$0xf]
                  %1099 = vst [vmem:[%s795 + $0x25c] sm:$0xf] %v1098
                  %v1100 = vld [vmem:[%s794 + $0x720] sm:$0xf]
                  %1101 = vst [vmem:[%s795 + $0x260] sm:$0xf] %v1100
                  %v1102 = vld [vmem:[%s794 + $0x72c] sm:$0xf]
                  %1103 = vst [vmem:[%s795 + $0x264] sm:$0xf] %v1102
                  %v1104 = vld [vmem:[%s794 + $0x738] sm:$0xf]
                  %1105 = vst [vmem:[%s795 + $0x268] sm:$0xf] %v1104
                  %v1106 = vld [vmem:[%s794 + $0x744] sm:$0xf]
                  %1107 = vst [vmem:[%s795 + $0x26c] sm:$0xf] %v1106
                  %v1108 = vld [vmem:[%s794 + $0x750] sm:$0xf]
                  %1109 = vst [vmem:[%s795 + $0x270] sm:$0xf] %v1108
                  %v1110 = vld [vmem:[%s794 + $0x75c] sm:$0xf]
                  %1111 = vst [vmem:[%s795 + $0x274] sm:$0xf] %v1110
                  %v1112 = vld [vmem:[%s794 + $0x768] sm:$0xf]
                  %1113 = vst [vmem:[%s795 + $0x278] sm:$0xf] %v1112
                  %v1114 = vld [vmem:[%s794 + $0x774] sm:$0xf]
                  %1115 = vst [vmem:[%s795 + $0x27c] sm:$0xf] %v1114
                  %v1116 = vld [vmem:[%s794 + $0x780] sm:$0xf]
                  %1117 = vst [vmem:[%s795 + $0x280] sm:$0xf] %v1116
                  %v1118 = vld [vmem:[%s794 + $0x78c] sm:$0xf]
                  %1119 = vst [vmem:[%s795 + $0x284] sm:$0xf] %v1118
                  %v1120 = vld [vmem:[%s794 + $0x798] sm:$0xf]
                  %1121 = vst [vmem:[%s795 + $0x288] sm:$0xf] %v1120
                  %v1122 = vld [vmem:[%s794 + $0x7a4] sm:$0xf]
                  %1123 = vst [vmem:[%s795 + $0x28c] sm:$0xf] %v1122
                  %v1124 = vld [vmem:[%s794 + $0x7b0] sm:$0xf]
                  %1125 = vst [vmem:[%s795 + $0x290] sm:$0xf] %v1124
                  %v1126 = vld [vmem:[%s794 + $0x7bc] sm:$0xf]
                  %1127 = vst [vmem:[%s795 + $0x294] sm:$0xf] %v1126
                  %v1128 = vld [vmem:[%s794 + $0x7c8] sm:$0xf]
                  %1129 = vst [vmem:[%s795 + $0x298] sm:$0xf] %v1128
                  %v1130 = vld [vmem:[%s794 + $0x7d4] sm:$0xf]
                  %1131 = vst [vmem:[%s795 + $0x29c] sm:$0xf] %v1130
                  %v1132 = vld [vmem:[%s794 + $0x7e0] sm:$0xf]
                  %1133 = vst [vmem:[%s795 + $0x2a0] sm:$0xf] %v1132
                  %v1134 = vld [vmem:[%s794 + $0x7ec] sm:$0xf]
                  %1135 = vst [vmem:[%s795 + $0x2a4] sm:$0xf] %v1134
                  %v1136 = vld [vmem:[%s794 + $0x7f8] sm:$0xf]
                  %1137 = vst [vmem:[%s795 + $0x2a8] sm:$0xf] %v1136
                  %v1138 = vld [vmem:[%s794 + $0x804] sm:$0xf]
                  %1139 = vst [vmem:[%s795 + $0x2ac] sm:$0xf] %v1138
                  %v1140 = vld [vmem:[%s794 + $0x810] sm:$0xf]
                  %1141 = vst [vmem:[%s795 + $0x2b0] sm:$0xf] %v1140
                  %v1142 = vld [vmem:[%s794 + $0x81c] sm:$0xf]
                  %1143 = vst [vmem:[%s795 + $0x2b4] sm:$0xf] %v1142
                  %v1144 = vld [vmem:[%s794 + $0x828] sm:$0xf]
                  %1145 = vst [vmem:[%s795 + $0x2b8] sm:$0xf] %v1144
                  %v1146 = vld [vmem:[%s794 + $0x834] sm:$0xf]
                  %1147 = vst [vmem:[%s795 + $0x2bc] sm:$0xf] %v1146
                  %v1148 = vld [vmem:[%s794 + $0x840] sm:$0xf]
                  %1149 = vst [vmem:[%s795 + $0x2c0] sm:$0xf] %v1148
                  %v1150 = vld [vmem:[%s794 + $0x84c] sm:$0xf]
                  %1151 = vst [vmem:[%s795 + $0x2c4] sm:$0xf] %v1150
                  %v1152 = vld [vmem:[%s794 + $0x858] sm:$0xf]
                  %1153 = vst [vmem:[%s795 + $0x2c8] sm:$0xf] %v1152
                  %v1154 = vld [vmem:[%s794 + $0x864] sm:$0xf]
                  %1155 = vst [vmem:[%s795 + $0x2cc] sm:$0xf] %v1154
                  %v1156 = vld [vmem:[%s794 + $0x870] sm:$0xf]
                  %1157 = vst [vmem:[%s795 + $0x2d0] sm:$0xf] %v1156
                  %v1158 = vld [vmem:[%s794 + $0x87c] sm:$0xf]
                  %1159 = vst [vmem:[%s795 + $0x2d4] sm:$0xf] %v1158
                  %v1160 = vld [vmem:[%s794 + $0x888] sm:$0xf]
                  %1161 = vst [vmem:[%s795 + $0x2d8] sm:$0xf] %v1160
                  %v1162 = vld [vmem:[%s794 + $0x894] sm:$0xf]
                  %1163 = vst [vmem:[%s795 + $0x2dc] sm:$0xf] %v1162
                  %v1164 = vld [vmem:[%s794 + $0x8a0] sm:$0xf]
                  %1165 = vst [vmem:[%s795 + $0x2e0] sm:$0xf] %v1164
                  %v1166 = vld [vmem:[%s794 + $0x8ac] sm:$0xf]
                  %1167 = vst [vmem:[%s795 + $0x2e4] sm:$0xf] %v1166
                  %v1168 = vld [vmem:[%s794 + $0x8b8] sm:$0xf]
                  %1169 = vst [vmem:[%s795 + $0x2e8] sm:$0xf] %v1168
                  %v1170 = vld [vmem:[%s794 + $0x8c4] sm:$0xf]
                  %1171 = vst [vmem:[%s795 + $0x2ec] sm:$0xf] %v1170
                  %v1172 = vld [vmem:[%s794 + $0x8d0] sm:$0xf]
                  %1173 = vst [vmem:[%s795 + $0x2f0] sm:$0xf] %v1172
                  %v1174 = vld [vmem:[%s794 + $0x8dc] sm:$0xf]
                  %1175 = vst [vmem:[%s795 + $0x2f4] sm:$0xf] %v1174
                  %v1176 = vld [vmem:[%s794 + $0x8e8] sm:$0xf]
                  %1177 = vst [vmem:[%s795 + $0x2f8] sm:$0xf] %v1176
                  %v1178 = vld [vmem:[%s794 + $0x8f4] sm:$0xf]
                  %1179 = vst [vmem:[%s795 + $0x2fc] sm:$0xf] %v1178
                  %v1180 = vld [vmem:[%s794 + $0x900] sm:$0xf]
                  %1181 = vst [vmem:[%s795 + $0x300] sm:$0xf] %v1180
                  %v1182 = vld [vmem:[%s794 + $0x90c] sm:$0xf]
                  %1183 = vst [vmem:[%s795 + $0x304] sm:$0xf] %v1182
                  %v1184 = vld [vmem:[%s794 + $0x918] sm:$0xf]
                  %1185 = vst [vmem:[%s795 + $0x308] sm:$0xf] %v1184
                  %v1186 = vld [vmem:[%s794 + $0x924] sm:$0xf]
                  %1187 = vst [vmem:[%s795 + $0x30c] sm:$0xf] %v1186
                  %v1188 = vld [vmem:[%s794 + $0x930] sm:$0xf]
                  %1189 = vst [vmem:[%s795 + $0x310] sm:$0xf] %v1188
                  %v1190 = vld [vmem:[%s794 + $0x93c] sm:$0xf]
                  %1191 = vst [vmem:[%s795 + $0x314] sm:$0xf] %v1190
                  %v1192 = vld [vmem:[%s794 + $0x948] sm:$0xf]
                  %1193 = vst [vmem:[%s795 + $0x318] sm:$0xf] %v1192
                  %v1194 = vld [vmem:[%s794 + $0x954] sm:$0xf]
                  %1195 = vst [vmem:[%s795 + $0x31c] sm:$0xf] %v1194
                  %v1196 = vld [vmem:[%s794 + $0x960] sm:$0xf]
                  %1197 = vst [vmem:[%s795 + $0x320] sm:$0xf] %v1196
                  %v1198 = vld [vmem:[%s794 + $0x96c] sm:$0xf]
                  %1199 = vst [vmem:[%s795 + $0x324] sm:$0xf] %v1198
                  %v1200 = vld [vmem:[%s794 + $0x978] sm:$0xf]
                  %1201 = vst [vmem:[%s795 + $0x328] sm:$0xf] %v1200
                  %v1202 = vld [vmem:[%s794 + $0x984] sm:$0xf]
                  %1203 = vst [vmem:[%s795 + $0x32c] sm:$0xf] %v1202
                  %v1204 = vld [vmem:[%s794 + $0x990] sm:$0xf]
                  %1205 = vst [vmem:[%s795 + $0x330] sm:$0xf] %v1204
                  %v1206 = vld [vmem:[%s794 + $0x99c] sm:$0xf]
                  %1207 = vst [vmem:[%s795 + $0x334] sm:$0xf] %v1206
                  %v1208 = vld [vmem:[%s794 + $0x9a8] sm:$0xf]
                  %1209 = vst [vmem:[%s795 + $0x338] sm:$0xf] %v1208
                  %v1210 = vld [vmem:[%s794 + $0x9b4] sm:$0xf]
                  %1211 = vst [vmem:[%s795 + $0x33c] sm:$0xf] %v1210
                  %v1212 = vld [vmem:[%s794 + $0x9c0] sm:$0xf]
                  %1213 = vst [vmem:[%s795 + $0x340] sm:$0xf] %v1212
                  %v1214 = vld [vmem:[%s794 + $0x9cc] sm:$0xf]
                  %1215 = vst [vmem:[%s795 + $0x344] sm:$0xf] %v1214
                  %v1216 = vld [vmem:[%s794 + $0x9d8] sm:$0xf]
                  %1217 = vst [vmem:[%s795 + $0x348] sm:$0xf] %v1216
                  %v1218 = vld [vmem:[%s794 + $0x9e4] sm:$0xf]
                  %1219 = vst [vmem:[%s795 + $0x34c] sm:$0xf] %v1218
                  %v1220 = vld [vmem:[%s794 + $0x9f0] sm:$0xf]
                  %1221 = vst [vmem:[%s795 + $0x350] sm:$0xf] %v1220
                  %v1222 = vld [vmem:[%s794 + $0x9fc] sm:$0xf]
                  %1223 = vst [vmem:[%s795 + $0x354] sm:$0xf] %v1222
                  %v1224 = vld [vmem:[%s794 + $0xa08] sm:$0xf]
                  %1225 = vst [vmem:[%s795 + $0x358] sm:$0xf] %v1224
                  %v1226 = vld [vmem:[%s794 + $0xa14] sm:$0xf]
                  %1227 = vst [vmem:[%s795 + $0x35c] sm:$0xf] %v1226
                  %v1228 = vld [vmem:[%s794 + $0xa20] sm:$0xf]
                  %1229 = vst [vmem:[%s795 + $0x360] sm:$0xf] %v1228
                  %v1230 = vld [vmem:[%s794 + $0xa2c] sm:$0xf]
                  %1231 = vst [vmem:[%s795 + $0x364] sm:$0xf] %v1230
                  %v1232 = vld [vmem:[%s794 + $0xa38] sm:$0xf]
                  %1233 = vst [vmem:[%s795 + $0x368] sm:$0xf] %v1232
                  %v1234 = vld [vmem:[%s794 + $0xa44] sm:$0xf]
                  %1235 = vst [vmem:[%s795 + $0x36c] sm:$0xf] %v1234
                  %v1236 = vld [vmem:[%s794 + $0xa50] sm:$0xf]
                  %1237 = vst [vmem:[%s795 + $0x370] sm:$0xf] %v1236
                  %v1238 = vld [vmem:[%s794 + $0xa5c] sm:$0xf]
                  %1239 = vst [vmem:[%s795 + $0x374] sm:$0xf] %v1238
                  %v1240 = vld [vmem:[%s794 + $0xa68] sm:$0xf]
                  %1241 = vst [vmem:[%s795 + $0x378] sm:$0xf] %v1240
                  %v1242 = vld [vmem:[%s794 + $0xa74] sm:$0xf]
                  %1243 = vst [vmem:[%s795 + $0x37c] sm:$0xf] %v1242
                  %v1244 = vld [vmem:[%s794 + $0xa80] sm:$0xf]
                  %1245 = vst [vmem:[%s795 + $0x380] sm:$0xf] %v1244
                  %v1246 = vld [vmem:[%s794 + $0xa8c] sm:$0xf]
                  %1247 = vst [vmem:[%s795 + $0x384] sm:$0xf] %v1246
                  %v1248 = vld [vmem:[%s794 + $0xa98] sm:$0xf]
                  %1249 = vst [vmem:[%s795 + $0x388] sm:$0xf] %v1248
                  %v1250 = vld [vmem:[%s794 + $0xaa4] sm:$0xf]
                  %1251 = vst [vmem:[%s795 + $0x38c] sm:$0xf] %v1250
                  %v1252 = vld [vmem:[%s794 + $0xab0] sm:$0xf]
                  %1253 = vst [vmem:[%s795 + $0x390] sm:$0xf] %v1252
                  %v1254 = vld [vmem:[%s794 + $0xabc] sm:$0xf]
                  %1255 = vst [vmem:[%s795 + $0x394] sm:$0xf] %v1254
                  %v1256 = vld [vmem:[%s794 + $0xac8] sm:$0xf]
                  %1257 = vst [vmem:[%s795 + $0x398] sm:$0xf] %v1256
                  %v1258 = vld [vmem:[%s794 + $0xad4] sm:$0xf]
                  %1259 = vst [vmem:[%s795 + $0x39c] sm:$0xf] %v1258
                  %v1260 = vld [vmem:[%s794 + $0xae0] sm:$0xf]
                  %1261 = vst [vmem:[%s795 + $0x3a0] sm:$0xf] %v1260
                  %v1262 = vld [vmem:[%s794 + $0xaec] sm:$0xf]
                  %1263 = vst [vmem:[%s795 + $0x3a4] sm:$0xf] %v1262
                  %v1264 = vld [vmem:[%s794 + $0xaf8] sm:$0xf]
                  %1265 = vst [vmem:[%s795 + $0x3a8] sm:$0xf] %v1264
                  %v1266 = vld [vmem:[%s794 + $0xb04] sm:$0xf]
                  %1267 = vst [vmem:[%s795 + $0x3ac] sm:$0xf] %v1266
                  %v1268 = vld [vmem:[%s794 + $0xb10] sm:$0xf]
                  %1269 = vst [vmem:[%s795 + $0x3b0] sm:$0xf] %v1268
                  %v1270 = vld [vmem:[%s794 + $0xb1c] sm:$0xf]
                  %1271 = vst [vmem:[%s795 + $0x3b4] sm:$0xf] %v1270
                  %v1272 = vld [vmem:[%s794 + $0xb28] sm:$0xf]
                  %1273 = vst [vmem:[%s795 + $0x3b8] sm:$0xf] %v1272
                  %v1274 = vld [vmem:[%s794 + $0xb34] sm:$0xf]
                  %1275 = vst [vmem:[%s795 + $0x3bc] sm:$0xf] %v1274
                  %v1276 = vld [vmem:[%s794 + $0xb40] sm:$0xf]
                  %1277 = vst [vmem:[%s795 + $0x3c0] sm:$0xf] %v1276
                  %v1278 = vld [vmem:[%s794 + $0xb4c] sm:$0xf]
                  %1279 = vst [vmem:[%s795 + $0x3c4] sm:$0xf] %v1278
                  %v1280 = vld [vmem:[%s794 + $0xb58] sm:$0xf]
                  %1281 = vst [vmem:[%s795 + $0x3c8] sm:$0xf] %v1280
                  %v1282 = vld [vmem:[%s794 + $0xb64] sm:$0xf]
                  %1283 = vst [vmem:[%s795 + $0x3cc] sm:$0xf] %v1282
                  %v1284 = vld [vmem:[%s794 + $0xb70] sm:$0xf]
                  %1285 = vst [vmem:[%s795 + $0x3d0] sm:$0xf] %v1284
                  %v1286 = vld [vmem:[%s794 + $0xb7c] sm:$0xf]
                  %1287 = vst [vmem:[%s795 + $0x3d4] sm:$0xf] %v1286
                  %v1288 = vld [vmem:[%s794 + $0xb88] sm:$0xf]
                  %1289 = vst [vmem:[%s795 + $0x3d8] sm:$0xf] %v1288
                  %v1290 = vld [vmem:[%s794 + $0xb94] sm:$0xf]
                  %1291 = vst [vmem:[%s795 + $0x3dc] sm:$0xf] %v1290
                  %v1292 = vld [vmem:[%s794 + $0xba0] sm:$0xf]
                  %1293 = vst [vmem:[%s795 + $0x3e0] sm:$0xf] %v1292
                  %v1294 = vld [vmem:[%s794 + $0xbac] sm:$0xf]
                  %1295 = vst [vmem:[%s795 + $0x3e4] sm:$0xf] %v1294
                  %v1296 = vld [vmem:[%s794 + $0xbb8] sm:$0xf]
                  %1297 = vst [vmem:[%s795 + $0x3e8] sm:$0xf] %v1296
                  %v1298 = vld [vmem:[%s794 + $0xbc4] sm:$0xf]
                  %1299 = vst [vmem:[%s795 + $0x3ec] sm:$0xf] %v1298
                  %v1300 = vld [vmem:[%s794 + $0xbd0] sm:$0xf]
                  %1301 = vst [vmem:[%s795 + $0x3f0] sm:$0xf] %v1300
                  %v1302 = vld [vmem:[%s794 + $0xbdc] sm:$0xf]
                  %1303 = vst [vmem:[%s795 + $0x3f4] sm:$0xf] %v1302
                  %v1304 = vld [vmem:[%s794 + $0xbe8] sm:$0xf]
                  %1305 = vst [vmem:[%s795 + $0x3f8] sm:$0xf] %v1304
                  %v1306 = vld [vmem:[%s794 + $0xbf4] sm:$0xf]
                  %1307 = vst [vmem:[%s795 + $0x3fc] sm:$0xf] %v1306
                  %v1308 = vld [vmem:[%s794 + $0xc00] sm:$0xf]
                  %1309 = vst [vmem:[%s795 + $0x400] sm:$0xf] %v1308
                  %v1310 = vld [vmem:[%s794 + $0xc0c] sm:$0xf]
                  %1311 = vst [vmem:[%s795 + $0x404] sm:$0xf] %v1310
                  %v1312 = vld [vmem:[%s794 + $0xc18] sm:$0xf]
                  %1313 = vst [vmem:[%s795 + $0x408] sm:$0xf] %v1312
                  %v1314 = vld [vmem:[%s794 + $0xc24] sm:$0xf]
                  %1315 = vst [vmem:[%s795 + $0x40c] sm:$0xf] %v1314
                  %v1316 = vld [vmem:[%s794 + $0xc30] sm:$0xf]
                  %1317 = vst [vmem:[%s795 + $0x410] sm:$0xf] %v1316
                  %v1318 = vld [vmem:[%s794 + $0xc3c] sm:$0xf]
                  %1319 = vst [vmem:[%s795 + $0x414] sm:$0xf] %v1318
                  %v1320 = vld [vmem:[%s794 + $0xc48] sm:$0xf]
                  %1321 = vst [vmem:[%s795 + $0x418] sm:$0xf] %v1320
                  %v1322 = vld [vmem:[%s794 + $0xc54] sm:$0xf]
                  %1323 = vst [vmem:[%s795 + $0x41c] sm:$0xf] %v1322
                  %v1324 = vld [vmem:[%s794 + $0xc60] sm:$0xf]
                  %1325 = vst [vmem:[%s795 + $0x420] sm:$0xf] %v1324
                  %v1326 = vld [vmem:[%s794 + $0xc6c] sm:$0xf]
                  %1327 = vst [vmem:[%s795 + $0x424] sm:$0xf] %v1326
                  %v1328 = vld [vmem:[%s794 + $0xc78] sm:$0xf]
                  %1329 = vst [vmem:[%s795 + $0x428] sm:$0xf] %v1328
                  %v1330 = vld [vmem:[%s794 + $0xc84] sm:$0xf]
                  %1331 = vst [vmem:[%s795 + $0x42c] sm:$0xf] %v1330
                  %v1332 = vld [vmem:[%s794 + $0xc90] sm:$0xf]
                  %1333 = vst [vmem:[%s795 + $0x430] sm:$0xf] %v1332
                  %v1334 = vld [vmem:[%s794 + $0xc9c] sm:$0xf]
                  %1335 = vst [vmem:[%s795 + $0x434] sm:$0xf] %v1334
                  %v1336 = vld [vmem:[%s794 + $0xca8] sm:$0xf]
                  %1337 = vst [vmem:[%s795 + $0x438] sm:$0xf] %v1336
                  %v1338 = vld [vmem:[%s794 + $0xcb4] sm:$0xf]
                  %1339 = vst [vmem:[%s795 + $0x43c] sm:$0xf] %v1338
                  %v1340 = vld [vmem:[%s794 + $0xcc0] sm:$0xf]
                  %1341 = vst [vmem:[%s795 + $0x440] sm:$0xf] %v1340
                  %v1342 = vld [vmem:[%s794 + $0xccc] sm:$0xf]
                  %1343 = vst [vmem:[%s795 + $0x444] sm:$0xf] %v1342
                  %v1344 = vld [vmem:[%s794 + $0xcd8] sm:$0xf]
                  %1345 = vst [vmem:[%s795 + $0x448] sm:$0xf] %v1344
                  %v1346 = vld [vmem:[%s794 + $0xce4] sm:$0xf]
                  %1347 = vst [vmem:[%s795 + $0x44c] sm:$0xf] %v1346
                  %v1348 = vld [vmem:[%s794 + $0xcf0] sm:$0xf]
                  %1349 = vst [vmem:[%s795 + $0x450] sm:$0xf] %v1348
                  %v1350 = vld [vmem:[%s794 + $0xcfc] sm:$0xf]
                  %1351 = vst [vmem:[%s795 + $0x454] sm:$0xf] %v1350
                  %v1352 = vld [vmem:[%s794 + $0xd08] sm:$0xf]
                  %1353 = vst [vmem:[%s795 + $0x458] sm:$0xf] %v1352
                  %v1354 = vld [vmem:[%s794 + $0xd14] sm:$0xf]
                  %1355 = vst [vmem:[%s795 + $0x45c] sm:$0xf] %v1354
                  %v1356 = vld [vmem:[%s794 + $0xd20] sm:$0xf]
                  %1357 = vst [vmem:[%s795 + $0x460] sm:$0xf] %v1356
                  %v1358 = vld [vmem:[%s794 + $0xd2c] sm:$0xf]
                  %1359 = vst [vmem:[%s795 + $0x464] sm:$0xf] %v1358
                  %v1360 = vld [vmem:[%s794 + $0xd38] sm:$0xf]
                  %1361 = vst [vmem:[%s795 + $0x468] sm:$0xf] %v1360
                  %v1362 = vld [vmem:[%s794 + $0xd44] sm:$0xf]
                  %1363 = vst [vmem:[%s795 + $0x46c] sm:$0xf] %v1362
                  %v1364 = vld [vmem:[%s794 + $0xd50] sm:$0xf]
                  %1365 = vst [vmem:[%s795 + $0x470] sm:$0xf] %v1364
                  %v1366 = vld [vmem:[%s794 + $0xd5c] sm:$0xf]
                  %1367 = vst [vmem:[%s795 + $0x474] sm:$0xf] %v1366
                  %v1368 = vld [vmem:[%s794 + $0xd68] sm:$0xf]
                  %1369 = vst [vmem:[%s795 + $0x478] sm:$0xf] %v1368
                  %v1370 = vld [vmem:[%s794 + $0xd74] sm:$0xf]
                  %1371 = vst [vmem:[%s795 + $0x47c] sm:$0xf] %v1370
                $region59: #{alexnet_forward.11} parent=46 // loop_footer
                  %s793 = sadd.s32 1, %s789
                $region60: #{alexnet_forward.11} parent=46 // loop_footer_branch
                  %788 = sbr.rel target = $region56
                $region61: #{alexnet_forward.11} parent=46 // loop_exit
                  _
              $region47: #{alexnet_forward.11} parent=31 // pred_fallthru
                _
            $region32: #{alexnet_forward.11} parent=27 // pred_fallthru
              _
            // Predicated region
            $region33: #{alexnet_forward.11} parent=27 // pred_check
              _
            $region34: #{alexnet_forward.11} parent=27 // pred_check_branch
              %191 = sbr.rel (0) target = $region36
            $region35: #{alexnet_forward.11} parent=27 // pred_region
              loop: start=0, step=1, limit=1
              $region37: #{alexnet_forward.11} parent=35 // loop_pre_header
                _
              $region38: #{alexnet_forward.11} parent=35 // loop_header
                %s194 = sphi 0, %s198
                %p195 = scmp.ge.s32.totalorder %s194, 1
                %s199 = sphi %s185, %s185
                %s200 = sphi %s181, %s181
              $region39: #{alexnet_forward.11} parent=35 // loop_header_branch
                %197 = sbr.rel (%p195) target = $region43
              $region40: #{alexnet_forward.11} parent=35 // loop_body
                %v201 = vld [vmem:[%s199] sm:$0xf]
                %202 = vst [vmem:[%s200] sm:$0xf] %v201
                %v203 = vld [vmem:[%s199 + $0xc] sm:$0xf]
                %204 = vst [vmem:[%s200 + $0x4] sm:$0xf] %v203
                %v205 = vld [vmem:[%s199 + $0x18] sm:$0xf]
                %206 = vst [vmem:[%s200 + $0x8] sm:$0xf] %v205
                %v207 = vld [vmem:[%s199 + $0x24] sm:$0xf]
                %208 = vst [vmem:[%s200 + $0xc] sm:$0xf] %v207
                %v209 = vld [vmem:[%s199 + $0x30] sm:$0xf]
                %210 = vst [vmem:[%s200 + $0x10] sm:$0xf] %v209
                %v211 = vld [vmem:[%s199 + $0x3c] sm:$0xf]
                %212 = vst [vmem:[%s200 + $0x14] sm:$0xf] %v211
                %v213 = vld [vmem:[%s199 + $0x48] sm:$0xf]
                %214 = vst [vmem:[%s200 + $0x18] sm:$0xf] %v213
                %v215 = vld [vmem:[%s199 + $0x54] sm:$0xf]
                %216 = vst [vmem:[%s200 + $0x1c] sm:$0xf] %v215
                %v217 = vld [vmem:[%s199 + $0x60] sm:$0xf]
                %218 = vst [vmem:[%s200 + $0x20] sm:$0xf] %v217
                %v219 = vld [vmem:[%s199 + $0x6c] sm:$0xf]
                %220 = vst [vmem:[%s200 + $0x24] sm:$0xf] %v219
                %v221 = vld [vmem:[%s199 + $0x78] sm:$0xf]
                %222 = vst [vmem:[%s200 + $0x28] sm:$0xf] %v221
                %v223 = vld [vmem:[%s199 + $0x84] sm:$0xf]
                %224 = vst [vmem:[%s200 + $0x2c] sm:$0xf] %v223
                %v225 = vld [vmem:[%s199 + $0x90] sm:$0xf]
                %226 = vst [vmem:[%s200 + $0x30] sm:$0xf] %v225
                %v227 = vld [vmem:[%s199 + $0x9c] sm:$0xf]
                %228 = vst [vmem:[%s200 + $0x34] sm:$0xf] %v227
                %v229 = vld [vmem:[%s199 + $0xa8] sm:$0xf]
                %230 = vst [vmem:[%s200 + $0x38] sm:$0xf] %v229
                %v231 = vld [vmem:[%s199 + $0xb4] sm:$0xf]
                %232 = vst [vmem:[%s200 + $0x3c] sm:$0xf] %v231
                %v233 = vld [vmem:[%s199 + $0xc0] sm:$0xf]
                %234 = vst [vmem:[%s200 + $0x40] sm:$0xf] %v233
                %v235 = vld [vmem:[%s199 + $0xcc] sm:$0xf]
                %236 = vst [vmem:[%s200 + $0x44] sm:$0xf] %v235
                %v237 = vld [vmem:[%s199 + $0xd8] sm:$0xf]
                %238 = vst [vmem:[%s200 + $0x48] sm:$0xf] %v237
                %v239 = vld [vmem:[%s199 + $0xe4] sm:$0xf]
                %240 = vst [vmem:[%s200 + $0x4c] sm:$0xf] %v239
                %v241 = vld [vmem:[%s199 + $0xf0] sm:$0xf]
                %242 = vst [vmem:[%s200 + $0x50] sm:$0xf] %v241
                %v243 = vld [vmem:[%s199 + $0xfc] sm:$0xf]
                %244 = vst [vmem:[%s200 + $0x54] sm:$0xf] %v243
                %v245 = vld [vmem:[%s199 + $0x108] sm:$0xf]
                %246 = vst [vmem:[%s200 + $0x58] sm:$0xf] %v245
                %v247 = vld [vmem:[%s199 + $0x114] sm:$0xf]
                %248 = vst [vmem:[%s200 + $0x5c] sm:$0xf] %v247
                %v249 = vld [vmem:[%s199 + $0x120] sm:$0xf]
                %250 = vst [vmem:[%s200 + $0x60] sm:$0xf] %v249
                %v251 = vld [vmem:[%s199 + $0x12c] sm:$0xf]
                %252 = vst [vmem:[%s200 + $0x64] sm:$0xf] %v251
                %v253 = vld [vmem:[%s199 + $0x138] sm:$0xf]
                %254 = vst [vmem:[%s200 + $0x68] sm:$0xf] %v253
                %v255 = vld [vmem:[%s199 + $0x144] sm:$0xf]
                %256 = vst [vmem:[%s200 + $0x6c] sm:$0xf] %v255
                %v257 = vld [vmem:[%s199 + $0x150] sm:$0xf]
                %258 = vst [vmem:[%s200 + $0x70] sm:$0xf] %v257
                %v259 = vld [vmem:[%s199 + $0x15c] sm:$0xf]
                %260 = vst [vmem:[%s200 + $0x74] sm:$0xf] %v259
                %v261 = vld [vmem:[%s199 + $0x168] sm:$0xf]
                %262 = vst [vmem:[%s200 + $0x78] sm:$0xf] %v261
                %v263 = vld [vmem:[%s199 + $0x174] sm:$0xf]
                %264 = vst [vmem:[%s200 + $0x7c] sm:$0xf] %v263
                %v265 = vld [vmem:[%s199 + $0x180] sm:$0xf]
                %266 = vst [vmem:[%s200 + $0x80] sm:$0xf] %v265
                %v267 = vld [vmem:[%s199 + $0x18c] sm:$0xf]
                %268 = vst [vmem:[%s200 + $0x84] sm:$0xf] %v267
                %v269 = vld [vmem:[%s199 + $0x198] sm:$0xf]
                %270 = vst [vmem:[%s200 + $0x88] sm:$0xf] %v269
                %v271 = vld [vmem:[%s199 + $0x1a4] sm:$0xf]
                %272 = vst [vmem:[%s200 + $0x8c] sm:$0xf] %v271
                %v273 = vld [vmem:[%s199 + $0x1b0] sm:$0xf]
                %274 = vst [vmem:[%s200 + $0x90] sm:$0xf] %v273
                %v275 = vld [vmem:[%s199 + $0x1bc] sm:$0xf]
                %276 = vst [vmem:[%s200 + $0x94] sm:$0xf] %v275
                %v277 = vld [vmem:[%s199 + $0x1c8] sm:$0xf]
                %278 = vst [vmem:[%s200 + $0x98] sm:$0xf] %v277
                %v279 = vld [vmem:[%s199 + $0x1d4] sm:$0xf]
                %280 = vst [vmem:[%s200 + $0x9c] sm:$0xf] %v279
                %v281 = vld [vmem:[%s199 + $0x1e0] sm:$0xf]
                %282 = vst [vmem:[%s200 + $0xa0] sm:$0xf] %v281
                %v283 = vld [vmem:[%s199 + $0x1ec] sm:$0xf]
                %284 = vst [vmem:[%s200 + $0xa4] sm:$0xf] %v283
                %v285 = vld [vmem:[%s199 + $0x1f8] sm:$0xf]
                %286 = vst [vmem:[%s200 + $0xa8] sm:$0xf] %v285
                %v287 = vld [vmem:[%s199 + $0x204] sm:$0xf]
                %288 = vst [vmem:[%s200 + $0xac] sm:$0xf] %v287
                %v289 = vld [vmem:[%s199 + $0x210] sm:$0xf]
                %290 = vst [vmem:[%s200 + $0xb0] sm:$0xf] %v289
                %v291 = vld [vmem:[%s199 + $0x21c] sm:$0xf]
                %292 = vst [vmem:[%s200 + $0xb4] sm:$0xf] %v291
                %v293 = vld [vmem:[%s199 + $0x228] sm:$0xf]
                %294 = vst [vmem:[%s200 + $0xb8] sm:$0xf] %v293
                %v295 = vld [vmem:[%s199 + $0x234] sm:$0xf]
                %296 = vst [vmem:[%s200 + $0xbc] sm:$0xf] %v295
                %v297 = vld [vmem:[%s199 + $0x240] sm:$0xf]
                %298 = vst [vmem:[%s200 + $0xc0] sm:$0xf] %v297
                %v299 = vld [vmem:[%s199 + $0x24c] sm:$0xf]
                %300 = vst [vmem:[%s200 + $0xc4] sm:$0xf] %v299
                %v301 = vld [vmem:[%s199 + $0x258] sm:$0xf]
                %302 = vst [vmem:[%s200 + $0xc8] sm:$0xf] %v301
                %v303 = vld [vmem:[%s199 + $0x264] sm:$0xf]
                %304 = vst [vmem:[%s200 + $0xcc] sm:$0xf] %v303
                %v305 = vld [vmem:[%s199 + $0x270] sm:$0xf]
                %306 = vst [vmem:[%s200 + $0xd0] sm:$0xf] %v305
                %v307 = vld [vmem:[%s199 + $0x27c] sm:$0xf]
                %308 = vst [vmem:[%s200 + $0xd4] sm:$0xf] %v307
                %v309 = vld [vmem:[%s199 + $0x288] sm:$0xf]
                %310 = vst [vmem:[%s200 + $0xd8] sm:$0xf] %v309
                %v311 = vld [vmem:[%s199 + $0x294] sm:$0xf]
                %312 = vst [vmem:[%s200 + $0xdc] sm:$0xf] %v311
                %v313 = vld [vmem:[%s199 + $0x2a0] sm:$0xf]
                %314 = vst [vmem:[%s200 + $0xe0] sm:$0xf] %v313
                %v315 = vld [vmem:[%s199 + $0x2ac] sm:$0xf]
                %316 = vst [vmem:[%s200 + $0xe4] sm:$0xf] %v315
                %v317 = vld [vmem:[%s199 + $0x2b8] sm:$0xf]
                %318 = vst [vmem:[%s200 + $0xe8] sm:$0xf] %v317
                %v319 = vld [vmem:[%s199 + $0x2c4] sm:$0xf]
                %320 = vst [vmem:[%s200 + $0xec] sm:$0xf] %v319
                %v321 = vld [vmem:[%s199 + $0x2d0] sm:$0xf]
                %322 = vst [vmem:[%s200 + $0xf0] sm:$0xf] %v321
                %v323 = vld [vmem:[%s199 + $0x2dc] sm:$0xf]
                %324 = vst [vmem:[%s200 + $0xf4] sm:$0xf] %v323
                %v325 = vld [vmem:[%s199 + $0x2e8] sm:$0xf]
                %326 = vst [vmem:[%s200 + $0xf8] sm:$0xf] %v325
                %v327 = vld [vmem:[%s199 + $0x2f4] sm:$0xf]
                %328 = vst [vmem:[%s200 + $0xfc] sm:$0xf] %v327
                %v329 = vld [vmem:[%s199 + $0x300] sm:$0xf]
                %330 = vst [vmem:[%s200 + $0x100] sm:$0xf] %v329
                %v331 = vld [vmem:[%s199 + $0x30c] sm:$0xf]
                %332 = vst [vmem:[%s200 + $0x104] sm:$0xf] %v331
                %v333 = vld [vmem:[%s199 + $0x318] sm:$0xf]
                %334 = vst [vmem:[%s200 + $0x108] sm:$0xf] %v333
                %v335 = vld [vmem:[%s199 + $0x324] sm:$0xf]
                %336 = vst [vmem:[%s200 + $0x10c] sm:$0xf] %v335
                %v337 = vld [vmem:[%s199 + $0x330] sm:$0xf]
                %338 = vst [vmem:[%s200 + $0x110] sm:$0xf] %v337
                %v339 = vld [vmem:[%s199 + $0x33c] sm:$0xf]
                %340 = vst [vmem:[%s200 + $0x114] sm:$0xf] %v339
                %v341 = vld [vmem:[%s199 + $0x348] sm:$0xf]
                %342 = vst [vmem:[%s200 + $0x118] sm:$0xf] %v341
                %v343 = vld [vmem:[%s199 + $0x354] sm:$0xf]
                %344 = vst [vmem:[%s200 + $0x11c] sm:$0xf] %v343
                %v345 = vld [vmem:[%s199 + $0x360] sm:$0xf]
                %346 = vst [vmem:[%s200 + $0x120] sm:$0xf] %v345
                %v347 = vld [vmem:[%s199 + $0x36c] sm:$0xf]
                %348 = vst [vmem:[%s200 + $0x124] sm:$0xf] %v347
                %v349 = vld [vmem:[%s199 + $0x378] sm:$0xf]
                %350 = vst [vmem:[%s200 + $0x128] sm:$0xf] %v349
                %v351 = vld [vmem:[%s199 + $0x384] sm:$0xf]
                %352 = vst [vmem:[%s200 + $0x12c] sm:$0xf] %v351
                %v353 = vld [vmem:[%s199 + $0x390] sm:$0xf]
                %354 = vst [vmem:[%s200 + $0x130] sm:$0xf] %v353
                %v355 = vld [vmem:[%s199 + $0x39c] sm:$0xf]
                %356 = vst [vmem:[%s200 + $0x134] sm:$0xf] %v355
                %v357 = vld [vmem:[%s199 + $0x3a8] sm:$0xf]
                %358 = vst [vmem:[%s200 + $0x138] sm:$0xf] %v357
                %v359 = vld [vmem:[%s199 + $0x3b4] sm:$0xf]
                %360 = vst [vmem:[%s200 + $0x13c] sm:$0xf] %v359
                %v361 = vld [vmem:[%s199 + $0x3c0] sm:$0xf]
                %362 = vst [vmem:[%s200 + $0x140] sm:$0xf] %v361
                %v363 = vld [vmem:[%s199 + $0x3cc] sm:$0xf]
                %364 = vst [vmem:[%s200 + $0x144] sm:$0xf] %v363
                %v365 = vld [vmem:[%s199 + $0x3d8] sm:$0xf]
                %366 = vst [vmem:[%s200 + $0x148] sm:$0xf] %v365
                %v367 = vld [vmem:[%s199 + $0x3e4] sm:$0xf]
                %368 = vst [vmem:[%s200 + $0x14c] sm:$0xf] %v367
                %v369 = vld [vmem:[%s199 + $0x3f0] sm:$0xf]
                %370 = vst [vmem:[%s200 + $0x150] sm:$0xf] %v369
                %v371 = vld [vmem:[%s199 + $0x3fc] sm:$0xf]
                %372 = vst [vmem:[%s200 + $0x154] sm:$0xf] %v371
                %v373 = vld [vmem:[%s199 + $0x408] sm:$0xf]
                %374 = vst [vmem:[%s200 + $0x158] sm:$0xf] %v373
                %v375 = vld [vmem:[%s199 + $0x414] sm:$0xf]
                %376 = vst [vmem:[%s200 + $0x15c] sm:$0xf] %v375
                %v377 = vld [vmem:[%s199 + $0x420] sm:$0xf]
                %378 = vst [vmem:[%s200 + $0x160] sm:$0xf] %v377
                %v379 = vld [vmem:[%s199 + $0x42c] sm:$0xf]
                %380 = vst [vmem:[%s200 + $0x164] sm:$0xf] %v379
                %v381 = vld [vmem:[%s199 + $0x438] sm:$0xf]
                %382 = vst [vmem:[%s200 + $0x168] sm:$0xf] %v381
                %v383 = vld [vmem:[%s199 + $0x444] sm:$0xf]
                %384 = vst [vmem:[%s200 + $0x16c] sm:$0xf] %v383
                %v385 = vld [vmem:[%s199 + $0x450] sm:$0xf]
                %386 = vst [vmem:[%s200 + $0x170] sm:$0xf] %v385
                %v387 = vld [vmem:[%s199 + $0x45c] sm:$0xf]
                %388 = vst [vmem:[%s200 + $0x174] sm:$0xf] %v387
                %v389 = vld [vmem:[%s199 + $0x468] sm:$0xf]
                %390 = vst [vmem:[%s200 + $0x178] sm:$0xf] %v389
                %v391 = vld [vmem:[%s199 + $0x474] sm:$0xf]
                %392 = vst [vmem:[%s200 + $0x17c] sm:$0xf] %v391
                %v393 = vld [vmem:[%s199 + $0x480] sm:$0xf]
                %394 = vst [vmem:[%s200 + $0x180] sm:$0xf] %v393
                %v395 = vld [vmem:[%s199 + $0x48c] sm:$0xf]
                %396 = vst [vmem:[%s200 + $0x184] sm:$0xf] %v395
                %v397 = vld [vmem:[%s199 + $0x498] sm:$0xf]
                %398 = vst [vmem:[%s200 + $0x188] sm:$0xf] %v397
                %v399 = vld [vmem:[%s199 + $0x4a4] sm:$0xf]
                %400 = vst [vmem:[%s200 + $0x18c] sm:$0xf] %v399
                %v401 = vld [vmem:[%s199 + $0x4b0] sm:$0xf]
                %402 = vst [vmem:[%s200 + $0x190] sm:$0xf] %v401
                %v403 = vld [vmem:[%s199 + $0x4bc] sm:$0xf]
                %404 = vst [vmem:[%s200 + $0x194] sm:$0xf] %v403
                %v405 = vld [vmem:[%s199 + $0x4c8] sm:$0xf]
                %406 = vst [vmem:[%s200 + $0x198] sm:$0xf] %v405
                %v407 = vld [vmem:[%s199 + $0x4d4] sm:$0xf]
                %408 = vst [vmem:[%s200 + $0x19c] sm:$0xf] %v407
                %v409 = vld [vmem:[%s199 + $0x4e0] sm:$0xf]
                %410 = vst [vmem:[%s200 + $0x1a0] sm:$0xf] %v409
                %v411 = vld [vmem:[%s199 + $0x4ec] sm:$0xf]
                %412 = vst [vmem:[%s200 + $0x1a4] sm:$0xf] %v411
                %v413 = vld [vmem:[%s199 + $0x4f8] sm:$0xf]
                %414 = vst [vmem:[%s200 + $0x1a8] sm:$0xf] %v413
                %v415 = vld [vmem:[%s199 + $0x504] sm:$0xf]
                %416 = vst [vmem:[%s200 + $0x1ac] sm:$0xf] %v415
                %v417 = vld [vmem:[%s199 + $0x510] sm:$0xf]
                %418 = vst [vmem:[%s200 + $0x1b0] sm:$0xf] %v417
                %v419 = vld [vmem:[%s199 + $0x51c] sm:$0xf]
                %420 = vst [vmem:[%s200 + $0x1b4] sm:$0xf] %v419
                %v421 = vld [vmem:[%s199 + $0x528] sm:$0xf]
                %422 = vst [vmem:[%s200 + $0x1b8] sm:$0xf] %v421
                %v423 = vld [vmem:[%s199 + $0x534] sm:$0xf]
                %424 = vst [vmem:[%s200 + $0x1bc] sm:$0xf] %v423
                %v425 = vld [vmem:[%s199 + $0x540] sm:$0xf]
                %426 = vst [vmem:[%s200 + $0x1c0] sm:$0xf] %v425
                %v427 = vld [vmem:[%s199 + $0x54c] sm:$0xf]
                %428 = vst [vmem:[%s200 + $0x1c4] sm:$0xf] %v427
                %v429 = vld [vmem:[%s199 + $0x558] sm:$0xf]
                %430 = vst [vmem:[%s200 + $0x1c8] sm:$0xf] %v429
                %v431 = vld [vmem:[%s199 + $0x564] sm:$0xf]
                %432 = vst [vmem:[%s200 + $0x1cc] sm:$0xf] %v431
                %v433 = vld [vmem:[%s199 + $0x570] sm:$0xf]
                %434 = vst [vmem:[%s200 + $0x1d0] sm:$0xf] %v433
                %v435 = vld [vmem:[%s199 + $0x57c] sm:$0xf]
                %436 = vst [vmem:[%s200 + $0x1d4] sm:$0xf] %v435
                %v437 = vld [vmem:[%s199 + $0x588] sm:$0xf]
                %438 = vst [vmem:[%s200 + $0x1d8] sm:$0xf] %v437
                %v439 = vld [vmem:[%s199 + $0x594] sm:$0xf]
                %440 = vst [vmem:[%s200 + $0x1dc] sm:$0xf] %v439
                %v441 = vld [vmem:[%s199 + $0x5a0] sm:$0xf]
                %442 = vst [vmem:[%s200 + $0x1e0] sm:$0xf] %v441
                %v443 = vld [vmem:[%s199 + $0x5ac] sm:$0xf]
                %444 = vst [vmem:[%s200 + $0x1e4] sm:$0xf] %v443
                %v445 = vld [vmem:[%s199 + $0x5b8] sm:$0xf]
                %446 = vst [vmem:[%s200 + $0x1e8] sm:$0xf] %v445
                %v447 = vld [vmem:[%s199 + $0x5c4] sm:$0xf]
                %448 = vst [vmem:[%s200 + $0x1ec] sm:$0xf] %v447
                %v449 = vld [vmem:[%s199 + $0x5d0] sm:$0xf]
                %450 = vst [vmem:[%s200 + $0x1f0] sm:$0xf] %v449
                %v451 = vld [vmem:[%s199 + $0x5dc] sm:$0xf]
                %452 = vst [vmem:[%s200 + $0x1f4] sm:$0xf] %v451
                %v453 = vld [vmem:[%s199 + $0x5e8] sm:$0xf]
                %454 = vst [vmem:[%s200 + $0x1f8] sm:$0xf] %v453
                %v455 = vld [vmem:[%s199 + $0x5f4] sm:$0xf]
                %456 = vst [vmem:[%s200 + $0x1fc] sm:$0xf] %v455
                %v457 = vld [vmem:[%s199 + $0x600] sm:$0xf]
                %458 = vst [vmem:[%s200 + $0x200] sm:$0xf] %v457
                %v459 = vld [vmem:[%s199 + $0x60c] sm:$0xf]
                %460 = vst [vmem:[%s200 + $0x204] sm:$0xf] %v459
                %v461 = vld [vmem:[%s199 + $0x618] sm:$0xf]
                %462 = vst [vmem:[%s200 + $0x208] sm:$0xf] %v461
                %v463 = vld [vmem:[%s199 + $0x624] sm:$0xf]
                %464 = vst [vmem:[%s200 + $0x20c] sm:$0xf] %v463
                %v465 = vld [vmem:[%s199 + $0x630] sm:$0xf]
                %466 = vst [vmem:[%s200 + $0x210] sm:$0xf] %v465
                %v467 = vld [vmem:[%s199 + $0x63c] sm:$0xf]
                %468 = vst [vmem:[%s200 + $0x214] sm:$0xf] %v467
                %v469 = vld [vmem:[%s199 + $0x648] sm:$0xf]
                %470 = vst [vmem:[%s200 + $0x218] sm:$0xf] %v469
                %v471 = vld [vmem:[%s199 + $0x654] sm:$0xf]
                %472 = vst [vmem:[%s200 + $0x21c] sm:$0xf] %v471
                %v473 = vld [vmem:[%s199 + $0x660] sm:$0xf]
                %474 = vst [vmem:[%s200 + $0x220] sm:$0xf] %v473
                %v475 = vld [vmem:[%s199 + $0x66c] sm:$0xf]
                %476 = vst [vmem:[%s200 + $0x224] sm:$0xf] %v475
                %v477 = vld [vmem:[%s199 + $0x678] sm:$0xf]
                %478 = vst [vmem:[%s200 + $0x228] sm:$0xf] %v477
                %v479 = vld [vmem:[%s199 + $0x684] sm:$0xf]
                %480 = vst [vmem:[%s200 + $0x22c] sm:$0xf] %v479
                %v481 = vld [vmem:[%s199 + $0x690] sm:$0xf]
                %482 = vst [vmem:[%s200 + $0x230] sm:$0xf] %v481
                %v483 = vld [vmem:[%s199 + $0x69c] sm:$0xf]
                %484 = vst [vmem:[%s200 + $0x234] sm:$0xf] %v483
                %v485 = vld [vmem:[%s199 + $0x6a8] sm:$0xf]
                %486 = vst [vmem:[%s200 + $0x238] sm:$0xf] %v485
                %v487 = vld [vmem:[%s199 + $0x6b4] sm:$0xf]
                %488 = vst [vmem:[%s200 + $0x23c] sm:$0xf] %v487
                %v489 = vld [vmem:[%s199 + $0x6c0] sm:$0xf]
                %490 = vst [vmem:[%s200 + $0x240] sm:$0xf] %v489
                %v491 = vld [vmem:[%s199 + $0x6cc] sm:$0xf]
                %492 = vst [vmem:[%s200 + $0x244] sm:$0xf] %v491
                %v493 = vld [vmem:[%s199 + $0x6d8] sm:$0xf]
                %494 = vst [vmem:[%s200 + $0x248] sm:$0xf] %v493
                %v495 = vld [vmem:[%s199 + $0x6e4] sm:$0xf]
                %496 = vst [vmem:[%s200 + $0x24c] sm:$0xf] %v495
                %v497 = vld [vmem:[%s199 + $0x6f0] sm:$0xf]
                %498 = vst [vmem:[%s200 + $0x250] sm:$0xf] %v497
                %v499 = vld [vmem:[%s199 + $0x6fc] sm:$0xf]
                %500 = vst [vmem:[%s200 + $0x254] sm:$0xf] %v499
                %v501 = vld [vmem:[%s199 + $0x708] sm:$0xf]
                %502 = vst [vmem:[%s200 + $0x258] sm:$0xf] %v501
                %v503 = vld [vmem:[%s199 + $0x714] sm:$0xf]
                %504 = vst [vmem:[%s200 + $0x25c] sm:$0xf] %v503
                %v505 = vld [vmem:[%s199 + $0x720] sm:$0xf]
                %506 = vst [vmem:[%s200 + $0x260] sm:$0xf] %v505
                %v507 = vld [vmem:[%s199 + $0x72c] sm:$0xf]
                %508 = vst [vmem:[%s200 + $0x264] sm:$0xf] %v507
                %v509 = vld [vmem:[%s199 + $0x738] sm:$0xf]
                %510 = vst [vmem:[%s200 + $0x268] sm:$0xf] %v509
                %v511 = vld [vmem:[%s199 + $0x744] sm:$0xf]
                %512 = vst [vmem:[%s200 + $0x26c] sm:$0xf] %v511
                %v513 = vld [vmem:[%s199 + $0x750] sm:$0xf]
                %514 = vst [vmem:[%s200 + $0x270] sm:$0xf] %v513
                %v515 = vld [vmem:[%s199 + $0x75c] sm:$0xf]
                %516 = vst [vmem:[%s200 + $0x274] sm:$0xf] %v515
                %v517 = vld [vmem:[%s199 + $0x768] sm:$0xf]
                %518 = vst [vmem:[%s200 + $0x278] sm:$0xf] %v517
                %v519 = vld [vmem:[%s199 + $0x774] sm:$0xf]
                %520 = vst [vmem:[%s200 + $0x27c] sm:$0xf] %v519
                %v521 = vld [vmem:[%s199 + $0x780] sm:$0xf]
                %522 = vst [vmem:[%s200 + $0x280] sm:$0xf] %v521
                %v523 = vld [vmem:[%s199 + $0x78c] sm:$0xf]
                %524 = vst [vmem:[%s200 + $0x284] sm:$0xf] %v523
                %v525 = vld [vmem:[%s199 + $0x798] sm:$0xf]
                %526 = vst [vmem:[%s200 + $0x288] sm:$0xf] %v525
                %v527 = vld [vmem:[%s199 + $0x7a4] sm:$0xf]
                %528 = vst [vmem:[%s200 + $0x28c] sm:$0xf] %v527
                %v529 = vld [vmem:[%s199 + $0x7b0] sm:$0xf]
                %530 = vst [vmem:[%s200 + $0x290] sm:$0xf] %v529
                %v531 = vld [vmem:[%s199 + $0x7bc] sm:$0xf]
                %532 = vst [vmem:[%s200 + $0x294] sm:$0xf] %v531
                %v533 = vld [vmem:[%s199 + $0x7c8] sm:$0xf]
                %534 = vst [vmem:[%s200 + $0x298] sm:$0xf] %v533
                %v535 = vld [vmem:[%s199 + $0x7d4] sm:$0xf]
                %536 = vst [vmem:[%s200 + $0x29c] sm:$0xf] %v535
                %v537 = vld [vmem:[%s199 + $0x7e0] sm:$0xf]
                %538 = vst [vmem:[%s200 + $0x2a0] sm:$0xf] %v537
                %v539 = vld [vmem:[%s199 + $0x7ec] sm:$0xf]
                %540 = vst [vmem:[%s200 + $0x2a4] sm:$0xf] %v539
                %v541 = vld [vmem:[%s199 + $0x7f8] sm:$0xf]
                %542 = vst [vmem:[%s200 + $0x2a8] sm:$0xf] %v541
                %v543 = vld [vmem:[%s199 + $0x804] sm:$0xf]
                %544 = vst [vmem:[%s200 + $0x2ac] sm:$0xf] %v543
                %v545 = vld [vmem:[%s199 + $0x810] sm:$0xf]
                %546 = vst [vmem:[%s200 + $0x2b0] sm:$0xf] %v545
                %v547 = vld [vmem:[%s199 + $0x81c] sm:$0xf]
                %548 = vst [vmem:[%s200 + $0x2b4] sm:$0xf] %v547
                %v549 = vld [vmem:[%s199 + $0x828] sm:$0xf]
                %550 = vst [vmem:[%s200 + $0x2b8] sm:$0xf] %v549
                %v551 = vld [vmem:[%s199 + $0x834] sm:$0xf]
                %552 = vst [vmem:[%s200 + $0x2bc] sm:$0xf] %v551
                %v553 = vld [vmem:[%s199 + $0x840] sm:$0xf]
                %554 = vst [vmem:[%s200 + $0x2c0] sm:$0xf] %v553
                %v555 = vld [vmem:[%s199 + $0x84c] sm:$0xf]
                %556 = vst [vmem:[%s200 + $0x2c4] sm:$0xf] %v555
                %v557 = vld [vmem:[%s199 + $0x858] sm:$0xf]
                %558 = vst [vmem:[%s200 + $0x2c8] sm:$0xf] %v557
                %v559 = vld [vmem:[%s199 + $0x864] sm:$0xf]
                %560 = vst [vmem:[%s200 + $0x2cc] sm:$0xf] %v559
                %v561 = vld [vmem:[%s199 + $0x870] sm:$0xf]
                %562 = vst [vmem:[%s200 + $0x2d0] sm:$0xf] %v561
                %v563 = vld [vmem:[%s199 + $0x87c] sm:$0xf]
                %564 = vst [vmem:[%s200 + $0x2d4] sm:$0xf] %v563
                %v565 = vld [vmem:[%s199 + $0x888] sm:$0xf]
                %566 = vst [vmem:[%s200 + $0x2d8] sm:$0xf] %v565
                %v567 = vld [vmem:[%s199 + $0x894] sm:$0xf]
                %568 = vst [vmem:[%s200 + $0x2dc] sm:$0xf] %v567
                %v569 = vld [vmem:[%s199 + $0x8a0] sm:$0xf]
                %570 = vst [vmem:[%s200 + $0x2e0] sm:$0xf] %v569
                %v571 = vld [vmem:[%s199 + $0x8ac] sm:$0xf]
                %572 = vst [vmem:[%s200 + $0x2e4] sm:$0xf] %v571
                %v573 = vld [vmem:[%s199 + $0x8b8] sm:$0xf]
                %574 = vst [vmem:[%s200 + $0x2e8] sm:$0xf] %v573
                %v575 = vld [vmem:[%s199 + $0x8c4] sm:$0xf]
                %576 = vst [vmem:[%s200 + $0x2ec] sm:$0xf] %v575
                %v577 = vld [vmem:[%s199 + $0x8d0] sm:$0xf]
                %578 = vst [vmem:[%s200 + $0x2f0] sm:$0xf] %v577
                %v579 = vld [vmem:[%s199 + $0x8dc] sm:$0xf]
                %580 = vst [vmem:[%s200 + $0x2f4] sm:$0xf] %v579
                %v581 = vld [vmem:[%s199 + $0x8e8] sm:$0xf]
                %582 = vst [vmem:[%s200 + $0x2f8] sm:$0xf] %v581
                %v583 = vld [vmem:[%s199 + $0x8f4] sm:$0xf]
                %584 = vst [vmem:[%s200 + $0x2fc] sm:$0xf] %v583
                %v585 = vld [vmem:[%s199 + $0x900] sm:$0xf]
                %586 = vst [vmem:[%s200 + $0x300] sm:$0xf] %v585
                %v587 = vld [vmem:[%s199 + $0x90c] sm:$0xf]
                %588 = vst [vmem:[%s200 + $0x304] sm:$0xf] %v587
                %v589 = vld [vmem:[%s199 + $0x918] sm:$0xf]
                %590 = vst [vmem:[%s200 + $0x308] sm:$0xf] %v589
                %v591 = vld [vmem:[%s199 + $0x924] sm:$0xf]
                %592 = vst [vmem:[%s200 + $0x30c] sm:$0xf] %v591
                %v593 = vld [vmem:[%s199 + $0x930] sm:$0xf]
                %594 = vst [vmem:[%s200 + $0x310] sm:$0xf] %v593
                %v595 = vld [vmem:[%s199 + $0x93c] sm:$0xf]
                %596 = vst [vmem:[%s200 + $0x314] sm:$0xf] %v595
                %v597 = vld [vmem:[%s199 + $0x948] sm:$0xf]
                %598 = vst [vmem:[%s200 + $0x318] sm:$0xf] %v597
                %v599 = vld [vmem:[%s199 + $0x954] sm:$0xf]
                %600 = vst [vmem:[%s200 + $0x31c] sm:$0xf] %v599
                %v601 = vld [vmem:[%s199 + $0x960] sm:$0xf]
                %602 = vst [vmem:[%s200 + $0x320] sm:$0xf] %v601
                %v603 = vld [vmem:[%s199 + $0x96c] sm:$0xf]
                %604 = vst [vmem:[%s200 + $0x324] sm:$0xf] %v603
                %v605 = vld [vmem:[%s199 + $0x978] sm:$0xf]
                %606 = vst [vmem:[%s200 + $0x328] sm:$0xf] %v605
                %v607 = vld [vmem:[%s199 + $0x984] sm:$0xf]
                %608 = vst [vmem:[%s200 + $0x32c] sm:$0xf] %v607
                %v609 = vld [vmem:[%s199 + $0x990] sm:$0xf]
                %610 = vst [vmem:[%s200 + $0x330] sm:$0xf] %v609
                %v611 = vld [vmem:[%s199 + $0x99c] sm:$0xf]
                %612 = vst [vmem:[%s200 + $0x334] sm:$0xf] %v611
                %v613 = vld [vmem:[%s199 + $0x9a8] sm:$0xf]
                %614 = vst [vmem:[%s200 + $0x338] sm:$0xf] %v613
                %v615 = vld [vmem:[%s199 + $0x9b4] sm:$0xf]
                %616 = vst [vmem:[%s200 + $0x33c] sm:$0xf] %v615
                %v617 = vld [vmem:[%s199 + $0x9c0] sm:$0xf]
                %618 = vst [vmem:[%s200 + $0x340] sm:$0xf] %v617
                %v619 = vld [vmem:[%s199 + $0x9cc] sm:$0xf]
                %620 = vst [vmem:[%s200 + $0x344] sm:$0xf] %v619
                %v621 = vld [vmem:[%s199 + $0x9d8] sm:$0xf]
                %622 = vst [vmem:[%s200 + $0x348] sm:$0xf] %v621
                %v623 = vld [vmem:[%s199 + $0x9e4] sm:$0xf]
                %624 = vst [vmem:[%s200 + $0x34c] sm:$0xf] %v623
                %v625 = vld [vmem:[%s199 + $0x9f0] sm:$0xf]
                %626 = vst [vmem:[%s200 + $0x350] sm:$0xf] %v625
                %v627 = vld [vmem:[%s199 + $0x9fc] sm:$0xf]
                %628 = vst [vmem:[%s200 + $0x354] sm:$0xf] %v627
                %v629 = vld [vmem:[%s199 + $0xa08] sm:$0xf]
                %630 = vst [vmem:[%s200 + $0x358] sm:$0xf] %v629
                %v631 = vld [vmem:[%s199 + $0xa14] sm:$0xf]
                %632 = vst [vmem:[%s200 + $0x35c] sm:$0xf] %v631
                %v633 = vld [vmem:[%s199 + $0xa20] sm:$0xf]
                %634 = vst [vmem:[%s200 + $0x360] sm:$0xf] %v633
                %v635 = vld [vmem:[%s199 + $0xa2c] sm:$0xf]
                %636 = vst [vmem:[%s200 + $0x364] sm:$0xf] %v635
                %v637 = vld [vmem:[%s199 + $0xa38] sm:$0xf]
                %638 = vst [vmem:[%s200 + $0x368] sm:$0xf] %v637
                %v639 = vld [vmem:[%s199 + $0xa44] sm:$0xf]
                %640 = vst [vmem:[%s200 + $0x36c] sm:$0xf] %v639
                %v641 = vld [vmem:[%s199 + $0xa50] sm:$0xf]
                %642 = vst [vmem:[%s200 + $0x370] sm:$0xf] %v641
                %v643 = vld [vmem:[%s199 + $0xa5c] sm:$0xf]
                %644 = vst [vmem:[%s200 + $0x374] sm:$0xf] %v643
                %v645 = vld [vmem:[%s199 + $0xa68] sm:$0xf]
                %646 = vst [vmem:[%s200 + $0x378] sm:$0xf] %v645
                %v647 = vld [vmem:[%s199 + $0xa74] sm:$0xf]
                %648 = vst [vmem:[%s200 + $0x37c] sm:$0xf] %v647
                %v649 = vld [vmem:[%s199 + $0xa80] sm:$0xf]
                %650 = vst [vmem:[%s200 + $0x380] sm:$0xf] %v649
                %v651 = vld [vmem:[%s199 + $0xa8c] sm:$0xf]
                %652 = vst [vmem:[%s200 + $0x384] sm:$0xf] %v651
                %v653 = vld [vmem:[%s199 + $0xa98] sm:$0xf]
                %654 = vst [vmem:[%s200 + $0x388] sm:$0xf] %v653
                %v655 = vld [vmem:[%s199 + $0xaa4] sm:$0xf]
                %656 = vst [vmem:[%s200 + $0x38c] sm:$0xf] %v655
                %v657 = vld [vmem:[%s199 + $0xab0] sm:$0xf]
                %658 = vst [vmem:[%s200 + $0x390] sm:$0xf] %v657
                %v659 = vld [vmem:[%s199 + $0xabc] sm:$0xf]
                %660 = vst [vmem:[%s200 + $0x394] sm:$0xf] %v659
                %v661 = vld [vmem:[%s199 + $0xac8] sm:$0xf]
                %662 = vst [vmem:[%s200 + $0x398] sm:$0xf] %v661
                %v663 = vld [vmem:[%s199 + $0xad4] sm:$0xf]
                %664 = vst [vmem:[%s200 + $0x39c] sm:$0xf] %v663
                %v665 = vld [vmem:[%s199 + $0xae0] sm:$0xf]
                %666 = vst [vmem:[%s200 + $0x3a0] sm:$0xf] %v665
                %v667 = vld [vmem:[%s199 + $0xaec] sm:$0xf]
                %668 = vst [vmem:[%s200 + $0x3a4] sm:$0xf] %v667
                %v669 = vld [vmem:[%s199 + $0xaf8] sm:$0xf]
                %670 = vst [vmem:[%s200 + $0x3a8] sm:$0xf] %v669
                %v671 = vld [vmem:[%s199 + $0xb04] sm:$0xf]
                %672 = vst [vmem:[%s200 + $0x3ac] sm:$0xf] %v671
                %v673 = vld [vmem:[%s199 + $0xb10] sm:$0xf]
                %674 = vst [vmem:[%s200 + $0x3b0] sm:$0xf] %v673
                %v675 = vld [vmem:[%s199 + $0xb1c] sm:$0xf]
                %676 = vst [vmem:[%s200 + $0x3b4] sm:$0xf] %v675
                %v677 = vld [vmem:[%s199 + $0xb28] sm:$0xf]
                %678 = vst [vmem:[%s200 + $0x3b8] sm:$0xf] %v677
                %v679 = vld [vmem:[%s199 + $0xb34] sm:$0xf]
                %680 = vst [vmem:[%s200 + $0x3bc] sm:$0xf] %v679
                %v681 = vld [vmem:[%s199 + $0xb40] sm:$0xf]
                %682 = vst [vmem:[%s200 + $0x3c0] sm:$0xf] %v681
                %v683 = vld [vmem:[%s199 + $0xb4c] sm:$0xf]
                %684 = vst [vmem:[%s200 + $0x3c4] sm:$0xf] %v683
                %v685 = vld [vmem:[%s199 + $0xb58] sm:$0xf]
                %686 = vst [vmem:[%s200 + $0x3c8] sm:$0xf] %v685
                %v687 = vld [vmem:[%s199 + $0xb64] sm:$0xf]
                %688 = vst [vmem:[%s200 + $0x3cc] sm:$0xf] %v687
                %v689 = vld [vmem:[%s199 + $0xb70] sm:$0xf]
                %690 = vst [vmem:[%s200 + $0x3d0] sm:$0xf] %v689
                %v691 = vld [vmem:[%s199 + $0xb7c] sm:$0xf]
                %692 = vst [vmem:[%s200 + $0x3d4] sm:$0xf] %v691
                %v693 = vld [vmem:[%s199 + $0xb88] sm:$0xf]
                %694 = vst [vmem:[%s200 + $0x3d8] sm:$0xf] %v693
                %v695 = vld [vmem:[%s199 + $0xb94] sm:$0xf]
                %696 = vst [vmem:[%s200 + $0x3dc] sm:$0xf] %v695
                %v697 = vld [vmem:[%s199 + $0xba0] sm:$0xf]
                %698 = vst [vmem:[%s200 + $0x3e0] sm:$0xf] %v697
                %v699 = vld [vmem:[%s199 + $0xbac] sm:$0xf]
                %700 = vst [vmem:[%s200 + $0x3e4] sm:$0xf] %v699
                %v701 = vld [vmem:[%s199 + $0xbb8] sm:$0xf]
                %702 = vst [vmem:[%s200 + $0x3e8] sm:$0xf] %v701
                %v703 = vld [vmem:[%s199 + $0xbc4] sm:$0xf]
                %704 = vst [vmem:[%s200 + $0x3ec] sm:$0xf] %v703
                %v705 = vld [vmem:[%s199 + $0xbd0] sm:$0xf]
                %706 = vst [vmem:[%s200 + $0x3f0] sm:$0xf] %v705
                %v707 = vld [vmem:[%s199 + $0xbdc] sm:$0xf]
                %708 = vst [vmem:[%s200 + $0x3f4] sm:$0xf] %v707
                %v709 = vld [vmem:[%s199 + $0xbe8] sm:$0xf]
                %710 = vst [vmem:[%s200 + $0x3f8] sm:$0xf] %v709
                %v711 = vld [vmem:[%s199 + $0xbf4] sm:$0xf]
                %712 = vst [vmem:[%s200 + $0x3fc] sm:$0xf] %v711
                %v713 = vld [vmem:[%s199 + $0xc00] sm:$0xf]
                %714 = vst [vmem:[%s200 + $0x400] sm:$0xf] %v713
                %v715 = vld [vmem:[%s199 + $0xc0c] sm:$0xf]
                %716 = vst [vmem:[%s200 + $0x404] sm:$0xf] %v715
                %v717 = vld [vmem:[%s199 + $0xc18] sm:$0xf]
                %718 = vst [vmem:[%s200 + $0x408] sm:$0xf] %v717
                %v719 = vld [vmem:[%s199 + $0xc24] sm:$0xf]
                %720 = vst [vmem:[%s200 + $0x40c] sm:$0xf] %v719
                %v721 = vld [vmem:[%s199 + $0xc30] sm:$0xf]
                %722 = vst [vmem:[%s200 + $0x410] sm:$0xf] %v721
                %v723 = vld [vmem:[%s199 + $0xc3c] sm:$0xf]
                %724 = vst [vmem:[%s200 + $0x414] sm:$0xf] %v723
                %v725 = vld [vmem:[%s199 + $0xc48] sm:$0xf]
                %726 = vst [vmem:[%s200 + $0x418] sm:$0xf] %v725
                %v727 = vld [vmem:[%s199 + $0xc54] sm:$0xf]
                %728 = vst [vmem:[%s200 + $0x41c] sm:$0xf] %v727
                %v729 = vld [vmem:[%s199 + $0xc60] sm:$0xf]
                %730 = vst [vmem:[%s200 + $0x420] sm:$0xf] %v729
                %v731 = vld [vmem:[%s199 + $0xc6c] sm:$0xf]
                %732 = vst [vmem:[%s200 + $0x424] sm:$0xf] %v731
                %v733 = vld [vmem:[%s199 + $0xc78] sm:$0xf]
                %734 = vst [vmem:[%s200 + $0x428] sm:$0xf] %v733
                %v735 = vld [vmem:[%s199 + $0xc84] sm:$0xf]
                %736 = vst [vmem:[%s200 + $0x42c] sm:$0xf] %v735
                %v737 = vld [vmem:[%s199 + $0xc90] sm:$0xf]
                %738 = vst [vmem:[%s200 + $0x430] sm:$0xf] %v737
                %v739 = vld [vmem:[%s199 + $0xc9c] sm:$0xf]
                %740 = vst [vmem:[%s200 + $0x434] sm:$0xf] %v739
                %v741 = vld [vmem:[%s199 + $0xca8] sm:$0xf]
                %742 = vst [vmem:[%s200 + $0x438] sm:$0xf] %v741
                %v743 = vld [vmem:[%s199 + $0xcb4] sm:$0xf]
                %744 = vst [vmem:[%s200 + $0x43c] sm:$0xf] %v743
                %v745 = vld [vmem:[%s199 + $0xcc0] sm:$0xf]
                %746 = vst [vmem:[%s200 + $0x440] sm:$0xf] %v745
                %v747 = vld [vmem:[%s199 + $0xccc] sm:$0xf]
                %748 = vst [vmem:[%s200 + $0x444] sm:$0xf] %v747
                %v749 = vld [vmem:[%s199 + $0xcd8] sm:$0xf]
                %750 = vst [vmem:[%s200 + $0x448] sm:$0xf] %v749
                %v751 = vld [vmem:[%s199 + $0xce4] sm:$0xf]
                %752 = vst [vmem:[%s200 + $0x44c] sm:$0xf] %v751
                %v753 = vld [vmem:[%s199 + $0xcf0] sm:$0xf]
                %754 = vst [vmem:[%s200 + $0x450] sm:$0xf] %v753
                %v755 = vld [vmem:[%s199 + $0xcfc] sm:$0xf]
                %756 = vst [vmem:[%s200 + $0x454] sm:$0xf] %v755
                %v757 = vld [vmem:[%s199 + $0xd08] sm:$0xf]
                %758 = vst [vmem:[%s200 + $0x458] sm:$0xf] %v757
                %v759 = vld [vmem:[%s199 + $0xd14] sm:$0xf]
                %760 = vst [vmem:[%s200 + $0x45c] sm:$0xf] %v759
                %v761 = vld [vmem:[%s199 + $0xd20] sm:$0xf]
                %762 = vst [vmem:[%s200 + $0x460] sm:$0xf] %v761
                %v763 = vld [vmem:[%s199 + $0xd2c] sm:$0xf]
                %764 = vst [vmem:[%s200 + $0x464] sm:$0xf] %v763
                %v765 = vld [vmem:[%s199 + $0xd38] sm:$0xf]
                %766 = vst [vmem:[%s200 + $0x468] sm:$0xf] %v765
                %v767 = vld [vmem:[%s199 + $0xd44] sm:$0xf]
                %768 = vst [vmem:[%s200 + $0x46c] sm:$0xf] %v767
                %v769 = vld [vmem:[%s199 + $0xd50] sm:$0xf]
                %770 = vst [vmem:[%s200 + $0x470] sm:$0xf] %v769
                %v771 = vld [vmem:[%s199 + $0xd5c] sm:$0xf]
                %772 = vst [vmem:[%s200 + $0x474] sm:$0xf] %v771
                %v773 = vld [vmem:[%s199 + $0xd68] sm:$0xf]
                %774 = vst [vmem:[%s200 + $0x478] sm:$0xf] %v773
                %v775 = vld [vmem:[%s199 + $0xd74] sm:$0xf]
                %776 = vst [vmem:[%s200 + $0x47c] sm:$0xf] %v775
              $region41: #{alexnet_forward.11} parent=35 // loop_footer
                %s198 = sadd.s32 1, %s194
              $region42: #{alexnet_forward.11} parent=35 // loop_footer_branch
                %193 = sbr.rel target = $region38
              $region43: #{alexnet_forward.11} parent=35 // loop_exit
                _
            $region36: #{alexnet_forward.11} parent=27 // pred_fallthru
              _
          $region28: #{alexnet_forward.11} parent=23 // pred_fallthru
            _
          %1372 = vnop
        $region24: #{alexnet_forward.11} parent=19 // pred_fallthru
          _
        // Predicated region
        $region62: #{alexnet_forward.11} parent=19 // pred_check
          %p1373 = pneg %p106
        $region63: #{alexnet_forward.11} parent=19 // pred_check_branch
          %1375 = sbr.rel (%p1373) target = $region65
        $region64: #{alexnet_forward.11} parent=19 // pred_region
          %p1376 = scmp.lt.s32.totalorder %s16, 0
          %s1377 = scalar_select %p1376, %s16, 0
          %p1378 = scmp.lt.s32.totalorder %s18, 2
          %s1379 = scalar_select %p1378, %s18, 2
          %s1380 = smul.addr %s1377, 3
          %s1381 = sadd.s32 %s1379, %s1380
          %s1382 = scalar_lea.vmem %s2, %s1381
        $region65: #{alexnet_forward.11} parent=19 // pred_fallthru
          _
      $region20: #{alexnet_forward.11} parent=5 // pred_fallthru
        _
      %p1383 = scmp.le.s32.totalorder 1, %s9
      %p1384 = scmp.lt.s32.totalorder %s9, 4
      %p1385 = pnand %p1383, %p1384
      %p1386 = pneg %p1385
      // Predicated region
      $region66: #{alexnet_forward.11} parent=5 // pred_check
        _
      $region67: #{alexnet_forward.11} parent=5 // pred_check_branch
        %1388 = sbr.rel (%p1385) target = $region69
      $region68: #{alexnet_forward.11} parent=5 // pred_region
        %s1389 = ssub.s32 %s9, 1
        %s1390 = sand.u32 %s71, 1
        %s1391 = sand.u32 %s71, 1
        %s1392 = smul.addr %s1391, 1152
        %s1393 = scalar_lea.vmem [#allocation2], %s1392
        // Predicated region
        $region70: #{alexnet_forward.11} parent=68 // pred_check
          %p1394 = pneg %p84
        $region71: #{alexnet_forward.11} parent=68 // pred_check_branch
          %1396 = sbr.rel (%p1394) target = $region73
        $region72: #{alexnet_forward.11} parent=68 // pred_region
          _
        $region73: #{alexnet_forward.11} parent=68 // pred_fallthru
          _
        %s1397 = smul.u32 3, %s20
        %p1398 = scmp.lt.s32.totalorder %s19, 0
        %s1399 = scalar_select %p1398, %s19, 0
        %p1400 = scmp.lt.s32.totalorder %s1397, 2
        %s1401 = scalar_select %p1400, %s1397, 2
        %s1402 = smul.addr %s1401, 18
        %s1403 = smul.addr %s1399, 54
        %s1404 = sadd.s32 %s1402, %s1403
        %s1405 = smul.addr %s1404, 4
        %s1406 = scalar_lea.vmem %s0, %s1405
        %p1407 = pneg %p56
        %p1408 = pneg %p53
        %s1409 = sand.u32 %s71, 1
        %s1410 = sand.u32 %s71, 1
        %s1411 = smul.addr %s1410, 1152
        %s1412 = scalar_lea.vmem [#allocation2], %s1411
        %p1413 = pneg %p84
        %p1414 = pneg %p81
        %p1415 = scmp.lt.s32.totalorder %s19, 0
        %s1416 = scalar_select %p1415, %s19, 0
        %p1417 = scmp.lt.s32.totalorder %s21, 2
        %s1418 = scalar_select %p1417, %s21, 2
        %s1419 = smul.addr %s1416, 3
        %s1420 = sadd.s32 %s1418, %s1419
        %s1421 = scalar_lea.vmem %s2, %s1420
        %p1422 = pneg %p112
        %p1423 = pneg %p109
        %p1424 = pneg %p142
        %p1425 = pneg %p139
        %s1426 = sand.u32 %s129, 1
        %s1427 = sand.u32 %s129, 1
        %s1428 = smul.addr %s1427, 12
        %s1429 = scalar_lea.vmem [#allocation3], %s1428
        %s1430 = smul.u32 3, %s20
        %p1431 = scmp.lt.s32.totalorder %s19, 0
        %s1432 = scalar_select %p1431, %s19, 0
        %p1433 = scmp.lt.s32.totalorder %s1430, 2
        %s1434 = scalar_select %p1433, %s1430, 2
        %s1435 = smul.addr %s1434, 18
        %s1436 = smul.addr %s1432, 54
        %s1437 = sadd.s32 %s1435, %s1436
        %s1438 = smul.addr %s1437, 4
        %s1439 = scalar_lea.vmem %s0, %s1438
        %s1440 = smul.u32 3, %s20
        %p1441 = scmp.lt.s32.totalorder %s19, 0
        %s1442 = scalar_select %p1441, %s19, 0
        %p1443 = scmp.lt.s32.totalorder %s21, 2
        %s1444 = scalar_select %p1443, %s21, 2
        %s1445 = smul.addr %s1442, 3
        %s1446 = sadd.s32 %s1444, %s1445
        %s1447 = scalar_lea.vmem %s2, %s1446
        %s1448 = smul.u32 3, %s20
        %v1450 = vld [vmem:[%s1439] sm:$0xff]
        %v1451 = vld [vmem:[%s1439 + $0x8] sm:$0xff]
        %v1452 = vld [vmem:[%s1439 + $0x10] sm:$0xff]
        %v1453 = vld [vmem:[%s1439 + $0x18] sm:$0xff]
        %v1454 = vld [vmem:[%s1439 + $0x20] sm:$0xff]
        %v1455 = vld [vmem:[%s1439 + $0x28] sm:$0xff]
        %v1456 = vld [vmem:[%s1439 + $0x30] sm:$0xff]
        %v1457 = vld [vmem:[%s1439 + $0x38] sm:$0xff]
        %v1458 = vld [vmem:[%s1439 + $0x40] sm:$0xff]
        %v1459 = vld [vmem:[%s1439 + $0x48] sm:$0xff]
        %v1460 = vld [vmem:[%s1439 + $0x50] sm:$0xff]
        %v1461 = vld [vmem:[%s1439 + $0x58] sm:$0xff]
        %v1462 = vld [vmem:[%s1439 + $0x60] sm:$0xff]
        %v1463 = vld [vmem:[%s1439 + $0x68] sm:$0xff]
        %v1464 = vld [vmem:[%s1439 + $0x70] sm:$0xff]
        %v1465 = vld [vmem:[%s1439 + $0x78] sm:$0xff]
        %v1466 = vld [vmem:[%s1439 + $0x80] sm:$0xff]
        %v1467 = vld [vmem:[%s1439 + $0x88] sm:$0xff]
        %v1468 = vld [vmem:[%s1439 + $0x90] sm:$0x11]
        %v1469 = vld [vmem:[%s1439 + $0x98] sm:$0x11]
        %v1470 = vld [vmem:[%s1439 + $0xa0] sm:$0x11]
        %v1471 = vld [vmem:[%s1439 + $0xa8] sm:$0x11]
        %v1472 = vld [vmem:[%s1439 + $0xb0] sm:$0x11]
        %v1473 = vld [vmem:[%s1439 + $0xb8] sm:$0x11]
        %v1474 = vld [vmem:[%s1439 + $0xc0] sm:$0x11]
        %v1475 = vld [vmem:[%s1439 + $0xc8] sm:$0x11]
        %v1476 = vld [vmem:[%s1439 + $0xd0] sm:$0x11]
        %v1477 = vld [vmem:[%s1393] sm:$0xf]
        %v1478 = vld [vmem:[%s1393 + $0x4] sm:$0xf]
        %v1479 = vld [vmem:[%s1393 + $0x8] sm:$0xf]
        %v1480 = vld [vmem:[%s1393 + $0xc] sm:$0xf]
        %v1481 = vld [vmem:[%s1393 + $0x10] sm:$0xf]
        %v1482 = vld [vmem:[%s1393 + $0x14] sm:$0xf]
        %v1483 = vld [vmem:[%s1393 + $0x18] sm:$0xf]
        %v1484 = vld [vmem:[%s1393 + $0x1c] sm:$0xf]
        %v1485 = vld [vmem:[%s1393 + $0x20] sm:$0xf]
        %v1486 = vld [vmem:[%s1393 + $0x24] sm:$0xf]
        %v1487 = vld [vmem:[%s1393 + $0x28] sm:$0xf]
        %v1488 = vld [vmem:[%s1393 + $0x2c] sm:$0xf]
        %v1489 = vld [vmem:[%s1393 + $0x30] sm:$0xf]
        %v1490 = vld [vmem:[%s1393 + $0x34] sm:$0xf]
        %v1491 = vld [vmem:[%s1393 + $0x38] sm:$0xf]
        %v1492 = vld [vmem:[%s1393 + $0x3c] sm:$0xf]
        %v1493 = vld [vmem:[%s1393 + $0x40] sm:$0xf]
        %v1494 = vld [vmem:[%s1393 + $0x44] sm:$0xf]
        %v1495 = vld [vmem:[%s1393 + $0x48] sm:$0xf]
        %v1496 = vld [vmem:[%s1393 + $0x4c] sm:$0xf]
        %v1497 = vld [vmem:[%s1393 + $0x50] sm:$0xf]
        %v1498 = vld [vmem:[%s1393 + $0x54] sm:$0xf]
        %v1499 = vld [vmem:[%s1393 + $0x58] sm:$0xf]
        %v1500 = vld [vmem:[%s1393 + $0x5c] sm:$0xf]
        %v1501 = vld [vmem:[%s1393 + $0x60] sm:$0xf]
        %v1502 = vld [vmem:[%s1393 + $0x64] sm:$0xf]
        %v1503 = vld [vmem:[%s1393 + $0x68] sm:$0xf]
        %v1504 = vld [vmem:[%s1393 + $0x6c] sm:$0xf]
        %v1505 = vld [vmem:[%s1393 + $0x70] sm:$0xf]
        %v1506 = vld [vmem:[%s1393 + $0x74] sm:$0xf]
        %v1507 = vld [vmem:[%s1393 + $0x78] sm:$0xf]
        %v1508 = vld [vmem:[%s1393 + $0x7c] sm:$0xf]
        %v1509 = vld [vmem:[%s1393 + $0x80] sm:$0xf]
        %v1510 = vld [vmem:[%s1393 + $0x84] sm:$0xf]
        %v1511 = vld [vmem:[%s1393 + $0x88] sm:$0xf]
        %v1512 = vld [vmem:[%s1393 + $0x8c] sm:$0xf]
        %v1513 = vld [vmem:[%s1393 + $0x90] sm:$0xf]
        %v1514 = vld [vmem:[%s1393 + $0x94] sm:$0xf]
        %v1515 = vld [vmem:[%s1393 + $0x98] sm:$0xf]
        %v1516 = vld [vmem:[%s1393 + $0x9c] sm:$0xf]
        %v1517 = vld [vmem:[%s1393 + $0xa0] sm:$0xf]
        %v1518 = vld [vmem:[%s1393 + $0xa4] sm:$0xf]
        %v1519 = vld [vmem:[%s1393 + $0xa8] sm:$0xf]
        %v1520 = vld [vmem:[%s1393 + $0xac] sm:$0xf]
        %v1521 = vld [vmem:[%s1393 + $0xb0] sm:$0xf]
        %v1522 = vld [vmem:[%s1393 + $0xb4] sm:$0xf]
        %v1523 = vld [vmem:[%s1393 + $0xb8] sm:$0xf]
        %v1524 = vld [vmem:[%s1393 + $0xbc] sm:$0xf]
        %v1525 = vld [vmem:[%s1393 + $0xc0] sm:$0xf]
        %v1526 = vld [vmem:[%s1393 + $0xc4] sm:$0xf]
        %v1527 = vld [vmem:[%s1393 + $0xc8] sm:$0xf]
        %v1528 = vld [vmem:[%s1393 + $0xcc] sm:$0xf]
        %v1529 = vld [vmem:[%s1393 + $0xd0] sm:$0xf]
        %v1530 = vld [vmem:[%s1393 + $0xd4] sm:$0xf]
        %v1531 = vld [vmem:[%s1393 + $0xd8] sm:$0xf]
        %v1532 = vld [vmem:[%s1393 + $0xdc] sm:$0xf]
        %v1533 = vld [vmem:[%s1393 + $0xe0] sm:$0xf]
        %v1534 = vld [vmem:[%s1393 + $0xe4] sm:$0xf]
        %v1535 = vld [vmem:[%s1393 + $0xe8] sm:$0xf]
        %v1536 = vld [vmem:[%s1393 + $0xec] sm:$0xf]
        %v1537 = vld [vmem:[%s1393 + $0xf0] sm:$0xf]
        %v1538 = vld [vmem:[%s1393 + $0xf4] sm:$0xf]
        %v1539 = vld [vmem:[%s1393 + $0xf8] sm:$0xf]
        %v1540 = vld [vmem:[%s1393 + $0xfc] sm:$0xf]
        %v1541 = vld [vmem:[%s1393 + $0x100] sm:$0xf]
        %v1542 = vld [vmem:[%s1393 + $0x104] sm:$0xf]
        %v1543 = vld [vmem:[%s1393 + $0x108] sm:$0xf]
        %v1544 = vld [vmem:[%s1393 + $0x10c] sm:$0xf]
        %v1545 = vld [vmem:[%s1393 + $0x110] sm:$0xf]
        %v1546 = vld [vmem:[%s1393 + $0x114] sm:$0xf]
        %v1547 = vld [vmem:[%s1393 + $0x118] sm:$0xf]
        %v1548 = vld [vmem:[%s1393 + $0x11c] sm:$0xf]
        %v1549 = vld [vmem:[%s1393 + $0x120] sm:$0xf]
        %v1550 = vld [vmem:[%s1393 + $0x124] sm:$0xf]
        %v1551 = vld [vmem:[%s1393 + $0x128] sm:$0xf]
        %v1552 = vld [vmem:[%s1393 + $0x12c] sm:$0xf]
        %v1553 = vld [vmem:[%s1393 + $0x130] sm:$0xf]
        %v1554 = vld [vmem:[%s1393 + $0x134] sm:$0xf]
        %v1555 = vld [vmem:[%s1393 + $0x138] sm:$0xf]
        %v1556 = vld [vmem:[%s1393 + $0x13c] sm:$0xf]
        %v1557 = vld [vmem:[%s1393 + $0x140] sm:$0xf]
        %v1558 = vld [vmem:[%s1393 + $0x144] sm:$0xf]
        %v1559 = vld [vmem:[%s1393 + $0x148] sm:$0xf]
        %v1560 = vld [vmem:[%s1393 + $0x14c] sm:$0xf]
        %v1561 = vld [vmem:[%s1393 + $0x150] sm:$0xf]
        %v1562 = vld [vmem:[%s1393 + $0x154] sm:$0xf]
        %v1563 = vld [vmem:[%s1393 + $0x158] sm:$0xf]
        %v1564 = vld [vmem:[%s1393 + $0x15c] sm:$0xf]
        %v1565 = vld [vmem:[%s1393 + $0x160] sm:$0xf]
        %v1566 = vld [vmem:[%s1393 + $0x164] sm:$0xf]
        %v1567 = vld [vmem:[%s1393 + $0x168] sm:$0xf]
        %v1568 = vld [vmem:[%s1393 + $0x16c] sm:$0xf]
        %v1569 = vld [vmem:[%s1393 + $0x170] sm:$0xf]
        %v1570 = vld [vmem:[%s1393 + $0x174] sm:$0xf]
        %v1571 = vld [vmem:[%s1393 + $0x178] sm:$0xf]
        %v1572 = vld [vmem:[%s1393 + $0x17c] sm:$0xf]
        %v1573 = vld [vmem:[%s1393 + $0x180] sm:$0xf]
        %v1574 = vld [vmem:[%s1393 + $0x184] sm:$0xf]
        %v1575 = vld [vmem:[%s1393 + $0x188] sm:$0xf]
        %v1576 = vld [vmem:[%s1393 + $0x18c] sm:$0xf]
        %v1577 = vld [vmem:[%s1393 + $0x190] sm:$0xf]
        %v1578 = vld [vmem:[%s1393 + $0x194] sm:$0xf]
        %v1579 = vld [vmem:[%s1393 + $0x198] sm:$0xf]
        %v1580 = vld [vmem:[%s1393 + $0x19c] sm:$0xf]
        %v1581 = vld [vmem:[%s1393 + $0x1a0] sm:$0xf]
        %v1582 = vld [vmem:[%s1393 + $0x1a4] sm:$0xf]
        %v1583 = vld [vmem:[%s1393 + $0x1a8] sm:$0xf]
        %v1584 = vld [vmem:[%s1393 + $0x1ac] sm:$0xf]
        %v1585 = vld [vmem:[%s1393 + $0x1b0] sm:$0xf]
        %v1586 = vld [vmem:[%s1393 + $0x1b4] sm:$0xf]
        %v1587 = vld [vmem:[%s1393 + $0x1b8] sm:$0xf]
        %v1588 = vld [vmem:[%s1393 + $0x1bc] sm:$0xf]
        %v1589 = vld [vmem:[%s1393 + $0x1c0] sm:$0xf]
        %v1590 = vld [vmem:[%s1393 + $0x1c4] sm:$0xf]
        %v1591 = vld [vmem:[%s1393 + $0x1c8] sm:$0xf]
        %v1592 = vld [vmem:[%s1393 + $0x1cc] sm:$0xf]
        %v1593 = vld [vmem:[%s1393 + $0x1d0] sm:$0xf]
        %v1594 = vld [vmem:[%s1393 + $0x1d4] sm:$0xf]
        %v1595 = vld [vmem:[%s1393 + $0x1d8] sm:$0xf]
        %v1596 = vld [vmem:[%s1393 + $0x1dc] sm:$0xf]
        %v1597 = vld [vmem:[%s1393 + $0x1e0] sm:$0xf]
        %v1598 = vld [vmem:[%s1393 + $0x1e4] sm:$0xf]
        %v1599 = vld [vmem:[%s1393 + $0x1e8] sm:$0xf]
        %v1600 = vld [vmem:[%s1393 + $0x1ec] sm:$0xf]
        %v1601 = vld [vmem:[%s1393 + $0x1f0] sm:$0xf]
        %v1602 = vld [vmem:[%s1393 + $0x1f4] sm:$0xf]
        %v1603 = vld [vmem:[%s1393 + $0x1f8] sm:$0xf]
        %v1604 = vld [vmem:[%s1393 + $0x1fc] sm:$0xf]
        %v1605 = vld [vmem:[%s1393 + $0x200] sm:$0xf]
        %v1606 = vld [vmem:[%s1393 + $0x204] sm:$0xf]
        %v1607 = vld [vmem:[%s1393 + $0x208] sm:$0xf]
        %v1608 = vld [vmem:[%s1393 + $0x20c] sm:$0xf]
        %v1609 = vld [vmem:[%s1393 + $0x210] sm:$0xf]
        %v1610 = vld [vmem:[%s1393 + $0x214] sm:$0xf]
        %v1611 = vld [vmem:[%s1393 + $0x218] sm:$0xf]
        %v1612 = vld [vmem:[%s1393 + $0x21c] sm:$0xf]
        %v1613 = vld [vmem:[%s1393 + $0x220] sm:$0xf]
        %v1614 = vld [vmem:[%s1393 + $0x224] sm:$0xf]
        %v1615 = vld [vmem:[%s1393 + $0x228] sm:$0xf]
        %v1616 = vld [vmem:[%s1393 + $0x22c] sm:$0xf]
        %v1617 = vld [vmem:[%s1393 + $0x230] sm:$0xf]
        %v1618 = vld [vmem:[%s1393 + $0x234] sm:$0xf]
        %v1619 = vld [vmem:[%s1393 + $0x238] sm:$0xf]
        %v1620 = vld [vmem:[%s1393 + $0x23c] sm:$0xf]
        %v1621 = vld [vmem:[%s1393 + $0x240] sm:$0xf]
        %v1622 = vld [vmem:[%s1393 + $0x244] sm:$0xf]
        %v1623 = vld [vmem:[%s1393 + $0x248] sm:$0xf]
        %v1624 = vld [vmem:[%s1393 + $0x24c] sm:$0xf]
        %v1625 = vld [vmem:[%s1393 + $0x250] sm:$0xf]
        %v1626 = vld [vmem:[%s1393 + $0x254] sm:$0xf]
        %v1627 = vld [vmem:[%s1393 + $0x258] sm:$0xf]
        %v1628 = vld [vmem:[%s1393 + $0x25c] sm:$0xf]
        %v1629 = vld [vmem:[%s1393 + $0x260] sm:$0xf]
        %v1630 = vld [vmem:[%s1393 + $0x264] sm:$0xf]
        %v1631 = vld [vmem:[%s1393 + $0x268] sm:$0xf]
        %v1632 = vld [vmem:[%s1393 + $0x26c] sm:$0xf]
        %v1633 = vld [vmem:[%s1393 + $0x270] sm:$0xf]
        %v1634 = vld [vmem:[%s1393 + $0x274] sm:$0xf]
        %v1635 = vld [vmem:[%s1393 + $0x278] sm:$0xf]
        %v1636 = vld [vmem:[%s1393 + $0x27c] sm:$0xf]
        %v1637 = vld [vmem:[%s1393 + $0x280] sm:$0xf]
        %v1638 = vld [vmem:[%s1393 + $0x284] sm:$0xf]
        %v1639 = vld [vmem:[%s1393 + $0x288] sm:$0xf]
        %v1640 = vld [vmem:[%s1393 + $0x28c] sm:$0xf]
        %v1641 = vld [vmem:[%s1393 + $0x290] sm:$0xf]
        %v1642 = vld [vmem:[%s1393 + $0x294] sm:$0xf]
        %v1643 = vld [vmem:[%s1393 + $0x298] sm:$0xf]
        %v1644 = vld [vmem:[%s1393 + $0x29c] sm:$0xf]
        %v1645 = vld [vmem:[%s1393 + $0x2a0] sm:$0xf]
        %v1646 = vld [vmem:[%s1393 + $0x2a4] sm:$0xf]
        %v1647 = vld [vmem:[%s1393 + $0x2a8] sm:$0xf]
        %v1648 = vld [vmem:[%s1393 + $0x2ac] sm:$0xf]
        %v1649 = vld [vmem:[%s1393 + $0x2b0] sm:$0xf]
        %v1650 = vld [vmem:[%s1393 + $0x2b4] sm:$0xf]
        %v1651 = vld [vmem:[%s1393 + $0x2b8] sm:$0xf]
        %v1652 = vld [vmem:[%s1393 + $0x2bc] sm:$0xf]
        %v1653 = vld [vmem:[%s1393 + $0x2c0] sm:$0xf]
        %v1654 = vld [vmem:[%s1393 + $0x2c4] sm:$0xf]
        %v1655 = vld [vmem:[%s1393 + $0x2c8] sm:$0xf]
        %v1656 = vld [vmem:[%s1393 + $0x2cc] sm:$0xf]
        %v1657 = vld [vmem:[%s1393 + $0x2d0] sm:$0xf]
        %v1658 = vld [vmem:[%s1393 + $0x2d4] sm:$0xf]
        %v1659 = vld [vmem:[%s1393 + $0x2d8] sm:$0xf]
        %v1660 = vld [vmem:[%s1393 + $0x2dc] sm:$0xf]
        %v1661 = vld [vmem:[%s1393 + $0x2e0] sm:$0xf]
        %v1662 = vld [vmem:[%s1393 + $0x2e4] sm:$0xf]
        %v1663 = vld [vmem:[%s1393 + $0x2e8] sm:$0xf]
        %v1664 = vld [vmem:[%s1393 + $0x2ec] sm:$0xf]
        %v1665 = vld [vmem:[%s1393 + $0x2f0] sm:$0xf]
        %v1666 = vld [vmem:[%s1393 + $0x2f4] sm:$0xf]
        %v1667 = vld [vmem:[%s1393 + $0x2f8] sm:$0xf]
        %v1668 = vld [vmem:[%s1393 + $0x2fc] sm:$0xf]
        %v1669 = vld [vmem:[%s1393 + $0x300] sm:$0xf]
        %v1670 = vld [vmem:[%s1393 + $0x304] sm:$0xf]
        %v1671 = vld [vmem:[%s1393 + $0x308] sm:$0xf]
        %v1672 = vld [vmem:[%s1393 + $0x30c] sm:$0xf]
        %v1673 = vld [vmem:[%s1393 + $0x310] sm:$0xf]
        %v1674 = vld [vmem:[%s1393 + $0x314] sm:$0xf]
        %v1675 = vld [vmem:[%s1393 + $0x318] sm:$0xf]
        %v1676 = vld [vmem:[%s1393 + $0x31c] sm:$0xf]
        %v1677 = vld [vmem:[%s1393 + $0x320] sm:$0xf]
        %v1678 = vld [vmem:[%s1393 + $0x324] sm:$0xf]
        %v1679 = vld [vmem:[%s1393 + $0x328] sm:$0xf]
        %v1680 = vld [vmem:[%s1393 + $0x32c] sm:$0xf]
        %v1681 = vld [vmem:[%s1393 + $0x330] sm:$0xf]
        %v1682 = vld [vmem:[%s1393 + $0x334] sm:$0xf]
        %v1683 = vld [vmem:[%s1393 + $0x338] sm:$0xf]
        %v1684 = vld [vmem:[%s1393 + $0x33c] sm:$0xf]
        %v1685 = vld [vmem:[%s1393 + $0x340] sm:$0xf]
        %v1686 = vld [vmem:[%s1393 + $0x344] sm:$0xf]
        %v1687 = vld [vmem:[%s1393 + $0x348] sm:$0xf]
        %v1688 = vld [vmem:[%s1393 + $0x34c] sm:$0xf]
        %v1689 = vld [vmem:[%s1393 + $0x350] sm:$0xf]
        %v1690 = vld [vmem:[%s1393 + $0x354] sm:$0xf]
        %v1691 = vld [vmem:[%s1393 + $0x358] sm:$0xf]
        %v1692 = vld [vmem:[%s1393 + $0x35c] sm:$0xf]
        %v1693 = vld [vmem:[%s1393 + $0x360] sm:$0xf]
        %v1694 = vld [vmem:[%s1393 + $0x364] sm:$0xf]
        %v1695 = vld [vmem:[%s1393 + $0x368] sm:$0xf]
        %v1696 = vld [vmem:[%s1393 + $0x36c] sm:$0xf]
        %v1697 = vld [vmem:[%s1393 + $0x370] sm:$0xf]
        %v1698 = vld [vmem:[%s1393 + $0x374] sm:$0xf]
        %v1699 = vld [vmem:[%s1393 + $0x378] sm:$0xf]
        %v1700 = vld [vmem:[%s1393 + $0x37c] sm:$0xf]
        %v1701 = vld [vmem:[%s1393 + $0x380] sm:$0xf]
        %v1702 = vld [vmem:[%s1393 + $0x384] sm:$0xf]
        %v1703 = vld [vmem:[%s1393 + $0x388] sm:$0xf]
        %v1704 = vld [vmem:[%s1393 + $0x38c] sm:$0xf]
        %v1705 = vld [vmem:[%s1393 + $0x390] sm:$0xf]
        %v1706 = vld [vmem:[%s1393 + $0x394] sm:$0xf]
        %v1707 = vld [vmem:[%s1393 + $0x398] sm:$0xf]
        %v1708 = vld [vmem:[%s1393 + $0x39c] sm:$0xf]
        %v1709 = vld [vmem:[%s1393 + $0x3a0] sm:$0xf]
        %v1710 = vld [vmem:[%s1393 + $0x3a4] sm:$0xf]
        %v1711 = vld [vmem:[%s1393 + $0x3a8] sm:$0xf]
        %v1712 = vld [vmem:[%s1393 + $0x3ac] sm:$0xf]
        %v1713 = vld [vmem:[%s1393 + $0x3b0] sm:$0xf]
        %v1714 = vld [vmem:[%s1393 + $0x3b4] sm:$0xf]
        %v1715 = vld [vmem:[%s1393 + $0x3b8] sm:$0xf]
        %v1716 = vld [vmem:[%s1393 + $0x3bc] sm:$0xf]
        %v1717 = vld [vmem:[%s1393 + $0x3c0] sm:$0xf]
        %v1718 = vld [vmem:[%s1393 + $0x3c4] sm:$0xf]
        %v1719 = vld [vmem:[%s1393 + $0x3c8] sm:$0xf]
        %v1720 = vld [vmem:[%s1393 + $0x3cc] sm:$0xf]
        %v1721 = vld [vmem:[%s1393 + $0x3d0] sm:$0xf]
        %v1722 = vld [vmem:[%s1393 + $0x3d4] sm:$0xf]
        %v1723 = vld [vmem:[%s1393 + $0x3d8] sm:$0xf]
        %v1724 = vld [vmem:[%s1393 + $0x3dc] sm:$0xf]
        %v1725 = vld [vmem:[%s1393 + $0x3e0] sm:$0xf]
        %v1726 = vld [vmem:[%s1393 + $0x3e4] sm:$0xf]
        %v1727 = vld [vmem:[%s1393 + $0x3e8] sm:$0xf]
        %v1728 = vld [vmem:[%s1393 + $0x3ec] sm:$0xf]
        %v1729 = vld [vmem:[%s1393 + $0x3f0] sm:$0xf]
        %v1730 = vld [vmem:[%s1393 + $0x3f4] sm:$0xf]
        %v1731 = vld [vmem:[%s1393 + $0x3f8] sm:$0xf]
        %v1732 = vld [vmem:[%s1393 + $0x3fc] sm:$0xf]
        %v1733 = vld [vmem:[%s1393 + $0x400] sm:$0xf]
        %v1734 = vld [vmem:[%s1393 + $0x404] sm:$0xf]
        %v1735 = vld [vmem:[%s1393 + $0x408] sm:$0xf]
        %v1736 = vld [vmem:[%s1393 + $0x40c] sm:$0xf]
        %v1737 = vld [vmem:[%s1393 + $0x410] sm:$0xf]
        %v1738 = vld [vmem:[%s1393 + $0x414] sm:$0xf]
        %v1739 = vld [vmem:[%s1393 + $0x418] sm:$0xf]
        %v1740 = vld [vmem:[%s1393 + $0x41c] sm:$0xf]
        %v1741 = vld [vmem:[%s1393 + $0x420] sm:$0xf]
        %v1742 = vld [vmem:[%s1393 + $0x424] sm:$0xf]
        %v1743 = vld [vmem:[%s1393 + $0x428] sm:$0xf]
        %v1744 = vld [vmem:[%s1393 + $0x42c] sm:$0xf]
        %v1745 = vld [vmem:[%s1393 + $0x430] sm:$0xf]
        %v1746 = vld [vmem:[%s1393 + $0x434] sm:$0xf]
        %v1747 = vld [vmem:[%s1393 + $0x438] sm:$0xf]
        %v1748 = vld [vmem:[%s1393 + $0x43c] sm:$0xf]
        %v1749 = vld [vmem:[%s1393 + $0x440] sm:$0xf]
        %v1750 = vld [vmem:[%s1393 + $0x444] sm:$0xf]
        %v1751 = vld [vmem:[%s1393 + $0x448] sm:$0xf]
        %v1752 = vld [vmem:[%s1393 + $0x44c] sm:$0xf]
        %v1753 = vld [vmem:[%s1393 + $0x450] sm:$0xf]
        %v1754 = vld [vmem:[%s1393 + $0x454] sm:$0xf]
        %v1755 = vld [vmem:[%s1393 + $0x458] sm:$0xf]
        %v1756 = vld [vmem:[%s1393 + $0x45c] sm:$0xf]
        %v1757 = vld [vmem:[%s1393 + $0x460] sm:$0xf]
        %v1758 = vld [vmem:[%s1393 + $0x464] sm:$0xf]
        %v1759 = vld [vmem:[%s1393 + $0x468] sm:$0xf]
        %v1760 = vld [vmem:[%s1393 + $0x46c] sm:$0xf]
        %v1761 = vld [vmem:[%s1393 + $0x470] sm:$0xf]
        %v1762 = vld [vmem:[%s1393 + $0x474] sm:$0xf]
        %v1763 = vld [vmem:[%s1393 + $0x478] sm:$0xf]
        %v1764 = vld [vmem:[%s1393 + $0x47c] sm:$0xf]
        %v1765 = vld [vmem:[%s1447] sm:$0x1]
        %v1767 = vlaneseq
        %v1768 = vshrl.u32 %v1767, 7
        %v1769 = vsub.s32 0, %v1768
        %v1770 = vrot.slane %v1765, %v1769
        %v1799 = vunpack.c.l.b16 %v1450
        %v1800 = vunpack.c.h.b16 %v1450
        %v1801 = vunpack.c.l.b16 %v1451
        %v1802 = vunpack.c.h.b16 %v1451
        %v1803 = vunpack.c.l.b16 %v1452
        %v1804 = vunpack.c.h.b16 %v1452
        %v1805 = vunpack.c.l.b16 %v1453
        %v1806 = vunpack.c.h.b16 %v1453
        %v1807 = vunpack.c.l.b16 %v1454
        %v1808 = vunpack.c.h.b16 %v1454
        %v1809 = vunpack.c.l.b16 %v1455
        %v1810 = vunpack.c.h.b16 %v1455
        %v1811 = vunpack.c.l.b16 %v1456
        %v1812 = vunpack.c.h.b16 %v1456
        %v1813 = vunpack.c.l.b16 %v1457
        %v1814 = vunpack.c.h.b16 %v1457
        %v1815 = vunpack.c.l.b16 %v1458
        %v1816 = vunpack.c.h.b16 %v1458
        %v1817 = vunpack.c.l.b16 %v1459
        %v1818 = vunpack.c.h.b16 %v1459
        %v1819 = vunpack.c.l.b16 %v1460
        %v1820 = vunpack.c.h.b16 %v1460
        %v1821 = vunpack.c.l.b16 %v1461
        %v1822 = vunpack.c.h.b16 %v1461
        %v1823 = vunpack.c.l.b16 %v1462
        %v1824 = vunpack.c.h.b16 %v1462
        %v1825 = vunpack.c.l.b16 %v1463
        %v1826 = vunpack.c.h.b16 %v1463
        %v1827 = vunpack.c.l.b16 %v1464
        %v1828 = vunpack.c.h.b16 %v1464
        %v1829 = vunpack.c.l.b16 %v1465
        %v1830 = vunpack.c.h.b16 %v1465
        %v1831 = vunpack.c.l.b16 %v1466
        %v1832 = vunpack.c.h.b16 %v1466
        %v1833 = vunpack.c.l.b16 %v1467
        %v1834 = vunpack.c.h.b16 %v1467
        %v1835 = vunpack.c.l.b16 %v1468
        %v1836 = vunpack.c.h.b16 %v1468
        %v1837 = vunpack.c.l.b16 %v1469
        %v1838 = vunpack.c.h.b16 %v1469
        %v1839 = vunpack.c.l.b16 %v1470
        %v1840 = vunpack.c.h.b16 %v1470
        %v1841 = vunpack.c.l.b16 %v1471
        %v1842 = vunpack.c.h.b16 %v1471
        %v1843 = vunpack.c.l.b16 %v1472
        %v1844 = vunpack.c.h.b16 %v1472
        %v1845 = vunpack.c.l.b16 %v1473
        %v1846 = vunpack.c.h.b16 %v1473
        %v1847 = vunpack.c.l.b16 %v1474
        %v1848 = vunpack.c.h.b16 %v1474
        %v1849 = vunpack.c.l.b16 %v1475
        %v1850 = vunpack.c.h.b16 %v1475
        %v1851 = vunpack.c.l.b16 %v1476
        %v1852 = vunpack.c.h.b16 %v1476
        %v1853 = vpack.c.b16 %v1817, %v1799
        %v1854 = vpack.c.b16 %v1818, %v1800
        %v1855 = vpack.c.b16 %v1819, %v1801
        %v1856 = vpack.c.b16 %v1820, %v1802
        %v1857 = vpack.c.b16 %v1821, %v1803
        %v1858 = vpack.c.b16 %v1822, %v1804
        %v1859 = vpack.c.b16 %v1823, %v1805
        %v1860 = vpack.c.b16 %v1824, %v1806
        %v1861 = vpack.c.b16 %v1825, %v1807
        %v1862 = vpack.c.b16 %v1826, %v1808
        %v1863 = vpack.c.b16 %v1827, %v1809
        %v1864 = vpack.c.b16 %v1828, %v1810
        %v1865 = vpack.c.b16 %v1829, %v1811
        %v1866 = vpack.c.b16 %v1830, %v1812
        %v1867 = vpack.c.b16 %v1831, %v1813
        %v1868 = vpack.c.b16 %v1832, %v1814
        %v1869 = vpack.c.b16 %v1833, %v1815
        %v1870 = vpack.c.b16 %v1834, %v1816
        %v1871 = vpack.c.b16 %v1835, %v1835
        %v1872 = vpack.c.b16 %v1836, %v1836
        %v1873 = vpack.c.b16 %v1837, %v1837
        %v1874 = vpack.c.b16 %v1838, %v1838
        %v1875 = vpack.c.b16 %v1839, %v1839
        %v1876 = vpack.c.b16 %v1840, %v1840
        %v1877 = vpack.c.b16 %v1841, %v1841
        %v1878 = vpack.c.b16 %v1842, %v1842
        %v1879 = vpack.c.b16 %v1843, %v1843
        %v1880 = vpack.c.b16 %v1844, %v1844
        %v1881 = vpack.c.b16 %v1845, %v1845
        %v1882 = vpack.c.b16 %v1846, %v1846
        %v1883 = vpack.c.b16 %v1847, %v1847
        %v1884 = vpack.c.b16 %v1848, %v1848
        %v1885 = vpack.c.b16 %v1849, %v1849
        %v1886 = vpack.c.b16 %v1850, %v1850
        %v1887 = vpack.c.b16 %v1851, %v1851
        %v1888 = vpack.c.b16 %v1852, %v1852
        %v2213 = vunpack.c.l.b16 %v1477
        %v2214 = vunpack.c.l.b16 %v1478
        %v2215 = vunpack.c.l.b16 %v1479
        %v2216 = vunpack.c.l.b16 %v1480
        %v2217 = vunpack.c.l.b16 %v1481
        %v2218 = vunpack.c.l.b16 %v1482
        %v2219 = vunpack.c.l.b16 %v1483
        %v2220 = vunpack.c.l.b16 %v1484
        %v2221 = vunpack.c.l.b16 %v1485
        %v2222 = vunpack.c.l.b16 %v1486
        %v2223 = vunpack.c.l.b16 %v1487
        %v2224 = vunpack.c.l.b16 %v1488
        %v2225 = vunpack.c.l.b16 %v1489
        %v2226 = vunpack.c.l.b16 %v1490
        %v2227 = vunpack.c.l.b16 %v1491
        %v2228 = vunpack.c.l.b16 %v1492
        %v2229 = vunpack.c.l.b16 %v1493
        %v2230 = vunpack.c.l.b16 %v1494
        %v2231 = vunpack.c.l.b16 %v1495
        %v2232 = vunpack.c.l.b16 %v1496
        %v2233 = vunpack.c.l.b16 %v1497
        %v2234 = vunpack.c.l.b16 %v1498
        %v2235 = vunpack.c.l.b16 %v1499
        %v2236 = vunpack.c.l.b16 %v1500
        %v2237 = vunpack.c.l.b16 %v1501
        %v2238 = vunpack.c.l.b16 %v1502
        %v2239 = vunpack.c.l.b16 %v1503
        %v2240 = vunpack.c.l.b16 %v1504
        %v2241 = vunpack.c.l.b16 %v1505
        %v2242 = vunpack.c.l.b16 %v1506
        %v2243 = vunpack.c.l.b16 %v1507
        %v2244 = vunpack.c.l.b16 %v1508
        %v2245 = vunpack.c.l.b16 %v1509
        %v2246 = vunpack.c.l.b16 %v1510
        %v2247 = vunpack.c.l.b16 %v1511
        %v2248 = vunpack.c.l.b16 %v1512
        %v2249 = vunpack.c.l.b16 %v1513
        %v2250 = vunpack.c.l.b16 %v1514
        %v2251 = vunpack.c.l.b16 %v1515
        %v2252 = vunpack.c.l.b16 %v1516
        %v2253 = vunpack.c.l.b16 %v1517
        %v2254 = vunpack.c.l.b16 %v1518
        %v2255 = vunpack.c.l.b16 %v1519
        %v2256 = vunpack.c.l.b16 %v1520
        %v2257 = vunpack.c.l.b16 %v1521
        %v2258 = vunpack.c.l.b16 %v1522
        %v2259 = vunpack.c.l.b16 %v1523
        %v2260 = vunpack.c.l.b16 %v1524
        %v2261 = vunpack.c.l.b16 %v1525
        %v2262 = vunpack.c.l.b16 %v1526
        %v2263 = vunpack.c.l.b16 %v1527
        %v2264 = vunpack.c.l.b16 %v1528
        %v2265 = vunpack.c.l.b16 %v1529
        %v2266 = vunpack.c.l.b16 %v1530
        %v2267 = vunpack.c.l.b16 %v1531
        %v2268 = vunpack.c.l.b16 %v1532
        %v2269 = vunpack.c.l.b16 %v1533
        %v2270 = vunpack.c.l.b16 %v1534
        %v2271 = vunpack.c.l.b16 %v1535
        %v2272 = vunpack.c.l.b16 %v1536
        %v2273 = vunpack.c.l.b16 %v1537
        %v2274 = vunpack.c.l.b16 %v1538
        %v2275 = vunpack.c.l.b16 %v1539
        %v2276 = vunpack.c.l.b16 %v1540
        %v2277 = vunpack.c.l.b16 %v1541
        %v2278 = vunpack.c.l.b16 %v1542
        %v2279 = vunpack.c.l.b16 %v1543
        %v2280 = vunpack.c.l.b16 %v1544
        %v2281 = vunpack.c.l.b16 %v1545
        %v2282 = vunpack.c.l.b16 %v1546
        %v2283 = vunpack.c.l.b16 %v1547
        %v2284 = vunpack.c.l.b16 %v1548
        %v2285 = vunpack.c.l.b16 %v1549
        %v2286 = vunpack.c.l.b16 %v1550
        %v2287 = vunpack.c.l.b16 %v1551
        %v2288 = vunpack.c.l.b16 %v1552
        %v2289 = vunpack.c.l.b16 %v1553
        %v2290 = vunpack.c.l.b16 %v1554
        %v2291 = vunpack.c.l.b16 %v1555
        %v2292 = vunpack.c.l.b16 %v1556
        %v2293 = vunpack.c.l.b16 %v1557
        %v2294 = vunpack.c.l.b16 %v1558
        %v2295 = vunpack.c.l.b16 %v1559
        %v2296 = vunpack.c.l.b16 %v1560
        %v2297 = vunpack.c.l.b16 %v1561
        %v2298 = vunpack.c.l.b16 %v1562
        %v2299 = vunpack.c.l.b16 %v1563
        %v2300 = vunpack.c.l.b16 %v1564
        %v2301 = vunpack.c.l.b16 %v1565
        %v2302 = vunpack.c.l.b16 %v1566
        %v2303 = vunpack.c.l.b16 %v1567
        %v2304 = vunpack.c.l.b16 %v1568
        %v2305 = vunpack.c.l.b16 %v1569
        %v2306 = vunpack.c.l.b16 %v1570
        %v2307 = vunpack.c.l.b16 %v1571
        %v2308 = vunpack.c.l.b16 %v1572
        %v2309 = vunpack.c.l.b16 %v1573
        %v2310 = vunpack.c.l.b16 %v1574
        %v2311 = vunpack.c.l.b16 %v1575
        %v2312 = vunpack.c.l.b16 %v1576
        %v2313 = vunpack.c.l.b16 %v1577
        %v2314 = vunpack.c.l.b16 %v1578
        %v2315 = vunpack.c.l.b16 %v1579
        %v2316 = vunpack.c.l.b16 %v1580
        %v2317 = vunpack.c.l.b16 %v1581
        %v2318 = vunpack.c.l.b16 %v1582
        %v2319 = vunpack.c.l.b16 %v1583
        %v2320 = vunpack.c.l.b16 %v1584
        %v2321 = vunpack.c.l.b16 %v1585
        %v2322 = vunpack.c.l.b16 %v1586
        %v2323 = vunpack.c.l.b16 %v1587
        %v2324 = vunpack.c.l.b16 %v1588
        %v2325 = vunpack.c.l.b16 %v1589
        %v2326 = vunpack.c.l.b16 %v1590
        %v2327 = vunpack.c.l.b16 %v1591
        %v2328 = vunpack.c.l.b16 %v1592
        %v2329 = vunpack.c.l.b16 %v1593
        %v2330 = vunpack.c.l.b16 %v1594
        %v2331 = vunpack.c.l.b16 %v1595
        %v2332 = vunpack.c.l.b16 %v1596
        %v2333 = vunpack.c.l.b16 %v1597
        %v2334 = vunpack.c.l.b16 %v1598
        %v2335 = vunpack.c.l.b16 %v1599
        %v2336 = vunpack.c.l.b16 %v1600
        %v2337 = vunpack.c.l.b16 %v1601
        %v2338 = vunpack.c.l.b16 %v1602
        %v2339 = vunpack.c.l.b16 %v1603
        %v2340 = vunpack.c.l.b16 %v1604
        %v2341 = vunpack.c.l.b16 %v1605
        %v2342 = vunpack.c.l.b16 %v1606
        %v2343 = vunpack.c.l.b16 %v1607
        %v2344 = vunpack.c.l.b16 %v1608
        %v2345 = vunpack.c.l.b16 %v1609
        %v2346 = vunpack.c.l.b16 %v1610
        %v2347 = vunpack.c.l.b16 %v1611
        %v2348 = vunpack.c.l.b16 %v1612
        %v2349 = vunpack.c.l.b16 %v1613
        %v2350 = vunpack.c.l.b16 %v1614
        %v2351 = vunpack.c.l.b16 %v1615
        %v2352 = vunpack.c.l.b16 %v1616
        %v2353 = vunpack.c.l.b16 %v1617
        %v2354 = vunpack.c.l.b16 %v1618
        %v2355 = vunpack.c.l.b16 %v1619
        %v2356 = vunpack.c.l.b16 %v1620
        %v2357 = vunpack.c.l.b16 %v1621
        %v2358 = vunpack.c.l.b16 %v1622
        %v2359 = vunpack.c.l.b16 %v1623
        %v2360 = vunpack.c.l.b16 %v1624
        %v2361 = vunpack.c.l.b16 %v1625
        %v2362 = vunpack.c.l.b16 %v1626
        %v2363 = vunpack.c.l.b16 %v1627
        %v2364 = vunpack.c.l.b16 %v1628
        %v2365 = vunpack.c.l.b16 %v1629
        %v2366 = vunpack.c.l.b16 %v1630
        %v2367 = vunpack.c.l.b16 %v1631
        %v2368 = vunpack.c.l.b16 %v1632
        %v2369 = vunpack.c.l.b16 %v1633
        %v2370 = vunpack.c.l.b16 %v1634
        %v2371 = vunpack.c.l.b16 %v1635
        %v2372 = vunpack.c.l.b16 %v1636
        %v2373 = vunpack.c.l.b16 %v1637
        %v2374 = vunpack.c.l.b16 %v1638
        %v2375 = vunpack.c.l.b16 %v1639
        %v2376 = vunpack.c.l.b16 %v1640
        %v2377 = vunpack.c.l.b16 %v1641
        %v2378 = vunpack.c.l.b16 %v1642
        %v2379 = vunpack.c.l.b16 %v1643
        %v2380 = vunpack.c.l.b16 %v1644
        %v2381 = vunpack.c.l.b16 %v1645
        %v2382 = vunpack.c.l.b16 %v1646
        %v2383 = vunpack.c.l.b16 %v1647
        %v2384 = vunpack.c.l.b16 %v1648
        %v2385 = vunpack.c.l.b16 %v1649
        %v2386 = vunpack.c.l.b16 %v1650
        %v2387 = vunpack.c.l.b16 %v1651
        %v2388 = vunpack.c.l.b16 %v1652
        %v2389 = vunpack.c.l.b16 %v1653
        %v2390 = vunpack.c.l.b16 %v1654
        %v2391 = vunpack.c.l.b16 %v1655
        %v2392 = vunpack.c.l.b16 %v1656
        %v2393 = vunpack.c.l.b16 %v1657
        %v2394 = vunpack.c.l.b16 %v1658
        %v2395 = vunpack.c.l.b16 %v1659
        %v2396 = vunpack.c.l.b16 %v1660
        %v2397 = vunpack.c.l.b16 %v1661
        %v2398 = vunpack.c.l.b16 %v1662
        %v2399 = vunpack.c.l.b16 %v1663
        %v2400 = vunpack.c.l.b16 %v1664
        %v2401 = vunpack.c.l.b16 %v1665
        %v2402 = vunpack.c.l.b16 %v1666
        %v2403 = vunpack.c.l.b16 %v1667
        %v2404 = vunpack.c.l.b16 %v1668
        %v2405 = vunpack.c.l.b16 %v1669
        %v2406 = vunpack.c.l.b16 %v1670
        %v2407 = vunpack.c.l.b16 %v1671
        %v2408 = vunpack.c.l.b16 %v1672
        %v2409 = vunpack.c.l.b16 %v1673
        %v2410 = vunpack.c.l.b16 %v1674
        %v2411 = vunpack.c.l.b16 %v1675
        %v2412 = vunpack.c.l.b16 %v1676
        %v2413 = vunpack.c.l.b16 %v1677
        %v2414 = vunpack.c.l.b16 %v1678
        %v2415 = vunpack.c.l.b16 %v1679
        %v2416 = vunpack.c.l.b16 %v1680
        %v2417 = vunpack.c.l.b16 %v1681
        %v2418 = vunpack.c.l.b16 %v1682
        %v2419 = vunpack.c.l.b16 %v1683
        %v2420 = vunpack.c.l.b16 %v1684
        %v2421 = vunpack.c.l.b16 %v1685
        %v2422 = vunpack.c.l.b16 %v1686
        %v2423 = vunpack.c.l.b16 %v1687
        %v2424 = vunpack.c.l.b16 %v1688
        %v2425 = vunpack.c.l.b16 %v1689
        %v2426 = vunpack.c.l.b16 %v1690
        %v2427 = vunpack.c.l.b16 %v1691
        %v2428 = vunpack.c.l.b16 %v1692
        %v2429 = vunpack.c.l.b16 %v1693
        %v2430 = vunpack.c.l.b16 %v1694
        %v2431 = vunpack.c.l.b16 %v1695
        %v2432 = vunpack.c.l.b16 %v1696
        %v2433 = vunpack.c.l.b16 %v1697
        %v2434 = vunpack.c.l.b16 %v1698
        %v2435 = vunpack.c.l.b16 %v1699
        %v2436 = vunpack.c.l.b16 %v1700
        %v2437 = vunpack.c.l.b16 %v1701
        %v2438 = vunpack.c.l.b16 %v1702
        %v2439 = vunpack.c.l.b16 %v1703
        %v2440 = vunpack.c.l.b16 %v1704
        %v2441 = vunpack.c.l.b16 %v1705
        %v2442 = vunpack.c.l.b16 %v1706
        %v2443 = vunpack.c.l.b16 %v1707
        %v2444 = vunpack.c.l.b16 %v1708
        %v2445 = vunpack.c.l.b16 %v1709
        %v2446 = vunpack.c.l.b16 %v1710
        %v2447 = vunpack.c.l.b16 %v1711
        %v2448 = vunpack.c.l.b16 %v1712
        %v2449 = vunpack.c.l.b16 %v1713
        %v2450 = vunpack.c.l.b16 %v1714
        %v2451 = vunpack.c.l.b16 %v1715
        %v2452 = vunpack.c.l.b16 %v1716
        %v2453 = vunpack.c.l.b16 %v1717
        %v2454 = vunpack.c.l.b16 %v1718
        %v2455 = vunpack.c.l.b16 %v1719
        %v2456 = vunpack.c.l.b16 %v1720
        %v2457 = vunpack.c.l.b16 %v1721
        %v2458 = vunpack.c.l.b16 %v1722
        %v2459 = vunpack.c.l.b16 %v1723
        %v2460 = vunpack.c.l.b16 %v1724
        %v2461 = vunpack.c.l.b16 %v1725
        %v2462 = vunpack.c.l.b16 %v1726
        %v2463 = vunpack.c.l.b16 %v1727
        %v2464 = vunpack.c.l.b16 %v1728
        %v2465 = vunpack.c.l.b16 %v1729
        %v2466 = vunpack.c.l.b16 %v1730
        %v2467 = vunpack.c.l.b16 %v1731
        %v2468 = vunpack.c.l.b16 %v1732
        %v2469 = vunpack.c.l.b16 %v1733
        %v2470 = vunpack.c.l.b16 %v1734
        %v2471 = vunpack.c.l.b16 %v1735
        %v2472 = vunpack.c.l.b16 %v1736
        %v2473 = vunpack.c.l.b16 %v1737
        %v2474 = vunpack.c.l.b16 %v1738
        %v2475 = vunpack.c.l.b16 %v1739
        %v2476 = vunpack.c.l.b16 %v1740
        %v2477 = vunpack.c.l.b16 %v1741
        %v2478 = vunpack.c.l.b16 %v1742
        %v2479 = vunpack.c.l.b16 %v1743
        %v2480 = vunpack.c.l.b16 %v1744
        %v2481 = vunpack.c.l.b16 %v1745
        %v2482 = vunpack.c.l.b16 %v1746
        %v2483 = vunpack.c.l.b16 %v1747
        %v2484 = vunpack.c.l.b16 %v1748
        %v2485 = vunpack.c.l.b16 %v1749
        %v2486 = vunpack.c.l.b16 %v1750
        %v2487 = vunpack.c.l.b16 %v1751
        %v2488 = vunpack.c.l.b16 %v1752
        %v2489 = vunpack.c.l.b16 %v1753
        %v2490 = vunpack.c.l.b16 %v1754
        %v2491 = vunpack.c.l.b16 %v1755
        %v2492 = vunpack.c.l.b16 %v1756
        %v2493 = vunpack.c.l.b16 %v1757
        %v2494 = vunpack.c.l.b16 %v1758
        %v2495 = vunpack.c.l.b16 %v1759
        %v2496 = vunpack.c.l.b16 %v1760
        %v2497 = vunpack.c.l.b16 %v1761
        %v2498 = vunpack.c.l.b16 %v1762
        %v2499 = vunpack.c.l.b16 %v1763
        %v2500 = vunpack.c.l.b16 %v1764
        %v2501 = vpack.c.b16 %v2214, %v2213
        %v2502 = vpack.c.b16 %v2216, %v2215
        %v2503 = vpack.c.b16 %v2218, %v2217
        %v2504 = vpack.c.b16 %v2220, %v2219
        %v2505 = vpack.c.b16 %v2222, %v2221
        %v2506 = vpack.c.b16 %v2224, %v2223
        %v2507 = vpack.c.b16 %v2226, %v2225
        %v2508 = vpack.c.b16 %v2228, %v2227
        %v2509 = vpack.c.b16 %v2230, %v2229
        %v2510 = vpack.c.b16 %v2232, %v2231
        %v2511 = vpack.c.b16 %v2234, %v2233
        %v2512 = vpack.c.b16 %v2236, %v2235
        %v2513 = vpack.c.b16 %v2238, %v2237
        %v2514 = vpack.c.b16 %v2240, %v2239
        %v2515 = vpack.c.b16 %v2242, %v2241
        %v2516 = vpack.c.b16 %v2244, %v2243
        %v2517 = vpack.c.b16 %v2246, %v2245
        %v2518 = vpack.c.b16 %v2248, %v2247
        %v2519 = vpack.c.b16 %v2250, %v2249
        %v2520 = vpack.c.b16 %v2252, %v2251
        %v2521 = vpack.c.b16 %v2254, %v2253
        %v2522 = vpack.c.b16 %v2256, %v2255
        %v2523 = vpack.c.b16 %v2258, %v2257
        %v2524 = vpack.c.b16 %v2260, %v2259
        %v2525 = vpack.c.b16 %v2262, %v2261
        %v2526 = vpack.c.b16 %v2264, %v2263
        %v2527 = vpack.c.b16 %v2266, %v2265
        %v2528 = vpack.c.b16 %v2268, %v2267
        %v2529 = vpack.c.b16 %v2270, %v2269
        %v2530 = vpack.c.b16 %v2272, %v2271
        %v2531 = vpack.c.b16 %v2274, %v2273
        %v2532 = vpack.c.b16 %v2276, %v2275
        %v2533 = vpack.c.b16 %v2278, %v2277
        %v2534 = vpack.c.b16 %v2280, %v2279
        %v2535 = vpack.c.b16 %v2282, %v2281
        %v2536 = vpack.c.b16 %v2284, %v2283
        %v2537 = vpack.c.b16 %v2286, %v2285
        %v2538 = vpack.c.b16 %v2288, %v2287
        %v2539 = vpack.c.b16 %v2290, %v2289
        %v2540 = vpack.c.b16 %v2292, %v2291
        %v2541 = vpack.c.b16 %v2294, %v2293
        %v2542 = vpack.c.b16 %v2296, %v2295
        %v2543 = vpack.c.b16 %v2298, %v2297
        %v2544 = vpack.c.b16 %v2300, %v2299
        %v2545 = vpack.c.b16 %v2302, %v2301
        %v2546 = vpack.c.b16 %v2304, %v2303
        %v2547 = vpack.c.b16 %v2306, %v2305
        %v2548 = vpack.c.b16 %v2308, %v2307
        %v2549 = vpack.c.b16 %v2310, %v2309
        %v2550 = vpack.c.b16 %v2312, %v2311
        %v2551 = vpack.c.b16 %v2314, %v2313
        %v2552 = vpack.c.b16 %v2316, %v2315
        %v2553 = vpack.c.b16 %v2318, %v2317
        %v2554 = vpack.c.b16 %v2320, %v2319
        %v2555 = vpack.c.b16 %v2322, %v2321
        %v2556 = vpack.c.b16 %v2324, %v2323
        %v2557 = vpack.c.b16 %v2326, %v2325
        %v2558 = vpack.c.b16 %v2328, %v2327
        %v2559 = vpack.c.b16 %v2330, %v2329
        %v2560 = vpack.c.b16 %v2332, %v2331
        %v2561 = vpack.c.b16 %v2334, %v2333
        %v2562 = vpack.c.b16 %v2336, %v2335
        %v2563 = vpack.c.b16 %v2338, %v2337
        %v2564 = vpack.c.b16 %v2340, %v2339
        %v2565 = vpack.c.b16 %v2342, %v2341
        %v2566 = vpack.c.b16 %v2344, %v2343
        %v2567 = vpack.c.b16 %v2346, %v2345
        %v2568 = vpack.c.b16 %v2348, %v2347
        %v2569 = vpack.c.b16 %v2350, %v2349
        %v2570 = vpack.c.b16 %v2352, %v2351
        %v2571 = vpack.c.b16 %v2354, %v2353
        %v2572 = vpack.c.b16 %v2356, %v2355
        %v2573 = vpack.c.b16 %v2358, %v2357
        %v2574 = vpack.c.b16 %v2360, %v2359
        %v2575 = vpack.c.b16 %v2362, %v2361
        %v2576 = vpack.c.b16 %v2364, %v2363
        %v2577 = vpack.c.b16 %v2366, %v2365
        %v2578 = vpack.c.b16 %v2368, %v2367
        %v2579 = vpack.c.b16 %v2370, %v2369
        %v2580 = vpack.c.b16 %v2372, %v2371
        %v2581 = vpack.c.b16 %v2374, %v2373
        %v2582 = vpack.c.b16 %v2376, %v2375
        %v2583 = vpack.c.b16 %v2378, %v2377
        %v2584 = vpack.c.b16 %v2380, %v2379
        %v2585 = vpack.c.b16 %v2382, %v2381
        %v2586 = vpack.c.b16 %v2384, %v2383
        %v2587 = vpack.c.b16 %v2386, %v2385
        %v2588 = vpack.c.b16 %v2388, %v2387
        %v2589 = vpack.c.b16 %v2390, %v2389
        %v2590 = vpack.c.b16 %v2392, %v2391
        %v2591 = vpack.c.b16 %v2394, %v2393
        %v2592 = vpack.c.b16 %v2396, %v2395
        %v2593 = vpack.c.b16 %v2398, %v2397
        %v2594 = vpack.c.b16 %v2400, %v2399
        %v2595 = vpack.c.b16 %v2402, %v2401
        %v2596 = vpack.c.b16 %v2404, %v2403
        %v2597 = vpack.c.b16 %v2406, %v2405
        %v2598 = vpack.c.b16 %v2408, %v2407
        %v2599 = vpack.c.b16 %v2410, %v2409
        %v2600 = vpack.c.b16 %v2412, %v2411
        %v2601 = vpack.c.b16 %v2414, %v2413
        %v2602 = vpack.c.b16 %v2416, %v2415
        %v2603 = vpack.c.b16 %v2418, %v2417
        %v2604 = vpack.c.b16 %v2420, %v2419
        %v2605 = vpack.c.b16 %v2422, %v2421
        %v2606 = vpack.c.b16 %v2424, %v2423
        %v2607 = vpack.c.b16 %v2426, %v2425
        %v2608 = vpack.c.b16 %v2428, %v2427
        %v2609 = vpack.c.b16 %v2430, %v2429
        %v2610 = vpack.c.b16 %v2432, %v2431
        %v2611 = vpack.c.b16 %v2434, %v2433
        %v2612 = vpack.c.b16 %v2436, %v2435
        %v2613 = vpack.c.b16 %v2438, %v2437
        %v2614 = vpack.c.b16 %v2440, %v2439
        %v2615 = vpack.c.b16 %v2442, %v2441
        %v2616 = vpack.c.b16 %v2444, %v2443
        %v2617 = vpack.c.b16 %v2446, %v2445
        %v2618 = vpack.c.b16 %v2448, %v2447
        %v2619 = vpack.c.b16 %v2450, %v2449
        %v2620 = vpack.c.b16 %v2452, %v2451
        %v2621 = vpack.c.b16 %v2454, %v2453
        %v2622 = vpack.c.b16 %v2456, %v2455
        %v2623 = vpack.c.b16 %v2458, %v2457
        %v2624 = vpack.c.b16 %v2460, %v2459
        %v2625 = vpack.c.b16 %v2462, %v2461
        %v2626 = vpack.c.b16 %v2464, %v2463
        %v2627 = vpack.c.b16 %v2466, %v2465
        %v2628 = vpack.c.b16 %v2468, %v2467
        %v2629 = vpack.c.b16 %v2470, %v2469
        %v2630 = vpack.c.b16 %v2472, %v2471
        %v2631 = vpack.c.b16 %v2474, %v2473
        %v2632 = vpack.c.b16 %v2476, %v2475
        %v2633 = vpack.c.b16 %v2478, %v2477
        %v2634 = vpack.c.b16 %v2480, %v2479
        %v2635 = vpack.c.b16 %v2482, %v2481
        %v2636 = vpack.c.b16 %v2484, %v2483
        %v2637 = vpack.c.b16 %v2486, %v2485
        %v2638 = vpack.c.b16 %v2488, %v2487
        %v2639 = vpack.c.b16 %v2490, %v2489
        %v2640 = vpack.c.b16 %v2492, %v2491
        %v2641 = vpack.c.b16 %v2494, %v2493
        %v2642 = vpack.c.b16 %v2496, %v2495
        %v2643 = vpack.c.b16 %v2498, %v2497
        %v2644 = vpack.c.b16 %v2500, %v2499
        %2789 = vmatprep.subr.bf16.mxu0 0
        %2790 = vmatpush1.bf16.msra.mxu0 %v2501
        %2791 = vmatprep.subr.bf16.mxu0 0
        %2792 = vmatpush1.bf16.msra.mxu0 %v2502
        %2793 = vmatprep.subr.bf16.mxu0 0
        %2794 = vmatpush1.bf16.msra.mxu0 %v2503
        %2795 = vmatprep.subr.bf16.mxu0 0
        %2796 = vmatpush1.bf16.msra.mxu0 %v2504
        %2797 = vmatprep.subr.bf16.mxu0 0
        %2798 = vmatpush1.bf16.msra.mxu0 %v2505
        %2799 = vmatprep.subr.bf16.mxu0 0
        %2800 = vmatpush1.bf16.msra.mxu0 %v2506
        %2801 = vmatprep.subr.bf16.mxu0 0
        %2802 = vmatpush1.bf16.msra.mxu0 %v2507
        %2803 = vmatprep.subr.bf16.mxu0 0
        %2804 = vmatpush1.bf16.msra.mxu0 %v2508
        %2805 = vmatprep.subr.bf16.mxu0 0
        %2806 = vmatpush1.bf16.msra.mxu0 %v2509
        %2807 = vmatprep.subr.bf16.mxu0 0
        %2808 = vmatpush1.bf16.msra.mxu0 %v2510
        %2809 = vmatprep.subr.bf16.mxu0 0
        %2810 = vmatpush1.bf16.msra.mxu0 %v2511
        %2811 = vmatprep.subr.bf16.mxu0 0
        %2812 = vmatpush1.bf16.msra.mxu0 %v2512
        %2813 = vmatprep.subr.bf16.mxu0 0
        %2814 = vmatpush1.bf16.msra.mxu0 %v2513
        %2815 = vmatprep.subr.bf16.mxu0 0
        %2816 = vmatpush1.bf16.msra.mxu0 %v2514
        %2817 = vmatprep.subr.bf16.mxu0 0
        %2818 = vmatpush1.bf16.msra.mxu0 %v2515
        %2819 = vmatprep.subr.bf16.mxu0 0
        %2820 = vmatpush1.bf16.msra.mxu0 %v2516
        %2821 = vmatprep.mubr.bf16.mxu0 %v1854
        %2822 = vmatmul.mubr.bf16.gmra.mrb[0].mxu0 %v1853
        %v2823 = vpop.f32.mrb[0].mxu0
        %v2824 = vadd.f32 %v1770, %v2823
        %v2825 = vpop.f32.mrb[0].mxu0
        %v2826 = vpop.f32.mrb[0].mxu0
        %v2827 = vadd.f32 %v1770, %v2826
        %v2828 = vpop.f32.mrb[0].mxu0
        %2829 = vmatprep.mubr.bf16.mxu0 %v1872
        %2830 = vmatmul.mubr.bf16.gmra.mrb[0].mxu0 %v1871
        %v2831 = vpop.f32.mrb[0].mxu0
        %v2832 = vadd.f32 %v1770, %v2831
        %v2833 = vpop.f32.mrb[0].mxu0
        %v2834 = vpop.f32.mrb[0].mxu0
        %v2835 = vpop.f32.mrb[0].mxu0
        %2836 = vdwg.mxu0
        %2837 = vmatprep.subr.bf16.mxu0 0
        %2838 = vmatpush1.bf16.msra.mxu0 %v2517
        %2839 = vmatprep.subr.bf16.mxu0 0
        %2840 = vmatpush1.bf16.msra.mxu0 %v2518
        %2841 = vmatprep.subr.bf16.mxu0 0
        %2842 = vmatpush1.bf16.msra.mxu0 %v2519
        %2843 = vmatprep.subr.bf16.mxu0 0
        %2844 = vmatpush1.bf16.msra.mxu0 %v2520
        %2845 = vmatprep.subr.bf16.mxu0 0
        %2846 = vmatpush1.bf16.msra.mxu0 %v2521
        %2847 = vmatprep.subr.bf16.mxu0 0
        %2848 = vmatpush1.bf16.msra.mxu0 %v2522
        %2849 = vmatprep.subr.bf16.mxu0 0
        %2850 = vmatpush1.bf16.msra.mxu0 %v2523
        %2851 = vmatprep.subr.bf16.mxu0 0
        %2852 = vmatpush1.bf16.msra.mxu0 %v2524
        %2853 = vmatprep.subr.bf16.mxu0 0
        %2854 = vmatpush1.bf16.msra.mxu0 %v2525
        %2855 = vmatprep.subr.bf16.mxu0 0
        %2856 = vmatpush1.bf16.msra.mxu0 %v2526
        %2857 = vmatprep.subr.bf16.mxu0 0
        %2858 = vmatpush1.bf16.msra.mxu0 %v2527
        %2859 = vmatprep.subr.bf16.mxu0 0
        %2860 = vmatpush1.bf16.msra.mxu0 %v2528
        %2861 = vmatprep.subr.bf16.mxu0 0
        %2862 = vmatpush1.bf16.msra.mxu0 %v2529
        %2863 = vmatprep.subr.bf16.mxu0 0
        %2864 = vmatpush1.bf16.msra.mxu0 %v2530
        %2865 = vmatprep.subr.bf16.mxu0 0
        %2866 = vmatpush1.bf16.msra.mxu0 %v2531
        %2867 = vmatprep.subr.bf16.mxu0 0
        %2868 = vmatpush1.bf16.msra.mxu0 %v2532
        %2869 = vmatprep.mubr.bf16.mxu0 %v1856
        %2870 = vmatmul.mubr.bf16.gmra.mrb[0].mxu0 %v1855
        %v2871 = vpop.f32.mrb[0].mxu0
        %v2872 = vadd.f32 %v2824, %v2871
        %v2873 = vpop.f32.mrb[0].mxu0
        %v2874 = vpop.f32.mrb[0].mxu0
        %v2875 = vadd.f32 %v2827, %v2874
        %v2876 = vpop.f32.mrb[0].mxu0
        %2877 = vmatprep.mubr.bf16.mxu0 %v1874
        %2878 = vmatmul.mubr.bf16.gmra.mrb[0].mxu0 %v1873
        %v2879 = vpop.f32.mrb[0].mxu0
        %v2880 = vadd.f32 %v2832, %v2879
        %v2881 = vpop.f32.mrb[0].mxu0
        %v2882 = vpop.f32.mrb[0].mxu0
        %v2883 = vpop.f32.mrb[0].mxu0
        %2884 = vdwg.mxu0
        %2885 = vmatprep.subr.bf16.mxu0 0
        %2886 = vmatpush1.bf16.msra.mxu0 %v2533
        %2887 = vmatprep.subr.bf16.mxu0 0
        %2888 = vmatpush1.bf16.msra.mxu0 %v2534
        %2889 = vmatprep.subr.bf16.mxu0 0
        %2890 = vmatpush1.bf16.msra.mxu0 %v2535
        %2891 = vmatprep.subr.bf16.mxu0 0
        %2892 = vmatpush1.bf16.msra.mxu0 %v2536
        %2893 = vmatprep.subr.bf16.mxu0 0
        %2894 = vmatpush1.bf16.msra.mxu0 %v2537
        %2895 = vmatprep.subr.bf16.mxu0 0
        %2896 = vmatpush1.bf16.msra.mxu0 %v2538
        %2897 = vmatprep.subr.bf16.mxu0 0
        %2898 = vmatpush1.bf16.msra.mxu0 %v2539
        %2899 = vmatprep.subr.bf16.mxu0 0
        %2900 = vmatpush1.bf16.msra.mxu0 %v2540
        %2901 = vmatprep.subr.bf16.mxu0 0
        %2902 = vmatpush1.bf16.msra.mxu0 %v2541
        %2903 = vmatprep.subr.bf16.mxu0 0
        %2904 = vmatpush1.bf16.msra.mxu0 %v2542
        %2905 = vmatprep.subr.bf16.mxu0 0
        %2906 = vmatpush1.bf16.msra.mxu0 %v2543
        %2907 = vmatprep.subr.bf16.mxu0 0
        %2908 = vmatpush1.bf16.msra.mxu0 %v2544
        %2909 = vmatprep.subr.bf16.mxu0 0
        %2910 = vmatpush1.bf16.msra.mxu0 %v2545
        %2911 = vmatprep.subr.bf16.mxu0 0
        %2912 = vmatpush1.bf16.msra.mxu0 %v2546
        %2913 = vmatprep.subr.bf16.mxu0 0
        %2914 = vmatpush1.bf16.msra.mxu0 %v2547
        %2915 = vmatprep.subr.bf16.mxu0 0
        %2916 = vmatpush1.bf16.msra.mxu0 %v2548
        %2917 = vmatprep.mubr.bf16.mxu0 %v1858
        %2918 = vmatmul.mubr.bf16.gmra.mrb[0].mxu0 %v1857
        %v2919 = vpop.f32.mrb[0].mxu0
        %v2920 = vadd.f32 %v2872, %v2919
        %v2921 = vpop.f32.mrb[0].mxu0
        %v2922 = vpop.f32.mrb[0].mxu0
        %v2923 = vadd.f32 %v2875, %v2922
        %v2924 = vpop.f32.mrb[0].mxu0
        %2925 = vmatprep.mubr.bf16.mxu0 %v1876
        %2926 = vmatmul.mubr.bf16.gmra.mrb[0].mxu0 %v1875
        %v2927 = vpop.f32.mrb[0].mxu0
        %v2928 = vadd.f32 %v2880, %v2927
        %v2929 = vpop.f32.mrb[0].mxu0
        %v2930 = vpop.f32.mrb[0].mxu0
        %v2931 = vpop.f32.mrb[0].mxu0
        %2932 = vdwg.mxu0
        %2933 = vmatprep.subr.bf16.mxu0 0
        %2934 = vmatpush1.bf16.msra.mxu0 %v2549
        %2935 = vmatprep.subr.bf16.mxu0 0
        %2936 = vmatpush1.bf16.msra.mxu0 %v2550
        %2937 = vmatprep.subr.bf16.mxu0 0
        %2938 = vmatpush1.bf16.msra.mxu0 %v2551
        %2939 = vmatprep.subr.bf16.mxu0 0
        %2940 = vmatpush1.bf16.msra.mxu0 %v2552
        %2941 = vmatprep.subr.bf16.mxu0 0
        %2942 = vmatpush1.bf16.msra.mxu0 %v2553
        %2943 = vmatprep.subr.bf16.mxu0 0
        %2944 = vmatpush1.bf16.msra.mxu0 %v2554
        %2945 = vmatprep.subr.bf16.mxu0 0
        %2946 = vmatpush1.bf16.msra.mxu0 %v2555
        %2947 = vmatprep.subr.bf16.mxu0 0
        %2948 = vmatpush1.bf16.msra.mxu0 %v2556
        %2949 = vmatprep.subr.bf16.mxu0 0
        %2950 = vmatpush1.bf16.msra.mxu0 %v2557
        %2951 = vmatprep.subr.bf16.mxu0 0
        %2952 = vmatpush1.bf16.msra.mxu0 %v2558
        %2953 = vmatprep.subr.bf16.mxu0 0
        %2954 = vmatpush1.bf16.msra.mxu0 %v2559
        %2955 = vmatprep.subr.bf16.mxu0 0
        %2956 = vmatpush1.bf16.msra.mxu0 %v2560
        %2957 = vmatprep.subr.bf16.mxu0 0
        %2958 = vmatpush1.bf16.msra.mxu0 %v2561
        %2959 = vmatprep.subr.bf16.mxu0 0
        %2960 = vmatpush1.bf16.msra.mxu0 %v2562
        %2961 = vmatprep.subr.bf16.mxu0 0
        %2962 = vmatpush1.bf16.msra.mxu0 %v2563
        %2963 = vmatprep.subr.bf16.mxu0 0
        %2964 = vmatpush1.bf16.msra.mxu0 %v2564
        %2965 = vmatprep.mubr.bf16.mxu0 %v1860
        %2966 = vmatmul.mubr.bf16.gmra.mrb[0].mxu0 %v1859
        %v2967 = vpop.f32.mrb[0].mxu0
        %v2968 = vadd.f32 %v2920, %v2967
        %v2969 = vpop.f32.mrb[0].mxu0
        %v2970 = vpop.f32.mrb[0].mxu0
        %v2971 = vadd.f32 %v2923, %v2970
        %v2972 = vpop.f32.mrb[0].mxu0
        %2973 = vmatprep.mubr.bf16.mxu0 %v1878
        %2974 = vmatmul.mubr.bf16.gmra.mrb[0].mxu0 %v1877
        %v2975 = vpop.f32.mrb[0].mxu0
        %v2976 = vadd.f32 %v2928, %v2975
        %v2977 = vpop.f32.mrb[0].mxu0
        %v2978 = vpop.f32.mrb[0].mxu0
        %v2979 = vpop.f32.mrb[0].mxu0
        %2980 = vdwg.mxu0
        %2981 = vmatprep.subr.bf16.mxu0 0
        %2982 = vmatpush1.bf16.msra.mxu0 %v2565
        %2983 = vmatprep.subr.bf16.mxu0 0
        %2984 = vmatpush1.bf16.msra.mxu0 %v2566
        %2985 = vmatprep.subr.bf16.mxu0 0
        %2986 = vmatpush1.bf16.msra.mxu0 %v2567
        %2987 = vmatprep.subr.bf16.mxu0 0
        %2988 = vmatpush1.bf16.msra.mxu0 %v2568
        %2989 = vmatprep.subr.bf16.mxu0 0
        %2990 = vmatpush1.bf16.msra.mxu0 %v2569
        %2991 = vmatprep.subr.bf16.mxu0 0
        %2992 = vmatpush1.bf16.msra.mxu0 %v2570
        %2993 = vmatprep.subr.bf16.mxu0 0
        %2994 = vmatpush1.bf16.msra.mxu0 %v2571
        %2995 = vmatprep.subr.bf16.mxu0 0
        %2996 = vmatpush1.bf16.msra.mxu0 %v2572
        %2997 = vmatprep.subr.bf16.mxu0 0
        %2998 = vmatpush1.bf16.msra.mxu0 %v2573
        %2999 = vmatprep.subr.bf16.mxu0 0
        %3000 = vmatpush1.bf16.msra.mxu0 %v2574
        %3001 = vmatprep.subr.bf16.mxu0 0
        %3002 = vmatpush1.bf16.msra.mxu0 %v2575
        %3003 = vmatprep.subr.bf16.mxu0 0
        %3004 = vmatpush1.bf16.msra.mxu0 %v2576
        %3005 = vmatprep.subr.bf16.mxu0 0
        %3006 = vmatpush1.bf16.msra.mxu0 %v2577
        %3007 = vmatprep.subr.bf16.mxu0 0
        %3008 = vmatpush1.bf16.msra.mxu0 %v2578
        %3009 = vmatprep.subr.bf16.mxu0 0
        %3010 = vmatpush1.bf16.msra.mxu0 %v2579
        %3011 = vmatprep.subr.bf16.mxu0 0
        %3012 = vmatpush1.bf16.msra.mxu0 %v2580
        %3013 = vmatprep.mubr.bf16.mxu0 %v1862
        %3014 = vmatmul.mubr.bf16.gmra.mrb[0].mxu0 %v1861
        %v3015 = vpop.f32.mrb[0].mxu0
        %v3016 = vadd.f32 %v2968, %v3015
        %v3017 = vpop.f32.mrb[0].mxu0
        %v3018 = vpop.f32.mrb[0].mxu0
        %v3019 = vadd.f32 %v2971, %v3018
        %v3020 = vpop.f32.mrb[0].mxu0
        %3021 = vmatprep.mubr.bf16.mxu0 %v1880
        %3022 = vmatmul.mubr.bf16.gmra.mrb[0].mxu0 %v1879
        %v3023 = vpop.f32.mrb[0].mxu0
        %v3024 = vadd.f32 %v2976, %v3023
        %v3025 = vpop.f32.mrb[0].mxu0
        %v3026 = vpop.f32.mrb[0].mxu0
        %v3027 = vpop.f32.mrb[0].mxu0
        %3028 = vdwg.mxu0
        %3029 = vmatprep.subr.bf16.mxu0 0
        %3030 = vmatpush1.bf16.msra.mxu0 %v2581
        %3031 = vmatprep.subr.bf16.mxu0 0
        %3032 = vmatpush1.bf16.msra.mxu0 %v2582
        %3033 = vmatprep.subr.bf16.mxu0 0
        %3034 = vmatpush1.bf16.msra.mxu0 %v2583
        %3035 = vmatprep.subr.bf16.mxu0 0
        %3036 = vmatpush1.bf16.msra.mxu0 %v2584
        %3037 = vmatprep.subr.bf16.mxu0 0
        %3038 = vmatpush1.bf16.msra.mxu0 %v2585
        %3039 = vmatprep.subr.bf16.mxu0 0
        %3040 = vmatpush1.bf16.msra.mxu0 %v2586
        %3041 = vmatprep.subr.bf16.mxu0 0
        %3042 = vmatpush1.bf16.msra.mxu0 %v2587
        %3043 = vmatprep.subr.bf16.mxu0 0
        %3044 = vmatpush1.bf16.msra.mxu0 %v2588
        %3045 = vmatprep.subr.bf16.mxu0 0
        %3046 = vmatpush1.bf16.msra.mxu0 %v2589
        %3047 = vmatprep.subr.bf16.mxu0 0
        %3048 = vmatpush1.bf16.msra.mxu0 %v2590
        %3049 = vmatprep.subr.bf16.mxu0 0
        %3050 = vmatpush1.bf16.msra.mxu0 %v2591
        %3051 = vmatprep.subr.bf16.mxu0 0
        %3052 = vmatpush1.bf16.msra.mxu0 %v2592
        %3053 = vmatprep.subr.bf16.mxu0 0
        %3054 = vmatpush1.bf16.msra.mxu0 %v2593
        %3055 = vmatprep.subr.bf16.mxu0 0
        %3056 = vmatpush1.bf16.msra.mxu0 %v2594
        %3057 = vmatprep.subr.bf16.mxu0 0
        %3058 = vmatpush1.bf16.msra.mxu0 %v2595
        %3059 = vmatprep.subr.bf16.mxu0 0
        %3060 = vmatpush1.bf16.msra.mxu0 %v2596
        %3061 = vmatprep.mubr.bf16.mxu0 %v1864
        %3062 = vmatmul.mubr.bf16.gmra.mrb[0].mxu0 %v1863
        %v3063 = vpop.f32.mrb[0].mxu0
        %v3064 = vadd.f32 %v3016, %v3063
        %v3065 = vpop.f32.mrb[0].mxu0
        %v3066 = vpop.f32.mrb[0].mxu0
        %v3067 = vadd.f32 %v3019, %v3066
        %v3068 = vpop.f32.mrb[0].mxu0
        %3069 = vmatprep.mubr.bf16.mxu0 %v1882
        %3070 = vmatmul.mubr.bf16.gmra.mrb[0].mxu0 %v1881
        %v3071 = vpop.f32.mrb[0].mxu0
        %v3072 = vadd.f32 %v3024, %v3071
        %v3073 = vpop.f32.mrb[0].mxu0
        %v3074 = vpop.f32.mrb[0].mxu0
        %v3075 = vpop.f32.mrb[0].mxu0
        %3076 = vdwg.mxu0
        %3077 = vmatprep.subr.bf16.mxu0 0
        %3078 = vmatpush1.bf16.msra.mxu0 %v2597
        %3079 = vmatprep.subr.bf16.mxu0 0
        %3080 = vmatpush1.bf16.msra.mxu0 %v2598
        %3081 = vmatprep.subr.bf16.mxu0 0
        %3082 = vmatpush1.bf16.msra.mxu0 %v2599
        %3083 = vmatprep.subr.bf16.mxu0 0
        %3084 = vmatpush1.bf16.msra.mxu0 %v2600
        %3085 = vmatprep.subr.bf16.mxu0 0
        %3086 = vmatpush1.bf16.msra.mxu0 %v2601
        %3087 = vmatprep.subr.bf16.mxu0 0
        %3088 = vmatpush1.bf16.msra.mxu0 %v2602
        %3089 = vmatprep.subr.bf16.mxu0 0
        %3090 = vmatpush1.bf16.msra.mxu0 %v2603
        %3091 = vmatprep.subr.bf16.mxu0 0
        %3092 = vmatpush1.bf16.msra.mxu0 %v2604
        %3093 = vmatprep.subr.bf16.mxu0 0
        %3094 = vmatpush1.bf16.msra.mxu0 %v2605
        %3095 = vmatprep.subr.bf16.mxu0 0
        %3096 = vmatpush1.bf16.msra.mxu0 %v2606
        %3097 = vmatprep.subr.bf16.mxu0 0
        %3098 = vmatpush1.bf16.msra.mxu0 %v2607
        %3099 = vmatprep.subr.bf16.mxu0 0
        %3100 = vmatpush1.bf16.msra.mxu0 %v2608
        %3101 = vmatprep.subr.bf16.mxu0 0
        %3102 = vmatpush1.bf16.msra.mxu0 %v2609
        %3103 = vmatprep.subr.bf16.mxu0 0
        %3104 = vmatpush1.bf16.msra.mxu0 %v2610
        %3105 = vmatprep.subr.bf16.mxu0 0
        %3106 = vmatpush1.bf16.msra.mxu0 %v2611
        %3107 = vmatprep.subr.bf16.mxu0 0
        %3108 = vmatpush1.bf16.msra.mxu0 %v2612
        %3109 = vmatprep.mubr.bf16.mxu0 %v1866
        %3110 = vmatmul.mubr.bf16.gmra.mrb[0].mxu0 %v1865
        %v3111 = vpop.f32.mrb[0].mxu0
        %v3112 = vadd.f32 %v3064, %v3111
        %v3113 = vpop.f32.mrb[0].mxu0
        %v3114 = vpop.f32.mrb[0].mxu0
        %v3115 = vadd.f32 %v3067, %v3114
        %v3116 = vpop.f32.mrb[0].mxu0
        %3117 = vmatprep.mubr.bf16.mxu0 %v1884
        %3118 = vmatmul.mubr.bf16.gmra.mrb[0].mxu0 %v1883
        %v3119 = vpop.f32.mrb[0].mxu0
        %v3120 = vadd.f32 %v3072, %v3119
        %v3121 = vpop.f32.mrb[0].mxu0
        %v3122 = vpop.f32.mrb[0].mxu0
        %v3123 = vpop.f32.mrb[0].mxu0
        %3124 = vdwg.mxu0
        %3125 = vmatprep.subr.bf16.mxu0 0
        %3126 = vmatpush1.bf16.msra.mxu0 %v2613
        %3127 = vmatprep.subr.bf16.mxu0 0
        %3128 = vmatpush1.bf16.msra.mxu0 %v2614
        %3129 = vmatprep.subr.bf16.mxu0 0
        %3130 = vmatpush1.bf16.msra.mxu0 %v2615
        %3131 = vmatprep.subr.bf16.mxu0 0
        %3132 = vmatpush1.bf16.msra.mxu0 %v2616
        %3133 = vmatprep.subr.bf16.mxu0 0
        %3134 = vmatpush1.bf16.msra.mxu0 %v2617
        %3135 = vmatprep.subr.bf16.mxu0 0
        %3136 = vmatpush1.bf16.msra.mxu0 %v2618
        %3137 = vmatprep.subr.bf16.mxu0 0
        %3138 = vmatpush1.bf16.msra.mxu0 %v2619
        %3139 = vmatprep.subr.bf16.mxu0 0
        %3140 = vmatpush1.bf16.msra.mxu0 %v2620
        %3141 = vmatprep.subr.bf16.mxu0 0
        %3142 = vmatpush1.bf16.msra.mxu0 %v2621
        %3143 = vmatprep.subr.bf16.mxu0 0
        %3144 = vmatpush1.bf16.msra.mxu0 %v2622
        %3145 = vmatprep.subr.bf16.mxu0 0
        %3146 = vmatpush1.bf16.msra.mxu0 %v2623
        %3147 = vmatprep.subr.bf16.mxu0 0
        %3148 = vmatpush1.bf16.msra.mxu0 %v2624
        %3149 = vmatprep.subr.bf16.mxu0 0
        %3150 = vmatpush1.bf16.msra.mxu0 %v2625
        %3151 = vmatprep.subr.bf16.mxu0 0
        %3152 = vmatpush1.bf16.msra.mxu0 %v2626
        %3153 = vmatprep.subr.bf16.mxu0 0
        %3154 = vmatpush1.bf16.msra.mxu0 %v2627
        %3155 = vmatprep.subr.bf16.mxu0 0
        %3156 = vmatpush1.bf16.msra.mxu0 %v2628
        %3157 = vmatprep.mubr.bf16.mxu0 %v1868
        %3158 = vmatmul.mubr.bf16.gmra.mrb[0].mxu0 %v1867
        %v3159 = vpop.f32.mrb[0].mxu0
        %v3160 = vadd.f32 %v3112, %v3159
        %v3161 = vpop.f32.mrb[0].mxu0
        %v3162 = vpop.f32.mrb[0].mxu0
        %v3163 = vadd.f32 %v3115, %v3162
        %v3164 = vpop.f32.mrb[0].mxu0
        %3165 = vmatprep.mubr.bf16.mxu0 %v1886
        %3166 = vmatmul.mubr.bf16.gmra.mrb[0].mxu0 %v1885
        %v3167 = vpop.f32.mrb[0].mxu0
        %v3168 = vadd.f32 %v3120, %v3167
        %v3169 = vpop.f32.mrb[0].mxu0
        %v3170 = vpop.f32.mrb[0].mxu0
        %v3171 = vpop.f32.mrb[0].mxu0
        %3172 = vdwg.mxu0
        %3173 = vmatprep.subr.bf16.mxu0 0
        %3174 = vmatpush1.bf16.msra.mxu0 %v2629
        %3175 = vmatprep.subr.bf16.mxu0 0
        %3176 = vmatpush1.bf16.msra.mxu0 %v2630
        %3177 = vmatprep.subr.bf16.mxu0 0
        %3178 = vmatpush1.bf16.msra.mxu0 %v2631
        %3179 = vmatprep.subr.bf16.mxu0 0
        %3180 = vmatpush1.bf16.msra.mxu0 %v2632
        %3181 = vmatprep.subr.bf16.mxu0 0
        %3182 = vmatpush1.bf16.msra.mxu0 %v2633
        %3183 = vmatprep.subr.bf16.mxu0 0
        %3184 = vmatpush1.bf16.msra.mxu0 %v2634
        %3185 = vmatprep.subr.bf16.mxu0 0
        %3186 = vmatpush1.bf16.msra.mxu0 %v2635
        %3187 = vmatprep.subr.bf16.mxu0 0
        %3188 = vmatpush1.bf16.msra.mxu0 %v2636
        %3189 = vmatprep.subr.bf16.mxu0 0
        %3190 = vmatpush1.bf16.msra.mxu0 %v2637
        %3191 = vmatprep.subr.bf16.mxu0 0
        %3192 = vmatpush1.bf16.msra.mxu0 %v2638
        %3193 = vmatprep.subr.bf16.mxu0 0
        %3194 = vmatpush1.bf16.msra.mxu0 %v2639
        %3195 = vmatprep.subr.bf16.mxu0 0
        %3196 = vmatpush1.bf16.msra.mxu0 %v2640
        %3197 = vmatprep.subr.bf16.mxu0 0
        %3198 = vmatpush1.bf16.msra.mxu0 %v2641
        %3199 = vmatprep.subr.bf16.mxu0 0
        %3200 = vmatpush1.bf16.msra.mxu0 %v2642
        %3201 = vmatprep.subr.bf16.mxu0 0
        %3202 = vmatpush1.bf16.msra.mxu0 %v2643
        %3203 = vmatprep.subr.bf16.mxu0 0
        %3204 = vmatpush1.bf16.msra.mxu0 %v2644
        %3205 = vmatprep.mubr.bf16.mxu0 %v1870
        %3206 = vmatmul.mubr.bf16.gmra.mrb[0].mxu0 %v1869
        %v3207 = vpop.f32.mrb[0].mxu0
        %v3208 = vadd.f32 %v3160, %v3207
        %v3209 = vpop.f32.mrb[0].mxu0
        %v3210 = vpop.f32.mrb[0].mxu0
        %v3211 = vadd.f32 %v3163, %v3210
        %v3212 = vpop.f32.mrb[0].mxu0
        %3213 = vmatprep.mubr.bf16.mxu0 %v1888
        %3214 = vmatmul.mubr.bf16.gmra.mrb[0].mxu0 %v1887
        %v3215 = vpop.f32.mrb[0].mxu0
        %v3216 = vadd.f32 %v3168, %v3215
        %v3217 = vpop.f32.mrb[0].mxu0
        %v3218 = vpop.f32.mrb[0].mxu0
        %v3219 = vpop.f32.mrb[0].mxu0
        %3220 = vdwg.mxu0
        %v3221 = vmax.f32 %v3208, 0.0
        %v3222 = vmax.f32 %v3211, 0.0
        %v3223 = vmax.f32 %v3216, 0.0
        %v3224 = vpack.c.bf16 %v3222, %v3221
        %v3225 = vpack.c.bf16 %v3223, %v3223
        %v3228 = vunpack.c.l.b16 %v3224
        %v3229 = vunpack.c.h.b16 %v3224
        %v3230 = vunpack.c.l.b16 %v3225
        %v3231 = vpack.c.b16 %v3228, %v3228
        %v3232 = vpack.c.b16 %v3229, %v3229
        %v3233 = vpack.c.b16 %v3230, %v3230
        %3237 = vst [vmem:[%s1429] sm:$0xf] %v3231
        %3238 = vst [vmem:[%s1429 + $0x4] sm:$0xf] %v3232
        %3239 = vst [vmem:[%s1429 + $0x8] sm:$0x1] %v3233
        %s3240 = sand.u32 %s129, 1
        %s3241 = sand.u32 %s129, 1
        %s3242 = smul.addr %s3241, 12
        %s3243 = scalar_lea.vmem [#allocation3], %s3242
        // Predicated region
        $region74: #{alexnet_forward.11} parent=68 // pred_check
          %p3244 = pneg %p139
        $region75: #{alexnet_forward.11} parent=68 // pred_check_branch
          %3246 = sbr.rel (%p3244) target = $region77
        $region76: #{alexnet_forward.11} parent=68 // pred_region
          %s3247 = smul.u32 3, %s20
          %s3248 = smul.addr %s3247, 3
          %s3249 = sadd.s32 %s21, %s3248
          %s3250 = smul.addr %s19, 9
          %s3251 = sadd.s32 %s3249, %s3250
          %s3252 = smul.addr %s3251, 4
          %s3253 = scalar_lea.vmem %s3, %s3252
          // Predicated region
          $region78: #{alexnet_forward.11} parent=76 // pred_check
            _
          $region79: #{alexnet_forward.11} parent=76 // pred_check_branch
            %3255 = sbr.rel (0) target = $region81
          $region80: #{alexnet_forward.11} parent=76 // pred_region
            // Predicated region
            $region82: #{alexnet_forward.11} parent=80 // pred_check
              _
            $region83: #{alexnet_forward.11} parent=80 // pred_check_branch
              %3257 = sbr.rel target = $region85
            $region84: #{alexnet_forward.11} parent=80 // pred_region
              // Predicated region
              $region97: #{alexnet_forward.11} parent=84 // pred_check
                _
              $region98: #{alexnet_forward.11} parent=84 // pred_check_branch
                %3276 = sbr.rel (0) target = $region100
              $region99: #{alexnet_forward.11} parent=84 // pred_region
                loop: start=0, step=1, limit=1
                $region101: #{alexnet_forward.11} parent=99 // loop_pre_header
                  _
                $region102: #{alexnet_forward.11} parent=99 // loop_header
                  %s3278 = sphi 0, %s3282
                  %p3279 = scmp.ge.s32.totalorder %s3278, 1
                  %s3283 = sphi %s3243, %s3243
                  %s3284 = sphi %s3253, %s3253
                $region103: #{alexnet_forward.11} parent=99 // loop_header_branch
                  %3281 = sbr.rel (%p3279) target = $region107
                $region104: #{alexnet_forward.11} parent=99 // loop_body
                  _
                $region105: #{alexnet_forward.11} parent=99 // loop_footer
                  %s3282 = sadd.s32 1, %s3278
                $region106: #{alexnet_forward.11} parent=99 // loop_footer_branch
                  %3277 = sbr.rel target = $region102
                $region107: #{alexnet_forward.11} parent=99 // loop_exit
                  _
                loop: start=0, step=1, limit=1
                $region108: #{alexnet_forward.11} parent=99 // loop_pre_header
                  _
                $region109: #{alexnet_forward.11} parent=99 // loop_header
                  %s3287 = sphi 0, %s3291
                  %p3288 = scmp.ge.s32.totalorder %s3287, 1
                  %s3292 = sphi %s3243, %s3243
                  %s3293 = sphi %s3253, %s3253
                $region110: #{alexnet_forward.11} parent=99 // loop_header_branch
                  %3290 = sbr.rel (%p3288) target = $region114
                $region111: #{alexnet_forward.11} parent=99 // loop_body
                  %v3294 = vld [vmem:[%s3292] sm:$0xf]
                  %3295 = vst [vmem:[%s3293] sm:$0xf] %v3294
                  %v3296 = vld [vmem:[%s3292 + $0x4] sm:$0xf]
                  %3297 = vst [vmem:[%s3293 + $0xc] sm:$0xf] %v3296
                  %v3298 = vld [vmem:[%s3292 + $0x8] sm:$0xf]
                  %3299 = vst [vmem:[%s3293 + $0x18] sm:$0xf] %v3298
                $region112: #{alexnet_forward.11} parent=99 // loop_footer
                  %s3291 = sadd.s32 1, %s3287
                $region113: #{alexnet_forward.11} parent=99 // loop_footer_branch
                  %3286 = sbr.rel target = $region109
                $region114: #{alexnet_forward.11} parent=99 // loop_exit
                  _
              $region100: #{alexnet_forward.11} parent=84 // pred_fallthru
                _
            $region85: #{alexnet_forward.11} parent=80 // pred_fallthru
              _
            // Predicated region
            $region86: #{alexnet_forward.11} parent=80 // pred_check
              _
            $region87: #{alexnet_forward.11} parent=80 // pred_check_branch
              %3259 = sbr.rel (0) target = $region89
            $region88: #{alexnet_forward.11} parent=80 // pred_region
              loop: start=0, step=1, limit=1
              $region90: #{alexnet_forward.11} parent=88 // loop_pre_header
                _
              $region91: #{alexnet_forward.11} parent=88 // loop_header
                %s3262 = sphi 0, %s3266
                %p3263 = scmp.ge.s32.totalorder %s3262, 1
                %s3267 = sphi %s3243, %s3243
                %s3268 = sphi %s3253, %s3253
              $region92: #{alexnet_forward.11} parent=88 // loop_header_branch
                %3265 = sbr.rel (%p3263) target = $region96
              $region93: #{alexnet_forward.11} parent=88 // loop_body
                %v3269 = vld [vmem:[%s3267] sm:$0xf]
                %3270 = vst [vmem:[%s3268] sm:$0xf] %v3269
                %v3271 = vld [vmem:[%s3267 + $0x4] sm:$0xf]
                %3272 = vst [vmem:[%s3268 + $0xc] sm:$0xf] %v3271
                %v3273 = vld [vmem:[%s3267 + $0x8] sm:$0xf]
                %3274 = vst [vmem:[%s3268 + $0x18] sm:$0xf] %v3273
              $region94: #{alexnet_forward.11} parent=88 // loop_footer
                %s3266 = sadd.s32 1, %s3262
              $region95: #{alexnet_forward.11} parent=88 // loop_footer_branch
                %3261 = sbr.rel target = $region91
              $region96: #{alexnet_forward.11} parent=88 // loop_exit
                _
            $region89: #{alexnet_forward.11} parent=80 // pred_fallthru
              _
          $region81: #{alexnet_forward.11} parent=76 // pred_fallthru
            _
          %3300 = vnop
        $region77: #{alexnet_forward.11} parent=68 // pred_fallthru
          _
      $region69: #{alexnet_forward.11} parent=5 // pred_fallthru
        _
      %p3301 = scmp.le.s32.totalorder 2, %s9
      // Predicated region
      $region115: #{alexnet_forward.11} parent=5 // pred_check
        %p3302 = pneg %p3301
      $region116: #{alexnet_forward.11} parent=5 // pred_check_branch
        %3304 = sbr.rel (%p3302) target = $region118
      $region117: #{alexnet_forward.11} parent=5 // pred_region
        %s3305 = ssub.s32 %s9, 2
        // Predicated region
        $region119: #{alexnet_forward.11} parent=117 // pred_check
          %p3306 = pneg %p145
        $region120: #{alexnet_forward.11} parent=117 // pred_check_branch
          %3308 = sbr.rel (%p3306) target = $region122
        $region121: #{alexnet_forward.11} parent=117 // pred_region
          %s3309 = sand.u32 %s130, 1
          %s3310 = sand.u32 %s130, 1
          %s3311 = smul.addr %s3310, 12
          %s3312 = scalar_lea.vmem [#allocation3], %s3311
        $region122: #{alexnet_forward.11} parent=117 // pred_fallthru
          _
      $region118: #{alexnet_forward.11} parent=5 // pred_fallthru
        _
    $region6: #{alexnet_forward.11} parent=1 // loop_footer
      %s13 = sadd.s32 1, %s9
    $region7: #{alexnet_forward.11} parent=1 // loop_footer_branch
      %8 = sbr.rel target = $region3
    $region8: #{alexnet_forward.11} parent=1 // loop_exit
      _

// kernel: alexnet_forward.12
$region0: #{alexnet_forward.12}
  #allocation0 [shape = 'u32[]', space=smem, size = 0x4, offset = 0x4, fixed_abs, tag = 'smem constant byte address 0x4 - core index']
  #allocation1 [shape = 'u32[144,128]{1,0:T(1,128)}', space=vmem, size = 0x12000, scoped, tag = 'internal scratch']
  %s0 = inlined_call_operand.vmem [shape: bf16[2,18,1728], index: 0, kind: input, shape index: {}]
  %s1 = inlined_call_operand.vmem [shape: bf16[2,1728,192], index: 1, kind: input, shape index: {}]
  %s2 = inlined_call_operand.vmem [shape: f32[2,1,192], index: 2, kind: input, shape index: {}]
  %s3 = inlined_call_operand.vmem [shape: bf16[2,18,192], index: 3, kind: output, shape index: {}]
  %s4 = sld [smem:[#allocation0]]
  $region45: #{alexnet_forward.12} parent=0
    _
  %s6 = ssub.s32 1, %s4
  %s7 = scalar_select 0, %s6, %s4
  loop: start=0, step=1, limit=4
  $region2: #{alexnet_forward.12} parent=0 // loop_pre_header
    _
  $region3: #{alexnet_forward.12} parent=0 // loop_header
    %s9 = sphi 0, %s13
    %p10 = scmp.ge.s32.totalorder %s9, 4
    %s16 = sphi 0, %s35
    %s17 = sphi 0, %s31
    %s18 = sphi 0, %s27
    %s19 = sphi 0, %s16
    %s20 = sphi 0, %s17
    %s21 = sphi 0, %s18
    %s22 = sphi 0, %s19
    %s23 = sphi 0, %s20
    %s24 = sphi 0, %s21
    %s40 = sphi 0, %s42
    %s43 = sphi 0, %s40
    %s44 = sphi 0, %s43
    %s60 = sphi 0, %s44
    %s68 = sphi 0, %s70
    %s71 = sphi 0, %s68
    %s72 = sphi 0, %s71
    %s88 = sphi 0, %s72
    %s96 = sphi 0, %s98
    %s99 = sphi 0, %s96
    %s100 = sphi 0, %s99
    %s116 = sphi 0, %s100
    %s126 = sphi 0, %s128
    %s129 = sphi 0, %s126
    %s130 = sphi 0, %s129
    %s146 = sphi 0, %s130
  $region4: #{alexnet_forward.12} parent=0 // loop_header_branch
    %12 = sbr.rel (%p10) target = $region8
  $region5: #{alexnet_forward.12} parent=0 // loop_body
    %s14 = ssub.s32 %s9, 1
    %s15 = ssub.s32 %s9, 2
    %s25 = sadd.s32 1, %s18
    %p26 = scmp.ge.s32.totalorder %s25, 1
    %s27 = scalar_select %p26, 0, %s25
    %s28 = sadd.s32 1, %s17
    %s29 = scalar_select %p26, %s28, %s17
    %p30 = scmp.ge.s32.totalorder %s29, 1
    %s31 = scalar_select %p30, 0, %s29
    %s32 = sadd.s32 1, %s16
    %s33 = scalar_select %p30, %s32, %s16
    %p34 = scmp.ge.s32.totalorder %s33, 2
    %s35 = scalar_select %p34, 0, %s33
    %s36 = ssub.s32 %s16, %s35
    %s37 = ssub.s32 %s17, %s31
    %s38 = sor.u32 %s36, %s37
    %p39 = scmp.eq.s32.totalorder %s38, 0
    %s41 = sadd.s32 %s40, 1
    %s42 = scalar_select %p39, %s40, %s41
    %p45 = pneg %p39
    %p46 = scmp.eq.s32.totalorder %s9, 1
    %p47 = por %p45, %p46
    %p48 = scmp.ne.s32.totalorder %s40, %s43
    %p49 = scmp.eq.s32.totalorder %s9, 0
    %p50 = por %p48, %p49
    %p51 = scmp.ne.s32.totalorder %s40, %s43
    %p52 = scmp.eq.s32.totalorder %s14, 1
    %p53 = por %p51, %p52
    %p54 = scmp.ne.s32.totalorder %s43, %s44
    %p55 = scmp.eq.s32.totalorder %s14, 0
    %p56 = por %p54, %p55
    %p57 = scmp.ne.s32.totalorder %s43, %s44
    %p58 = scmp.eq.s32.totalorder %s15, 1
    %p59 = por %p57, %p58
    %p61 = scmp.ne.s32.totalorder %s44, %s60
    %p62 = scmp.eq.s32.totalorder %s15, 0
    %p63 = por %p61, %p62
    %s64 = ssub.s32 %s16, %s35
    %s65 = ssub.s32 %s18, %s27
    %s66 = sor.u32 %s64, %s65
    %p67 = scmp.eq.s32.totalorder %s66, 0
    %s69 = sadd.s32 %s68, 1
    %s70 = scalar_select %p67, %s68, %s69
    %p73 = pneg %p67
    %p74 = scmp.eq.s32.totalorder %s9, 1
    %p75 = por %p73, %p74
    %p76 = scmp.ne.s32.totalorder %s68, %s71
    %p77 = scmp.eq.s32.totalorder %s9, 0
    %p78 = por %p76, %p77
    %p79 = scmp.ne.s32.totalorder %s68, %s71
    %p80 = scmp.eq.s32.totalorder %s14, 1
    %p81 = por %p79, %p80
    %p82 = scmp.ne.s32.totalorder %s71, %s72
    %p83 = scmp.eq.s32.totalorder %s14, 0
    %p84 = por %p82, %p83
    %p85 = scmp.ne.s32.totalorder %s71, %s72
    %p86 = scmp.eq.s32.totalorder %s15, 1
    %p87 = por %p85, %p86
    %p89 = scmp.ne.s32.totalorder %s72, %s88
    %p90 = scmp.eq.s32.totalorder %s15, 0
    %p91 = por %p89, %p90
    %s92 = ssub.s32 %s16, %s35
    %s93 = ssub.s32 %s18, %s27
    %s94 = sor.u32 %s92, %s93
    %p95 = scmp.eq.s32.totalorder %s94, 0
    %s97 = sadd.s32 %s96, 1
    %s98 = scalar_select %p95, %s96, %s97
    %p101 = pneg %p95
    %p102 = scmp.eq.s32.totalorder %s9, 1
    %p103 = por %p101, %p102
    %p104 = scmp.ne.s32.totalorder %s96, %s99
    %p105 = scmp.eq.s32.totalorder %s9, 0
    %p106 = por %p104, %p105
    %p107 = scmp.ne.s32.totalorder %s96, %s99
    %p108 = scmp.eq.s32.totalorder %s14, 1
    %p109 = por %p107, %p108
    %p110 = scmp.ne.s32.totalorder %s99, %s100
    %p111 = scmp.eq.s32.totalorder %s14, 0
    %p112 = por %p110, %p111
    %p113 = scmp.ne.s32.totalorder %s99, %s100
    %p114 = scmp.eq.s32.totalorder %s15, 1
    %p115 = por %p113, %p114
    %p117 = scmp.ne.s32.totalorder %s100, %s116
    %p118 = scmp.eq.s32.totalorder %s15, 0
    %p119 = por %p117, %p118
    %s120 = ssub.s32 %s16, %s35
    %s121 = ssub.s32 %s17, %s31
    %s122 = sor.u32 %s120, %s121
    %s123 = ssub.s32 %s18, %s27
    %s124 = sor.u32 %s122, %s123
    %p125 = scmp.eq.s32.totalorder %s124, 0
    %s127 = sadd.s32 %s126, 1
    %s128 = scalar_select %p125, %s126, %s127
    %p131 = pneg %p125
    %p132 = scmp.eq.s32.totalorder %s9, 1
    %p133 = por %p131, %p132
    %p134 = scmp.ne.s32.totalorder %s126, %s129
    %p135 = scmp.eq.s32.totalorder %s9, 0
    %p136 = por %p134, %p135
    %p137 = scmp.ne.s32.totalorder %s126, %s129
    %p138 = scmp.eq.s32.totalorder %s14, 1
    %p139 = por %p137, %p138
    %p140 = scmp.ne.s32.totalorder %s129, %s130
    %p141 = scmp.eq.s32.totalorder %s14, 0
    %p142 = por %p140, %p141
    %p143 = scmp.ne.s32.totalorder %s129, %s130
    %p144 = scmp.eq.s32.totalorder %s15, 1
    %p145 = por %p143, %p144
    %p147 = scmp.ne.s32.totalorder %s130, %s146
    %p148 = scmp.eq.s32.totalorder %s15, 0
    %p149 = por %p147, %p148
    %p150 = scmp.le.s32.totalorder 1, %s9
    %p151 = scmp.lt.s32.totalorder %s9, 3
    %p152 = pnand %p150, %p151
    %p153 = pneg %p152
    // Predicated region
    $region9: #{alexnet_forward.12} parent=5 // pred_check
      _
    $region10: #{alexnet_forward.12} parent=5 // pred_check_branch
      %155 = sbr.rel (%p152) target = $region12
    $region11: #{alexnet_forward.12} parent=5 // pred_region
      %s156 = ssub.s32 %s9, 1
    $region12: #{alexnet_forward.12} parent=5 // pred_fallthru
      _
    %p157 = scmp.lt.s32.totalorder %s9, 2
    // Predicated region
    $region13: #{alexnet_forward.12} parent=5 // pred_check
      %p158 = pneg %p157
    $region14: #{alexnet_forward.12} parent=5 // pred_check_branch
      %160 = sbr.rel (%p158) target = $region16
    $region15: #{alexnet_forward.12} parent=5 // pred_region
      // Predicated region
      $region17: #{alexnet_forward.12} parent=15 // pred_check
        %p161 = pneg %p50
      $region18: #{alexnet_forward.12} parent=15 // pred_check_branch
        %163 = sbr.rel (%p161) target = $region20
      $region19: #{alexnet_forward.12} parent=15 // pred_region
        %s164 = smul.u32 3, %s17
        %p165 = scmp.lt.s32.totalorder %s16, 1
        %s166 = scalar_select %p165, %s16, 1
        %p167 = scmp.lt.s32.totalorder %s164, 2
        %s168 = scalar_select %p167, %s164, 2
        %s169 = smul.addr %s168, 14
        %s170 = smul.addr %s166, 42
        %s171 = sadd.s32 %s169, %s170
        %s172 = smul.addr %s171, 4
        %s173 = scalar_lea.vmem %s0, %s172
        %s174 = smul.u32 3, %s17
      $region20: #{alexnet_forward.12} parent=15 // pred_fallthru
        _
      // Predicated region
      $region21: #{alexnet_forward.12} parent=15 // pred_check
        %p175 = pneg %p78
      $region22: #{alexnet_forward.12} parent=15 // pred_check_branch
        %177 = sbr.rel (%p175) target = $region24
      $region23: #{alexnet_forward.12} parent=15 // pred_region
        %s178 = smul.u32 2, %s18
        %p179 = scmp.lt.s32.totalorder %s16, 1
        %s180 = scalar_select %p179, %s16, 1
        %p181 = scmp.lt.s32.totalorder %s178, 1
        %s182 = scalar_select %p181, %s178, 1
        %s183 = smul.addr %s180, 432
        %s184 = sadd.s32 %s182, %s183
        %s185 = smul.addr %s184, 4
        %s186 = scalar_lea.vmem %s1, %s185
        %s187 = smul.u32 2, %s18
      $region24: #{alexnet_forward.12} parent=15 // pred_fallthru
        _
      // Predicated region
      $region25: #{alexnet_forward.12} parent=15 // pred_check
        %p188 = pneg %p106
      $region26: #{alexnet_forward.12} parent=15 // pred_check_branch
        %190 = sbr.rel (%p188) target = $region28
      $region27: #{alexnet_forward.12} parent=15 // pred_region
        %s191 = smul.u32 2, %s18
        %p192 = scmp.lt.s32.totalorder %s16, 1
        %s193 = scalar_select %p192, %s16, 1
        %p194 = scmp.lt.s32.totalorder %s191, 1
        %s195 = scalar_select %p194, %s191, 1
        %s196 = smul.addr %s193, 2
        %s197 = sadd.s32 %s195, %s196
        %s198 = scalar_lea.vmem %s2, %s197
        %s199 = smul.u32 2, %s18
      $region28: #{alexnet_forward.12} parent=15 // pred_fallthru
        _
    $region16: #{alexnet_forward.12} parent=5 // pred_fallthru
      _
    %p200 = scmp.le.s32.totalorder 1, %s9
    %p201 = scmp.lt.s32.totalorder %s9, 3
    %p202 = pnand %p200, %p201
    %p203 = pneg %p202
    // Predicated region
    $region29: #{alexnet_forward.12} parent=5 // pred_check
      _
    $region30: #{alexnet_forward.12} parent=5 // pred_check_branch
      %205 = sbr.rel (%p202) target = $region32
    $region31: #{alexnet_forward.12} parent=5 // pred_region
      %s206 = ssub.s32 %s9, 1
      %s207 = smul.u32 3, %s20
      %p208 = scmp.lt.s32.totalorder %s19, 1
      %s209 = scalar_select %p208, %s19, 1
      %p210 = scmp.lt.s32.totalorder %s207, 2
      %s211 = scalar_select %p210, %s207, 2
      %s212 = smul.addr %s211, 14
      %s213 = smul.addr %s209, 42
      %s214 = sadd.s32 %s212, %s213
      %s215 = smul.addr %s214, 4
      %s216 = scalar_lea.vmem %s0, %s215
      %p217 = pneg %p56
      %p218 = pneg %p53
      %s219 = smul.u32 2, %s21
      %p220 = scmp.lt.s32.totalorder %s19, 1
      %s221 = scalar_select %p220, %s19, 1
      %p222 = scmp.lt.s32.totalorder %s219, 1
      %s223 = scalar_select %p222, %s219, 1
      %s224 = smul.addr %s221, 432
      %s225 = sadd.s32 %s223, %s224
      %s226 = smul.addr %s225, 4
      %s227 = scalar_lea.vmem %s1, %s226
      %p228 = pneg %p84
      %p229 = pneg %p81
      %s230 = smul.u32 2, %s21
      %p231 = scmp.lt.s32.totalorder %s19, 1
      %s232 = scalar_select %p231, %s19, 1
      %p233 = scmp.lt.s32.totalorder %s230, 1
      %s234 = scalar_select %p233, %s230, 1
      %s235 = smul.addr %s232, 2
      %s236 = sadd.s32 %s234, %s235
      %s237 = scalar_lea.vmem %s2, %s236
      %p238 = pneg %p112
      %p239 = pneg %p109
      %p240 = pneg %p142
      %p241 = pneg %p139
      %s242 = smul.u32 3, %s20
      %s243 = smul.u32 2, %s21
      %p244 = scmp.lt.s32.totalorder %s19, 1
      %s245 = scalar_select %p244, %s19, 1
      %p246 = scmp.lt.s32.totalorder %s242, 2
      %s247 = scalar_select %p246, %s242, 2
      %p248 = scmp.lt.s32.totalorder %s243, 1
      %s249 = scalar_select %p248, %s243, 1
      %s250 = smul.addr %s247, 2
      %s251 = sadd.s32 %s249, %s250
      %s252 = smul.addr %s245, 6
      %s253 = sadd.s32 %s251, %s252
      %s254 = smul.addr %s253, 4
      %s255 = scalar_lea.vmem %s3, %s254
      %s256 = smul.u32 3, %s20
      %p257 = scmp.lt.s32.totalorder %s19, 1
      %s258 = scalar_select %p257, %s19, 1
      %p259 = scmp.lt.s32.totalorder %s256, 2
      %s260 = scalar_select %p259, %s256, 2
      %s261 = smul.addr %s260, 14
      %s262 = smul.addr %s258, 42
      %s263 = sadd.s32 %s261, %s262
      %s264 = smul.addr %s263, 4
      %s265 = scalar_lea.vmem %s0, %s264
      %s266 = smul.u32 3, %s20
      %s267 = smul.u32 2, %s21
      %p268 = scmp.lt.s32.totalorder %s19, 1
      %s269 = scalar_select %p268, %s19, 1
      %p270 = scmp.lt.s32.totalorder %s267, 1
      %s271 = scalar_select %p270, %s267, 1
      %s272 = smul.addr %s269, 432
      %s273 = sadd.s32 %s271, %s272
      %s274 = smul.addr %s273, 4
      %s275 = scalar_lea.vmem %s1, %s274
      %s276 = smul.u32 2, %s21
      %s277 = smul.u32 2, %s21
      %p278 = scmp.lt.s32.totalorder %s19, 1
      %s279 = scalar_select %p278, %s19, 1
      %p280 = scmp.lt.s32.totalorder %s277, 1
      %s281 = scalar_select %p280, %s277, 1
      %s282 = smul.addr %s279, 2
      %s283 = sadd.s32 %s281, %s282
      %s284 = scalar_lea.vmem %s2, %s283
      %s285 = smul.u32 2, %s21
      %s286 = smul.u32 3, %s20
      %s287 = smul.u32 2, %s21
      %p288 = scmp.lt.s32.totalorder %s19, 1
      %s289 = scalar_select %p288, %s19, 1
      %p290 = scmp.lt.s32.totalorder %s286, 2
      %s291 = scalar_select %p290, %s286, 2
      %p292 = scmp.lt.s32.totalorder %s287, 1
      %s293 = scalar_select %p292, %s287, 1
      %s294 = smul.addr %s291, 2
      %s295 = sadd.s32 %s293, %s294
      %s296 = smul.addr %s289, 6
      %s297 = sadd.s32 %s295, %s296
      %s298 = smul.addr %s297, 4
      %s299 = scalar_lea.vmem %s3, %s298
      %s300 = smul.u32 3, %s20
      %s301 = smul.u32 2, %s21
      %v303 = vld [vmem:[%s265] sm:$0xff]
      %v304 = vld [vmem:[%s265 + $0x8] sm:$0xff]
      %v305 = vld [vmem:[%s265 + $0x10] sm:$0xff]
      %v306 = vld [vmem:[%s265 + $0x18] sm:$0xff]
      %v307 = vld [vmem:[%s265 + $0x20] sm:$0xff]
      %v308 = vld [vmem:[%s265 + $0x28] sm:$0xff]
      %v309 = vld [vmem:[%s265 + $0x30] sm:$0xff]
      %v310 = vld [vmem:[%s265 + $0x38] sm:$0xff]
      %v311 = vld [vmem:[%s265 + $0x40] sm:$0xff]
      %v312 = vld [vmem:[%s265 + $0x48] sm:$0xff]
      %v313 = vld [vmem:[%s265 + $0x50] sm:$0xff]
      %v314 = vld [vmem:[%s265 + $0x58] sm:$0xff]
      %v315 = vld [vmem:[%s265 + $0x60] sm:$0xff]
      %v316 = vld [vmem:[%s265 + $0x68] sm:$0xff]
      %v317 = vld [vmem:[%s265 + $0x70] sm:$0x11]
      %v318 = vld [vmem:[%s265 + $0x78] sm:$0x11]
      %v319 = vld [vmem:[%s265 + $0x80] sm:$0x11]
      %v320 = vld [vmem:[%s265 + $0x88] sm:$0x11]
      %v321 = vld [vmem:[%s265 + $0x90] sm:$0x11]
      %v322 = vld [vmem:[%s265 + $0x98] sm:$0x11]
      %v323 = vld [vmem:[%s265 + $0xa0] sm:$0x11]
      %v324 = vld [vmem:[%s275] sm:$0xff]
      %v325 = vld [vmem:[%s275 + $0x8] sm:$0xff]
      %v326 = vld [vmem:[%s275 + $0x10] sm:$0xff]
      %v327 = vld [vmem:[%s275 + $0x18] sm:$0xff]
      %v328 = vld [vmem:[%s275 + $0x20] sm:$0xff]
      %v329 = vld [vmem:[%s275 + $0x28] sm:$0xff]
      %v330 = vld [vmem:[%s275 + $0x30] sm:$0xff]
      %v331 = vld [vmem:[%s275 + $0x38] sm:$0xff]
      %v332 = vld [vmem:[%s275 + $0x40] sm:$0xff]
      %v333 = vld [vmem:[%s275 + $0x48] sm:$0xff]
      %v334 = vld [vmem:[%s275 + $0x50] sm:$0xff]
      %v335 = vld [vmem:[%s275 + $0x58] sm:$0xff]
      %v336 = vld [vmem:[%s275 + $0x60] sm:$0xff]
      %v337 = vld [vmem:[%s275 + $0x68] sm:$0xff]
      %v338 = vld [vmem:[%s275 + $0x70] sm:$0xff]
      %v339 = vld [vmem:[%s275 + $0x78] sm:$0xff]
      %v340 = vld [vmem:[%s275 + $0x80] sm:$0xff]
      %v341 = vld [vmem:[%s275 + $0x88] sm:$0xff]
      %v342 = vld [vmem:[%s275 + $0x90] sm:$0xff]
      %v343 = vld [vmem:[%s275 + $0x98] sm:$0xff]
      %v344 = vld [vmem:[%s275 + $0xa0] sm:$0xff]
      %v345 = vld [vmem:[%s275 + $0xa8] sm:$0xff]
      %v346 = vld [vmem:[%s275 + $0xb0] sm:$0xff]
      %v347 = vld [vmem:[%s275 + $0xb8] sm:$0xff]
      %v348 = vld [vmem:[%s275 + $0xc0] sm:$0xff]
      %v349 = vld [vmem:[%s275 + $0xc8] sm:$0xff]
      %v350 = vld [vmem:[%s275 + $0xd0] sm:$0xff]
      %v351 = vld [vmem:[%s275 + $0xd8] sm:$0xff]
      %v352 = vld [vmem:[%s275 + $0xe0] sm:$0xff]
      %v353 = vld [vmem:[%s275 + $0xe8] sm:$0xff]
      %v354 = vld [vmem:[%s275 + $0xf0] sm:$0xff]
      %v355 = vld [vmem:[%s275 + $0xf8] sm:$0xff]
      %v356 = vld [vmem:[%s275 + $0x100] sm:$0xff]
      %v357 = vld [vmem:[%s275 + $0x108] sm:$0xff]
      %v358 = vld [vmem:[%s275 + $0x110] sm:$0xff]
      %v359 = vld [vmem:[%s275 + $0x118] sm:$0xff]
      %v360 = vld [vmem:[%s275 + $0x120] sm:$0xff]
      %v361 = vld [vmem:[%s275 + $0x128] sm:$0xff]
      %v362 = vld [vmem:[%s275 + $0x130] sm:$0xff]
      %v363 = vld [vmem:[%s275 + $0x138] sm:$0xff]
      %v364 = vld [vmem:[%s275 + $0x140] sm:$0xff]
      %v365 = vld [vmem:[%s275 + $0x148] sm:$0xff]
      %v366 = vld [vmem:[%s275 + $0x150] sm:$0xff]
      %v367 = vld [vmem:[%s275 + $0x158] sm:$0xff]
      %v368 = vld [vmem:[%s275 + $0x160] sm:$0xff]
      %v369 = vld [vmem:[%s275 + $0x168] sm:$0xff]
      %v370 = vld [vmem:[%s275 + $0x170] sm:$0xff]
      %v371 = vld [vmem:[%s275 + $0x178] sm:$0xff]
      %v372 = vld [vmem:[%s275 + $0x180] sm:$0xff]
      %v373 = vld [vmem:[%s275 + $0x188] sm:$0xff]
      %v374 = vld [vmem:[%s275 + $0x190] sm:$0xff]
      %v375 = vld [vmem:[%s275 + $0x198] sm:$0xff]
      %v376 = vld [vmem:[%s275 + $0x1a0] sm:$0xff]
      %v377 = vld [vmem:[%s275 + $0x1a8] sm:$0xff]
      %v378 = vld [vmem:[%s275 + $0x1b0] sm:$0xff]
      %v379 = vld [vmem:[%s275 + $0x1b8] sm:$0xff]
      %v380 = vld [vmem:[%s275 + $0x1c0] sm:$0xff]
      %v381 = vld [vmem:[%s275 + $0x1c8] sm:$0xff]
      %v382 = vld [vmem:[%s275 + $0x1d0] sm:$0xff]
      %v383 = vld [vmem:[%s275 + $0x1d8] sm:$0xff]
      %v384 = vld [vmem:[%s275 + $0x1e0] sm:$0xff]
      %v385 = vld [vmem:[%s275 + $0x1e8] sm:$0xff]
      %v386 = vld [vmem:[%s275 + $0x1f0] sm:$0xff]
      %v387 = vld [vmem:[%s275 + $0x1f8] sm:$0xff]
      %v388 = vld [vmem:[%s275 + $0x200] sm:$0xff]
      %v389 = vld [vmem:[%s275 + $0x208] sm:$0xff]
      %v390 = vld [vmem:[%s275 + $0x210] sm:$0xff]
      %v391 = vld [vmem:[%s275 + $0x218] sm:$0xff]
      %v392 = vld [vmem:[%s275 + $0x220] sm:$0xff]
      %v393 = vld [vmem:[%s275 + $0x228] sm:$0xff]
      %v394 = vld [vmem:[%s275 + $0x230] sm:$0xff]
      %v395 = vld [vmem:[%s275 + $0x238] sm:$0xff]
      %v396 = vld [vmem:[%s275 + $0x240] sm:$0xff]
      %v397 = vld [vmem:[%s275 + $0x248] sm:$0xff]
      %v398 = vld [vmem:[%s275 + $0x250] sm:$0xff]
      %v399 = vld [vmem:[%s275 + $0x258] sm:$0xff]
      %v400 = vld [vmem:[%s275 + $0x260] sm:$0xff]
      %v401 = vld [vmem:[%s275 + $0x268] sm:$0xff]
      %v402 = vld [vmem:[%s275 + $0x270] sm:$0xff]
      %v403 = vld [vmem:[%s275 + $0x278] sm:$0xff]
      %v404 = vld [vmem:[%s275 + $0x280] sm:$0xff]
      %v405 = vld [vmem:[%s275 + $0x288] sm:$0xff]
      %v406 = vld [vmem:[%s275 + $0x290] sm:$0xff]
      %v407 = vld [vmem:[%s275 + $0x298] sm:$0xff]
      %v408 = vld [vmem:[%s275 + $0x2a0] sm:$0xff]
      %v409 = vld [vmem:[%s275 + $0x2a8] sm:$0xff]
      %v410 = vld [vmem:[%s275 + $0x2b0] sm:$0xff]
      %v411 = vld [vmem:[%s275 + $0x2b8] sm:$0xff]
      %v412 = vld [vmem:[%s275 + $0x2c0] sm:$0xff]
      %v413 = vld [vmem:[%s275 + $0x2c8] sm:$0xff]
      %v414 = vld [vmem:[%s275 + $0x2d0] sm:$0xff]
      %v415 = vld [vmem:[%s275 + $0x2d8] sm:$0xff]
      %v416 = vld [vmem:[%s275 + $0x2e0] sm:$0xff]
      %v417 = vld [vmem:[%s275 + $0x2e8] sm:$0xff]
      %v418 = vld [vmem:[%s275 + $0x2f0] sm:$0xff]
      %v419 = vld [vmem:[%s275 + $0x2f8] sm:$0xff]
      %v420 = vld [vmem:[%s275 + $0x300] sm:$0xff]
      %v421 = vld [vmem:[%s275 + $0x308] sm:$0xff]
      %v422 = vld [vmem:[%s275 + $0x310] sm:$0xff]
      %v423 = vld [vmem:[%s275 + $0x318] sm:$0xff]
      %v424 = vld [vmem:[%s275 + $0x320] sm:$0xff]
      %v425 = vld [vmem:[%s275 + $0x328] sm:$0xff]
      %v426 = vld [vmem:[%s275 + $0x330] sm:$0xff]
      %v427 = vld [vmem:[%s275 + $0x338] sm:$0xff]
      %v428 = vld [vmem:[%s275 + $0x340] sm:$0xff]
      %v429 = vld [vmem:[%s275 + $0x348] sm:$0xff]
      %v430 = vld [vmem:[%s275 + $0x350] sm:$0xff]
      %v431 = vld [vmem:[%s275 + $0x358] sm:$0xff]
      %v432 = vld [vmem:[%s275 + $0x360] sm:$0xff]
      %v433 = vld [vmem:[%s275 + $0x368] sm:$0xff]
      %v434 = vld [vmem:[%s275 + $0x370] sm:$0xff]
      %v435 = vld [vmem:[%s275 + $0x378] sm:$0xff]
      %v436 = vld [vmem:[%s275 + $0x380] sm:$0xff]
      %v437 = vld [vmem:[%s275 + $0x388] sm:$0xff]
      %v438 = vld [vmem:[%s275 + $0x390] sm:$0xff]
      %v439 = vld [vmem:[%s275 + $0x398] sm:$0xff]
      %v440 = vld [vmem:[%s275 + $0x3a0] sm:$0xff]
      %v441 = vld [vmem:[%s275 + $0x3a8] sm:$0xff]
      %v442 = vld [vmem:[%s275 + $0x3b0] sm:$0xff]
      %v443 = vld [vmem:[%s275 + $0x3b8] sm:$0xff]
      %v444 = vld [vmem:[%s275 + $0x3c0] sm:$0xff]
      %v445 = vld [vmem:[%s275 + $0x3c8] sm:$0xff]
      %v446 = vld [vmem:[%s275 + $0x3d0] sm:$0xff]
      %v447 = vld [vmem:[%s275 + $0x3d8] sm:$0xff]
      %v448 = vld [vmem:[%s275 + $0x3e0] sm:$0xff]
      %v449 = vld [vmem:[%s275 + $0x3e8] sm:$0xff]
      %v450 = vld [vmem:[%s275 + $0x3f0] sm:$0xff]
      %v451 = vld [vmem:[%s275 + $0x3f8] sm:$0xff]
      %v452 = vld [vmem:[%s275 + $0x400] sm:$0xff]
      %v453 = vld [vmem:[%s275 + $0x408] sm:$0xff]
      %v454 = vld [vmem:[%s275 + $0x410] sm:$0xff]
      %v455 = vld [vmem:[%s275 + $0x418] sm:$0xff]
      %v456 = vld [vmem:[%s275 + $0x420] sm:$0xff]
      %v457 = vld [vmem:[%s275 + $0x428] sm:$0xff]
      %v458 = vld [vmem:[%s275 + $0x430] sm:$0xff]
      %v459 = vld [vmem:[%s275 + $0x438] sm:$0xff]
      %v460 = vld [vmem:[%s275 + $0x440] sm:$0xff]
      %v461 = vld [vmem:[%s275 + $0x448] sm:$0xff]
      %v462 = vld [vmem:[%s275 + $0x450] sm:$0xff]
      %v463 = vld [vmem:[%s275 + $0x458] sm:$0xff]
      %v464 = vld [vmem:[%s275 + $0x460] sm:$0xff]
      %v465 = vld [vmem:[%s275 + $0x468] sm:$0xff]
      %v466 = vld [vmem:[%s275 + $0x470] sm:$0xff]
      %v467 = vld [vmem:[%s275 + $0x478] sm:$0xff]
      %v468 = vld [vmem:[%s275 + $0x480] sm:$0xff]
      %v469 = vld [vmem:[%s275 + $0x488] sm:$0xff]
      %v470 = vld [vmem:[%s275 + $0x490] sm:$0xff]
      %v471 = vld [vmem:[%s275 + $0x498] sm:$0xff]
      %v472 = vld [vmem:[%s275 + $0x4a0] sm:$0xff]
      %v473 = vld [vmem:[%s275 + $0x4a8] sm:$0xff]
      %v474 = vld [vmem:[%s275 + $0x4b0] sm:$0xff]
      %v475 = vld [vmem:[%s275 + $0x4b8] sm:$0xff]
      %v476 = vld [vmem:[%s275 + $0x4c0] sm:$0xff]
      %v477 = vld [vmem:[%s275 + $0x4c8] sm:$0xff]
      %v478 = vld [vmem:[%s275 + $0x4d0] sm:$0xff]
      %v479 = vld [vmem:[%s275 + $0x4d8] sm:$0xff]
      %v480 = vld [vmem:[%s275 + $0x4e0] sm:$0xff]
      %v481 = vld [vmem:[%s275 + $0x4e8] sm:$0xff]
      %v482 = vld [vmem:[%s275 + $0x4f0] sm:$0xff]
      %v483 = vld [vmem:[%s275 + $0x4f8] sm:$0xff]
      %v484 = vld [vmem:[%s275 + $0x500] sm:$0xff]
      %v485 = vld [vmem:[%s275 + $0x508] sm:$0xff]
      %v486 = vld [vmem:[%s275 + $0x510] sm:$0xff]
      %v487 = vld [vmem:[%s275 + $0x518] sm:$0xff]
      %v488 = vld [vmem:[%s275 + $0x520] sm:$0xff]
      %v489 = vld [vmem:[%s275 + $0x528] sm:$0xff]
      %v490 = vld [vmem:[%s275 + $0x530] sm:$0xff]
      %v491 = vld [vmem:[%s275 + $0x538] sm:$0xff]
      %v492 = vld [vmem:[%s275 + $0x540] sm:$0xff]
      %v493 = vld [vmem:[%s275 + $0x548] sm:$0xff]
      %v494 = vld [vmem:[%s275 + $0x550] sm:$0xff]
      %v495 = vld [vmem:[%s275 + $0x558] sm:$0xff]
      %v496 = vld [vmem:[%s275 + $0x560] sm:$0xff]
      %v497 = vld [vmem:[%s275 + $0x568] sm:$0xff]
      %v498 = vld [vmem:[%s275 + $0x570] sm:$0xff]
      %v499 = vld [vmem:[%s275 + $0x578] sm:$0xff]
      %v500 = vld [vmem:[%s275 + $0x580] sm:$0xff]
      %v501 = vld [vmem:[%s275 + $0x588] sm:$0xff]
      %v502 = vld [vmem:[%s275 + $0x590] sm:$0xff]
      %v503 = vld [vmem:[%s275 + $0x598] sm:$0xff]
      %v504 = vld [vmem:[%s275 + $0x5a0] sm:$0xff]
      %v505 = vld [vmem:[%s275 + $0x5a8] sm:$0xff]
      %v506 = vld [vmem:[%s275 + $0x5b0] sm:$0xff]
      %v507 = vld [vmem:[%s275 + $0x5b8] sm:$0xff]
      %v508 = vld [vmem:[%s275 + $0x5c0] sm:$0xff]
      %v509 = vld [vmem:[%s275 + $0x5c8] sm:$0xff]
      %v510 = vld [vmem:[%s275 + $0x5d0] sm:$0xff]
      %v511 = vld [vmem:[%s275 + $0x5d8] sm:$0xff]
      %v512 = vld [vmem:[%s275 + $0x5e0] sm:$0xff]
      %v513 = vld [vmem:[%s275 + $0x5e8] sm:$0xff]
      %v514 = vld [vmem:[%s275 + $0x5f0] sm:$0xff]
      %v515 = vld [vmem:[%s275 + $0x5f8] sm:$0xff]
      %v516 = vld [vmem:[%s275 + $0x600] sm:$0xff]
      %v517 = vld [vmem:[%s275 + $0x608] sm:$0xff]
      %v518 = vld [vmem:[%s275 + $0x610] sm:$0xff]
      %v519 = vld [vmem:[%s275 + $0x618] sm:$0xff]
      %v520 = vld [vmem:[%s275 + $0x620] sm:$0xff]
      %v521 = vld [vmem:[%s275 + $0x628] sm:$0xff]
      %v522 = vld [vmem:[%s275 + $0x630] sm:$0xff]
      %v523 = vld [vmem:[%s275 + $0x638] sm:$0xff]
      %v524 = vld [vmem:[%s275 + $0x640] sm:$0xff]
      %v525 = vld [vmem:[%s275 + $0x648] sm:$0xff]
      %v526 = vld [vmem:[%s275 + $0x650] sm:$0xff]
      %v527 = vld [vmem:[%s275 + $0x658] sm:$0xff]
      %v528 = vld [vmem:[%s275 + $0x660] sm:$0xff]
      %v529 = vld [vmem:[%s275 + $0x668] sm:$0xff]
      %v530 = vld [vmem:[%s275 + $0x670] sm:$0xff]
      %v531 = vld [vmem:[%s275 + $0x678] sm:$0xff]
      %v532 = vld [vmem:[%s275 + $0x680] sm:$0xff]
      %v533 = vld [vmem:[%s275 + $0x688] sm:$0xff]
      %v534 = vld [vmem:[%s275 + $0x690] sm:$0xff]
      %v535 = vld [vmem:[%s275 + $0x698] sm:$0xff]
      %v536 = vld [vmem:[%s275 + $0x6a0] sm:$0xff]
      %v537 = vld [vmem:[%s275 + $0x6a8] sm:$0xff]
      %v538 = vld [vmem:[%s275 + $0x6b0] sm:$0xff]
      %v539 = vld [vmem:[%s275 + $0x6b8] sm:$0xff]
      %v540 = vld [vmem:[%s284] sm:$0x3]
      %v542 = vlaneseq
      %v543 = vshrl.u32 %v542, 7
      %v544 = vsub.s32 0, %v543
      %v545 = vrot.slane %v540, %v544
      %v546 = vlaneseq
      %v547 = vshrl.u32 %v546, 7
      %v548 = vsub.s32 1, %v547
      %v549 = vrot.slane %v540, %v548
      %v573 = vunpack.c.l.b16 %v303
      %v574 = vunpack.c.h.b16 %v303
      %v575 = vunpack.c.l.b16 %v304
      %v576 = vunpack.c.h.b16 %v304
      %v577 = vunpack.c.l.b16 %v305
      %v578 = vunpack.c.h.b16 %v305
      %v579 = vunpack.c.l.b16 %v306
      %v580 = vunpack.c.h.b16 %v306
      %v581 = vunpack.c.l.b16 %v307
      %v582 = vunpack.c.h.b16 %v307
      %v583 = vunpack.c.l.b16 %v308
      %v584 = vunpack.c.h.b16 %v308
      %v585 = vunpack.c.l.b16 %v309
      %v586 = vunpack.c.h.b16 %v309
      %v587 = vunpack.c.l.b16 %v310
      %v588 = vunpack.c.h.b16 %v310
      %v589 = vunpack.c.l.b16 %v311
      %v590 = vunpack.c.h.b16 %v311
      %v591 = vunpack.c.l.b16 %v312
      %v592 = vunpack.c.h.b16 %v312
      %v593 = vunpack.c.l.b16 %v313
      %v594 = vunpack.c.h.b16 %v313
      %v595 = vunpack.c.l.b16 %v314
      %v596 = vunpack.c.h.b16 %v314
      %v597 = vunpack.c.l.b16 %v315
      %v598 = vunpack.c.h.b16 %v315
      %v599 = vunpack.c.l.b16 %v316
      %v600 = vunpack.c.h.b16 %v316
      %v601 = vunpack.c.l.b16 %v317
      %v602 = vunpack.c.h.b16 %v317
      %v603 = vunpack.c.l.b16 %v318
      %v604 = vunpack.c.h.b16 %v318
      %v605 = vunpack.c.l.b16 %v319
      %v606 = vunpack.c.h.b16 %v319
      %v607 = vunpack.c.l.b16 %v320
      %v608 = vunpack.c.h.b16 %v320
      %v609 = vunpack.c.l.b16 %v321
      %v610 = vunpack.c.h.b16 %v321
      %v611 = vunpack.c.l.b16 %v322
      %v612 = vunpack.c.h.b16 %v322
      %v613 = vunpack.c.l.b16 %v323
      %v614 = vunpack.c.h.b16 %v323
      %v615 = vpack.c.b16 %v587, %v573
      %v616 = vpack.c.b16 %v588, %v574
      %v617 = vpack.c.b16 %v589, %v575
      %v618 = vpack.c.b16 %v590, %v576
      %v619 = vpack.c.b16 %v591, %v577
      %v620 = vpack.c.b16 %v592, %v578
      %v621 = vpack.c.b16 %v593, %v579
      %v622 = vpack.c.b16 %v594, %v580
      %v623 = vpack.c.b16 %v595, %v581
      %v624 = vpack.c.b16 %v596, %v582
      %v625 = vpack.c.b16 %v597, %v583
      %v626 = vpack.c.b16 %v598, %v584
      %v627 = vpack.c.b16 %v599, %v585
      %v628 = vpack.c.b16 %v600, %v586
      %v629 = vpack.c.b16 %v601, %v601
      %v630 = vpack.c.b16 %v602, %v602
      %v631 = vpack.c.b16 %v603, %v603
      %v632 = vpack.c.b16 %v604, %v604
      %v633 = vpack.c.b16 %v605, %v605
      %v634 = vpack.c.b16 %v606, %v606
      %v635 = vpack.c.b16 %v607, %v607
      %v636 = vpack.c.b16 %v608, %v608
      %v637 = vpack.c.b16 %v609, %v609
      %v638 = vpack.c.b16 %v610, %v610
      %v639 = vpack.c.b16 %v611, %v611
      %v640 = vpack.c.b16 %v612, %v612
      %v641 = vpack.c.b16 %v613, %v613
      %v642 = vpack.c.b16 %v614, %v614
      %v885 = vunpack.c.l.b16 %v324
      %v886 = vunpack.c.h.b16 %v324
      %v887 = vunpack.c.l.b16 %v325
      %v888 = vunpack.c.h.b16 %v325
      %v889 = vunpack.c.l.b16 %v326
      %v890 = vunpack.c.h.b16 %v326
      %v891 = vunpack.c.l.b16 %v327
      %v892 = vunpack.c.h.b16 %v327
      %v893 = vunpack.c.l.b16 %v328
      %v894 = vunpack.c.h.b16 %v328
      %v895 = vunpack.c.l.b16 %v329
      %v896 = vunpack.c.h.b16 %v329
      %v897 = vunpack.c.l.b16 %v330
      %v898 = vunpack.c.h.b16 %v330
      %v899 = vunpack.c.l.b16 %v331
      %v900 = vunpack.c.h.b16 %v331
      %v901 = vunpack.c.l.b16 %v332
      %v902 = vunpack.c.h.b16 %v332
      %v903 = vunpack.c.l.b16 %v333
      %v904 = vunpack.c.h.b16 %v333
      %v905 = vunpack.c.l.b16 %v334
      %v906 = vunpack.c.h.b16 %v334
      %v907 = vunpack.c.l.b16 %v335
      %v908 = vunpack.c.h.b16 %v335
      %v909 = vunpack.c.l.b16 %v336
      %v910 = vunpack.c.h.b16 %v336
      %v911 = vunpack.c.l.b16 %v337
      %v912 = vunpack.c.h.b16 %v337
      %v913 = vunpack.c.l.b16 %v338
      %v914 = vunpack.c.h.b16 %v338
      %v915 = vunpack.c.l.b16 %v339
      %v916 = vunpack.c.h.b16 %v339
      %v917 = vunpack.c.l.b16 %v340
      %v918 = vunpack.c.h.b16 %v340
      %v919 = vunpack.c.l.b16 %v341
      %v920 = vunpack.c.h.b16 %v341
      %v921 = vunpack.c.l.b16 %v342
      %v922 = vunpack.c.h.b16 %v342
      %v923 = vunpack.c.l.b16 %v343
      %v924 = vunpack.c.h.b16 %v343
      %v925 = vunpack.c.l.b16 %v344
      %v926 = vunpack.c.h.b16 %v344
      %v927 = vunpack.c.l.b16 %v345
      %v928 = vunpack.c.h.b16 %v345
      %v929 = vunpack.c.l.b16 %v346
      %v930 = vunpack.c.h.b16 %v346
      %v931 = vunpack.c.l.b16 %v347
      %v932 = vunpack.c.h.b16 %v347
      %v933 = vunpack.c.l.b16 %v348
      %v934 = vunpack.c.h.b16 %v348
      %v935 = vunpack.c.l.b16 %v349
      %v936 = vunpack.c.h.b16 %v349
      %v937 = vunpack.c.l.b16 %v350
      %v938 = vunpack.c.h.b16 %v350
      %v939 = vunpack.c.l.b16 %v351
      %v940 = vunpack.c.h.b16 %v351
      %v941 = vunpack.c.l.b16 %v352
      %v942 = vunpack.c.h.b16 %v352
      %v943 = vunpack.c.l.b16 %v353
      %v944 = vunpack.c.h.b16 %v353
      %v945 = vunpack.c.l.b16 %v354
      %v946 = vunpack.c.h.b16 %v354
      %v947 = vunpack.c.l.b16 %v355
      %v948 = vunpack.c.h.b16 %v355
      %v949 = vunpack.c.l.b16 %v356
      %v950 = vunpack.c.h.b16 %v356
      %v951 = vunpack.c.l.b16 %v357
      %v952 = vunpack.c.h.b16 %v357
      %v953 = vunpack.c.l.b16 %v358
      %v954 = vunpack.c.h.b16 %v358
      %v955 = vunpack.c.l.b16 %v359
      %v956 = vunpack.c.h.b16 %v359
      %v957 = vunpack.c.l.b16 %v360
      %v958 = vunpack.c.h.b16 %v360
      %v959 = vunpack.c.l.b16 %v361
      %v960 = vunpack.c.h.b16 %v361
      %v961 = vunpack.c.l.b16 %v362
      %v962 = vunpack.c.h.b16 %v362
      %v963 = vunpack.c.l.b16 %v363
      %v964 = vunpack.c.h.b16 %v363
      %v965 = vunpack.c.l.b16 %v364
      %v966 = vunpack.c.h.b16 %v364
      %v967 = vunpack.c.l.b16 %v365
      %v968 = vunpack.c.h.b16 %v365
      %v969 = vunpack.c.l.b16 %v366
      %v970 = vunpack.c.h.b16 %v366
      %v971 = vunpack.c.l.b16 %v367
      %v972 = vunpack.c.h.b16 %v367
      %v973 = vunpack.c.l.b16 %v368
      %v974 = vunpack.c.h.b16 %v368
      %v975 = vunpack.c.l.b16 %v369
      %v976 = vunpack.c.h.b16 %v369
      %v977 = vunpack.c.l.b16 %v370
      %v978 = vunpack.c.h.b16 %v370
      %v979 = vunpack.c.l.b16 %v371
      %v980 = vunpack.c.h.b16 %v371
      %v981 = vunpack.c.l.b16 %v372
      %v982 = vunpack.c.h.b16 %v372
      %v983 = vunpack.c.l.b16 %v373
      %v984 = vunpack.c.h.b16 %v373
      %v985 = vunpack.c.l.b16 %v374
      %v986 = vunpack.c.h.b16 %v374
      %v987 = vunpack.c.l.b16 %v375
      %v988 = vunpack.c.h.b16 %v375
      %v989 = vunpack.c.l.b16 %v376
      %v990 = vunpack.c.h.b16 %v376
      %v991 = vunpack.c.l.b16 %v377
      %v992 = vunpack.c.h.b16 %v377
      %v993 = vunpack.c.l.b16 %v378
      %v994 = vunpack.c.h.b16 %v378
      %v995 = vunpack.c.l.b16 %v379
      %v996 = vunpack.c.h.b16 %v379
      %v997 = vunpack.c.l.b16 %v380
      %v998 = vunpack.c.h.b16 %v380
      %v999 = vunpack.c.l.b16 %v381
      %v1000 = vunpack.c.h.b16 %v381
      %v1001 = vunpack.c.l.b16 %v382
      %v1002 = vunpack.c.h.b16 %v382
      %v1003 = vunpack.c.l.b16 %v383
      %v1004 = vunpack.c.h.b16 %v383
      %v1005 = vunpack.c.l.b16 %v384
      %v1006 = vunpack.c.h.b16 %v384
      %v1007 = vunpack.c.l.b16 %v385
      %v1008 = vunpack.c.h.b16 %v385
      %v1009 = vunpack.c.l.b16 %v386
      %v1010 = vunpack.c.h.b16 %v386
      %v1011 = vunpack.c.l.b16 %v387
      %v1012 = vunpack.c.h.b16 %v387
      %v1013 = vunpack.c.l.b16 %v388
      %v1014 = vunpack.c.h.b16 %v388
      %v1015 = vunpack.c.l.b16 %v389
      %v1016 = vunpack.c.h.b16 %v389
      %v1017 = vunpack.c.l.b16 %v390
      %v1018 = vunpack.c.h.b16 %v390
      %v1019 = vunpack.c.l.b16 %v391
      %v1020 = vunpack.c.h.b16 %v391
      %v1021 = vunpack.c.l.b16 %v392
      %v1022 = vunpack.c.h.b16 %v392
      %v1023 = vunpack.c.l.b16 %v393
      %v1024 = vunpack.c.h.b16 %v393
      %v1025 = vunpack.c.l.b16 %v394
      %v1026 = vunpack.c.h.b16 %v394
      %v1027 = vunpack.c.l.b16 %v395
      %v1028 = vunpack.c.h.b16 %v395
      %v1029 = vunpack.c.l.b16 %v396
      %v1030 = vunpack.c.h.b16 %v396
      %v1031 = vunpack.c.l.b16 %v397
      %v1032 = vunpack.c.h.b16 %v397
      %v1033 = vunpack.c.l.b16 %v398
      %v1034 = vunpack.c.h.b16 %v398
      %v1035 = vunpack.c.l.b16 %v399
      %v1036 = vunpack.c.h.b16 %v399
      %v1037 = vunpack.c.l.b16 %v400
      %v1038 = vunpack.c.h.b16 %v400
      %v1039 = vunpack.c.l.b16 %v401
      %v1040 = vunpack.c.h.b16 %v401
      %v1041 = vunpack.c.l.b16 %v402
      %v1042 = vunpack.c.h.b16 %v402
      %v1043 = vunpack.c.l.b16 %v403
      %v1044 = vunpack.c.h.b16 %v403
      %v1045 = vunpack.c.l.b16 %v404
      %v1046 = vunpack.c.h.b16 %v404
      %v1047 = vunpack.c.l.b16 %v405
      %v1048 = vunpack.c.h.b16 %v405
      %v1049 = vunpack.c.l.b16 %v406
      %v1050 = vunpack.c.h.b16 %v406
      %v1051 = vunpack.c.l.b16 %v407
      %v1052 = vunpack.c.h.b16 %v407
      %v1053 = vunpack.c.l.b16 %v408
      %v1054 = vunpack.c.h.b16 %v408
      %v1055 = vunpack.c.l.b16 %v409
      %v1056 = vunpack.c.h.b16 %v409
      %v1057 = vunpack.c.l.b16 %v410
      %v1058 = vunpack.c.h.b16 %v410
      %v1059 = vunpack.c.l.b16 %v411
      %v1060 = vunpack.c.h.b16 %v411
      %v1061 = vunpack.c.l.b16 %v412
      %v1062 = vunpack.c.h.b16 %v412
      %v1063 = vunpack.c.l.b16 %v413
      %v1064 = vunpack.c.h.b16 %v413
      %v1065 = vunpack.c.l.b16 %v414
      %v1066 = vunpack.c.h.b16 %v414
      %v1067 = vunpack.c.l.b16 %v415
      %v1068 = vunpack.c.h.b16 %v415
      %v1069 = vunpack.c.l.b16 %v416
      %v1070 = vunpack.c.h.b16 %v416
      %v1071 = vunpack.c.l.b16 %v417
      %v1072 = vunpack.c.h.b16 %v417
      %v1073 = vunpack.c.l.b16 %v418
      %v1074 = vunpack.c.h.b16 %v418
      %v1075 = vunpack.c.l.b16 %v419
      %v1076 = vunpack.c.h.b16 %v419
      %v1077 = vunpack.c.l.b16 %v420
      %v1078 = vunpack.c.h.b16 %v420
      %v1079 = vunpack.c.l.b16 %v421
      %v1080 = vunpack.c.h.b16 %v421
      %v1081 = vunpack.c.l.b16 %v422
      %v1082 = vunpack.c.h.b16 %v422
      %v1083 = vunpack.c.l.b16 %v423
      %v1084 = vunpack.c.h.b16 %v423
      %v1085 = vunpack.c.l.b16 %v424
      %v1086 = vunpack.c.h.b16 %v424
      %v1087 = vunpack.c.l.b16 %v425
      %v1088 = vunpack.c.h.b16 %v425
      %v1089 = vunpack.c.l.b16 %v426
      %v1090 = vunpack.c.h.b16 %v426
      %v1091 = vunpack.c.l.b16 %v427
      %v1092 = vunpack.c.h.b16 %v427
      %v1093 = vunpack.c.l.b16 %v428
      %v1094 = vunpack.c.h.b16 %v428
      %v1095 = vunpack.c.l.b16 %v429
      %v1096 = vunpack.c.h.b16 %v429
      %v1097 = vunpack.c.l.b16 %v430
      %v1098 = vunpack.c.h.b16 %v430
      %v1099 = vunpack.c.l.b16 %v431
      %v1100 = vunpack.c.h.b16 %v431
      %v1101 = vunpack.c.l.b16 %v432
      %v1102 = vunpack.c.h.b16 %v432
      %v1103 = vunpack.c.l.b16 %v433
      %v1104 = vunpack.c.h.b16 %v433
      %v1105 = vunpack.c.l.b16 %v434
      %v1106 = vunpack.c.h.b16 %v434
      %v1107 = vunpack.c.l.b16 %v435
      %v1108 = vunpack.c.h.b16 %v435
      %v1109 = vunpack.c.l.b16 %v436
      %v1110 = vunpack.c.h.b16 %v436
      %v1111 = vunpack.c.l.b16 %v437
      %v1112 = vunpack.c.h.b16 %v437
      %v1113 = vunpack.c.l.b16 %v438
      %v1114 = vunpack.c.h.b16 %v438
      %v1115 = vunpack.c.l.b16 %v439
      %v1116 = vunpack.c.h.b16 %v439
      %v1117 = vunpack.c.l.b16 %v440
      %v1118 = vunpack.c.h.b16 %v440
      %v1119 = vunpack.c.l.b16 %v441
      %v1120 = vunpack.c.h.b16 %v441
      %v1121 = vunpack.c.l.b16 %v442
      %v1122 = vunpack.c.h.b16 %v442
      %v1123 = vunpack.c.l.b16 %v443
      %v1124 = vunpack.c.h.b16 %v443
      %v1125 = vunpack.c.l.b16 %v444
      %v1126 = vunpack.c.h.b16 %v444
      %v1127 = vunpack.c.l.b16 %v445
      %v1128 = vunpack.c.h.b16 %v445
      %v1129 = vunpack.c.l.b16 %v446
      %v1130 = vunpack.c.h.b16 %v446
      %v1131 = vunpack.c.l.b16 %v447
      %v1132 = vunpack.c.h.b16 %v447
      %v1133 = vunpack.c.l.b16 %v448
      %v1134 = vunpack.c.h.b16 %v448
      %v1135 = vunpack.c.l.b16 %v449
      %v1136 = vunpack.c.h.b16 %v449
      %v1137 = vunpack.c.l.b16 %v450
      %v1138 = vunpack.c.h.b16 %v450
      %v1139 = vunpack.c.l.b16 %v451
      %v1140 = vunpack.c.h.b16 %v451
      %v1141 = vunpack.c.l.b16 %v452
      %v1142 = vunpack.c.h.b16 %v452
      %v1143 = vunpack.c.l.b16 %v453
      %v1144 = vunpack.c.h.b16 %v453
      %v1145 = vunpack.c.l.b16 %v454
      %v1146 = vunpack.c.h.b16 %v454
      %v1147 = vunpack.c.l.b16 %v455
      %v1148 = vunpack.c.h.b16 %v455
      %v1149 = vunpack.c.l.b16 %v456
      %v1150 = vunpack.c.h.b16 %v456
      %v1151 = vunpack.c.l.b16 %v457
      %v1152 = vunpack.c.h.b16 %v457
      %v1153 = vunpack.c.l.b16 %v458
      %v1154 = vunpack.c.h.b16 %v458
      %v1155 = vunpack.c.l.b16 %v459
      %v1156 = vunpack.c.h.b16 %v459
      %v1157 = vunpack.c.l.b16 %v460
      %v1158 = vunpack.c.h.b16 %v460
      %v1159 = vunpack.c.l.b16 %v461
      %v1160 = vunpack.c.h.b16 %v461
      %v1161 = vunpack.c.l.b16 %v462
      %v1162 = vunpack.c.h.b16 %v462
      %v1163 = vunpack.c.l.b16 %v463
      %v1164 = vunpack.c.h.b16 %v463
      %v1165 = vunpack.c.l.b16 %v464
      %v1166 = vunpack.c.h.b16 %v464
      %v1167 = vunpack.c.l.b16 %v465
      %v1168 = vunpack.c.h.b16 %v465
      %v1169 = vunpack.c.l.b16 %v466
      %v1170 = vunpack.c.h.b16 %v466
      %v1171 = vunpack.c.l.b16 %v467
      %v1172 = vunpack.c.h.b16 %v467
      %v1173 = vunpack.c.l.b16 %v468
      %v1174 = vunpack.c.h.b16 %v468
      %v1175 = vunpack.c.l.b16 %v469
      %v1176 = vunpack.c.h.b16 %v469
      %v1177 = vunpack.c.l.b16 %v470
      %v1178 = vunpack.c.h.b16 %v470
      %v1179 = vunpack.c.l.b16 %v471
      %v1180 = vunpack.c.h.b16 %v471
      %v1181 = vunpack.c.l.b16 %v472
      %v1182 = vunpack.c.h.b16 %v472
      %v1183 = vunpack.c.l.b16 %v473
      %v1184 = vunpack.c.h.b16 %v473
      %v1185 = vunpack.c.l.b16 %v474
      %v1186 = vunpack.c.h.b16 %v474
      %v1187 = vunpack.c.l.b16 %v475
      %v1188 = vunpack.c.h.b16 %v475
      %v1189 = vunpack.c.l.b16 %v476
      %v1190 = vunpack.c.h.b16 %v476
      %v1191 = vunpack.c.l.b16 %v477
      %v1192 = vunpack.c.h.b16 %v477
      %v1193 = vunpack.c.l.b16 %v478
      %v1194 = vunpack.c.h.b16 %v478
      %v1195 = vunpack.c.l.b16 %v479
      %v1196 = vunpack.c.h.b16 %v479
      %v1197 = vunpack.c.l.b16 %v480
      %v1198 = vunpack.c.h.b16 %v480
      %v1199 = vunpack.c.l.b16 %v481
      %v1200 = vunpack.c.h.b16 %v481
      %v1201 = vunpack.c.l.b16 %v482
      %v1202 = vunpack.c.h.b16 %v482
      %v1203 = vunpack.c.l.b16 %v483
      %v1204 = vunpack.c.h.b16 %v483
      %v1205 = vunpack.c.l.b16 %v484
      %v1206 = vunpack.c.h.b16 %v484
      %v1207 = vunpack.c.l.b16 %v485
      %v1208 = vunpack.c.h.b16 %v485
      %v1209 = vunpack.c.l.b16 %v486
      %v1210 = vunpack.c.h.b16 %v486
      %v1211 = vunpack.c.l.b16 %v487
      %v1212 = vunpack.c.h.b16 %v487
      %v1213 = vunpack.c.l.b16 %v488
      %v1214 = vunpack.c.h.b16 %v488
      %v1215 = vunpack.c.l.b16 %v489
      %v1216 = vunpack.c.h.b16 %v489
      %v1217 = vunpack.c.l.b16 %v490
      %v1218 = vunpack.c.h.b16 %v490
      %v1219 = vunpack.c.l.b16 %v491
      %v1220 = vunpack.c.h.b16 %v491
      %v1221 = vunpack.c.l.b16 %v492
      %v1222 = vunpack.c.h.b16 %v492
      %v1223 = vunpack.c.l.b16 %v493
      %v1224 = vunpack.c.h.b16 %v493
      %v1225 = vunpack.c.l.b16 %v494
      %v1226 = vunpack.c.h.b16 %v494
      %v1227 = vunpack.c.l.b16 %v495
      %v1228 = vunpack.c.h.b16 %v495
      %v1229 = vunpack.c.l.b16 %v496
      %v1230 = vunpack.c.h.b16 %v496
      %v1231 = vunpack.c.l.b16 %v497
      %v1232 = vunpack.c.h.b16 %v497
      %v1233 = vunpack.c.l.b16 %v498
      %v1234 = vunpack.c.h.b16 %v498
      %v1235 = vunpack.c.l.b16 %v499
      %v1236 = vunpack.c.h.b16 %v499
      %v1237 = vunpack.c.l.b16 %v500
      %v1238 = vunpack.c.h.b16 %v500
      %v1239 = vunpack.c.l.b16 %v501
      %v1240 = vunpack.c.h.b16 %v501
      %v1241 = vunpack.c.l.b16 %v502
      %v1242 = vunpack.c.h.b16 %v502
      %v1243 = vunpack.c.l.b16 %v503
      %v1244 = vunpack.c.h.b16 %v503
      %v1245 = vunpack.c.l.b16 %v504
      %v1246 = vunpack.c.h.b16 %v504
      %v1247 = vunpack.c.l.b16 %v505
      %v1248 = vunpack.c.h.b16 %v505
      %v1249 = vunpack.c.l.b16 %v506
      %v1250 = vunpack.c.h.b16 %v506
      %v1251 = vunpack.c.l.b16 %v507
      %v1252 = vunpack.c.h.b16 %v507
      %v1253 = vunpack.c.l.b16 %v508
      %v1254 = vunpack.c.h.b16 %v508
      %v1255 = vunpack.c.l.b16 %v509
      %v1256 = vunpack.c.h.b16 %v509
      %v1257 = vunpack.c.l.b16 %v510
      %v1258 = vunpack.c.h.b16 %v510
      %v1259 = vunpack.c.l.b16 %v511
      %v1260 = vunpack.c.h.b16 %v511
      %v1261 = vunpack.c.l.b16 %v512
      %v1262 = vunpack.c.h.b16 %v512
      %v1263 = vunpack.c.l.b16 %v513
      %v1264 = vunpack.c.h.b16 %v513
      %v1265 = vunpack.c.l.b16 %v514
      %v1266 = vunpack.c.h.b16 %v514
      %v1267 = vunpack.c.l.b16 %v515
      %v1268 = vunpack.c.h.b16 %v515
      %v1269 = vunpack.c.l.b16 %v516
      %v1270 = vunpack.c.h.b16 %v516
      %v1271 = vunpack.c.l.b16 %v517
      %v1272 = vunpack.c.h.b16 %v517
      %v1273 = vunpack.c.l.b16 %v518
      %v1274 = vunpack.c.h.b16 %v518
      %v1275 = vunpack.c.l.b16 %v519
      %v1276 = vunpack.c.h.b16 %v519
      %v1277 = vunpack.c.l.b16 %v520
      %v1278 = vunpack.c.h.b16 %v520
      %v1279 = vunpack.c.l.b16 %v521
      %v1280 = vunpack.c.h.b16 %v521
      %v1281 = vunpack.c.l.b16 %v522
      %v1282 = vunpack.c.h.b16 %v522
      %v1283 = vunpack.c.l.b16 %v523
      %v1284 = vunpack.c.h.b16 %v523
      %v1285 = vunpack.c.l.b16 %v524
      %v1286 = vunpack.c.h.b16 %v524
      %v1287 = vunpack.c.l.b16 %v525
      %v1288 = vunpack.c.h.b16 %v525
      %v1289 = vunpack.c.l.b16 %v526
      %v1290 = vunpack.c.h.b16 %v526
      %v1291 = vunpack.c.l.b16 %v527
      %v1292 = vunpack.c.h.b16 %v527
      %v1293 = vunpack.c.l.b16 %v528
      %v1294 = vunpack.c.h.b16 %v528
      %v1295 = vunpack.c.l.b16 %v529
      %v1296 = vunpack.c.h.b16 %v529
      %v1297 = vunpack.c.l.b16 %v530
      %v1298 = vunpack.c.h.b16 %v530
      %v1299 = vunpack.c.l.b16 %v531
      %v1300 = vunpack.c.h.b16 %v531
      %v1301 = vunpack.c.l.b16 %v532
      %v1302 = vunpack.c.h.b16 %v532
      %v1303 = vunpack.c.l.b16 %v533
      %v1304 = vunpack.c.h.b16 %v533
      %v1305 = vunpack.c.l.b16 %v534
      %v1306 = vunpack.c.h.b16 %v534
      %v1307 = vunpack.c.l.b16 %v535
      %v1308 = vunpack.c.h.b16 %v535
      %v1309 = vunpack.c.l.b16 %v536
      %v1310 = vunpack.c.h.b16 %v536
      %v1311 = vunpack.c.l.b16 %v537
      %v1312 = vunpack.c.h.b16 %v537
      %v1313 = vunpack.c.l.b16 %v538
      %v1314 = vunpack.c.h.b16 %v538
      %v1315 = vunpack.c.l.b16 %v539
      %v1316 = vunpack.c.h.b16 %v539
      %v1317 = vpack.c.b16 %v887, %v885
      %v1318 = vpack.c.b16 %v888, %v886
      %v1319 = vpack.c.b16 %v891, %v889
      %v1320 = vpack.c.b16 %v892, %v890
      %v1321 = vpack.c.b16 %v895, %v893
      %v1322 = vpack.c.b16 %v896, %v894
      %v1323 = vpack.c.b16 %v899, %v897
      %v1324 = vpack.c.b16 %v900, %v898
      %v1325 = vpack.c.b16 %v903, %v901
      %v1326 = vpack.c.b16 %v904, %v902
      %v1327 = vpack.c.b16 %v907, %v905
      %v1328 = vpack.c.b16 %v908, %v906
      %v1329 = vpack.c.b16 %v911, %v909
      %v1330 = vpack.c.b16 %v912, %v910
      %v1331 = vpack.c.b16 %v915, %v913
      %v1332 = vpack.c.b16 %v916, %v914
      %v1333 = vpack.c.b16 %v919, %v917
      %v1334 = vpack.c.b16 %v920, %v918
      %v1335 = vpack.c.b16 %v923, %v921
      %v1336 = vpack.c.b16 %v924, %v922
      %v1337 = vpack.c.b16 %v927, %v925
      %v1338 = vpack.c.b16 %v928, %v926
      %v1339 = vpack.c.b16 %v931, %v929
      %v1340 = vpack.c.b16 %v932, %v930
      %v1341 = vpack.c.b16 %v935, %v933
      %v1342 = vpack.c.b16 %v936, %v934
      %v1343 = vpack.c.b16 %v939, %v937
      %v1344 = vpack.c.b16 %v940, %v938
      %v1345 = vpack.c.b16 %v943, %v941
      %v1346 = vpack.c.b16 %v944, %v942
      %v1347 = vpack.c.b16 %v947, %v945
      %v1348 = vpack.c.b16 %v948, %v946
      %v1349 = vpack.c.b16 %v951, %v949
      %v1350 = vpack.c.b16 %v952, %v950
      %v1351 = vpack.c.b16 %v955, %v953
      %v1352 = vpack.c.b16 %v956, %v954
      %v1353 = vpack.c.b16 %v959, %v957
      %v1354 = vpack.c.b16 %v960, %v958
      %v1355 = vpack.c.b16 %v963, %v961
      %v1356 = vpack.c.b16 %v964, %v962
      %v1357 = vpack.c.b16 %v967, %v965
      %v1358 = vpack.c.b16 %v968, %v966
      %v1359 = vpack.c.b16 %v971, %v969
      %v1360 = vpack.c.b16 %v972, %v970
      %v1361 = vpack.c.b16 %v975, %v973
      %v1362 = vpack.c.b16 %v976, %v974
      %v1363 = vpack.c.b16 %v979, %v977
      %v1364 = vpack.c.b16 %v980, %v978
      %v1365 = vpack.c.b16 %v983, %v981
      %v1366 = vpack.c.b16 %v984, %v982
      %v1367 = vpack.c.b16 %v987, %v985
      %v1368 = vpack.c.b16 %v988, %v986
      %v1369 = vpack.c.b16 %v991, %v989
      %v1370 = vpack.c.b16 %v992, %v990
      %v1371 = vpack.c.b16 %v995, %v993
      %v1372 = vpack.c.b16 %v996, %v994
      %v1373 = vpack.c.b16 %v999, %v997
      %v1374 = vpack.c.b16 %v1000, %v998
      %v1375 = vpack.c.b16 %v1003, %v1001
      %v1376 = vpack.c.b16 %v1004, %v1002
      %v1377 = vpack.c.b16 %v1007, %v1005
      %v1378 = vpack.c.b16 %v1008, %v1006
      %v1379 = vpack.c.b16 %v1011, %v1009
      %v1380 = vpack.c.b16 %v1012, %v1010
      %v1381 = vpack.c.b16 %v1015, %v1013
      %v1382 = vpack.c.b16 %v1016, %v1014
      %v1383 = vpack.c.b16 %v1019, %v1017
      %v1384 = vpack.c.b16 %v1020, %v1018
      %v1385 = vpack.c.b16 %v1023, %v1021
      %v1386 = vpack.c.b16 %v1024, %v1022
      %v1387 = vpack.c.b16 %v1027, %v1025
      %v1388 = vpack.c.b16 %v1028, %v1026
      %v1389 = vpack.c.b16 %v1031, %v1029
      %v1390 = vpack.c.b16 %v1032, %v1030
      %v1391 = vpack.c.b16 %v1035, %v1033
      %v1392 = vpack.c.b16 %v1036, %v1034
      %v1393 = vpack.c.b16 %v1039, %v1037
      %v1394 = vpack.c.b16 %v1040, %v1038
      %v1395 = vpack.c.b16 %v1043, %v1041
      %v1396 = vpack.c.b16 %v1044, %v1042
      %v1397 = vpack.c.b16 %v1047, %v1045
      %v1398 = vpack.c.b16 %v1048, %v1046
      %v1399 = vpack.c.b16 %v1051, %v1049
      %v1400 = vpack.c.b16 %v1052, %v1050
      %v1401 = vpack.c.b16 %v1055, %v1053
      %v1402 = vpack.c.b16 %v1056, %v1054
      %v1403 = vpack.c.b16 %v1059, %v1057
      %v1404 = vpack.c.b16 %v1060, %v1058
      %v1405 = vpack.c.b16 %v1063, %v1061
      %v1406 = vpack.c.b16 %v1064, %v1062
      %v1407 = vpack.c.b16 %v1067, %v1065
      %v1408 = vpack.c.b16 %v1068, %v1066
      %v1409 = vpack.c.b16 %v1071, %v1069
      %v1410 = vpack.c.b16 %v1072, %v1070
      %v1411 = vpack.c.b16 %v1075, %v1073
      %v1412 = vpack.c.b16 %v1076, %v1074
      %v1413 = vpack.c.b16 %v1079, %v1077
      %v1414 = vpack.c.b16 %v1080, %v1078
      %v1415 = vpack.c.b16 %v1083, %v1081
      %v1416 = vpack.c.b16 %v1084, %v1082
      %v1417 = vpack.c.b16 %v1087, %v1085
      %v1418 = vpack.c.b16 %v1088, %v1086
      %v1419 = vpack.c.b16 %v1091, %v1089
      %v1420 = vpack.c.b16 %v1092, %v1090
      %v1421 = vpack.c.b16 %v1095, %v1093
      %v1422 = vpack.c.b16 %v1096, %v1094
      %v1423 = vpack.c.b16 %v1099, %v1097
      %v1424 = vpack.c.b16 %v1100, %v1098
      %v1425 = vpack.c.b16 %v1103, %v1101
      %v1426 = vpack.c.b16 %v1104, %v1102
      %v1427 = vpack.c.b16 %v1107, %v1105
      %v1428 = vpack.c.b16 %v1108, %v1106
      %v1429 = vpack.c.b16 %v1111, %v1109
      %v1430 = vpack.c.b16 %v1112, %v1110
      %v1431 = vpack.c.b16 %v1115, %v1113
      %v1432 = vpack.c.b16 %v1116, %v1114
      %v1433 = vpack.c.b16 %v1119, %v1117
      %v1434 = vpack.c.b16 %v1120, %v1118
      %v1435 = vpack.c.b16 %v1123, %v1121
      %v1436 = vpack.c.b16 %v1124, %v1122
      %v1437 = vpack.c.b16 %v1127, %v1125
      %v1438 = vpack.c.b16 %v1128, %v1126
      %v1439 = vpack.c.b16 %v1131, %v1129
      %v1440 = vpack.c.b16 %v1132, %v1130
      %v1441 = vpack.c.b16 %v1135, %v1133
      %v1442 = vpack.c.b16 %v1136, %v1134
      %v1443 = vpack.c.b16 %v1139, %v1137
      %v1444 = vpack.c.b16 %v1140, %v1138
      %v1445 = vpack.c.b16 %v1143, %v1141
      %v1446 = vpack.c.b16 %v1144, %v1142
      %v1447 = vpack.c.b16 %v1147, %v1145
      %v1448 = vpack.c.b16 %v1148, %v1146
      %v1449 = vpack.c.b16 %v1151, %v1149
      %v1450 = vpack.c.b16 %v1152, %v1150
      %v1451 = vpack.c.b16 %v1155, %v1153
      %v1452 = vpack.c.b16 %v1156, %v1154
      %v1453 = vpack.c.b16 %v1159, %v1157
      %v1454 = vpack.c.b16 %v1160, %v1158
      %v1455 = vpack.c.b16 %v1163, %v1161
      %v1456 = vpack.c.b16 %v1164, %v1162
      %v1457 = vpack.c.b16 %v1167, %v1165
      %v1458 = vpack.c.b16 %v1168, %v1166
      %v1459 = vpack.c.b16 %v1171, %v1169
      %v1460 = vpack.c.b16 %v1172, %v1170
      %v1461 = vpack.c.b16 %v1175, %v1173
      %v1462 = vpack.c.b16 %v1176, %v1174
      %v1463 = vpack.c.b16 %v1179, %v1177
      %v1464 = vpack.c.b16 %v1180, %v1178
      %v1465 = vpack.c.b16 %v1183, %v1181
      %v1466 = vpack.c.b16 %v1184, %v1182
      %v1467 = vpack.c.b16 %v1187, %v1185
      %v1468 = vpack.c.b16 %v1188, %v1186
      %v1469 = vpack.c.b16 %v1191, %v1189
      %v1470 = vpack.c.b16 %v1192, %v1190
      %v1471 = vpack.c.b16 %v1195, %v1193
      %v1472 = vpack.c.b16 %v1196, %v1194
      %v1473 = vpack.c.b16 %v1199, %v1197
      %v1474 = vpack.c.b16 %v1200, %v1198
      %v1475 = vpack.c.b16 %v1203, %v1201
      %v1476 = vpack.c.b16 %v1204, %v1202
      %v1477 = vpack.c.b16 %v1207, %v1205
      %v1478 = vpack.c.b16 %v1208, %v1206
      %v1479 = vpack.c.b16 %v1211, %v1209
      %v1480 = vpack.c.b16 %v1212, %v1210
      %v1481 = vpack.c.b16 %v1215, %v1213
      %v1482 = vpack.c.b16 %v1216, %v1214
      %v1483 = vpack.c.b16 %v1219, %v1217
      %v1484 = vpack.c.b16 %v1220, %v1218
      %v1485 = vpack.c.b16 %v1223, %v1221
      %v1486 = vpack.c.b16 %v1224, %v1222
      %v1487 = vpack.c.b16 %v1227, %v1225
      %v1488 = vpack.c.b16 %v1228, %v1226
      %v1489 = vpack.c.b16 %v1231, %v1229
      %v1490 = vpack.c.b16 %v1232, %v1230
      %v1491 = vpack.c.b16 %v1235, %v1233
      %v1492 = vpack.c.b16 %v1236, %v1234
      %v1493 = vpack.c.b16 %v1239, %v1237
      %v1494 = vpack.c.b16 %v1240, %v1238
      %v1495 = vpack.c.b16 %v1243, %v1241
      %v1496 = vpack.c.b16 %v1244, %v1242
      %v1497 = vpack.c.b16 %v1247, %v1245
      %v1498 = vpack.c.b16 %v1248, %v1246
      %v1499 = vpack.c.b16 %v1251, %v1249
      %v1500 = vpack.c.b16 %v1252, %v1250
      %v1501 = vpack.c.b16 %v1255, %v1253
      %v1502 = vpack.c.b16 %v1256, %v1254
      %v1503 = vpack.c.b16 %v1259, %v1257
      %v1504 = vpack.c.b16 %v1260, %v1258
      %v1505 = vpack.c.b16 %v1263, %v1261
      %v1506 = vpack.c.b16 %v1264, %v1262
      %v1507 = vpack.c.b16 %v1267, %v1265
      %v1508 = vpack.c.b16 %v1268, %v1266
      %v1509 = vpack.c.b16 %v1271, %v1269
      %v1510 = vpack.c.b16 %v1272, %v1270
      %v1511 = vpack.c.b16 %v1275, %v1273
      %v1512 = vpack.c.b16 %v1276, %v1274
      %v1513 = vpack.c.b16 %v1279, %v1277
      %v1514 = vpack.c.b16 %v1280, %v1278
      %v1515 = vpack.c.b16 %v1283, %v1281
      %v1516 = vpack.c.b16 %v1284, %v1282
      %v1517 = vpack.c.b16 %v1287, %v1285
      %v1518 = vpack.c.b16 %v1288, %v1286
      %v1519 = vpack.c.b16 %v1291, %v1289
      %v1520 = vpack.c.b16 %v1292, %v1290
      %v1521 = vpack.c.b16 %v1295, %v1293
      %v1522 = vpack.c.b16 %v1296, %v1294
      %v1523 = vpack.c.b16 %v1299, %v1297
      %v1524 = vpack.c.b16 %v1300, %v1298
      %v1525 = vpack.c.b16 %v1303, %v1301
      %v1526 = vpack.c.b16 %v1304, %v1302
      %v1527 = vpack.c.b16 %v1307, %v1305
      %v1528 = vpack.c.b16 %v1308, %v1306
      %v1529 = vpack.c.b16 %v1311, %v1309
      %v1530 = vpack.c.b16 %v1312, %v1310
      %v1531 = vpack.c.b16 %v1315, %v1313
      %v1532 = vpack.c.b16 %v1316, %v1314
      %vm1749 = vcmask 523264
      %v1751 = vsel %vm1749, %v628, 0
      %v1754 = vsel %vm1749, %v642, 0
      %1756 = vmatprep.subr.bf16.mxu0 %v1318
      %1757 = vmatpush1.bf16.msra.mxu0 %v1317
      %1758 = vmatprep.subr.bf16.mxu0 %v1320
      %1759 = vmatpush1.bf16.msra.mxu0 %v1319
      %1760 = vmatprep.subr.bf16.mxu0 %v1322
      %1761 = vmatpush1.bf16.msra.mxu0 %v1321
      %1762 = vmatprep.subr.bf16.mxu0 %v1324
      %1763 = vmatpush1.bf16.msra.mxu0 %v1323
      %1764 = vmatprep.subr.bf16.mxu0 %v1326
      %1765 = vmatpush1.bf16.msra.mxu0 %v1325
      %1766 = vmatprep.subr.bf16.mxu0 %v1328
      %1767 = vmatpush1.bf16.msra.mxu0 %v1327
      %1768 = vmatprep.subr.bf16.mxu0 %v1330
      %1769 = vmatpush1.bf16.msra.mxu0 %v1329
      %1770 = vmatprep.subr.bf16.mxu0 %v1332
      %1771 = vmatpush1.bf16.msra.mxu0 %v1331
      %1772 = vmatprep.subr.bf16.mxu0 %v1334
      %1773 = vmatpush1.bf16.msra.mxu0 %v1333
      %1774 = vmatprep.subr.bf16.mxu0 %v1336
      %1775 = vmatpush1.bf16.msra.mxu0 %v1335
      %1776 = vmatprep.subr.bf16.mxu0 %v1338
      %1777 = vmatpush1.bf16.msra.mxu0 %v1337
      %1778 = vmatprep.subr.bf16.mxu0 %v1340
      %1779 = vmatpush1.bf16.msra.mxu0 %v1339
      %1780 = vmatprep.subr.bf16.mxu0 %v1342
      %1781 = vmatpush1.bf16.msra.mxu0 %v1341
      %1782 = vmatprep.subr.bf16.mxu0 %v1344
      %1783 = vmatpush1.bf16.msra.mxu0 %v1343
      %1784 = vmatprep.subr.bf16.mxu0 %v1346
      %1785 = vmatpush1.bf16.msra.mxu0 %v1345
      %1786 = vmatprep.subr.bf16.mxu0 %v1348
      %1787 = vmatpush1.bf16.msra.mxu0 %v1347
      %1788 = vmatprep.mubr.bf16.mxu0 %v616
      %1789 = vmatmul.mubr.bf16.gmra.mrb[0].mxu0 %v615
      %v1790 = vpop.f32.mrb[0].mxu0
      %v1791 = vadd.f32 %v545, %v1790
      %v1792 = vpop.f32.mrb[0].mxu0
      %v1793 = vadd.f32 %v549, %v1792
      %v1794 = vpop.f32.mrb[0].mxu0
      %v1795 = vadd.f32 %v545, %v1794
      %v1796 = vpop.f32.mrb[0].mxu0
      %v1797 = vadd.f32 %v549, %v1796
      %1798 = vmatprep.mubr.bf16.mxu0 %v630
      %1799 = vmatmul.mubr.bf16.gmra.mrb[0].mxu0 %v629
      %v1800 = vpop.f32.mrb[0].mxu0
      %v1801 = vadd.f32 %v545, %v1800
      %v1802 = vpop.f32.mrb[0].mxu0
      %v1803 = vadd.f32 %v549, %v1802
      %v1804 = vpop.f32.mrb[0].mxu0
      %v1805 = vpop.f32.mrb[0].mxu0
      %1806 = vdwg.mxu0
      %1807 = vmatprep.subr.bf16.mxu0 %v1350
      %1808 = vmatpush1.bf16.msra.mxu0 %v1349
      %1809 = vmatprep.subr.bf16.mxu0 %v1352
      %1810 = vmatpush1.bf16.msra.mxu0 %v1351
      %1811 = vmatprep.subr.bf16.mxu0 %v1354
      %1812 = vmatpush1.bf16.msra.mxu0 %v1353
      %1813 = vmatprep.subr.bf16.mxu0 %v1356
      %1814 = vmatpush1.bf16.msra.mxu0 %v1355
      %1815 = vmatprep.subr.bf16.mxu0 %v1358
      %1816 = vmatpush1.bf16.msra.mxu0 %v1357
      %1817 = vmatprep.subr.bf16.mxu0 %v1360
      %1818 = vmatpush1.bf16.msra.mxu0 %v1359
      %1819 = vmatprep.subr.bf16.mxu0 %v1362
      %1820 = vmatpush1.bf16.msra.mxu0 %v1361
      %1821 = vmatprep.subr.bf16.mxu0 %v1364
      %1822 = vmatpush1.bf16.msra.mxu0 %v1363
      %1823 = vmatprep.subr.bf16.mxu0 %v1366
      %1824 = vmatpush1.bf16.msra.mxu0 %v1365
      %1825 = vmatprep.subr.bf16.mxu0 %v1368
      %1826 = vmatpush1.bf16.msra.mxu0 %v1367
      %1827 = vmatprep.subr.bf16.mxu0 %v1370
      %1828 = vmatpush1.bf16.msra.mxu0 %v1369
      %1829 = vmatprep.subr.bf16.mxu0 %v1372
      %1830 = vmatpush1.bf16.msra.mxu0 %v1371
      %1831 = vmatprep.subr.bf16.mxu0 %v1374
      %1832 = vmatpush1.bf16.msra.mxu0 %v1373
      %1833 = vmatprep.subr.bf16.mxu0 %v1376
      %1834 = vmatpush1.bf16.msra.mxu0 %v1375
      %1835 = vmatprep.subr.bf16.mxu0 %v1378
      %1836 = vmatpush1.bf16.msra.mxu0 %v1377
      %1837 = vmatprep.subr.bf16.mxu0 %v1380
      %1838 = vmatpush1.bf16.msra.mxu0 %v1379
      %1839 = vmatprep.mubr.bf16.mxu0 %v618
      %1840 = vmatmul.mubr.bf16.gmra.mrb[0].mxu0 %v617
      %v1841 = vpop.f32.mrb[0].mxu0
      %v1842 = vadd.f32 %v1791, %v1841
      %v1843 = vpop.f32.mrb[0].mxu0
      %v1844 = vadd.f32 %v1793, %v1843
      %v1845 = vpop.f32.mrb[0].mxu0
      %v1846 = vadd.f32 %v1795, %v1845
      %v1847 = vpop.f32.mrb[0].mxu0
      %v1848 = vadd.f32 %v1797, %v1847
      %1849 = vmatprep.mubr.bf16.mxu0 %v632
      %1850 = vmatmul.mubr.bf16.gmra.mrb[0].mxu0 %v631
      %v1851 = vpop.f32.mrb[0].mxu0
      %v1852 = vadd.f32 %v1801, %v1851
      %v1853 = vpop.f32.mrb[0].mxu0
      %v1854 = vadd.f32 %v1803, %v1853
      %v1855 = vpop.f32.mrb[0].mxu0
      %v1856 = vpop.f32.mrb[0].mxu0
      %1857 = vdwg.mxu0
      %1858 = vmatprep.subr.bf16.mxu0 %v1382
      %1859 = vmatpush1.bf16.msra.mxu0 %v1381
      %1860 = vmatprep.subr.bf16.mxu0 %v1384
      %1861 = vmatpush1.bf16.msra.mxu0 %v1383
      %1862 = vmatprep.subr.bf16.mxu0 %v1386
      %1863 = vmatpush1.bf16.msra.mxu0 %v1385
      %1864 = vmatprep.subr.bf16.mxu0 %v1388
      %1865 = vmatpush1.bf16.msra.mxu0 %v1387
      %1866 = vmatprep.subr.bf16.mxu0 %v1390
      %1867 = vmatpush1.bf16.msra.mxu0 %v1389
      %1868 = vmatprep.subr.bf16.mxu0 %v1392
      %1869 = vmatpush1.bf16.msra.mxu0 %v1391
      %1870 = vmatprep.subr.bf16.mxu0 %v1394
      %1871 = vmatpush1.bf16.msra.mxu0 %v1393
      %1872 = vmatprep.subr.bf16.mxu0 %v1396
      %1873 = vmatpush1.bf16.msra.mxu0 %v1395
      %1874 = vmatprep.subr.bf16.mxu0 %v1398
      %1875 = vmatpush1.bf16.msra.mxu0 %v1397
      %1876 = vmatprep.subr.bf16.mxu0 %v1400
      %1877 = vmatpush1.bf16.msra.mxu0 %v1399
      %1878 = vmatprep.subr.bf16.mxu0 %v1402
      %1879 = vmatpush1.bf16.msra.mxu0 %v1401
      %1880 = vmatprep.subr.bf16.mxu0 %v1404
      %1881 = vmatpush1.bf16.msra.mxu0 %v1403
      %1882 = vmatprep.subr.bf16.mxu0 %v1406
      %1883 = vmatpush1.bf16.msra.mxu0 %v1405
      %1884 = vmatprep.subr.bf16.mxu0 %v1408
      %1885 = vmatpush1.bf16.msra.mxu0 %v1407
      %1886 = vmatprep.subr.bf16.mxu0 %v1410
      %1887 = vmatpush1.bf16.msra.mxu0 %v1409
      %1888 = vmatprep.subr.bf16.mxu0 %v1412
      %1889 = vmatpush1.bf16.msra.mxu0 %v1411
      %1890 = vmatprep.mubr.bf16.mxu0 %v620
      %1891 = vmatmul.mubr.bf16.gmra.mrb[0].mxu0 %v619
      %v1892 = vpop.f32.mrb[0].mxu0
      %v1893 = vadd.f32 %v1842, %v1892
      %v1894 = vpop.f32.mrb[0].mxu0
      %v1895 = vadd.f32 %v1844, %v1894
      %v1896 = vpop.f32.mrb[0].mxu0
      %v1897 = vadd.f32 %v1846, %v1896
      %v1898 = vpop.f32.mrb[0].mxu0
      %v1899 = vadd.f32 %v1848, %v1898
      %1900 = vmatprep.mubr.bf16.mxu0 %v634
      %1901 = vmatmul.mubr.bf16.gmra.mrb[0].mxu0 %v633
      %v1902 = vpop.f32.mrb[0].mxu0
      %v1903 = vadd.f32 %v1852, %v1902
      %v1904 = vpop.f32.mrb[0].mxu0
      %v1905 = vadd.f32 %v1854, %v1904
      %v1906 = vpop.f32.mrb[0].mxu0
      %v1907 = vpop.f32.mrb[0].mxu0
      %1908 = vdwg.mxu0
      %1909 = vmatprep.subr.bf16.mxu0 %v1414
      %1910 = vmatpush1.bf16.msra.mxu0 %v1413
      %1911 = vmatprep.subr.bf16.mxu0 %v1416
      %1912 = vmatpush1.bf16.msra.mxu0 %v1415
      %1913 = vmatprep.subr.bf16.mxu0 %v1418
      %1914 = vmatpush1.bf16.msra.mxu0 %v1417
      %1915 = vmatprep.subr.bf16.mxu0 %v1420
      %1916 = vmatpush1.bf16.msra.mxu0 %v1419
      %1917 = vmatprep.subr.bf16.mxu0 %v1422
      %1918 = vmatpush1.bf16.msra.mxu0 %v1421
      %1919 = vmatprep.subr.bf16.mxu0 %v1424
      %1920 = vmatpush1.bf16.msra.mxu0 %v1423
      %1921 = vmatprep.subr.bf16.mxu0 %v1426
      %1922 = vmatpush1.bf16.msra.mxu0 %v1425
      %1923 = vmatprep.subr.bf16.mxu0 %v1428
      %1924 = vmatpush1.bf16.msra.mxu0 %v1427
      %1925 = vmatprep.subr.bf16.mxu0 %v1430
      %1926 = vmatpush1.bf16.msra.mxu0 %v1429
      %1927 = vmatprep.subr.bf16.mxu0 %v1432
      %1928 = vmatpush1.bf16.msra.mxu0 %v1431
      %1929 = vmatprep.subr.bf16.mxu0 %v1434
      %1930 = vmatpush1.bf16.msra.mxu0 %v1433
      %1931 = vmatprep.subr.bf16.mxu0 %v1436
      %1932 = vmatpush1.bf16.msra.mxu0 %v1435
      %1933 = vmatprep.subr.bf16.mxu0 %v1438
      %1934 = vmatpush1.bf16.msra.mxu0 %v1437
      %1935 = vmatprep.subr.bf16.mxu0 %v1440
      %1936 = vmatpush1.bf16.msra.mxu0 %v1439
      %1937 = vmatprep.subr.bf16.mxu0 %v1442
      %1938 = vmatpush1.bf16.msra.mxu0 %v1441
      %1939 = vmatprep.subr.bf16.mxu0 %v1444
      %1940 = vmatpush1.bf16.msra.mxu0 %v1443
      %1941 = vmatprep.mubr.bf16.mxu0 %v622
      %1942 = vmatmul.mubr.bf16.gmra.mrb[0].mxu0 %v621
      %v1943 = vpop.f32.mrb[0].mxu0
      %v1944 = vadd.f32 %v1893, %v1943
      %v1945 = vpop.f32.mrb[0].mxu0
      %v1946 = vadd.f32 %v1895, %v1945
      %v1947 = vpop.f32.mrb[0].mxu0
      %v1948 = vadd.f32 %v1897, %v1947
      %v1949 = vpop.f32.mrb[0].mxu0
      %v1950 = vadd.f32 %v1899, %v1949
      %1951 = vmatprep.mubr.bf16.mxu0 %v636
      %1952 = vmatmul.mubr.bf16.gmra.mrb[0].mxu0 %v635
      %v1953 = vpop.f32.mrb[0].mxu0
      %v1954 = vadd.f32 %v1903, %v1953
      %v1955 = vpop.f32.mrb[0].mxu0
      %v1956 = vadd.f32 %v1905, %v1955
      %v1957 = vpop.f32.mrb[0].mxu0
      %v1958 = vpop.f32.mrb[0].mxu0
      %1959 = vdwg.mxu0
      %1960 = vmatprep.subr.bf16.mxu0 %v1446
      %1961 = vmatpush1.bf16.msra.mxu0 %v1445
      %1962 = vmatprep.subr.bf16.mxu0 %v1448
      %1963 = vmatpush1.bf16.msra.mxu0 %v1447
      %1964 = vmatprep.subr.bf16.mxu0 %v1450
      %1965 = vmatpush1.bf16.msra.mxu0 %v1449
      %1966 = vmatprep.subr.bf16.mxu0 %v1452
      %1967 = vmatpush1.bf16.msra.mxu0 %v1451
      %1968 = vmatprep.subr.bf16.mxu0 %v1454
      %1969 = vmatpush1.bf16.msra.mxu0 %v1453
      %1970 = vmatprep.subr.bf16.mxu0 %v1456
      %1971 = vmatpush1.bf16.msra.mxu0 %v1455
      %1972 = vmatprep.subr.bf16.mxu0 %v1458
      %1973 = vmatpush1.bf16.msra.mxu0 %v1457
      %1974 = vmatprep.subr.bf16.mxu0 %v1460
      %1975 = vmatpush1.bf16.msra.mxu0 %v1459
      %1976 = vmatprep.subr.bf16.mxu0 %v1462
      %1977 = vmatpush1.bf16.msra.mxu0 %v1461
      %1978 = vmatprep.subr.bf16.mxu0 %v1464
      %1979 = vmatpush1.bf16.msra.mxu0 %v1463
      %1980 = vmatprep.subr.bf16.mxu0 %v1466
      %1981 = vmatpush1.bf16.msra.mxu0 %v1465
      %1982 = vmatprep.subr.bf16.mxu0 %v1468
      %1983 = vmatpush1.bf16.msra.mxu0 %v1467
      %1984 = vmatprep.subr.bf16.mxu0 %v1470
      %1985 = vmatpush1.bf16.msra.mxu0 %v1469
      %1986 = vmatprep.subr.bf16.mxu0 %v1472
      %1987 = vmatpush1.bf16.msra.mxu0 %v1471
      %1988 = vmatprep.subr.bf16.mxu0 %v1474
      %1989 = vmatpush1.bf16.msra.mxu0 %v1473
      %1990 = vmatprep.subr.bf16.mxu0 %v1476
      %1991 = vmatpush1.bf16.msra.mxu0 %v1475
      %1992 = vmatprep.mubr.bf16.mxu0 %v624
      %1993 = vmatmul.mubr.bf16.gmra.mrb[0].mxu0 %v623
      %v1994 = vpop.f32.mrb[0].mxu0
      %v1995 = vadd.f32 %v1944, %v1994
      %v1996 = vpop.f32.mrb[0].mxu0
      %v1997 = vadd.f32 %v1946, %v1996
      %v1998 = vpop.f32.mrb[0].mxu0
      %v1999 = vadd.f32 %v1948, %v1998
      %v2000 = vpop.f32.mrb[0].mxu0
      %v2001 = vadd.f32 %v1950, %v2000
      %2002 = vmatprep.mubr.bf16.mxu0 %v638
      %2003 = vmatmul.mubr.bf16.gmra.mrb[0].mxu0 %v637
      %v2004 = vpop.f32.mrb[0].mxu0
      %v2005 = vadd.f32 %v1954, %v2004
      %v2006 = vpop.f32.mrb[0].mxu0
      %v2007 = vadd.f32 %v1956, %v2006
      %v2008 = vpop.f32.mrb[0].mxu0
      %v2009 = vpop.f32.mrb[0].mxu0
      %2010 = vdwg.mxu0
      %2011 = vmatprep.subr.bf16.mxu0 %v1478
      %2012 = vmatpush1.bf16.msra.mxu0 %v1477
      %2013 = vmatprep.subr.bf16.mxu0 %v1480
      %2014 = vmatpush1.bf16.msra.mxu0 %v1479
      %2015 = vmatprep.subr.bf16.mxu0 %v1482
      %2016 = vmatpush1.bf16.msra.mxu0 %v1481
      %2017 = vmatprep.subr.bf16.mxu0 %v1484
      %2018 = vmatpush1.bf16.msra.mxu0 %v1483
      %2019 = vmatprep.subr.bf16.mxu0 %v1486
      %2020 = vmatpush1.bf16.msra.mxu0 %v1485
      %2021 = vmatprep.subr.bf16.mxu0 %v1488
      %2022 = vmatpush1.bf16.msra.mxu0 %v1487
      %2023 = vmatprep.subr.bf16.mxu0 %v1490
      %2024 = vmatpush1.bf16.msra.mxu0 %v1489
      %2025 = vmatprep.subr.bf16.mxu0 %v1492
      %2026 = vmatpush1.bf16.msra.mxu0 %v1491
      %2027 = vmatprep.subr.bf16.mxu0 %v1494
      %2028 = vmatpush1.bf16.msra.mxu0 %v1493
      %2029 = vmatprep.subr.bf16.mxu0 %v1496
      %2030 = vmatpush1.bf16.msra.mxu0 %v1495
      %2031 = vmatprep.subr.bf16.mxu0 %v1498
      %2032 = vmatpush1.bf16.msra.mxu0 %v1497
      %2033 = vmatprep.subr.bf16.mxu0 %v1500
      %2034 = vmatpush1.bf16.msra.mxu0 %v1499
      %2035 = vmatprep.subr.bf16.mxu0 %v1502
      %2036 = vmatpush1.bf16.msra.mxu0 %v1501
      %2037 = vmatprep.subr.bf16.mxu0 %v1504
      %2038 = vmatpush1.bf16.msra.mxu0 %v1503
      %2039 = vmatprep.subr.bf16.mxu0 %v1506
      %2040 = vmatpush1.bf16.msra.mxu0 %v1505
      %2041 = vmatprep.subr.bf16.mxu0 %v1508
      %2042 = vmatpush1.bf16.msra.mxu0 %v1507
      %2043 = vmatprep.mubr.bf16.mxu0 %v626
      %2044 = vmatmul.mubr.bf16.gmra.mrb[0].mxu0 %v625
      %v2045 = vpop.f32.mrb[0].mxu0
      %v2046 = vadd.f32 %v1995, %v2045
      %v2047 = vpop.f32.mrb[0].mxu0
      %v2048 = vadd.f32 %v1997, %v2047
      %v2049 = vpop.f32.mrb[0].mxu0
      %v2050 = vadd.f32 %v1999, %v2049
      %v2051 = vpop.f32.mrb[0].mxu0
      %v2052 = vadd.f32 %v2001, %v2051
      %2053 = vmatprep.mubr.bf16.mxu0 %v640
      %2054 = vmatmul.mubr.bf16.gmra.mrb[0].mxu0 %v639
      %v2055 = vpop.f32.mrb[0].mxu0
      %v2056 = vadd.f32 %v2005, %v2055
      %v2057 = vpop.f32.mrb[0].mxu0
      %v2058 = vadd.f32 %v2007, %v2057
      %v2059 = vpop.f32.mrb[0].mxu0
      %v2060 = vpop.f32.mrb[0].mxu0
      %2061 = vdwg.mxu0
      %2062 = vmatprep.subr.bf16.mxu0 %v1510
      %2063 = vmatpush1.bf16.msra.mxu0 %v1509
      %2064 = vmatprep.subr.bf16.mxu0 %v1512
      %2065 = vmatpush1.bf16.msra.mxu0 %v1511
      %2066 = vmatprep.subr.bf16.mxu0 %v1514
      %2067 = vmatpush1.bf16.msra.mxu0 %v1513
      %2068 = vmatprep.subr.bf16.mxu0 %v1516
      %2069 = vmatpush1.bf16.msra.mxu0 %v1515
      %2070 = vmatprep.subr.bf16.mxu0 %v1518
      %2071 = vmatpush1.bf16.msra.mxu0 %v1517
      %2072 = vmatprep.subr.bf16.mxu0 %v1520
      %2073 = vmatpush1.bf16.msra.mxu0 %v1519
      %2074 = vmatprep.subr.bf16.mxu0 %v1522
      %2075 = vmatpush1.bf16.msra.mxu0 %v1521
      %2076 = vmatprep.subr.bf16.mxu0 %v1524
      %2077 = vmatpush1.bf16.msra.mxu0 %v1523
      %2078 = vmatprep.subr.bf16.mxu0 %v1526
      %2079 = vmatpush1.bf16.msra.mxu0 %v1525
      %2080 = vmatprep.subr.bf16.mxu0 %v1528
      %2081 = vmatpush1.bf16.msra.mxu0 %v1527
      %2082 = vmatprep.subr.bf16.mxu0 %v1530
      %2083 = vmatpush1.bf16.msra.mxu0 %v1529
      %2084 = vmatprep.subr.bf16.mxu0 %v1532
      %2085 = vmatpush1.bf16.msra.mxu0 %v1531
      %2086 = vmatprep.subr.bf16.mxu0 0
      %2087 = vmatpush1.bf16.msra.mxu0 0
      %2088 = vmatprep.subr.bf16.mxu0 0
      %2089 = vmatpush1.bf16.msra.mxu0 0
      %2090 = vmatprep.subr.bf16.mxu0 0
      %2091 = vmatpush1.bf16.msra.mxu0 0
      %2092 = vmatprep.subr.bf16.mxu0 0
      %2093 = vmatpush1.bf16.msra.mxu0 0
      %2094 = vmatprep.mubr.bf16.mxu0 %v1751
      %2095 = vmatmul.mubr.bf16.gmra.mrb[0].mxu0 %v627
      %v2096 = vpop.f32.mrb[0].mxu0
      %v2097 = vadd.f32 %v2046, %v2096
      %v2098 = vpop.f32.mrb[0].mxu0
      %v2099 = vadd.f32 %v2048, %v2098
      %v2100 = vpop.f32.mrb[0].mxu0
      %v2101 = vadd.f32 %v2050, %v2100
      %v2102 = vpop.f32.mrb[0].mxu0
      %v2103 = vadd.f32 %v2052, %v2102
      %2104 = vmatprep.mubr.bf16.mxu0 %v1754
      %2105 = vmatmul.mubr.bf16.gmra.mrb[0].mxu0 %v641
      %v2106 = vpop.f32.mrb[0].mxu0
      %v2107 = vadd.f32 %v2056, %v2106
      %v2108 = vpop.f32.mrb[0].mxu0
      %v2109 = vadd.f32 %v2058, %v2108
      %v2110 = vpop.f32.mrb[0].mxu0
      %v2111 = vpop.f32.mrb[0].mxu0
      %2112 = vdwg.mxu0
      %v2113 = vmax.f32 %v2097, 0.0
      %v2114 = vmax.f32 %v2099, 0.0
      %v2115 = vmax.f32 %v2101, 0.0
      %v2116 = vmax.f32 %v2103, 0.0
      %v2117 = vmax.f32 %v2107, 0.0
      %v2118 = vmax.f32 %v2109, 0.0
      %v2119 = vpack.c.bf16 %v2115, %v2113
      %v2120 = vpack.c.bf16 %v2116, %v2114
      %v2121 = vpack.c.bf16 %v2117, %v2117
      %v2122 = vpack.c.bf16 %v2118, %v2118
      %v2127 = vunpack.c.l.b16 %v2119
      %v2128 = vunpack.c.l.b16 %v2120
      %v2129 = vunpack.c.h.b16 %v2119
      %v2130 = vunpack.c.h.b16 %v2120
      %v2131 = vunpack.c.l.b16 %v2121
      %v2132 = vunpack.c.l.b16 %v2122
      %v2133 = vpack.c.b16 %v2128, %v2127
      %v2134 = vpack.c.b16 %v2130, %v2129
      %v2135 = vpack.c.b16 %v2132, %v2131
      %vm2139 = vcmask 1043456
      %vm2140 = vcmask 523268
      %vm2141 = vmor %vm2140, %vm2139
      %2142 = vst.msk [vmem:[%s299] sm:$0xff] %vm2141, %v2133
      %2143 = vst.msk [vmem:[%s299 + $0x8] sm:$0xff] %vm2141, %v2134
      %vm2144 = vcmask 1040384
      %vm2145 = vcmask 520196
      %vm2146 = vmor %vm2145, %vm2144
      %2147 = vst.msk [vmem:[%s299 + $0x10] sm:$0x11] %vm2146, %v2135
      %s2148 = smul.u32 3, %s20
      %s2149 = smul.u32 2, %s21
      %p2150 = scmp.lt.s32.totalorder %s19, 1
      %s2151 = scalar_select %p2150, %s19, 1
      %p2152 = scmp.lt.s32.totalorder %s2148, 2
      %s2153 = scalar_select %p2152, %s2148, 2
      %p2154 = scmp.lt.s32.totalorder %s2149, 1
      %s2155 = scalar_select %p2154, %s2149, 1
      %s2156 = smul.addr %s2153, 2
      %s2157 = sadd.s32 %s2155, %s2156
      %s2158 = smul.addr %s2151, 6
      %s2159 = sadd.s32 %s2157, %s2158
      %s2160 = smul.addr %s2159, 4
      %s2161 = scalar_lea.vmem %s3, %s2160
      // Predicated region
      $region33: #{alexnet_forward.12} parent=31 // pred_check
        %p2162 = pneg %p139
      $region34: #{alexnet_forward.12} parent=31 // pred_check_branch
        %2164 = sbr.rel (%p2162) target = $region36
      $region35: #{alexnet_forward.12} parent=31 // pred_region
        %s2165 = smul.u32 3, %s20
        %s2166 = smul.u32 2, %s21
      $region36: #{alexnet_forward.12} parent=31 // pred_fallthru
        _
    $region32: #{alexnet_forward.12} parent=5 // pred_fallthru
      _
    %p2167 = scmp.le.s32.totalorder 2, %s9
    // Predicated region
    $region37: #{alexnet_forward.12} parent=5 // pred_check
      %p2168 = pneg %p2167
    $region38: #{alexnet_forward.12} parent=5 // pred_check_branch
      %2170 = sbr.rel (%p2168) target = $region40
    $region39: #{alexnet_forward.12} parent=5 // pred_region
      %s2171 = ssub.s32 %s9, 2
      // Predicated region
      $region41: #{alexnet_forward.12} parent=39 // pred_check
        %p2172 = pneg %p145
      $region42: #{alexnet_forward.12} parent=39 // pred_check_branch
        %2174 = sbr.rel (%p2172) target = $region44
      $region43: #{alexnet_forward.12} parent=39 // pred_region
        %s2175 = smul.u32 3, %s23
        %s2176 = smul.u32 2, %s24
        %p2177 = scmp.lt.s32.totalorder %s22, 1
        %s2178 = scalar_select %p2177, %s22, 1
        %p2179 = scmp.lt.s32.totalorder %s2175, 2
        %s2180 = scalar_select %p2179, %s2175, 2
        %p2181 = scmp.lt.s32.totalorder %s2176, 1
        %s2182 = scalar_select %p2181, %s2176, 1
        %s2183 = smul.addr %s2180, 2
        %s2184 = sadd.s32 %s2182, %s2183
        %s2185 = smul.addr %s2178, 6
        %s2186 = sadd.s32 %s2184, %s2185
        %s2187 = smul.addr %s2186, 4
        %s2188 = scalar_lea.vmem %s3, %s2187
      $region44: #{alexnet_forward.12} parent=39 // pred_fallthru
        _
    $region40: #{alexnet_forward.12} parent=5 // pred_fallthru
      _
  $region6: #{alexnet_forward.12} parent=0 // loop_footer
    %s13 = sadd.s32 1, %s9
  $region7: #{alexnet_forward.12} parent=0 // loop_footer_branch
    %8 = sbr.rel target = $region3
  $region8: #{alexnet_forward.12} parent=0 // loop_exit
    _

// kernel: alexnet_forward.13
$region0: #{alexnet_forward.13}
  #allocation0 [shape = 'u32[]', space=smem, size = 0x4, offset = 0x4, fixed_abs, tag = 'smem constant byte address 0x4 - core index']
  #allocation1 [shape = 'u32[144,128]{1,0:T(1,128)}', space=vmem, size = 0x12000, scoped, tag = 'internal scratch']
  %s0 = inlined_call_operand.vmem [shape: bf16[2,18,1728], index: 0, kind: input, shape index: {}]
  %s1 = inlined_call_operand.vmem [shape: bf16[2,1728,128], index: 1, kind: input, shape index: {}]
  %s2 = inlined_call_operand.vmem [shape: f32[2,1,128], index: 2, kind: input, shape index: {}]
  %s3 = inlined_call_operand.vmem [shape: bf16[2,18,128], index: 3, kind: output, shape index: {}]
  %s4 = sld [smem:[#allocation0]]
  $region45: #{alexnet_forward.13} parent=0
    _
  %s6 = ssub.s32 1, %s4
  %s7 = scalar_select 0, %s6, %s4
  loop: start=0, step=1, limit=4
  $region2: #{alexnet_forward.13} parent=0 // loop_pre_header
    _
  $region3: #{alexnet_forward.13} parent=0 // loop_header
    %s9 = sphi 0, %s13
    %p10 = scmp.ge.s32.totalorder %s9, 4
    %s16 = sphi 0, %s35
    %s17 = sphi 0, %s31
    %s18 = sphi 0, %s27
    %s19 = sphi 0, %s16
    %s20 = sphi 0, %s17
    %s21 = sphi 0, %s18
    %s22 = sphi 0, %s19
    %s23 = sphi 0, %s20
    %s24 = sphi 0, %s21
    %s40 = sphi 0, %s42
    %s43 = sphi 0, %s40
    %s44 = sphi 0, %s43
    %s60 = sphi 0, %s44
    %s68 = sphi 0, %s70
    %s71 = sphi 0, %s68
    %s72 = sphi 0, %s71
    %s88 = sphi 0, %s72
    %s96 = sphi 0, %s98
    %s99 = sphi 0, %s96
    %s100 = sphi 0, %s99
    %s116 = sphi 0, %s100
    %s126 = sphi 0, %s128
    %s129 = sphi 0, %s126
    %s130 = sphi 0, %s129
    %s146 = sphi 0, %s130
  $region4: #{alexnet_forward.13} parent=0 // loop_header_branch
    %12 = sbr.rel (%p10) target = $region8
  $region5: #{alexnet_forward.13} parent=0 // loop_body
    %s14 = ssub.s32 %s9, 1
    %s15 = ssub.s32 %s9, 2
    %s25 = sadd.s32 1, %s18
    %p26 = scmp.ge.s32.totalorder %s25, 1
    %s27 = scalar_select %p26, 0, %s25
    %s28 = sadd.s32 1, %s17
    %s29 = scalar_select %p26, %s28, %s17
    %p30 = scmp.ge.s32.totalorder %s29, 1
    %s31 = scalar_select %p30, 0, %s29
    %s32 = sadd.s32 1, %s16
    %s33 = scalar_select %p30, %s32, %s16
    %p34 = scmp.ge.s32.totalorder %s33, 2
    %s35 = scalar_select %p34, 0, %s33
    %s36 = ssub.s32 %s16, %s35
    %s37 = ssub.s32 %s17, %s31
    %s38 = sor.u32 %s36, %s37
    %p39 = scmp.eq.s32.totalorder %s38, 0
    %s41 = sadd.s32 %s40, 1
    %s42 = scalar_select %p39, %s40, %s41
    %p45 = pneg %p39
    %p46 = scmp.eq.s32.totalorder %s9, 1
    %p47 = por %p45, %p46
    %p48 = scmp.ne.s32.totalorder %s40, %s43
    %p49 = scmp.eq.s32.totalorder %s9, 0
    %p50 = por %p48, %p49
    %p51 = scmp.ne.s32.totalorder %s40, %s43
    %p52 = scmp.eq.s32.totalorder %s14, 1
    %p53 = por %p51, %p52
    %p54 = scmp.ne.s32.totalorder %s43, %s44
    %p55 = scmp.eq.s32.totalorder %s14, 0
    %p56 = por %p54, %p55
    %p57 = scmp.ne.s32.totalorder %s43, %s44
    %p58 = scmp.eq.s32.totalorder %s15, 1
    %p59 = por %p57, %p58
    %p61 = scmp.ne.s32.totalorder %s44, %s60
    %p62 = scmp.eq.s32.totalorder %s15, 0
    %p63 = por %p61, %p62
    %s64 = ssub.s32 %s16, %s35
    %s65 = ssub.s32 %s18, %s27
    %s66 = sor.u32 %s64, %s65
    %p67 = scmp.eq.s32.totalorder %s66, 0
    %s69 = sadd.s32 %s68, 1
    %s70 = scalar_select %p67, %s68, %s69
    %p73 = pneg %p67
    %p74 = scmp.eq.s32.totalorder %s9, 1
    %p75 = por %p73, %p74
    %p76 = scmp.ne.s32.totalorder %s68, %s71
    %p77 = scmp.eq.s32.totalorder %s9, 0
    %p78 = por %p76, %p77
    %p79 = scmp.ne.s32.totalorder %s68, %s71
    %p80 = scmp.eq.s32.totalorder %s14, 1
    %p81 = por %p79, %p80
    %p82 = scmp.ne.s32.totalorder %s71, %s72
    %p83 = scmp.eq.s32.totalorder %s14, 0
    %p84 = por %p82, %p83
    %p85 = scmp.ne.s32.totalorder %s71, %s72
    %p86 = scmp.eq.s32.totalorder %s15, 1
    %p87 = por %p85, %p86
    %p89 = scmp.ne.s32.totalorder %s72, %s88
    %p90 = scmp.eq.s32.totalorder %s15, 0
    %p91 = por %p89, %p90
    %s92 = ssub.s32 %s16, %s35
    %s93 = ssub.s32 %s18, %s27
    %s94 = sor.u32 %s92, %s93
    %p95 = scmp.eq.s32.totalorder %s94, 0
    %s97 = sadd.s32 %s96, 1
    %s98 = scalar_select %p95, %s96, %s97
    %p101 = pneg %p95
    %p102 = scmp.eq.s32.totalorder %s9, 1
    %p103 = por %p101, %p102
    %p104 = scmp.ne.s32.totalorder %s96, %s99
    %p105 = scmp.eq.s32.totalorder %s9, 0
    %p106 = por %p104, %p105
    %p107 = scmp.ne.s32.totalorder %s96, %s99
    %p108 = scmp.eq.s32.totalorder %s14, 1
    %p109 = por %p107, %p108
    %p110 = scmp.ne.s32.totalorder %s99, %s100
    %p111 = scmp.eq.s32.totalorder %s14, 0
    %p112 = por %p110, %p111
    %p113 = scmp.ne.s32.totalorder %s99, %s100
    %p114 = scmp.eq.s32.totalorder %s15, 1
    %p115 = por %p113, %p114
    %p117 = scmp.ne.s32.totalorder %s100, %s116
    %p118 = scmp.eq.s32.totalorder %s15, 0
    %p119 = por %p117, %p118
    %s120 = ssub.s32 %s16, %s35
    %s121 = ssub.s32 %s17, %s31
    %s122 = sor.u32 %s120, %s121
    %s123 = ssub.s32 %s18, %s27
    %s124 = sor.u32 %s122, %s123
    %p125 = scmp.eq.s32.totalorder %s124, 0
    %s127 = sadd.s32 %s126, 1
    %s128 = scalar_select %p125, %s126, %s127
    %p131 = pneg %p125
    %p132 = scmp.eq.s32.totalorder %s9, 1
    %p133 = por %p131, %p132
    %p134 = scmp.ne.s32.totalorder %s126, %s129
    %p135 = scmp.eq.s32.totalorder %s9, 0
    %p136 = por %p134, %p135
    %p137 = scmp.ne.s32.totalorder %s126, %s129
    %p138 = scmp.eq.s32.totalorder %s14, 1
    %p139 = por %p137, %p138
    %p140 = scmp.ne.s32.totalorder %s129, %s130
    %p141 = scmp.eq.s32.totalorder %s14, 0
    %p142 = por %p140, %p141
    %p143 = scmp.ne.s32.totalorder %s129, %s130
    %p144 = scmp.eq.s32.totalorder %s15, 1
    %p145 = por %p143, %p144
    %p147 = scmp.ne.s32.totalorder %s130, %s146
    %p148 = scmp.eq.s32.totalorder %s15, 0
    %p149 = por %p147, %p148
    %p150 = scmp.le.s32.totalorder 1, %s9
    %p151 = scmp.lt.s32.totalorder %s9, 3
    %p152 = pnand %p150, %p151
    %p153 = pneg %p152
    // Predicated region
    $region9: #{alexnet_forward.13} parent=5 // pred_check
      _
    $region10: #{alexnet_forward.13} parent=5 // pred_check_branch
      %155 = sbr.rel (%p152) target = $region12
    $region11: #{alexnet_forward.13} parent=5 // pred_region
      %s156 = ssub.s32 %s9, 1
    $region12: #{alexnet_forward.13} parent=5 // pred_fallthru
      _
    %p157 = scmp.lt.s32.totalorder %s9, 2
    // Predicated region
    $region13: #{alexnet_forward.13} parent=5 // pred_check
      %p158 = pneg %p157
    $region14: #{alexnet_forward.13} parent=5 // pred_check_branch
      %160 = sbr.rel (%p158) target = $region16
    $region15: #{alexnet_forward.13} parent=5 // pred_region
      // Predicated region
      $region17: #{alexnet_forward.13} parent=15 // pred_check
        %p161 = pneg %p50
      $region18: #{alexnet_forward.13} parent=15 // pred_check_branch
        %163 = sbr.rel (%p161) target = $region20
      $region19: #{alexnet_forward.13} parent=15 // pred_region
        %s164 = smul.u32 3, %s17
        %p165 = scmp.lt.s32.totalorder %s16, 1
        %s166 = scalar_select %p165, %s16, 1
        %p167 = scmp.lt.s32.totalorder %s164, 2
        %s168 = scalar_select %p167, %s164, 2
        %s169 = smul.addr %s168, 14
        %s170 = smul.addr %s166, 42
        %s171 = sadd.s32 %s169, %s170
        %s172 = smul.addr %s171, 4
        %s173 = scalar_lea.vmem %s0, %s172
        %s174 = smul.u32 3, %s17
      $region20: #{alexnet_forward.13} parent=15 // pred_fallthru
        _
      // Predicated region
      $region21: #{alexnet_forward.13} parent=15 // pred_check
        %p175 = pneg %p78
      $region22: #{alexnet_forward.13} parent=15 // pred_check_branch
        %177 = sbr.rel (%p175) target = $region24
      $region23: #{alexnet_forward.13} parent=15 // pred_region
        %p178 = scmp.lt.s32.totalorder %s16, 1
        %s179 = scalar_select %p178, %s16, 1
        %p180 = scmp.lt.s32.totalorder %s18, 0
        %s181 = scalar_select %p180, %s18, 0
        %s182 = smul.addr %s179, 216
        %s183 = sadd.s32 %s181, %s182
        %s184 = smul.addr %s183, 4
        %s185 = scalar_lea.vmem %s1, %s184
      $region24: #{alexnet_forward.13} parent=15 // pred_fallthru
        _
      // Predicated region
      $region25: #{alexnet_forward.13} parent=15 // pred_check
        %p186 = pneg %p106
      $region26: #{alexnet_forward.13} parent=15 // pred_check_branch
        %188 = sbr.rel (%p186) target = $region28
      $region27: #{alexnet_forward.13} parent=15 // pred_region
        %p189 = scmp.lt.s32.totalorder %s16, 1
        %s190 = scalar_select %p189, %s16, 1
        %p191 = scmp.lt.s32.totalorder %s18, 0
        %s192 = scalar_select %p191, %s18, 0
        %s193 = sadd.s32 %s192, %s190
        %s194 = scalar_lea.vmem %s2, %s193
      $region28: #{alexnet_forward.13} parent=15 // pred_fallthru
        _
    $region16: #{alexnet_forward.13} parent=5 // pred_fallthru
      _
    %p195 = scmp.le.s32.totalorder 1, %s9
    %p196 = scmp.lt.s32.totalorder %s9, 3
    %p197 = pnand %p195, %p196
    %p198 = pneg %p197
    // Predicated region
    $region29: #{alexnet_forward.13} parent=5 // pred_check
      _
    $region30: #{alexnet_forward.13} parent=5 // pred_check_branch
      %200 = sbr.rel (%p197) target = $region32
    $region31: #{alexnet_forward.13} parent=5 // pred_region
      %s201 = ssub.s32 %s9, 1
      %s202 = smul.u32 3, %s20
      %p203 = scmp.lt.s32.totalorder %s19, 1
      %s204 = scalar_select %p203, %s19, 1
      %p205 = scmp.lt.s32.totalorder %s202, 2
      %s206 = scalar_select %p205, %s202, 2
      %s207 = smul.addr %s206, 14
      %s208 = smul.addr %s204, 42
      %s209 = sadd.s32 %s207, %s208
      %s210 = smul.addr %s209, 4
      %s211 = scalar_lea.vmem %s0, %s210
      %p212 = pneg %p56
      %p213 = pneg %p53
      %p214 = scmp.lt.s32.totalorder %s19, 1
      %s215 = scalar_select %p214, %s19, 1
      %p216 = scmp.lt.s32.totalorder %s21, 0
      %s217 = scalar_select %p216, %s21, 0
      %s218 = smul.addr %s215, 216
      %s219 = sadd.s32 %s217, %s218
      %s220 = smul.addr %s219, 4
      %s221 = scalar_lea.vmem %s1, %s220
      %p222 = pneg %p84
      %p223 = pneg %p81
      %p224 = scmp.lt.s32.totalorder %s19, 1
      %s225 = scalar_select %p224, %s19, 1
      %p226 = scmp.lt.s32.totalorder %s21, 0
      %s227 = scalar_select %p226, %s21, 0
      %s228 = sadd.s32 %s227, %s225
      %s229 = scalar_lea.vmem %s2, %s228
      %p230 = pneg %p112
      %p231 = pneg %p109
      %p232 = pneg %p142
      %p233 = pneg %p139
      %s234 = smul.u32 3, %s20
      %p235 = scmp.lt.s32.totalorder %s19, 1
      %s236 = scalar_select %p235, %s19, 1
      %p237 = scmp.lt.s32.totalorder %s234, 2
      %s238 = scalar_select %p237, %s234, 2
      %p239 = scmp.lt.s32.totalorder %s21, 0
      %s240 = scalar_select %p239, %s21, 0
      %s241 = sadd.s32 %s240, %s238
      %s242 = smul.addr %s236, 3
      %s243 = sadd.s32 %s241, %s242
      %s244 = smul.addr %s243, 4
      %s245 = scalar_lea.vmem %s3, %s244
      %s246 = smul.u32 3, %s20
      %p247 = scmp.lt.s32.totalorder %s19, 1
      %s248 = scalar_select %p247, %s19, 1
      %p249 = scmp.lt.s32.totalorder %s246, 2
      %s250 = scalar_select %p249, %s246, 2
      %s251 = smul.addr %s250, 14
      %s252 = smul.addr %s248, 42
      %s253 = sadd.s32 %s251, %s252
      %s254 = smul.addr %s253, 4
      %s255 = scalar_lea.vmem %s0, %s254
      %s256 = smul.u32 3, %s20
      %p257 = scmp.lt.s32.totalorder %s19, 1
      %s258 = scalar_select %p257, %s19, 1
      %p259 = scmp.lt.s32.totalorder %s21, 0
      %s260 = scalar_select %p259, %s21, 0
      %s261 = smul.addr %s258, 216
      %s262 = sadd.s32 %s260, %s261
      %s263 = smul.addr %s262, 4
      %s264 = scalar_lea.vmem %s1, %s263
      %p265 = scmp.lt.s32.totalorder %s19, 1
      %s266 = scalar_select %p265, %s19, 1
      %p267 = scmp.lt.s32.totalorder %s21, 0
      %s268 = scalar_select %p267, %s21, 0
      %s269 = sadd.s32 %s268, %s266
      %s270 = scalar_lea.vmem %s2, %s269
      %s271 = smul.u32 3, %s20
      %p272 = scmp.lt.s32.totalorder %s19, 1
      %s273 = scalar_select %p272, %s19, 1
      %p274 = scmp.lt.s32.totalorder %s271, 2
      %s275 = scalar_select %p274, %s271, 2
      %p276 = scmp.lt.s32.totalorder %s21, 0
      %s277 = scalar_select %p276, %s21, 0
      %s278 = sadd.s32 %s277, %s275
      %s279 = smul.addr %s273, 3
      %s280 = sadd.s32 %s278, %s279
      %s281 = smul.addr %s280, 4
      %s282 = scalar_lea.vmem %s3, %s281
      %s283 = smul.u32 3, %s20
      %v285 = vld [vmem:[%s255] sm:$0xff]
      %v286 = vld [vmem:[%s255 + $0x8] sm:$0xff]
      %v287 = vld [vmem:[%s255 + $0x10] sm:$0xff]
      %v288 = vld [vmem:[%s255 + $0x18] sm:$0xff]
      %v289 = vld [vmem:[%s255 + $0x20] sm:$0xff]
      %v290 = vld [vmem:[%s255 + $0x28] sm:$0xff]
      %v291 = vld [vmem:[%s255 + $0x30] sm:$0xff]
      %v292 = vld [vmem:[%s255 + $0x38] sm:$0xff]
      %v293 = vld [vmem:[%s255 + $0x40] sm:$0xff]
      %v294 = vld [vmem:[%s255 + $0x48] sm:$0xff]
      %v295 = vld [vmem:[%s255 + $0x50] sm:$0xff]
      %v296 = vld [vmem:[%s255 + $0x58] sm:$0xff]
      %v297 = vld [vmem:[%s255 + $0x60] sm:$0xff]
      %v298 = vld [vmem:[%s255 + $0x68] sm:$0xff]
      %v299 = vld [vmem:[%s255 + $0x70] sm:$0x11]
      %v300 = vld [vmem:[%s255 + $0x78] sm:$0x11]
      %v301 = vld [vmem:[%s255 + $0x80] sm:$0x11]
      %v302 = vld [vmem:[%s255 + $0x88] sm:$0x11]
      %v303 = vld [vmem:[%s255 + $0x90] sm:$0x11]
      %v304 = vld [vmem:[%s255 + $0x98] sm:$0x11]
      %v305 = vld [vmem:[%s255 + $0xa0] sm:$0x11]
      %v306 = vld [vmem:[%s264] sm:$0xf]
      %v307 = vld [vmem:[%s264 + $0x4] sm:$0xf]
      %v308 = vld [vmem:[%s264 + $0x8] sm:$0xf]
      %v309 = vld [vmem:[%s264 + $0xc] sm:$0xf]
      %v310 = vld [vmem:[%s264 + $0x10] sm:$0xf]
      %v311 = vld [vmem:[%s264 + $0x14] sm:$0xf]
      %v312 = vld [vmem:[%s264 + $0x18] sm:$0xf]
      %v313 = vld [vmem:[%s264 + $0x1c] sm:$0xf]
      %v314 = vld [vmem:[%s264 + $0x20] sm:$0xf]
      %v315 = vld [vmem:[%s264 + $0x24] sm:$0xf]
      %v316 = vld [vmem:[%s264 + $0x28] sm:$0xf]
      %v317 = vld [vmem:[%s264 + $0x2c] sm:$0xf]
      %v318 = vld [vmem:[%s264 + $0x30] sm:$0xf]
      %v319 = vld [vmem:[%s264 + $0x34] sm:$0xf]
      %v320 = vld [vmem:[%s264 + $0x38] sm:$0xf]
      %v321 = vld [vmem:[%s264 + $0x3c] sm:$0xf]
      %v322 = vld [vmem:[%s264 + $0x40] sm:$0xf]
      %v323 = vld [vmem:[%s264 + $0x44] sm:$0xf]
      %v324 = vld [vmem:[%s264 + $0x48] sm:$0xf]
      %v325 = vld [vmem:[%s264 + $0x4c] sm:$0xf]
      %v326 = vld [vmem:[%s264 + $0x50] sm:$0xf]
      %v327 = vld [vmem:[%s264 + $0x54] sm:$0xf]
      %v328 = vld [vmem:[%s264 + $0x58] sm:$0xf]
      %v329 = vld [vmem:[%s264 + $0x5c] sm:$0xf]
      %v330 = vld [vmem:[%s264 + $0x60] sm:$0xf]
      %v331 = vld [vmem:[%s264 + $0x64] sm:$0xf]
      %v332 = vld [vmem:[%s264 + $0x68] sm:$0xf]
      %v333 = vld [vmem:[%s264 + $0x6c] sm:$0xf]
      %v334 = vld [vmem:[%s264 + $0x70] sm:$0xf]
      %v335 = vld [vmem:[%s264 + $0x74] sm:$0xf]
      %v336 = vld [vmem:[%s264 + $0x78] sm:$0xf]
      %v337 = vld [vmem:[%s264 + $0x7c] sm:$0xf]
      %v338 = vld [vmem:[%s264 + $0x80] sm:$0xf]
      %v339 = vld [vmem:[%s264 + $0x84] sm:$0xf]
      %v340 = vld [vmem:[%s264 + $0x88] sm:$0xf]
      %v341 = vld [vmem:[%s264 + $0x8c] sm:$0xf]
      %v342 = vld [vmem:[%s264 + $0x90] sm:$0xf]
      %v343 = vld [vmem:[%s264 + $0x94] sm:$0xf]
      %v344 = vld [vmem:[%s264 + $0x98] sm:$0xf]
      %v345 = vld [vmem:[%s264 + $0x9c] sm:$0xf]
      %v346 = vld [vmem:[%s264 + $0xa0] sm:$0xf]
      %v347 = vld [vmem:[%s264 + $0xa4] sm:$0xf]
      %v348 = vld [vmem:[%s264 + $0xa8] sm:$0xf]
      %v349 = vld [vmem:[%s264 + $0xac] sm:$0xf]
      %v350 = vld [vmem:[%s264 + $0xb0] sm:$0xf]
      %v351 = vld [vmem:[%s264 + $0xb4] sm:$0xf]
      %v352 = vld [vmem:[%s264 + $0xb8] sm:$0xf]
      %v353 = vld [vmem:[%s264 + $0xbc] sm:$0xf]
      %v354 = vld [vmem:[%s264 + $0xc0] sm:$0xf]
      %v355 = vld [vmem:[%s264 + $0xc4] sm:$0xf]
      %v356 = vld [vmem:[%s264 + $0xc8] sm:$0xf]
      %v357 = vld [vmem:[%s264 + $0xcc] sm:$0xf]
      %v358 = vld [vmem:[%s264 + $0xd0] sm:$0xf]
      %v359 = vld [vmem:[%s264 + $0xd4] sm:$0xf]
      %v360 = vld [vmem:[%s264 + $0xd8] sm:$0xf]
      %v361 = vld [vmem:[%s264 + $0xdc] sm:$0xf]
      %v362 = vld [vmem:[%s264 + $0xe0] sm:$0xf]
      %v363 = vld [vmem:[%s264 + $0xe4] sm:$0xf]
      %v364 = vld [vmem:[%s264 + $0xe8] sm:$0xf]
      %v365 = vld [vmem:[%s264 + $0xec] sm:$0xf]
      %v366 = vld [vmem:[%s264 + $0xf0] sm:$0xf]
      %v367 = vld [vmem:[%s264 + $0xf4] sm:$0xf]
      %v368 = vld [vmem:[%s264 + $0xf8] sm:$0xf]
      %v369 = vld [vmem:[%s264 + $0xfc] sm:$0xf]
      %v370 = vld [vmem:[%s264 + $0x100] sm:$0xf]
      %v371 = vld [vmem:[%s264 + $0x104] sm:$0xf]
      %v372 = vld [vmem:[%s264 + $0x108] sm:$0xf]
      %v373 = vld [vmem:[%s264 + $0x10c] sm:$0xf]
      %v374 = vld [vmem:[%s264 + $0x110] sm:$0xf]
      %v375 = vld [vmem:[%s264 + $0x114] sm:$0xf]
      %v376 = vld [vmem:[%s264 + $0x118] sm:$0xf]
      %v377 = vld [vmem:[%s264 + $0x11c] sm:$0xf]
      %v378 = vld [vmem:[%s264 + $0x120] sm:$0xf]
      %v379 = vld [vmem:[%s264 + $0x124] sm:$0xf]
      %v380 = vld [vmem:[%s264 + $0x128] sm:$0xf]
      %v381 = vld [vmem:[%s264 + $0x12c] sm:$0xf]
      %v382 = vld [vmem:[%s264 + $0x130] sm:$0xf]
      %v383 = vld [vmem:[%s264 + $0x134] sm:$0xf]
      %v384 = vld [vmem:[%s264 + $0x138] sm:$0xf]
      %v385 = vld [vmem:[%s264 + $0x13c] sm:$0xf]
      %v386 = vld [vmem:[%s264 + $0x140] sm:$0xf]
      %v387 = vld [vmem:[%s264 + $0x144] sm:$0xf]
      %v388 = vld [vmem:[%s264 + $0x148] sm:$0xf]
      %v389 = vld [vmem:[%s264 + $0x14c] sm:$0xf]
      %v390 = vld [vmem:[%s264 + $0x150] sm:$0xf]
      %v391 = vld [vmem:[%s264 + $0x154] sm:$0xf]
      %v392 = vld [vmem:[%s264 + $0x158] sm:$0xf]
      %v393 = vld [vmem:[%s264 + $0x15c] sm:$0xf]
      %v394 = vld [vmem:[%s264 + $0x160] sm:$0xf]
      %v395 = vld [vmem:[%s264 + $0x164] sm:$0xf]
      %v396 = vld [vmem:[%s264 + $0x168] sm:$0xf]
      %v397 = vld [vmem:[%s264 + $0x16c] sm:$0xf]
      %v398 = vld [vmem:[%s264 + $0x170] sm:$0xf]
      %v399 = vld [vmem:[%s264 + $0x174] sm:$0xf]
      %v400 = vld [vmem:[%s264 + $0x178] sm:$0xf]
      %v401 = vld [vmem:[%s264 + $0x17c] sm:$0xf]
      %v402 = vld [vmem:[%s264 + $0x180] sm:$0xf]
      %v403 = vld [vmem:[%s264 + $0x184] sm:$0xf]
      %v404 = vld [vmem:[%s264 + $0x188] sm:$0xf]
      %v405 = vld [vmem:[%s264 + $0x18c] sm:$0xf]
      %v406 = vld [vmem:[%s264 + $0x190] sm:$0xf]
      %v407 = vld [vmem:[%s264 + $0x194] sm:$0xf]
      %v408 = vld [vmem:[%s264 + $0x198] sm:$0xf]
      %v409 = vld [vmem:[%s264 + $0x19c] sm:$0xf]
      %v410 = vld [vmem:[%s264 + $0x1a0] sm:$0xf]
      %v411 = vld [vmem:[%s264 + $0x1a4] sm:$0xf]
      %v412 = vld [vmem:[%s264 + $0x1a8] sm:$0xf]
      %v413 = vld [vmem:[%s264 + $0x1ac] sm:$0xf]
      %v414 = vld [vmem:[%s264 + $0x1b0] sm:$0xf]
      %v415 = vld [vmem:[%s264 + $0x1b4] sm:$0xf]
      %v416 = vld [vmem:[%s264 + $0x1b8] sm:$0xf]
      %v417 = vld [vmem:[%s264 + $0x1bc] sm:$0xf]
      %v418 = vld [vmem:[%s264 + $0x1c0] sm:$0xf]
      %v419 = vld [vmem:[%s264 + $0x1c4] sm:$0xf]
      %v420 = vld [vmem:[%s264 + $0x1c8] sm:$0xf]
      %v421 = vld [vmem:[%s264 + $0x1cc] sm:$0xf]
      %v422 = vld [vmem:[%s264 + $0x1d0] sm:$0xf]
      %v423 = vld [vmem:[%s264 + $0x1d4] sm:$0xf]
      %v424 = vld [vmem:[%s264 + $0x1d8] sm:$0xf]
      %v425 = vld [vmem:[%s264 + $0x1dc] sm:$0xf]
      %v426 = vld [vmem:[%s264 + $0x1e0] sm:$0xf]
      %v427 = vld [vmem:[%s264 + $0x1e4] sm:$0xf]
      %v428 = vld [vmem:[%s264 + $0x1e8] sm:$0xf]
      %v429 = vld [vmem:[%s264 + $0x1ec] sm:$0xf]
      %v430 = vld [vmem:[%s264 + $0x1f0] sm:$0xf]
      %v431 = vld [vmem:[%s264 + $0x1f4] sm:$0xf]
      %v432 = vld [vmem:[%s264 + $0x1f8] sm:$0xf]
      %v433 = vld [vmem:[%s264 + $0x1fc] sm:$0xf]
      %v434 = vld [vmem:[%s264 + $0x200] sm:$0xf]
      %v435 = vld [vmem:[%s264 + $0x204] sm:$0xf]
      %v436 = vld [vmem:[%s264 + $0x208] sm:$0xf]
      %v437 = vld [vmem:[%s264 + $0x20c] sm:$0xf]
      %v438 = vld [vmem:[%s264 + $0x210] sm:$0xf]
      %v439 = vld [vmem:[%s264 + $0x214] sm:$0xf]
      %v440 = vld [vmem:[%s264 + $0x218] sm:$0xf]
      %v441 = vld [vmem:[%s264 + $0x21c] sm:$0xf]
      %v442 = vld [vmem:[%s264 + $0x220] sm:$0xf]
      %v443 = vld [vmem:[%s264 + $0x224] sm:$0xf]
      %v444 = vld [vmem:[%s264 + $0x228] sm:$0xf]
      %v445 = vld [vmem:[%s264 + $0x22c] sm:$0xf]
      %v446 = vld [vmem:[%s264 + $0x230] sm:$0xf]
      %v447 = vld [vmem:[%s264 + $0x234] sm:$0xf]
      %v448 = vld [vmem:[%s264 + $0x238] sm:$0xf]
      %v449 = vld [vmem:[%s264 + $0x23c] sm:$0xf]
      %v450 = vld [vmem:[%s264 + $0x240] sm:$0xf]
      %v451 = vld [vmem:[%s264 + $0x244] sm:$0xf]
      %v452 = vld [vmem:[%s264 + $0x248] sm:$0xf]
      %v453 = vld [vmem:[%s264 + $0x24c] sm:$0xf]
      %v454 = vld [vmem:[%s264 + $0x250] sm:$0xf]
      %v455 = vld [vmem:[%s264 + $0x254] sm:$0xf]
      %v456 = vld [vmem:[%s264 + $0x258] sm:$0xf]
      %v457 = vld [vmem:[%s264 + $0x25c] sm:$0xf]
      %v458 = vld [vmem:[%s264 + $0x260] sm:$0xf]
      %v459 = vld [vmem:[%s264 + $0x264] sm:$0xf]
      %v460 = vld [vmem:[%s264 + $0x268] sm:$0xf]
      %v461 = vld [vmem:[%s264 + $0x26c] sm:$0xf]
      %v462 = vld [vmem:[%s264 + $0x270] sm:$0xf]
      %v463 = vld [vmem:[%s264 + $0x274] sm:$0xf]
      %v464 = vld [vmem:[%s264 + $0x278] sm:$0xf]
      %v465 = vld [vmem:[%s264 + $0x27c] sm:$0xf]
      %v466 = vld [vmem:[%s264 + $0x280] sm:$0xf]
      %v467 = vld [vmem:[%s264 + $0x284] sm:$0xf]
      %v468 = vld [vmem:[%s264 + $0x288] sm:$0xf]
      %v469 = vld [vmem:[%s264 + $0x28c] sm:$0xf]
      %v470 = vld [vmem:[%s264 + $0x290] sm:$0xf]
      %v471 = vld [vmem:[%s264 + $0x294] sm:$0xf]
      %v472 = vld [vmem:[%s264 + $0x298] sm:$0xf]
      %v473 = vld [vmem:[%s264 + $0x29c] sm:$0xf]
      %v474 = vld [vmem:[%s264 + $0x2a0] sm:$0xf]
      %v475 = vld [vmem:[%s264 + $0x2a4] sm:$0xf]
      %v476 = vld [vmem:[%s264 + $0x2a8] sm:$0xf]
      %v477 = vld [vmem:[%s264 + $0x2ac] sm:$0xf]
      %v478 = vld [vmem:[%s264 + $0x2b0] sm:$0xf]
      %v479 = vld [vmem:[%s264 + $0x2b4] sm:$0xf]
      %v480 = vld [vmem:[%s264 + $0x2b8] sm:$0xf]
      %v481 = vld [vmem:[%s264 + $0x2bc] sm:$0xf]
      %v482 = vld [vmem:[%s264 + $0x2c0] sm:$0xf]
      %v483 = vld [vmem:[%s264 + $0x2c4] sm:$0xf]
      %v484 = vld [vmem:[%s264 + $0x2c8] sm:$0xf]
      %v485 = vld [vmem:[%s264 + $0x2cc] sm:$0xf]
      %v486 = vld [vmem:[%s264 + $0x2d0] sm:$0xf]
      %v487 = vld [vmem:[%s264 + $0x2d4] sm:$0xf]
      %v488 = vld [vmem:[%s264 + $0x2d8] sm:$0xf]
      %v489 = vld [vmem:[%s264 + $0x2dc] sm:$0xf]
      %v490 = vld [vmem:[%s264 + $0x2e0] sm:$0xf]
      %v491 = vld [vmem:[%s264 + $0x2e4] sm:$0xf]
      %v492 = vld [vmem:[%s264 + $0x2e8] sm:$0xf]
      %v493 = vld [vmem:[%s264 + $0x2ec] sm:$0xf]
      %v494 = vld [vmem:[%s264 + $0x2f0] sm:$0xf]
      %v495 = vld [vmem:[%s264 + $0x2f4] sm:$0xf]
      %v496 = vld [vmem:[%s264 + $0x2f8] sm:$0xf]
      %v497 = vld [vmem:[%s264 + $0x2fc] sm:$0xf]
      %v498 = vld [vmem:[%s264 + $0x300] sm:$0xf]
      %v499 = vld [vmem:[%s264 + $0x304] sm:$0xf]
      %v500 = vld [vmem:[%s264 + $0x308] sm:$0xf]
      %v501 = vld [vmem:[%s264 + $0x30c] sm:$0xf]
      %v502 = vld [vmem:[%s264 + $0x310] sm:$0xf]
      %v503 = vld [vmem:[%s264 + $0x314] sm:$0xf]
      %v504 = vld [vmem:[%s264 + $0x318] sm:$0xf]
      %v505 = vld [vmem:[%s264 + $0x31c] sm:$0xf]
      %v506 = vld [vmem:[%s264 + $0x320] sm:$0xf]
      %v507 = vld [vmem:[%s264 + $0x324] sm:$0xf]
      %v508 = vld [vmem:[%s264 + $0x328] sm:$0xf]
      %v509 = vld [vmem:[%s264 + $0x32c] sm:$0xf]
      %v510 = vld [vmem:[%s264 + $0x330] sm:$0xf]
      %v511 = vld [vmem:[%s264 + $0x334] sm:$0xf]
      %v512 = vld [vmem:[%s264 + $0x338] sm:$0xf]
      %v513 = vld [vmem:[%s264 + $0x33c] sm:$0xf]
      %v514 = vld [vmem:[%s264 + $0x340] sm:$0xf]
      %v515 = vld [vmem:[%s264 + $0x344] sm:$0xf]
      %v516 = vld [vmem:[%s264 + $0x348] sm:$0xf]
      %v517 = vld [vmem:[%s264 + $0x34c] sm:$0xf]
      %v518 = vld [vmem:[%s264 + $0x350] sm:$0xf]
      %v519 = vld [vmem:[%s264 + $0x354] sm:$0xf]
      %v520 = vld [vmem:[%s264 + $0x358] sm:$0xf]
      %v521 = vld [vmem:[%s264 + $0x35c] sm:$0xf]
      %v522 = vld [vmem:[%s270] sm:$0x1]
      %v524 = vlaneseq
      %v525 = vshrl.u32 %v524, 7
      %v526 = vsub.s32 0, %v525
      %v527 = vrot.slane %v522, %v526
      %v550 = vunpack.c.l.b16 %v285
      %v551 = vunpack.c.h.b16 %v285
      %v552 = vunpack.c.l.b16 %v286
      %v553 = vunpack.c.h.b16 %v286
      %v554 = vunpack.c.l.b16 %v287
      %v555 = vunpack.c.h.b16 %v287
      %v556 = vunpack.c.l.b16 %v288
      %v557 = vunpack.c.h.b16 %v288
      %v558 = vunpack.c.l.b16 %v289
      %v559 = vunpack.c.h.b16 %v289
      %v560 = vunpack.c.l.b16 %v290
      %v561 = vunpack.c.h.b16 %v290
      %v562 = vunpack.c.l.b16 %v291
      %v563 = vunpack.c.h.b16 %v291
      %v564 = vunpack.c.l.b16 %v292
      %v565 = vunpack.c.h.b16 %v292
      %v566 = vunpack.c.l.b16 %v293
      %v567 = vunpack.c.h.b16 %v293
      %v568 = vunpack.c.l.b16 %v294
      %v569 = vunpack.c.h.b16 %v294
      %v570 = vunpack.c.l.b16 %v295
      %v571 = vunpack.c.h.b16 %v295
      %v572 = vunpack.c.l.b16 %v296
      %v573 = vunpack.c.h.b16 %v296
      %v574 = vunpack.c.l.b16 %v297
      %v575 = vunpack.c.h.b16 %v297
      %v576 = vunpack.c.l.b16 %v298
      %v577 = vunpack.c.h.b16 %v298
      %v578 = vunpack.c.l.b16 %v299
      %v579 = vunpack.c.h.b16 %v299
      %v580 = vunpack.c.l.b16 %v300
      %v581 = vunpack.c.h.b16 %v300
      %v582 = vunpack.c.l.b16 %v301
      %v583 = vunpack.c.h.b16 %v301
      %v584 = vunpack.c.l.b16 %v302
      %v585 = vunpack.c.h.b16 %v302
      %v586 = vunpack.c.l.b16 %v303
      %v587 = vunpack.c.h.b16 %v303
      %v588 = vunpack.c.l.b16 %v304
      %v589 = vunpack.c.h.b16 %v304
      %v590 = vunpack.c.l.b16 %v305
      %v591 = vunpack.c.h.b16 %v305
      %v592 = vpack.c.b16 %v564, %v550
      %v593 = vpack.c.b16 %v565, %v551
      %v594 = vpack.c.b16 %v566, %v552
      %v595 = vpack.c.b16 %v567, %v553
      %v596 = vpack.c.b16 %v568, %v554
      %v597 = vpack.c.b16 %v569, %v555
      %v598 = vpack.c.b16 %v570, %v556
      %v599 = vpack.c.b16 %v571, %v557
      %v600 = vpack.c.b16 %v572, %v558
      %v601 = vpack.c.b16 %v573, %v559
      %v602 = vpack.c.b16 %v574, %v560
      %v603 = vpack.c.b16 %v575, %v561
      %v604 = vpack.c.b16 %v576, %v562
      %v605 = vpack.c.b16 %v577, %v563
      %v606 = vpack.c.b16 %v578, %v578
      %v607 = vpack.c.b16 %v579, %v579
      %v608 = vpack.c.b16 %v580, %v580
      %v609 = vpack.c.b16 %v581, %v581
      %v610 = vpack.c.b16 %v582, %v582
      %v611 = vpack.c.b16 %v583, %v583
      %v612 = vpack.c.b16 %v584, %v584
      %v613 = vpack.c.b16 %v585, %v585
      %v614 = vpack.c.b16 %v586, %v586
      %v615 = vpack.c.b16 %v587, %v587
      %v616 = vpack.c.b16 %v588, %v588
      %v617 = vpack.c.b16 %v589, %v589
      %v618 = vpack.c.b16 %v590, %v590
      %v619 = vpack.c.b16 %v591, %v591
      %v862 = vunpack.c.l.b16 %v306
      %v863 = vunpack.c.l.b16 %v307
      %v864 = vunpack.c.l.b16 %v308
      %v865 = vunpack.c.l.b16 %v309
      %v866 = vunpack.c.l.b16 %v310
      %v867 = vunpack.c.l.b16 %v311
      %v868 = vunpack.c.l.b16 %v312
      %v869 = vunpack.c.l.b16 %v313
      %v870 = vunpack.c.l.b16 %v314
      %v871 = vunpack.c.l.b16 %v315
      %v872 = vunpack.c.l.b16 %v316
      %v873 = vunpack.c.l.b16 %v317
      %v874 = vunpack.c.l.b16 %v318
      %v875 = vunpack.c.l.b16 %v319
      %v876 = vunpack.c.l.b16 %v320
      %v877 = vunpack.c.l.b16 %v321
      %v878 = vunpack.c.l.b16 %v322
      %v879 = vunpack.c.l.b16 %v323
      %v880 = vunpack.c.l.b16 %v324
      %v881 = vunpack.c.l.b16 %v325
      %v882 = vunpack.c.l.b16 %v326
      %v883 = vunpack.c.l.b16 %v327
      %v884 = vunpack.c.l.b16 %v328
      %v885 = vunpack.c.l.b16 %v329
      %v886 = vunpack.c.l.b16 %v330
      %v887 = vunpack.c.l.b16 %v331
      %v888 = vunpack.c.l.b16 %v332
      %v889 = vunpack.c.l.b16 %v333
      %v890 = vunpack.c.l.b16 %v334
      %v891 = vunpack.c.l.b16 %v335
      %v892 = vunpack.c.l.b16 %v336
      %v893 = vunpack.c.l.b16 %v337
      %v894 = vunpack.c.l.b16 %v338
      %v895 = vunpack.c.l.b16 %v339
      %v896 = vunpack.c.l.b16 %v340
      %v897 = vunpack.c.l.b16 %v341
      %v898 = vunpack.c.l.b16 %v342
      %v899 = vunpack.c.l.b16 %v343
      %v900 = vunpack.c.l.b16 %v344
      %v901 = vunpack.c.l.b16 %v345
      %v902 = vunpack.c.l.b16 %v346
      %v903 = vunpack.c.l.b16 %v347
      %v904 = vunpack.c.l.b16 %v348
      %v905 = vunpack.c.l.b16 %v349
      %v906 = vunpack.c.l.b16 %v350
      %v907 = vunpack.c.l.b16 %v351
      %v908 = vunpack.c.l.b16 %v352
      %v909 = vunpack.c.l.b16 %v353
      %v910 = vunpack.c.l.b16 %v354
      %v911 = vunpack.c.l.b16 %v355
      %v912 = vunpack.c.l.b16 %v356
      %v913 = vunpack.c.l.b16 %v357
      %v914 = vunpack.c.l.b16 %v358
      %v915 = vunpack.c.l.b16 %v359
      %v916 = vunpack.c.l.b16 %v360
      %v917 = vunpack.c.l.b16 %v361
      %v918 = vunpack.c.l.b16 %v362
      %v919 = vunpack.c.l.b16 %v363
      %v920 = vunpack.c.l.b16 %v364
      %v921 = vunpack.c.l.b16 %v365
      %v922 = vunpack.c.l.b16 %v366
      %v923 = vunpack.c.l.b16 %v367
      %v924 = vunpack.c.l.b16 %v368
      %v925 = vunpack.c.l.b16 %v369
      %v926 = vunpack.c.l.b16 %v370
      %v927 = vunpack.c.l.b16 %v371
      %v928 = vunpack.c.l.b16 %v372
      %v929 = vunpack.c.l.b16 %v373
      %v930 = vunpack.c.l.b16 %v374
      %v931 = vunpack.c.l.b16 %v375
      %v932 = vunpack.c.l.b16 %v376
      %v933 = vunpack.c.l.b16 %v377
      %v934 = vunpack.c.l.b16 %v378
      %v935 = vunpack.c.l.b16 %v379
      %v936 = vunpack.c.l.b16 %v380
      %v937 = vunpack.c.l.b16 %v381
      %v938 = vunpack.c.l.b16 %v382
      %v939 = vunpack.c.l.b16 %v383
      %v940 = vunpack.c.l.b16 %v384
      %v941 = vunpack.c.l.b16 %v385
      %v942 = vunpack.c.l.b16 %v386
      %v943 = vunpack.c.l.b16 %v387
      %v944 = vunpack.c.l.b16 %v388
      %v945 = vunpack.c.l.b16 %v389
      %v946 = vunpack.c.l.b16 %v390
      %v947 = vunpack.c.l.b16 %v391
      %v948 = vunpack.c.l.b16 %v392
      %v949 = vunpack.c.l.b16 %v393
      %v950 = vunpack.c.l.b16 %v394
      %v951 = vunpack.c.l.b16 %v395
      %v952 = vunpack.c.l.b16 %v396
      %v953 = vunpack.c.l.b16 %v397
      %v954 = vunpack.c.l.b16 %v398
      %v955 = vunpack.c.l.b16 %v399
      %v956 = vunpack.c.l.b16 %v400
      %v957 = vunpack.c.l.b16 %v401
      %v958 = vunpack.c.l.b16 %v402
      %v959 = vunpack.c.l.b16 %v403
      %v960 = vunpack.c.l.b16 %v404
      %v961 = vunpack.c.l.b16 %v405
      %v962 = vunpack.c.l.b16 %v406
      %v963 = vunpack.c.l.b16 %v407
      %v964 = vunpack.c.l.b16 %v408
      %v965 = vunpack.c.l.b16 %v409
      %v966 = vunpack.c.l.b16 %v410
      %v967 = vunpack.c.l.b16 %v411
      %v968 = vunpack.c.l.b16 %v412
      %v969 = vunpack.c.l.b16 %v413
      %v970 = vunpack.c.l.b16 %v414
      %v971 = vunpack.c.l.b16 %v415
      %v972 = vunpack.c.l.b16 %v416
      %v973 = vunpack.c.l.b16 %v417
      %v974 = vunpack.c.l.b16 %v418
      %v975 = vunpack.c.l.b16 %v419
      %v976 = vunpack.c.l.b16 %v420
      %v977 = vunpack.c.l.b16 %v421
      %v978 = vunpack.c.l.b16 %v422
      %v979 = vunpack.c.l.b16 %v423
      %v980 = vunpack.c.l.b16 %v424
      %v981 = vunpack.c.l.b16 %v425
      %v982 = vunpack.c.l.b16 %v426
      %v983 = vunpack.c.l.b16 %v427
      %v984 = vunpack.c.l.b16 %v428
      %v985 = vunpack.c.l.b16 %v429
      %v986 = vunpack.c.l.b16 %v430
      %v987 = vunpack.c.l.b16 %v431
      %v988 = vunpack.c.l.b16 %v432
      %v989 = vunpack.c.l.b16 %v433
      %v990 = vunpack.c.l.b16 %v434
      %v991 = vunpack.c.l.b16 %v435
      %v992 = vunpack.c.l.b16 %v436
      %v993 = vunpack.c.l.b16 %v437
      %v994 = vunpack.c.l.b16 %v438
      %v995 = vunpack.c.l.b16 %v439
      %v996 = vunpack.c.l.b16 %v440
      %v997 = vunpack.c.l.b16 %v441
      %v998 = vunpack.c.l.b16 %v442
      %v999 = vunpack.c.l.b16 %v443
      %v1000 = vunpack.c.l.b16 %v444
      %v1001 = vunpack.c.l.b16 %v445
      %v1002 = vunpack.c.l.b16 %v446
      %v1003 = vunpack.c.l.b16 %v447
      %v1004 = vunpack.c.l.b16 %v448
      %v1005 = vunpack.c.l.b16 %v449
      %v1006 = vunpack.c.l.b16 %v450
      %v1007 = vunpack.c.l.b16 %v451
      %v1008 = vunpack.c.l.b16 %v452
      %v1009 = vunpack.c.l.b16 %v453
      %v1010 = vunpack.c.l.b16 %v454
      %v1011 = vunpack.c.l.b16 %v455
      %v1012 = vunpack.c.l.b16 %v456
      %v1013 = vunpack.c.l.b16 %v457
      %v1014 = vunpack.c.l.b16 %v458
      %v1015 = vunpack.c.l.b16 %v459
      %v1016 = vunpack.c.l.b16 %v460
      %v1017 = vunpack.c.l.b16 %v461
      %v1018 = vunpack.c.l.b16 %v462
      %v1019 = vunpack.c.l.b16 %v463
      %v1020 = vunpack.c.l.b16 %v464
      %v1021 = vunpack.c.l.b16 %v465
      %v1022 = vunpack.c.l.b16 %v466
      %v1023 = vunpack.c.l.b16 %v467
      %v1024 = vunpack.c.l.b16 %v468
      %v1025 = vunpack.c.l.b16 %v469
      %v1026 = vunpack.c.l.b16 %v470
      %v1027 = vunpack.c.l.b16 %v471
      %v1028 = vunpack.c.l.b16 %v472
      %v1029 = vunpack.c.l.b16 %v473
      %v1030 = vunpack.c.l.b16 %v474
      %v1031 = vunpack.c.l.b16 %v475
      %v1032 = vunpack.c.l.b16 %v476
      %v1033 = vunpack.c.l.b16 %v477
      %v1034 = vunpack.c.l.b16 %v478
      %v1035 = vunpack.c.l.b16 %v479
      %v1036 = vunpack.c.l.b16 %v480
      %v1037 = vunpack.c.l.b16 %v481
      %v1038 = vunpack.c.l.b16 %v482
      %v1039 = vunpack.c.l.b16 %v483
      %v1040 = vunpack.c.l.b16 %v484
      %v1041 = vunpack.c.l.b16 %v485
      %v1042 = vunpack.c.l.b16 %v486
      %v1043 = vunpack.c.l.b16 %v487
      %v1044 = vunpack.c.l.b16 %v488
      %v1045 = vunpack.c.l.b16 %v489
      %v1046 = vunpack.c.l.b16 %v490
      %v1047 = vunpack.c.l.b16 %v491
      %v1048 = vunpack.c.l.b16 %v492
      %v1049 = vunpack.c.l.b16 %v493
      %v1050 = vunpack.c.l.b16 %v494
      %v1051 = vunpack.c.l.b16 %v495
      %v1052 = vunpack.c.l.b16 %v496
      %v1053 = vunpack.c.l.b16 %v497
      %v1054 = vunpack.c.l.b16 %v498
      %v1055 = vunpack.c.l.b16 %v499
      %v1056 = vunpack.c.l.b16 %v500
      %v1057 = vunpack.c.l.b16 %v501
      %v1058 = vunpack.c.l.b16 %v502
      %v1059 = vunpack.c.l.b16 %v503
      %v1060 = vunpack.c.l.b16 %v504
      %v1061 = vunpack.c.l.b16 %v505
      %v1062 = vunpack.c.l.b16 %v506
      %v1063 = vunpack.c.l.b16 %v507
      %v1064 = vunpack.c.l.b16 %v508
      %v1065 = vunpack.c.l.b16 %v509
      %v1066 = vunpack.c.l.b16 %v510
      %v1067 = vunpack.c.l.b16 %v511
      %v1068 = vunpack.c.l.b16 %v512
      %v1069 = vunpack.c.l.b16 %v513
      %v1070 = vunpack.c.l.b16 %v514
      %v1071 = vunpack.c.l.b16 %v515
      %v1072 = vunpack.c.l.b16 %v516
      %v1073 = vunpack.c.l.b16 %v517
      %v1074 = vunpack.c.l.b16 %v518
      %v1075 = vunpack.c.l.b16 %v519
      %v1076 = vunpack.c.l.b16 %v520
      %v1077 = vunpack.c.l.b16 %v521
      %v1078 = vpack.c.b16 %v863, %v862
      %v1079 = vpack.c.b16 %v865, %v864
      %v1080 = vpack.c.b16 %v867, %v866
      %v1081 = vpack.c.b16 %v869, %v868
      %v1082 = vpack.c.b16 %v871, %v870
      %v1083 = vpack.c.b16 %v873, %v872
      %v1084 = vpack.c.b16 %v875, %v874
      %v1085 = vpack.c.b16 %v877, %v876
      %v1086 = vpack.c.b16 %v879, %v878
      %v1087 = vpack.c.b16 %v881, %v880
      %v1088 = vpack.c.b16 %v883, %v882
      %v1089 = vpack.c.b16 %v885, %v884
      %v1090 = vpack.c.b16 %v887, %v886
      %v1091 = vpack.c.b16 %v889, %v888
      %v1092 = vpack.c.b16 %v891, %v890
      %v1093 = vpack.c.b16 %v893, %v892
      %v1094 = vpack.c.b16 %v895, %v894
      %v1095 = vpack.c.b16 %v897, %v896
      %v1096 = vpack.c.b16 %v899, %v898
      %v1097 = vpack.c.b16 %v901, %v900
      %v1098 = vpack.c.b16 %v903, %v902
      %v1099 = vpack.c.b16 %v905, %v904
      %v1100 = vpack.c.b16 %v907, %v906
      %v1101 = vpack.c.b16 %v909, %v908
      %v1102 = vpack.c.b16 %v911, %v910
      %v1103 = vpack.c.b16 %v913, %v912
      %v1104 = vpack.c.b16 %v915, %v914
      %v1105 = vpack.c.b16 %v917, %v916
      %v1106 = vpack.c.b16 %v919, %v918
      %v1107 = vpack.c.b16 %v921, %v920
      %v1108 = vpack.c.b16 %v923, %v922
      %v1109 = vpack.c.b16 %v925, %v924
      %v1110 = vpack.c.b16 %v927, %v926
      %v1111 = vpack.c.b16 %v929, %v928
      %v1112 = vpack.c.b16 %v931, %v930
      %v1113 = vpack.c.b16 %v933, %v932
      %v1114 = vpack.c.b16 %v935, %v934
      %v1115 = vpack.c.b16 %v937, %v936
      %v1116 = vpack.c.b16 %v939, %v938
      %v1117 = vpack.c.b16 %v941, %v940
      %v1118 = vpack.c.b16 %v943, %v942
      %v1119 = vpack.c.b16 %v945, %v944
      %v1120 = vpack.c.b16 %v947, %v946
      %v1121 = vpack.c.b16 %v949, %v948
      %v1122 = vpack.c.b16 %v951, %v950
      %v1123 = vpack.c.b16 %v953, %v952
      %v1124 = vpack.c.b16 %v955, %v954
      %v1125 = vpack.c.b16 %v957, %v956
      %v1126 = vpack.c.b16 %v959, %v958
      %v1127 = vpack.c.b16 %v961, %v960
      %v1128 = vpack.c.b16 %v963, %v962
      %v1129 = vpack.c.b16 %v965, %v964
      %v1130 = vpack.c.b16 %v967, %v966
      %v1131 = vpack.c.b16 %v969, %v968
      %v1132 = vpack.c.b16 %v971, %v970
      %v1133 = vpack.c.b16 %v973, %v972
      %v1134 = vpack.c.b16 %v975, %v974
      %v1135 = vpack.c.b16 %v977, %v976
      %v1136 = vpack.c.b16 %v979, %v978
      %v1137 = vpack.c.b16 %v981, %v980
      %v1138 = vpack.c.b16 %v983, %v982
      %v1139 = vpack.c.b16 %v985, %v984
      %v1140 = vpack.c.b16 %v987, %v986
      %v1141 = vpack.c.b16 %v989, %v988
      %v1142 = vpack.c.b16 %v991, %v990
      %v1143 = vpack.c.b16 %v993, %v992
      %v1144 = vpack.c.b16 %v995, %v994
      %v1145 = vpack.c.b16 %v997, %v996
      %v1146 = vpack.c.b16 %v999, %v998
      %v1147 = vpack.c.b16 %v1001, %v1000
      %v1148 = vpack.c.b16 %v1003, %v1002
      %v1149 = vpack.c.b16 %v1005, %v1004
      %v1150 = vpack.c.b16 %v1007, %v1006
      %v1151 = vpack.c.b16 %v1009, %v1008
      %v1152 = vpack.c.b16 %v1011, %v1010
      %v1153 = vpack.c.b16 %v1013, %v1012
      %v1154 = vpack.c.b16 %v1015, %v1014
      %v1155 = vpack.c.b16 %v1017, %v1016
      %v1156 = vpack.c.b16 %v1019, %v1018
      %v1157 = vpack.c.b16 %v1021, %v1020
      %v1158 = vpack.c.b16 %v1023, %v1022
      %v1159 = vpack.c.b16 %v1025, %v1024
      %v1160 = vpack.c.b16 %v1027, %v1026
      %v1161 = vpack.c.b16 %v1029, %v1028
      %v1162 = vpack.c.b16 %v1031, %v1030
      %v1163 = vpack.c.b16 %v1033, %v1032
      %v1164 = vpack.c.b16 %v1035, %v1034
      %v1165 = vpack.c.b16 %v1037, %v1036
      %v1166 = vpack.c.b16 %v1039, %v1038
      %v1167 = vpack.c.b16 %v1041, %v1040
      %v1168 = vpack.c.b16 %v1043, %v1042
      %v1169 = vpack.c.b16 %v1045, %v1044
      %v1170 = vpack.c.b16 %v1047, %v1046
      %v1171 = vpack.c.b16 %v1049, %v1048
      %v1172 = vpack.c.b16 %v1051, %v1050
      %v1173 = vpack.c.b16 %v1053, %v1052
      %v1174 = vpack.c.b16 %v1055, %v1054
      %v1175 = vpack.c.b16 %v1057, %v1056
      %v1176 = vpack.c.b16 %v1059, %v1058
      %v1177 = vpack.c.b16 %v1061, %v1060
      %v1178 = vpack.c.b16 %v1063, %v1062
      %v1179 = vpack.c.b16 %v1065, %v1064
      %v1180 = vpack.c.b16 %v1067, %v1066
      %v1181 = vpack.c.b16 %v1069, %v1068
      %v1182 = vpack.c.b16 %v1071, %v1070
      %v1183 = vpack.c.b16 %v1073, %v1072
      %v1184 = vpack.c.b16 %v1075, %v1074
      %v1185 = vpack.c.b16 %v1077, %v1076
      %vm1294 = vcmask 523264
      %v1296 = vsel %vm1294, %v605, 0
      %v1299 = vsel %vm1294, %v619, 0
      %1301 = vmatprep.subr.bf16.mxu0 0
      %1302 = vmatpush1.bf16.msra.mxu0 %v1078
      %1303 = vmatprep.subr.bf16.mxu0 0
      %1304 = vmatpush1.bf16.msra.mxu0 %v1079
      %1305 = vmatprep.subr.bf16.mxu0 0
      %1306 = vmatpush1.bf16.msra.mxu0 %v1080
      %1307 = vmatprep.subr.bf16.mxu0 0
      %1308 = vmatpush1.bf16.msra.mxu0 %v1081
      %1309 = vmatprep.subr.bf16.mxu0 0
      %1310 = vmatpush1.bf16.msra.mxu0 %v1082
      %1311 = vmatprep.subr.bf16.mxu0 0
      %1312 = vmatpush1.bf16.msra.mxu0 %v1083
      %1313 = vmatprep.subr.bf16.mxu0 0
      %1314 = vmatpush1.bf16.msra.mxu0 %v1084
      %1315 = vmatprep.subr.bf16.mxu0 0
      %1316 = vmatpush1.bf16.msra.mxu0 %v1085
      %1317 = vmatprep.subr.bf16.mxu0 0
      %1318 = vmatpush1.bf16.msra.mxu0 %v1086
      %1319 = vmatprep.subr.bf16.mxu0 0
      %1320 = vmatpush1.bf16.msra.mxu0 %v1087
      %1321 = vmatprep.subr.bf16.mxu0 0
      %1322 = vmatpush1.bf16.msra.mxu0 %v1088
      %1323 = vmatprep.subr.bf16.mxu0 0
      %1324 = vmatpush1.bf16.msra.mxu0 %v1089
      %1325 = vmatprep.subr.bf16.mxu0 0
      %1326 = vmatpush1.bf16.msra.mxu0 %v1090
      %1327 = vmatprep.subr.bf16.mxu0 0
      %1328 = vmatpush1.bf16.msra.mxu0 %v1091
      %1329 = vmatprep.subr.bf16.mxu0 0
      %1330 = vmatpush1.bf16.msra.mxu0 %v1092
      %1331 = vmatprep.subr.bf16.mxu0 0
      %1332 = vmatpush1.bf16.msra.mxu0 %v1093
      %1333 = vmatprep.mubr.bf16.mxu0 %v593
      %1334 = vmatmul.mubr.bf16.gmra.mrb[0].mxu0 %v592
      %v1335 = vpop.f32.mrb[0].mxu0
      %v1336 = vadd.f32 %v527, %v1335
      %v1337 = vpop.f32.mrb[0].mxu0
      %v1338 = vpop.f32.mrb[0].mxu0
      %v1339 = vadd.f32 %v527, %v1338
      %v1340 = vpop.f32.mrb[0].mxu0
      %1341 = vmatprep.mubr.bf16.mxu0 %v607
      %1342 = vmatmul.mubr.bf16.gmra.mrb[0].mxu0 %v606
      %v1343 = vpop.f32.mrb[0].mxu0
      %v1344 = vadd.f32 %v527, %v1343
      %v1345 = vpop.f32.mrb[0].mxu0
      %v1346 = vpop.f32.mrb[0].mxu0
      %v1347 = vpop.f32.mrb[0].mxu0
      %1348 = vdwg.mxu0
      %1349 = vmatprep.subr.bf16.mxu0 0
      %1350 = vmatpush1.bf16.msra.mxu0 %v1094
      %1351 = vmatprep.subr.bf16.mxu0 0
      %1352 = vmatpush1.bf16.msra.mxu0 %v1095
      %1353 = vmatprep.subr.bf16.mxu0 0
      %1354 = vmatpush1.bf16.msra.mxu0 %v1096
      %1355 = vmatprep.subr.bf16.mxu0 0
      %1356 = vmatpush1.bf16.msra.mxu0 %v1097
      %1357 = vmatprep.subr.bf16.mxu0 0
      %1358 = vmatpush1.bf16.msra.mxu0 %v1098
      %1359 = vmatprep.subr.bf16.mxu0 0
      %1360 = vmatpush1.bf16.msra.mxu0 %v1099
      %1361 = vmatprep.subr.bf16.mxu0 0
      %1362 = vmatpush1.bf16.msra.mxu0 %v1100
      %1363 = vmatprep.subr.bf16.mxu0 0
      %1364 = vmatpush1.bf16.msra.mxu0 %v1101
      %1365 = vmatprep.subr.bf16.mxu0 0
      %1366 = vmatpush1.bf16.msra.mxu0 %v1102
      %1367 = vmatprep.subr.bf16.mxu0 0
      %1368 = vmatpush1.bf16.msra.mxu0 %v1103
      %1369 = vmatprep.subr.bf16.mxu0 0
      %1370 = vmatpush1.bf16.msra.mxu0 %v1104
      %1371 = vmatprep.subr.bf16.mxu0 0
      %1372 = vmatpush1.bf16.msra.mxu0 %v1105
      %1373 = vmatprep.subr.bf16.mxu0 0
      %1374 = vmatpush1.bf16.msra.mxu0 %v1106
      %1375 = vmatprep.subr.bf16.mxu0 0
      %1376 = vmatpush1.bf16.msra.mxu0 %v1107
      %1377 = vmatprep.subr.bf16.mxu0 0
      %1378 = vmatpush1.bf16.msra.mxu0 %v1108
      %1379 = vmatprep.subr.bf16.mxu0 0
      %1380 = vmatpush1.bf16.msra.mxu0 %v1109
      %1381 = vmatprep.mubr.bf16.mxu0 %v595
      %1382 = vmatmul.mubr.bf16.gmra.mrb[0].mxu0 %v594
      %v1383 = vpop.f32.mrb[0].mxu0
      %v1384 = vadd.f32 %v1336, %v1383
      %v1385 = vpop.f32.mrb[0].mxu0
      %v1386 = vpop.f32.mrb[0].mxu0
      %v1387 = vadd.f32 %v1339, %v1386
      %v1388 = vpop.f32.mrb[0].mxu0
      %1389 = vmatprep.mubr.bf16.mxu0 %v609
      %1390 = vmatmul.mubr.bf16.gmra.mrb[0].mxu0 %v608
      %v1391 = vpop.f32.mrb[0].mxu0
      %v1392 = vadd.f32 %v1344, %v1391
      %v1393 = vpop.f32.mrb[0].mxu0
      %v1394 = vpop.f32.mrb[0].mxu0
      %v1395 = vpop.f32.mrb[0].mxu0
      %1396 = vdwg.mxu0
      %1397 = vmatprep.subr.bf16.mxu0 0
      %1398 = vmatpush1.bf16.msra.mxu0 %v1110
      %1399 = vmatprep.subr.bf16.mxu0 0
      %1400 = vmatpush1.bf16.msra.mxu0 %v1111
      %1401 = vmatprep.subr.bf16.mxu0 0
      %1402 = vmatpush1.bf16.msra.mxu0 %v1112
      %1403 = vmatprep.subr.bf16.mxu0 0
      %1404 = vmatpush1.bf16.msra.mxu0 %v1113
      %1405 = vmatprep.subr.bf16.mxu0 0
      %1406 = vmatpush1.bf16.msra.mxu0 %v1114
      %1407 = vmatprep.subr.bf16.mxu0 0
      %1408 = vmatpush1.bf16.msra.mxu0 %v1115
      %1409 = vmatprep.subr.bf16.mxu0 0
      %1410 = vmatpush1.bf16.msra.mxu0 %v1116
      %1411 = vmatprep.subr.bf16.mxu0 0
      %1412 = vmatpush1.bf16.msra.mxu0 %v1117
      %1413 = vmatprep.subr.bf16.mxu0 0
      %1414 = vmatpush1.bf16.msra.mxu0 %v1118
      %1415 = vmatprep.subr.bf16.mxu0 0
      %1416 = vmatpush1.bf16.msra.mxu0 %v1119
      %1417 = vmatprep.subr.bf16.mxu0 0
      %1418 = vmatpush1.bf16.msra.mxu0 %v1120
      %1419 = vmatprep.subr.bf16.mxu0 0
      %1420 = vmatpush1.bf16.msra.mxu0 %v1121
      %1421 = vmatprep.subr.bf16.mxu0 0
      %1422 = vmatpush1.bf16.msra.mxu0 %v1122
      %1423 = vmatprep.subr.bf16.mxu0 0
      %1424 = vmatpush1.bf16.msra.mxu0 %v1123
      %1425 = vmatprep.subr.bf16.mxu0 0
      %1426 = vmatpush1.bf16.msra.mxu0 %v1124
      %1427 = vmatprep.subr.bf16.mxu0 0
      %1428 = vmatpush1.bf16.msra.mxu0 %v1125
      %1429 = vmatprep.mubr.bf16.mxu0 %v597
      %1430 = vmatmul.mubr.bf16.gmra.mrb[0].mxu0 %v596
      %v1431 = vpop.f32.mrb[0].mxu0
      %v1432 = vadd.f32 %v1384, %v1431
      %v1433 = vpop.f32.mrb[0].mxu0
      %v1434 = vpop.f32.mrb[0].mxu0
      %v1435 = vadd.f32 %v1387, %v1434
      %v1436 = vpop.f32.mrb[0].mxu0
      %1437 = vmatprep.mubr.bf16.mxu0 %v611
      %1438 = vmatmul.mubr.bf16.gmra.mrb[0].mxu0 %v610
      %v1439 = vpop.f32.mrb[0].mxu0
      %v1440 = vadd.f32 %v1392, %v1439
      %v1441 = vpop.f32.mrb[0].mxu0
      %v1442 = vpop.f32.mrb[0].mxu0
      %v1443 = vpop.f32.mrb[0].mxu0
      %1444 = vdwg.mxu0
      %1445 = vmatprep.subr.bf16.mxu0 0
      %1446 = vmatpush1.bf16.msra.mxu0 %v1126
      %1447 = vmatprep.subr.bf16.mxu0 0
      %1448 = vmatpush1.bf16.msra.mxu0 %v1127
      %1449 = vmatprep.subr.bf16.mxu0 0
      %1450 = vmatpush1.bf16.msra.mxu0 %v1128
      %1451 = vmatprep.subr.bf16.mxu0 0
      %1452 = vmatpush1.bf16.msra.mxu0 %v1129
      %1453 = vmatprep.subr.bf16.mxu0 0
      %1454 = vmatpush1.bf16.msra.mxu0 %v1130
      %1455 = vmatprep.subr.bf16.mxu0 0
      %1456 = vmatpush1.bf16.msra.mxu0 %v1131
      %1457 = vmatprep.subr.bf16.mxu0 0
      %1458 = vmatpush1.bf16.msra.mxu0 %v1132
      %1459 = vmatprep.subr.bf16.mxu0 0
      %1460 = vmatpush1.bf16.msra.mxu0 %v1133
      %1461 = vmatprep.subr.bf16.mxu0 0
      %1462 = vmatpush1.bf16.msra.mxu0 %v1134
      %1463 = vmatprep.subr.bf16.mxu0 0
      %1464 = vmatpush1.bf16.msra.mxu0 %v1135
      %1465 = vmatprep.subr.bf16.mxu0 0
      %1466 = vmatpush1.bf16.msra.mxu0 %v1136
      %1467 = vmatprep.subr.bf16.mxu0 0
      %1468 = vmatpush1.bf16.msra.mxu0 %v1137
      %1469 = vmatprep.subr.bf16.mxu0 0
      %1470 = vmatpush1.bf16.msra.mxu0 %v1138
      %1471 = vmatprep.subr.bf16.mxu0 0
      %1472 = vmatpush1.bf16.msra.mxu0 %v1139
      %1473 = vmatprep.subr.bf16.mxu0 0
      %1474 = vmatpush1.bf16.msra.mxu0 %v1140
      %1475 = vmatprep.subr.bf16.mxu0 0
      %1476 = vmatpush1.bf16.msra.mxu0 %v1141
      %1477 = vmatprep.mubr.bf16.mxu0 %v599
      %1478 = vmatmul.mubr.bf16.gmra.mrb[0].mxu0 %v598
      %v1479 = vpop.f32.mrb[0].mxu0
      %v1480 = vadd.f32 %v1432, %v1479
      %v1481 = vpop.f32.mrb[0].mxu0
      %v1482 = vpop.f32.mrb[0].mxu0
      %v1483 = vadd.f32 %v1435, %v1482
      %v1484 = vpop.f32.mrb[0].mxu0
      %1485 = vmatprep.mubr.bf16.mxu0 %v613
      %1486 = vmatmul.mubr.bf16.gmra.mrb[0].mxu0 %v612
      %v1487 = vpop.f32.mrb[0].mxu0
      %v1488 = vadd.f32 %v1440, %v1487
      %v1489 = vpop.f32.mrb[0].mxu0
      %v1490 = vpop.f32.mrb[0].mxu0
      %v1491 = vpop.f32.mrb[0].mxu0
      %1492 = vdwg.mxu0
      %1493 = vmatprep.subr.bf16.mxu0 0
      %1494 = vmatpush1.bf16.msra.mxu0 %v1142
      %1495 = vmatprep.subr.bf16.mxu0 0
      %1496 = vmatpush1.bf16.msra.mxu0 %v1143
      %1497 = vmatprep.subr.bf16.mxu0 0
      %1498 = vmatpush1.bf16.msra.mxu0 %v1144
      %1499 = vmatprep.subr.bf16.mxu0 0
      %1500 = vmatpush1.bf16.msra.mxu0 %v1145
      %1501 = vmatprep.subr.bf16.mxu0 0
      %1502 = vmatpush1.bf16.msra.mxu0 %v1146
      %1503 = vmatprep.subr.bf16.mxu0 0
      %1504 = vmatpush1.bf16.msra.mxu0 %v1147
      %1505 = vmatprep.subr.bf16.mxu0 0
      %1506 = vmatpush1.bf16.msra.mxu0 %v1148
      %1507 = vmatprep.subr.bf16.mxu0 0
      %1508 = vmatpush1.bf16.msra.mxu0 %v1149
      %1509 = vmatprep.subr.bf16.mxu0 0
      %1510 = vmatpush1.bf16.msra.mxu0 %v1150
      %1511 = vmatprep.subr.bf16.mxu0 0
      %1512 = vmatpush1.bf16.msra.mxu0 %v1151
      %1513 = vmatprep.subr.bf16.mxu0 0
      %1514 = vmatpush1.bf16.msra.mxu0 %v1152
      %1515 = vmatprep.subr.bf16.mxu0 0
      %1516 = vmatpush1.bf16.msra.mxu0 %v1153
      %1517 = vmatprep.subr.bf16.mxu0 0
      %1518 = vmatpush1.bf16.msra.mxu0 %v1154
      %1519 = vmatprep.subr.bf16.mxu0 0
      %1520 = vmatpush1.bf16.msra.mxu0 %v1155
      %1521 = vmatprep.subr.bf16.mxu0 0
      %1522 = vmatpush1.bf16.msra.mxu0 %v1156
      %1523 = vmatprep.subr.bf16.mxu0 0
      %1524 = vmatpush1.bf16.msra.mxu0 %v1157
      %1525 = vmatprep.mubr.bf16.mxu0 %v601
      %1526 = vmatmul.mubr.bf16.gmra.mrb[0].mxu0 %v600
      %v1527 = vpop.f32.mrb[0].mxu0
      %v1528 = vadd.f32 %v1480, %v1527
      %v1529 = vpop.f32.mrb[0].mxu0
      %v1530 = vpop.f32.mrb[0].mxu0
      %v1531 = vadd.f32 %v1483, %v1530
      %v1532 = vpop.f32.mrb[0].mxu0
      %1533 = vmatprep.mubr.bf16.mxu0 %v615
      %1534 = vmatmul.mubr.bf16.gmra.mrb[0].mxu0 %v614
      %v1535 = vpop.f32.mrb[0].mxu0
      %v1536 = vadd.f32 %v1488, %v1535
      %v1537 = vpop.f32.mrb[0].mxu0
      %v1538 = vpop.f32.mrb[0].mxu0
      %v1539 = vpop.f32.mrb[0].mxu0
      %1540 = vdwg.mxu0
      %1541 = vmatprep.subr.bf16.mxu0 0
      %1542 = vmatpush1.bf16.msra.mxu0 %v1158
      %1543 = vmatprep.subr.bf16.mxu0 0
      %1544 = vmatpush1.bf16.msra.mxu0 %v1159
      %1545 = vmatprep.subr.bf16.mxu0 0
      %1546 = vmatpush1.bf16.msra.mxu0 %v1160
      %1547 = vmatprep.subr.bf16.mxu0 0
      %1548 = vmatpush1.bf16.msra.mxu0 %v1161
      %1549 = vmatprep.subr.bf16.mxu0 0
      %1550 = vmatpush1.bf16.msra.mxu0 %v1162
      %1551 = vmatprep.subr.bf16.mxu0 0
      %1552 = vmatpush1.bf16.msra.mxu0 %v1163
      %1553 = vmatprep.subr.bf16.mxu0 0
      %1554 = vmatpush1.bf16.msra.mxu0 %v1164
      %1555 = vmatprep.subr.bf16.mxu0 0
      %1556 = vmatpush1.bf16.msra.mxu0 %v1165
      %1557 = vmatprep.subr.bf16.mxu0 0
      %1558 = vmatpush1.bf16.msra.mxu0 %v1166
      %1559 = vmatprep.subr.bf16.mxu0 0
      %1560 = vmatpush1.bf16.msra.mxu0 %v1167
      %1561 = vmatprep.subr.bf16.mxu0 0
      %1562 = vmatpush1.bf16.msra.mxu0 %v1168
      %1563 = vmatprep.subr.bf16.mxu0 0
      %1564 = vmatpush1.bf16.msra.mxu0 %v1169
      %1565 = vmatprep.subr.bf16.mxu0 0
      %1566 = vmatpush1.bf16.msra.mxu0 %v1170
      %1567 = vmatprep.subr.bf16.mxu0 0
      %1568 = vmatpush1.bf16.msra.mxu0 %v1171
      %1569 = vmatprep.subr.bf16.mxu0 0
      %1570 = vmatpush1.bf16.msra.mxu0 %v1172
      %1571 = vmatprep.subr.bf16.mxu0 0
      %1572 = vmatpush1.bf16.msra.mxu0 %v1173
      %1573 = vmatprep.mubr.bf16.mxu0 %v603
      %1574 = vmatmul.mubr.bf16.gmra.mrb[0].mxu0 %v602
      %v1575 = vpop.f32.mrb[0].mxu0
      %v1576 = vadd.f32 %v1528, %v1575
      %v1577 = vpop.f32.mrb[0].mxu0
      %v1578 = vpop.f32.mrb[0].mxu0
      %v1579 = vadd.f32 %v1531, %v1578
      %v1580 = vpop.f32.mrb[0].mxu0
      %1581 = vmatprep.mubr.bf16.mxu0 %v617
      %1582 = vmatmul.mubr.bf16.gmra.mrb[0].mxu0 %v616
      %v1583 = vpop.f32.mrb[0].mxu0
      %v1584 = vadd.f32 %v1536, %v1583
      %v1585 = vpop.f32.mrb[0].mxu0
      %v1586 = vpop.f32.mrb[0].mxu0
      %v1587 = vpop.f32.mrb[0].mxu0
      %1588 = vdwg.mxu0
      %1589 = vmatprep.subr.bf16.mxu0 0
      %1590 = vmatpush1.bf16.msra.mxu0 %v1174
      %1591 = vmatprep.subr.bf16.mxu0 0
      %1592 = vmatpush1.bf16.msra.mxu0 %v1175
      %1593 = vmatprep.subr.bf16.mxu0 0
      %1594 = vmatpush1.bf16.msra.mxu0 %v1176
      %1595 = vmatprep.subr.bf16.mxu0 0
      %1596 = vmatpush1.bf16.msra.mxu0 %v1177
      %1597 = vmatprep.subr.bf16.mxu0 0
      %1598 = vmatpush1.bf16.msra.mxu0 %v1178
      %1599 = vmatprep.subr.bf16.mxu0 0
      %1600 = vmatpush1.bf16.msra.mxu0 %v1179
      %1601 = vmatprep.subr.bf16.mxu0 0
      %1602 = vmatpush1.bf16.msra.mxu0 %v1180
      %1603 = vmatprep.subr.bf16.mxu0 0
      %1604 = vmatpush1.bf16.msra.mxu0 %v1181
      %1605 = vmatprep.subr.bf16.mxu0 0
      %1606 = vmatpush1.bf16.msra.mxu0 %v1182
      %1607 = vmatprep.subr.bf16.mxu0 0
      %1608 = vmatpush1.bf16.msra.mxu0 %v1183
      %1609 = vmatprep.subr.bf16.mxu0 0
      %1610 = vmatpush1.bf16.msra.mxu0 %v1184
      %1611 = vmatprep.subr.bf16.mxu0 0
      %1612 = vmatpush1.bf16.msra.mxu0 %v1185
      %1613 = vmatprep.subr.bf16.mxu0 0
      %1614 = vmatpush1.bf16.msra.mxu0 0
      %1615 = vmatprep.subr.bf16.mxu0 0
      %1616 = vmatpush1.bf16.msra.mxu0 0
      %1617 = vmatprep.subr.bf16.mxu0 0
      %1618 = vmatpush1.bf16.msra.mxu0 0
      %1619 = vmatprep.subr.bf16.mxu0 0
      %1620 = vmatpush1.bf16.msra.mxu0 0
      %1621 = vmatprep.mubr.bf16.mxu0 %v1296
      %1622 = vmatmul.mubr.bf16.gmra.mrb[0].mxu0 %v604
      %v1623 = vpop.f32.mrb[0].mxu0
      %v1624 = vadd.f32 %v1576, %v1623
      %v1625 = vpop.f32.mrb[0].mxu0
      %v1626 = vpop.f32.mrb[0].mxu0
      %v1627 = vadd.f32 %v1579, %v1626
      %v1628 = vpop.f32.mrb[0].mxu0
      %1629 = vmatprep.mubr.bf16.mxu0 %v1299
      %1630 = vmatmul.mubr.bf16.gmra.mrb[0].mxu0 %v618
      %v1631 = vpop.f32.mrb[0].mxu0
      %v1632 = vadd.f32 %v1584, %v1631
      %v1633 = vpop.f32.mrb[0].mxu0
      %v1634 = vpop.f32.mrb[0].mxu0
      %v1635 = vpop.f32.mrb[0].mxu0
      %1636 = vdwg.mxu0
      %v1637 = vpack.c.bf16 %v1627, %v1624
      %v1638 = vpack.c.bf16 %v1632, %v1632
      %v1641 = vunpack.c.l.b16 %v1637
      %v1642 = vunpack.c.h.b16 %v1637
      %v1643 = vunpack.c.l.b16 %v1638
      %v1644 = vpack.c.b16 %v1641, %v1641
      %v1645 = vpack.c.b16 %v1642, %v1642
      %v1646 = vpack.c.b16 %v1643, %v1643
      %1650 = vst [vmem:[%s282] sm:$0xf] %v1644
      %1651 = vst [vmem:[%s282 + $0x4] sm:$0xf] %v1645
      %1652 = vst [vmem:[%s282 + $0x8] sm:$0x1] %v1646
      %s1653 = smul.u32 3, %s20
      %p1654 = scmp.lt.s32.totalorder %s19, 1
      %s1655 = scalar_select %p1654, %s19, 1
      %p1656 = scmp.lt.s32.totalorder %s1653, 2
      %s1657 = scalar_select %p1656, %s1653, 2
      %p1658 = scmp.lt.s32.totalorder %s21, 0
      %s1659 = scalar_select %p1658, %s21, 0
      %s1660 = sadd.s32 %s1659, %s1657
      %s1661 = smul.addr %s1655, 3
      %s1662 = sadd.s32 %s1660, %s1661
      %s1663 = smul.addr %s1662, 4
      %s1664 = scalar_lea.vmem %s3, %s1663
      // Predicated region
      $region33: #{alexnet_forward.13} parent=31 // pred_check
        %p1665 = pneg %p139
      $region34: #{alexnet_forward.13} parent=31 // pred_check_branch
        %1667 = sbr.rel (%p1665) target = $region36
      $region35: #{alexnet_forward.13} parent=31 // pred_region
        %s1668 = smul.u32 3, %s20
      $region36: #{alexnet_forward.13} parent=31 // pred_fallthru
        _
    $region32: #{alexnet_forward.13} parent=5 // pred_fallthru
      _
    %p1669 = scmp.le.s32.totalorder 2, %s9
    // Predicated region
    $region37: #{alexnet_forward.13} parent=5 // pred_check
      %p1670 = pneg %p1669
    $region38: #{alexnet_forward.13} parent=5 // pred_check_branch
      %1672 = sbr.rel (%p1670) target = $region40
    $region39: #{alexnet_forward.13} parent=5 // pred_region
      %s1673 = ssub.s32 %s9, 2
      // Predicated region
      $region41: #{alexnet_forward.13} parent=39 // pred_check
        %p1674 = pneg %p145
      $region42: #{alexnet_forward.13} parent=39 // pred_check_branch
        %1676 = sbr.rel (%p1674) target = $region44
      $region43: #{alexnet_forward.13} parent=39 // pred_region
        %s1677 = smul.u32 3, %s23
        %p1678 = scmp.lt.s32.totalorder %s22, 1
        %s1679 = scalar_select %p1678, %s22, 1
        %p1680 = scmp.lt.s32.totalorder %s1677, 2
        %s1681 = scalar_select %p1680, %s1677, 2
        %p1682 = scmp.lt.s32.totalorder %s24, 0
        %s1683 = scalar_select %p1682, %s24, 0
        %s1684 = sadd.s32 %s1683, %s1681
        %s1685 = smul.addr %s1679, 3
        %s1686 = sadd.s32 %s1684, %s1685
        %s1687 = smul.addr %s1686, 4
        %s1688 = scalar_lea.vmem %s3, %s1687
      $region44: #{alexnet_forward.13} parent=39 // pred_fallthru
        _
    $region40: #{alexnet_forward.13} parent=5 // pred_fallthru
      _
  $region6: #{alexnet_forward.13} parent=0 // loop_footer
    %s13 = sadd.s32 1, %s9
  $region7: #{alexnet_forward.13} parent=0 // loop_footer_branch
    %8 = sbr.rel target = $region3
  $region8: #{alexnet_forward.13} parent=0 // loop_exit
    _

</llo_original>
